<compile_context>
chip_gen: v7x
topology: tpu7x:2x2x1
jax: 0.10.0
libtpu: 0.0.40
codegen_flags: <defaults>
</compile_context>

<pallas_src>
import functools

import jax
import jax.numpy as jnp
from jax import lax
from jax.experimental import pallas as pl
from jax.experimental.pallas import tpu as pltpu

# TODO(synk): DFTVAEDense.forward also calls the DenseVAE decoder before the DFT
# model, but as written it feeds a 2-D (B, input_size) tensor straight into
# Conv1d (ill-formed for generic shapes in PyTorch); we implement the working
# DFT path (functional / fit_dft_step), i.e. Pilati_model_5_layer's forward.


def _build_fused_forward(B, Cin0, L, Chid, K, pad, n_layers, H1, out_dtype):
    Lp = L + 2 * pad              # per-batch padded length
    G = B * Lp                    # all batch segments side by side (lane axis)
    Gv = G - 2 * pad              # matmul width covering every needed column
    Cmax = max(Cin0, Chid)
    cins = [Cin0] + [Chid] * (n_layers - 1)

    def kernel(*args):
        x_ref = args[0]                                   # (B, Cin0, L)
        cw = args[1:1 + n_layers]                         # (K, Chid, Cin_l)
        cb = args[1 + n_layers:1 + 2 * n_layers]          # (Chid, 1)
        w1_ref, b1_ref, w2_ref, b2_ref = args[1 + 2 * n_layers:1 + 2 * n_layers + 4]
        o_ref = args[1 + 2 * n_layers + 4]                # (B, 1)
        xpad, act = args[1 + 2 * n_layers + 5:]           # scratch

        # Zero halos once; they stay zero (padding_mode='zeros') for all layers.
        xpad[...] = jnp.zeros(xpad.shape, xpad.dtype)
        for b in range(B):
            xpad[pl.ds(0, Cin0), pl.ds(b * Lp + pad, L)] = (
                x_ref[b].astype(jnp.float32))

        # --- 5 x (Conv1d + ReLU), batch folded onto lanes -------------------
        for layer in range(n_layers):
            cin = cins[layer]
            w_ref, b_ref = cw[layer], cb[layer]
            acc = jnp.zeros((Chid, Gv), jnp.float32)
            for k in range(K):        # K static shifted slabs of the padded input
                acc = acc + jnp.dot(
                    w_ref[k], xpad[pl.ds(0, cin), pl.ds(k, Gv)],
                    preferred_element_type=jnp.float32)
            y = jnp.maximum(acc + b_ref[...], 0.0)
            if layer + 1 < n_layers:
                for b in range(B):    # write valid columns back under the halos
                    xpad[pl.ds(0, Chid), pl.ds(b * Lp + pad, L)] = (
                        y[:, b * Lp:b * Lp + L])
            else:
                for b in range(B):    # last layer -> (B, C, L) for the dense head
                    act[b, :, :] = y[:, b * Lp:b * Lp + L]

        # --- Flatten (channel-major, implicit) + Linear(F, H1) + ReLU -------
        h = jnp.zeros((B, H1), jnp.float32)
        for c in range(Chid):
            a_c = act[:, c, :]            # (B, L)   lane-dense
            w_c = w1_ref[:, c, :]         # (H1, L)  lane-dense
            h = h + lax.dot_general(
                a_c, w_c, (((1,), (1,)), ((), ())),
                preferred_element_type=jnp.float32)
        h = jnp.maximum(h + b1_ref[...], 0.0)

        # --- Linear(H1, 1) ---------------------------------------------------
        out = jnp.dot(h, w2_ref[...], preferred_element_type=jnp.float32)
        o_ref[...] = (out + b2_ref[...]).astype(o_ref.dtype)

    n_in = 1 + 2 * n_layers + 4
    flops = (sum(2 * Chid * c * K * B * L for c in cins)
             + 2 * B * Chid * L * H1 + 2 * B * H1)
    bytes_accessed = 4 * (B * Cin0 * L
                          + sum(Chid * c * K + Chid for c in cins)
                          + Chid * L * H1 + H1 + H1 + 1 + B)

    return pl.pallas_call(
        kernel,
        out_shape=jax.ShapeDtypeStruct((B, 1), out_dtype),
        in_specs=[pl.BlockSpec(memory_space=pltpu.MemorySpace.VMEM)] * n_in,
        out_specs=pl.BlockSpec(memory_space=pltpu.MemorySpace.VMEM),
        scratch_shapes=[
            pltpu.VMEM((Cmax, G), jnp.float32),     # padded activations, all batches
            pltpu.VMEM((B, Chid, L), jnp.float32),  # last conv output, (B, C, L)
        ],
        cost_estimate=pl.CostEstimate(flops=flops, transcendentals=0,
                                      bytes_accessed=bytes_accessed),
    )


@functools.partial(jax.jit, static_argnums=(2,))
def dft_forward(x_ncl, params, padding):
    """x_ncl: (B, Cin, L) in PyTorch NCL layout. Returns (B, 1)."""
    B, Cin0, L = x_ncl.shape
    convs = params["convs"]
    n_layers = len(convs)
    Chid, _, K = convs[0][0].shape
    H1, F = params["w1"].shape                     # torch Linear layout (out, in)
    assert F == Chid * L, "final_dense expects hidden_channel * 256 features"

    conv_w = [jnp.transpose(w, (2, 0, 1)) for (w, _) in convs]   # (K, Cout, Cin)
    conv_b = [b.reshape(Chid, 1) for (_, b) in convs]
    w1_3d = params["w1"].reshape(H1, Chid, L)      # (H1, C, L), lane-dense
    b1_2d = params["b1"].reshape(1, H1)
    w2_t = params["w2"].reshape(1, H1).T           # (H1, 1)
    b2_2d = params["b2"].reshape(1, 1)

    fused = _build_fused_forward(B, Cin0, L, Chid, K, padding, n_layers, H1,
                                 x_ncl.dtype)
    return fused(x_ncl, *conv_w, *conv_b, w1_3d, b1_2d, w2_t, b2_2d)


# ----------------------------- Reference (plain JAX) -----------------------------
def dft_forward_ref(x_ncl, params, padding):
    h = x_ncl
    for (w, b) in params["convs"]:
        h = jax.lax.conv_general_dilated(
            h, w, window_strides=(1,), padding=[(padding, padding)],
            dimension_numbers=("NCH", "OIH", "NCH"),
        ) + b.reshape(1, -1, 1)
        h = jnp.maximum(h, 0.0)
    B = h.shape[0]
    flat = h.reshape(B, -1)                          # torch Flatten: channel-major
    z = jnp.maximum(flat @ params["w1"].T + params["b1"], 0.0)
    return z @ params["w2"].T + params["b2"].reshape(1, 1)


if __name__ == "__main__":
    # The final Linear hard-codes hidden_channel * 256 input features, so L=256.
    B, Cin, Chid, L = 2, 4, 8, 256
    K, PAD = 3, 1              # 'same' conv, padding_mode='zeros', activation=ReLU

    key = jax.random.PRNGKey(0)
    keys = jax.random.split(key, 16)

    convs = []
    cin = Cin
    for i in range(5):
        w = 0.1 * jax.random.normal(keys[i], (Chid, cin, K), dtype=jnp.float32)
        b = 0.1 * jax.random.normal(keys[5 + i], (Chid,), dtype=jnp.float32)
        convs.append((w, b))
        cin = Chid

    F = Chid * 256
    params = {
        "convs": convs,
        # torch nn.Linear weight layout: (out_features, in_features)
        "w1": 0.05 * jax.random.normal(keys[10], (20, F), dtype=jnp.float32),
        "b1": 0.05 * jax.random.normal(keys[11], (20,), dtype=jnp.float32),
        "w2": 0.05 * jax.random.normal(keys[12], (1, 20), dtype=jnp.float32),
        "b2": 0.05 * jax.random.normal(keys[13], (1,), dtype=jnp.float32),
    }

    x = jax.random.normal(keys[14], (B, Cin, L), dtype=jnp.float32)  # NCL layout

    out = jax.block_until_ready(dft_forward(x, params, PAD))
    ref = jax.block_until_ready(dft_forward_ref(x, params, PAD))

    assert out.shape == (B, 1), out.shape
    assert jnp.allclose(out, ref, rtol=1e-4, atol=1e-4), (out, ref)
    print("KERNEL_OK")
</pallas_src>

<mosaic_0001>
module attributes {stable_mosaic.version = 11 : i64} {
  func.func @kernel(%arg0: memref<2x4x256xf32, #tpu.memory_space<vmem>>, %arg1: memref<3x8x4xf32, #tpu.memory_space<vmem>>, %arg2: memref<3x8x8xf32, #tpu.memory_space<vmem>>, %arg3: memref<3x8x8xf32, #tpu.memory_space<vmem>>, %arg4: memref<3x8x8xf32, #tpu.memory_space<vmem>>, %arg5: memref<3x8x8xf32, #tpu.memory_space<vmem>>, %arg6: memref<8x1xf32, #tpu.memory_space<vmem>>, %arg7: memref<8x1xf32, #tpu.memory_space<vmem>>, %arg8: memref<8x1xf32, #tpu.memory_space<vmem>>, %arg9: memref<8x1xf32, #tpu.memory_space<vmem>>, %arg10: memref<8x1xf32, #tpu.memory_space<vmem>>, %arg11: memref<20x8x256xf32, #tpu.memory_space<vmem>>, %arg12: memref<1x20xf32, #tpu.memory_space<vmem>>, %arg13: memref<20x1xf32, #tpu.memory_space<vmem>>, %arg14: memref<1x1xf32, #tpu.memory_space<vmem>>, %arg15: memref<2x1xf32, #tpu.memory_space<vmem>>, %arg16: memref<8x516xf32, #tpu.memory_space<vmem>>, %arg17: memref<2x8x256xf32, #tpu.memory_space<vmem>>) attributes {dimension_semantics = [], scalar_prefetch = 0 : i64, scratch_operands = 2 : i64, tpu.core_type = #tpu.core_type<tc>} {
    %cst = arith.constant 0.000000e+00 : f32
    %0 = vector.broadcast %cst : f32 to vector<8x516xf32>
    %c0 = arith.constant 0 : index
    %c0_0 = arith.constant 0 : index
    %1 = vector.load %arg16[%c0, %c0_0] : memref<8x516xf32, #tpu.memory_space<vmem>>, vector<8x516xf32>
    tpu.vector_store %arg16[%c0, %c0_0], %0 {strides = array<i32>} : memref<8x516xf32, #tpu.memory_space<vmem>>, vector<8x516xf32>,
    %c0_1 = arith.constant 0 : index
    %c0_2 = arith.constant 0 : index
    %c0_3 = arith.constant 0 : index
    %2 = vector.load %arg0[%c0_1, %c0_2, %c0_3] : memref<2x4x256xf32, #tpu.memory_space<vmem>>, vector<1x4x256xf32>
    %3 = vector.shape_cast %2 : vector<1x4x256xf32> to vector<4x256xf32>
    %c0_4 = arith.constant 0 : index
    %c1 = arith.constant 1 : index
    %4 = vector.load %arg16[%c0_4, %c1] : memref<8x516xf32, #tpu.memory_space<vmem>>, vector<4x256xf32>
    tpu.vector_store %arg16[%c0_4, %c1], %3 {strides = array<i32>} : memref<8x516xf32, #tpu.memory_space<vmem>>, vector<4x256xf32>,
    %c1_5 = arith.constant 1 : index
    %c0_6 = arith.constant 0 : index
    %c0_7 = arith.constant 0 : index
    %5 = vector.load %arg0[%c1_5, %c0_6, %c0_7] : memref<2x4x256xf32, #tpu.memory_space<vmem>>, vector<1x4x256xf32>
    %6 = vector.shape_cast %5 : vector<1x4x256xf32> to vector<4x256xf32>
    %c0_8 = arith.constant 0 : index
    %c259 = arith.constant 259 : index
    %7 = vector.load %arg16[%c0_8, %c259] : memref<8x516xf32, #tpu.memory_space<vmem>>, vector<4x256xf32>
    tpu.vector_store %arg16[%c0_8, %c259], %6 {strides = array<i32>} : memref<8x516xf32, #tpu.memory_space<vmem>>, vector<4x256xf32>,
    %cst_9 = arith.constant 0.000000e+00 : f32
    %8 = vector.broadcast %cst_9 : f32 to vector<8x514xf32>
    %c0_10 = arith.constant 0 : index
    %c0_11 = arith.constant 0 : index
    %c0_12 = arith.constant 0 : index
    %9 = vector.load %arg1[%c0_10, %c0_11, %c0_12] : memref<3x8x4xf32, #tpu.memory_space<vmem>>, vector<1x8x4xf32>
    %10 = vector.shape_cast %9 : vector<1x8x4xf32> to vector<8x4xf32>
    %c0_13 = arith.constant 0 : index
    %c0_14 = arith.constant 0 : index
    %11 = vector.load %arg16[%c0_13, %c0_14] : memref<8x516xf32, #tpu.memory_space<vmem>>, vector<4x514xf32>
    %cst_15 = arith.constant dense<0.000000e+00> : vector<8x514xf32>
    %12 = tpu.matmul %10, %11, %cst_15 {dimension_numbers = #tpu.dot_dimension_numbers<[1], [0], [0], [1], [0, 0, 1, 1], [], []>} : vector<8x4xf32>, vector<4x514xf32>, vector<8x514xf32> -> vector<8x514xf32>
    %13 = arith.addf %8, %12 : vector<8x514xf32>
    %c1_16 = arith.constant 1 : index
    %c0_17 = arith.constant 0 : index
    %c0_18 = arith.constant 0 : index
    %14 = vector.load %arg1[%c1_16, %c0_17, %c0_18] : memref<3x8x4xf32, #tpu.memory_space<vmem>>, vector<1x8x4xf32>
    %15 = vector.shape_cast %14 : vector<1x8x4xf32> to vector<8x4xf32>
    %c0_19 = arith.constant 0 : index
    %c1_20 = arith.constant 1 : index
    %16 = vector.load %arg16[%c0_19, %c1_20] : memref<8x516xf32, #tpu.memory_space<vmem>>, vector<4x514xf32>
    %cst_21 = arith.constant dense<0.000000e+00> : vector<8x514xf32>
    %17 = tpu.matmul %15, %16, %cst_21 {dimension_numbers = #tpu.dot_dimension_numbers<[1], [0], [0], [1], [0, 0, 1, 1], [], []>} : vector<8x4xf32>, vector<4x514xf32>, vector<8x514xf32> -> vector<8x514xf32>
    %18 = arith.addf %13, %17 : vector<8x514xf32>
    %c2 = arith.constant 2 : index
    %c0_22 = arith.constant 0 : index
    %c0_23 = arith.constant 0 : index
    %19 = vector.load %arg1[%c2, %c0_22, %c0_23] : memref<3x8x4xf32, #tpu.memory_space<vmem>>, vector<1x8x4xf32>
    %20 = vector.shape_cast %19 : vector<1x8x4xf32> to vector<8x4xf32>
    %c0_24 = arith.constant 0 : index
    %c2_25 = arith.constant 2 : index
    %21 = vector.load %arg16[%c0_24, %c2_25] : memref<8x516xf32, #tpu.memory_space<vmem>>, vector<4x514xf32>
    %cst_26 = arith.constant dense<0.000000e+00> : vector<8x514xf32>
    %22 = tpu.matmul %20, %21, %cst_26 {dimension_numbers = #tpu.dot_dimension_numbers<[1], [0], [0], [1], [0, 0, 1, 1], [], []>} : vector<8x4xf32>, vector<4x514xf32>, vector<8x514xf32> -> vector<8x514xf32>
    %23 = arith.addf %18, %22 : vector<8x514xf32>
    %c0_27 = arith.constant 0 : index
    %c0_28 = arith.constant 0 : index
    %24 = vector.load %arg6[%c0_27, %c0_28] : memref<8x1xf32, #tpu.memory_space<vmem>>, vector<8x1xf32>
    %25 = vector.broadcast %24 : vector<8x1xf32> to vector<8x514xf32>
    %26 = arith.addf %23, %25 : vector<8x514xf32>
    %cst_29 = arith.constant 0.000000e+00 : f32
    %27 = vector.broadcast %cst_29 : f32 to vector<8x514xf32>
    %28 = arith.maximumf %26, %27 : vector<8x514xf32>
    %29 = vector.extract_strided_slice %28 {offsets = [0, 0], sizes = [8, 256], strides = [1, 1]} : vector<8x514xf32> to vector<8x256xf32>
    %c0_30 = arith.constant 0 : index
    %c1_31 = arith.constant 1 : index
    %30 = vector.load %arg16[%c0_30, %c1_31] : memref<8x516xf32, #tpu.memory_space<vmem>>, vector<8x256xf32>
    tpu.vector_store %arg16[%c0_30, %c1_31], %29 {strides = array<i32>} : memref<8x516xf32, #tpu.memory_space<vmem>>, vector<8x256xf32>,
    %31 = vector.extract_strided_slice %28 {offsets = [0, 258], sizes = [8, 256], strides = [1, 1]} : vector<8x514xf32> to vector<8x256xf32>
    %c0_32 = arith.constant 0 : index
    %c259_33 = arith.constant 259 : index
    %32 = vector.load %arg16[%c0_32, %c259_33] : memref<8x516xf32, #tpu.memory_space<vmem>>, vector<8x256xf32>
    tpu.vector_store %arg16[%c0_32, %c259_33], %31 {strides = array<i32>} : memref<8x516xf32, #tpu.memory_space<vmem>>, vector<8x256xf32>,
    %cst_34 = arith.constant 0.000000e+00 : f32
    %33 = vector.broadcast %cst_34 : f32 to vector<8x514xf32>
    %c0_35 = arith.constant 0 : index
    %c0_36 = arith.constant 0 : index
    %c0_37 = arith.constant 0 : index
    %34 = vector.load %arg2[%c0_35, %c0_36, %c0_37] : memref<3x8x8xf32, #tpu.memory_space<vmem>>, vector<1x8x8xf32>
    %35 = vector.shape_cast %34 : vector<1x8x8xf32> to vector<8x8xf32>
    %c0_38 = arith.constant 0 : index
    %c0_39 = arith.constant 0 : index
    %36 = vector.load %arg16[%c0_38, %c0_39] : memref<8x516xf32, #tpu.memory_space<vmem>>, vector<8x514xf32>
    %cst_40 = arith.constant dense<0.000000e+00> : vector<8x514xf32>
    %37 = tpu.matmul %35, %36, %cst_40 {dimension_numbers = #tpu.dot_dimension_numbers<[1], [0], [0], [1], [0, 0, 1, 1], [], []>} : vector<8x8xf32>, vector<8x514xf32>, vector<8x514xf32> -> vector<8x514xf32>
    %38 = arith.addf %33, %37 : vector<8x514xf32>
    %c1_41 = arith.constant 1 : index
    %c0_42 = arith.constant 0 : index
    %c0_43 = arith.constant 0 : index
    %39 = vector.load %arg2[%c1_41, %c0_42, %c0_43] : memref<3x8x8xf32, #tpu.memory_space<vmem>>, vector<1x8x8xf32>
    %40 = vector.shape_cast %39 : vector<1x8x8xf32> to vector<8x8xf32>
    %c0_44 = arith.constant 0 : index
    %c1_45 = arith.constant 1 : index
    %41 = vector.load %arg16[%c0_44, %c1_45] : memref<8x516xf32, #tpu.memory_space<vmem>>, vector<8x514xf32>
    %cst_46 = arith.constant dense<0.000000e+00> : vector<8x514xf32>
    %42 = tpu.matmul %40, %41, %cst_46 {dimension_numbers = #tpu.dot_dimension_numbers<[1], [0], [0], [1], [0, 0, 1, 1], [], []>} : vector<8x8xf32>, vector<8x514xf32>, vector<8x514xf32> -> vector<8x514xf32>
    %43 = arith.addf %38, %42 : vector<8x514xf32>
    %c2_47 = arith.constant 2 : index
    %c0_48 = arith.constant 0 : index
    %c0_49 = arith.constant 0 : index
    %44 = vector.load %arg2[%c2_47, %c0_48, %c0_49] : memref<3x8x8xf32, #tpu.memory_space<vmem>>, vector<1x8x8xf32>
    %45 = vector.shape_cast %44 : vector<1x8x8xf32> to vector<8x8xf32>
    %c0_50 = arith.constant 0 : index
    %c2_51 = arith.constant 2 : index
    %46 = vector.load %arg16[%c0_50, %c2_51] : memref<8x516xf32, #tpu.memory_space<vmem>>, vector<8x514xf32>
    %cst_52 = arith.constant dense<0.000000e+00> : vector<8x514xf32>
    %47 = tpu.matmul %45, %46, %cst_52 {dimension_numbers = #tpu.dot_dimension_numbers<[1], [0], [0], [1], [0, 0, 1, 1], [], []>} : vector<8x8xf32>, vector<8x514xf32>, vector<8x514xf32> -> vector<8x514xf32>
    %48 = arith.addf %43, %47 : vector<8x514xf32>
    %c0_53 = arith.constant 0 : index
    %c0_54 = arith.constant 0 : index
    %49 = vector.load %arg7[%c0_53, %c0_54] : memref<8x1xf32, #tpu.memory_space<vmem>>, vector<8x1xf32>
    %50 = vector.broadcast %49 : vector<8x1xf32> to vector<8x514xf32>
    %51 = arith.addf %48, %50 : vector<8x514xf32>
    %cst_55 = arith.constant 0.000000e+00 : f32
    %52 = vector.broadcast %cst_55 : f32 to vector<8x514xf32>
    %53 = arith.maximumf %51, %52 : vector<8x514xf32>
    %54 = vector.extract_strided_slice %53 {offsets = [0, 0], sizes = [8, 256], strides = [1, 1]} : vector<8x514xf32> to vector<8x256xf32>
    %c0_56 = arith.constant 0 : index
    %c1_57 = arith.constant 1 : index
    %55 = vector.load %arg16[%c0_56, %c1_57] : memref<8x516xf32, #tpu.memory_space<vmem>>, vector<8x256xf32>
    tpu.vector_store %arg16[%c0_56, %c1_57], %54 {strides = array<i32>} : memref<8x516xf32, #tpu.memory_space<vmem>>, vector<8x256xf32>,
    %56 = vector.extract_strided_slice %53 {offsets = [0, 258], sizes = [8, 256], strides = [1, 1]} : vector<8x514xf32> to vector<8x256xf32>
    %c0_58 = arith.constant 0 : index
    %c259_59 = arith.constant 259 : index
    %57 = vector.load %arg16[%c0_58, %c259_59] : memref<8x516xf32, #tpu.memory_space<vmem>>, vector<8x256xf32>
    tpu.vector_store %arg16[%c0_58, %c259_59], %56 {strides = array<i32>} : memref<8x516xf32, #tpu.memory_space<vmem>>, vector<8x256xf32>,
    %cst_60 = arith.constant 0.000000e+00 : f32
    %58 = vector.broadcast %cst_60 : f32 to vector<8x514xf32>
    %c0_61 = arith.constant 0 : index
    %c0_62 = arith.constant 0 : index
    %c0_63 = arith.constant 0 : index
    %59 = vector.load %arg3[%c0_61, %c0_62, %c0_63] : memref<3x8x8xf32, #tpu.memory_space<vmem>>, vector<1x8x8xf32>
    %60 = vector.shape_cast %59 : vector<1x8x8xf32> to vector<8x8xf32>
    %c0_64 = arith.constant 0 : index
    %c0_65 = arith.constant 0 : index
    %61 = vector.load %arg16[%c0_64, %c0_65] : memref<8x516xf32, #tpu.memory_space<vmem>>, vector<8x514xf32>
    %cst_66 = arith.constant dense<0.000000e+00> : vector<8x514xf32>
    %62 = tpu.matmul %60, %61, %cst_66 {dimension_numbers = #tpu.dot_dimension_numbers<[1], [0], [0], [1], [0, 0, 1, 1], [], []>} : vector<8x8xf32>, vector<8x514xf32>, vector<8x514xf32> -> vector<8x514xf32>
    %63 = arith.addf %58, %62 : vector<8x514xf32>
    %c1_67 = arith.constant 1 : index
    %c0_68 = arith.constant 0 : index
    %c0_69 = arith.constant 0 : index
    %64 = vector.load %arg3[%c1_67, %c0_68, %c0_69] : memref<3x8x8xf32, #tpu.memory_space<vmem>>, vector<1x8x8xf32>
    %65 = vector.shape_cast %64 : vector<1x8x8xf32> to vector<8x8xf32>
    %c0_70 = arith.constant 0 : index
    %c1_71 = arith.constant 1 : index
    %66 = vector.load %arg16[%c0_70, %c1_71] : memref<8x516xf32, #tpu.memory_space<vmem>>, vector<8x514xf32>
    %cst_72 = arith.constant dense<0.000000e+00> : vector<8x514xf32>
    %67 = tpu.matmul %65, %66, %cst_72 {dimension_numbers = #tpu.dot_dimension_numbers<[1], [0], [0], [1], [0, 0, 1, 1], [], []>} : vector<8x8xf32>, vector<8x514xf32>, vector<8x514xf32> -> vector<8x514xf32>
    %68 = arith.addf %63, %67 : vector<8x514xf32>
    %c2_73 = arith.constant 2 : index
    %c0_74 = arith.constant 0 : index
    %c0_75 = arith.constant 0 : index
    %69 = vector.load %arg3[%c2_73, %c0_74, %c0_75] : memref<3x8x8xf32, #tpu.memory_space<vmem>>, vector<1x8x8xf32>
    %70 = vector.shape_cast %69 : vector<1x8x8xf32> to vector<8x8xf32>
    %c0_76 = arith.constant 0 : index
    %c2_77 = arith.constant 2 : index
    %71 = vector.load %arg16[%c0_76, %c2_77] : memref<8x516xf32, #tpu.memory_space<vmem>>, vector<8x514xf32>
    %cst_78 = arith.constant dense<0.000000e+00> : vector<8x514xf32>
    %72 = tpu.matmul %70, %71, %cst_78 {dimension_numbers = #tpu.dot_dimension_numbers<[1], [0], [0], [1], [0, 0, 1, 1], [], []>} : vector<8x8xf32>, vector<8x514xf32>, vector<8x514xf32> -> vector<8x514xf32>
    %73 = arith.addf %68, %72 : vector<8x514xf32>
    %c0_79 = arith.constant 0 : index
    %c0_80 = arith.constant 0 : index
    %74 = vector.load %arg8[%c0_79, %c0_80] : memref<8x1xf32, #tpu.memory_space<vmem>>, vector<8x1xf32>
    %75 = vector.broadcast %74 : vector<8x1xf32> to vector<8x514xf32>
    %76 = arith.addf %73, %75 : vector<8x514xf32>
    %cst_81 = arith.constant 0.000000e+00 : f32
    %77 = vector.broadcast %cst_81 : f32 to vector<8x514xf32>
    %78 = arith.maximumf %76, %77 : vector<8x514xf32>
    %79 = vector.extract_strided_slice %78 {offsets = [0, 0], sizes = [8, 256], strides = [1, 1]} : vector<8x514xf32> to vector<8x256xf32>
    %c0_82 = arith.constant 0 : index
    %c1_83 = arith.constant 1 : index
    %80 = vector.load %arg16[%c0_82, %c1_83] : memref<8x516xf32, #tpu.memory_space<vmem>>, vector<8x256xf32>
    tpu.vector_store %arg16[%c0_82, %c1_83], %79 {strides = array<i32>} : memref<8x516xf32, #tpu.memory_space<vmem>>, vector<8x256xf32>,
    %81 = vector.extract_strided_slice %78 {offsets = [0, 258], sizes = [8, 256], strides = [1, 1]} : vector<8x514xf32> to vector<8x256xf32>
    %c0_84 = arith.constant 0 : index
    %c259_85 = arith.constant 259 : index
    %82 = vector.load %arg16[%c0_84, %c259_85] : memref<8x516xf32, #tpu.memory_space<vmem>>, vector<8x256xf32>
    tpu.vector_store %arg16[%c0_84, %c259_85], %81 {strides = array<i32>} : memref<8x516xf32, #tpu.memory_space<vmem>>, vector<8x256xf32>,
    %cst_86 = arith.constant 0.000000e+00 : f32
    %83 = vector.broadcast %cst_86 : f32 to vector<8x514xf32>
    %c0_87 = arith.constant 0 : index
    %c0_88 = arith.constant 0 : index
    %c0_89 = arith.constant 0 : index
    %84 = vector.load %arg4[%c0_87, %c0_88, %c0_89] : memref<3x8x8xf32, #tpu.memory_space<vmem>>, vector<1x8x8xf32>
    %85 = vector.shape_cast %84 : vector<1x8x8xf32> to vector<8x8xf32>
    %c0_90 = arith.constant 0 : index
    %c0_91 = arith.constant 0 : index
    %86 = vector.load %arg16[%c0_90, %c0_91] : memref<8x516xf32, #tpu.memory_space<vmem>>, vector<8x514xf32>
    %cst_92 = arith.constant dense<0.000000e+00> : vector<8x514xf32>
    %87 = tpu.matmul %85, %86, %cst_92 {dimension_numbers = #tpu.dot_dimension_numbers<[1], [0], [0], [1], [0, 0, 1, 1], [], []>} : vector<8x8xf32>, vector<8x514xf32>, vector<8x514xf32> -> vector<8x514xf32>
    %88 = arith.addf %83, %87 : vector<8x514xf32>
    %c1_93 = arith.constant 1 : index
    %c0_94 = arith.constant 0 : index
    %c0_95 = arith.constant 0 : index
    %89 = vector.load %arg4[%c1_93, %c0_94, %c0_95] : memref<3x8x8xf32, #tpu.memory_space<vmem>>, vector<1x8x8xf32>
    %90 = vector.shape_cast %89 : vector<1x8x8xf32> to vector<8x8xf32>
    %c0_96 = arith.constant 0 : index
    %c1_97 = arith.constant 1 : index
    %91 = vector.load %arg16[%c0_96, %c1_97] : memref<8x516xf32, #tpu.memory_space<vmem>>, vector<8x514xf32>
    %cst_98 = arith.constant dense<0.000000e+00> : vector<8x514xf32>
    %92 = tpu.matmul %90, %91, %cst_98 {dimension_numbers = #tpu.dot_dimension_numbers<[1], [0], [0], [1], [0, 0, 1, 1], [], []>} : vector<8x8xf32>, vector<8x514xf32>, vector<8x514xf32> -> vector<8x514xf32>
    %93 = arith.addf %88, %92 : vector<8x514xf32>
    %c2_99 = arith.constant 2 : index
    %c0_100 = arith.constant 0 : index
    %c0_101 = arith.constant 0 : index
    %94 = vector.load %arg4[%c2_99, %c0_100, %c0_101] : memref<3x8x8xf32, #tpu.memory_space<vmem>>, vector<1x8x8xf32>
    %95 = vector.shape_cast %94 : vector<1x8x8xf32> to vector<8x8xf32>
    %c0_102 = arith.constant 0 : index
    %c2_103 = arith.constant 2 : index
    %96 = vector.load %arg16[%c0_102, %c2_103] : memref<8x516xf32, #tpu.memory_space<vmem>>, vector<8x514xf32>
    %cst_104 = arith.constant dense<0.000000e+00> : vector<8x514xf32>
    %97 = tpu.matmul %95, %96, %cst_104 {dimension_numbers = #tpu.dot_dimension_numbers<[1], [0], [0], [1], [0, 0, 1, 1], [], []>} : vector<8x8xf32>, vector<8x514xf32>, vector<8x514xf32> -> vector<8x514xf32>
    %98 = arith.addf %93, %97 : vector<8x514xf32>
    %c0_105 = arith.constant 0 : index
    %c0_106 = arith.constant 0 : index
    %99 = vector.load %arg9[%c0_105, %c0_106] : memref<8x1xf32, #tpu.memory_space<vmem>>, vector<8x1xf32>
    %100 = vector.broadcast %99 : vector<8x1xf32> to vector<8x514xf32>
    %101 = arith.addf %98, %100 : vector<8x514xf32>
    %cst_107 = arith.constant 0.000000e+00 : f32
    %102 = vector.broadcast %cst_107 : f32 to vector<8x514xf32>
    %103 = arith.maximumf %101, %102 : vector<8x514xf32>
    %104 = vector.extract_strided_slice %103 {offsets = [0, 0], sizes = [8, 256], strides = [1, 1]} : vector<8x514xf32> to vector<8x256xf32>
    %c0_108 = arith.constant 0 : index
    %c1_109 = arith.constant 1 : index
    %105 = vector.load %arg16[%c0_108, %c1_109] : memref<8x516xf32, #tpu.memory_space<vmem>>, vector<8x256xf32>
    tpu.vector_store %arg16[%c0_108, %c1_109], %104 {strides = array<i32>} : memref<8x516xf32, #tpu.memory_space<vmem>>, vector<8x256xf32>,
    %106 = vector.extract_strided_slice %103 {offsets = [0, 258], sizes = [8, 256], strides = [1, 1]} : vector<8x514xf32> to vector<8x256xf32>
    %c0_110 = arith.constant 0 : index
    %c259_111 = arith.constant 259 : index
    %107 = vector.load %arg16[%c0_110, %c259_111] : memref<8x516xf32, #tpu.memory_space<vmem>>, vector<8x256xf32>
    tpu.vector_store %arg16[%c0_110, %c259_111], %106 {strides = array<i32>} : memref<8x516xf32, #tpu.memory_space<vmem>>, vector<8x256xf32>,
    %cst_112 = arith.constant 0.000000e+00 : f32
    %108 = vector.broadcast %cst_112 : f32 to vector<8x514xf32>
    %c0_113 = arith.constant 0 : index
    %c0_114 = arith.constant 0 : index
    %c0_115 = arith.constant 0 : index
    %109 = vector.load %arg5[%c0_113, %c0_114, %c0_115] : memref<3x8x8xf32, #tpu.memory_space<vmem>>, vector<1x8x8xf32>
    %110 = vector.shape_cast %109 : vector<1x8x8xf32> to vector<8x8xf32>
    %c0_116 = arith.constant 0 : index
    %c0_117 = arith.constant 0 : index
    %111 = vector.load %arg16[%c0_116, %c0_117] : memref<8x516xf32, #tpu.memory_space<vmem>>, vector<8x514xf32>
    %cst_118 = arith.constant dense<0.000000e+00> : vector<8x514xf32>
    %112 = tpu.matmul %110, %111, %cst_118 {dimension_numbers = #tpu.dot_dimension_numbers<[1], [0], [0], [1], [0, 0, 1, 1], [], []>} : vector<8x8xf32>, vector<8x514xf32>, vector<8x514xf32> -> vector<8x514xf32>
    %113 = arith.addf %108, %112 : vector<8x514xf32>
    %c1_119 = arith.constant 1 : index
    %c0_120 = arith.constant 0 : index
    %c0_121 = arith.constant 0 : index
    %114 = vector.load %arg5[%c1_119, %c0_120, %c0_121] : memref<3x8x8xf32, #tpu.memory_space<vmem>>, vector<1x8x8xf32>
    %115 = vector.shape_cast %114 : vector<1x8x8xf32> to vector<8x8xf32>
    %c0_122 = arith.constant 0 : index
    %c1_123 = arith.constant 1 : index
    %116 = vector.load %arg16[%c0_122, %c1_123] : memref<8x516xf32, #tpu.memory_space<vmem>>, vector<8x514xf32>
    %cst_124 = arith.constant dense<0.000000e+00> : vector<8x514xf32>
    %117 = tpu.matmul %115, %116, %cst_124 {dimension_numbers = #tpu.dot_dimension_numbers<[1], [0], [0], [1], [0, 0, 1, 1], [], []>} : vector<8x8xf32>, vector<8x514xf32>, vector<8x514xf32> -> vector<8x514xf32>
    %118 = arith.addf %113, %117 : vector<8x514xf32>
    %c2_125 = arith.constant 2 : index
    %c0_126 = arith.constant 0 : index
    %c0_127 = arith.constant 0 : index
    %119 = vector.load %arg5[%c2_125, %c0_126, %c0_127] : memref<3x8x8xf32, #tpu.memory_space<vmem>>, vector<1x8x8xf32>
    %120 = vector.shape_cast %119 : vector<1x8x8xf32> to vector<8x8xf32>
    %c0_128 = arith.constant 0 : index
    %c2_129 = arith.constant 2 : index
    %121 = vector.load %arg16[%c0_128, %c2_129] : memref<8x516xf32, #tpu.memory_space<vmem>>, vector<8x514xf32>
    %cst_130 = arith.constant dense<0.000000e+00> : vector<8x514xf32>
    %122 = tpu.matmul %120, %121, %cst_130 {dimension_numbers = #tpu.dot_dimension_numbers<[1], [0], [0], [1], [0, 0, 1, 1], [], []>} : vector<8x8xf32>, vector<8x514xf32>, vector<8x514xf32> -> vector<8x514xf32>
    %123 = arith.addf %118, %122 : vector<8x514xf32>
    %c0_131 = arith.constant 0 : index
    %c0_132 = arith.constant 0 : index
    %124 = vector.load %arg10[%c0_131, %c0_132] : memref<8x1xf32, #tpu.memory_space<vmem>>, vector<8x1xf32>
    %125 = vector.broadcast %124 : vector<8x1xf32> to vector<8x514xf32>
    %126 = arith.addf %123, %125 : vector<8x514xf32>
    %cst_133 = arith.constant 0.000000e+00 : f32
    %127 = vector.broadcast %cst_133 : f32 to vector<8x514xf32>
    %128 = arith.maximumf %126, %127 : vector<8x514xf32>
    %129 = vector.extract_strided_slice %128 {offsets = [0, 0], sizes = [8, 256], strides = [1, 1]} : vector<8x514xf32> to vector<8x256xf32>
    %c0_134 = arith.constant 0 : index
    %c0_135 = arith.constant 0 : index
    %c0_136 = arith.constant 0 : index
    %130 = vector.load %arg17[%c0_134, %c0_135, %c0_136] : memref<2x8x256xf32, #tpu.memory_space<vmem>>, vector<1x8x256xf32>
    %131 = vector.shape_cast %130 : vector<1x8x256xf32> to vector<8x256xf32>
    %132 = vector.shape_cast %129 : vector<8x256xf32> to vector<1x8x256xf32>
    tpu.vector_store %arg17[%c0_134, %c0_135, %c0_136], %132 {strides = array<i32>} : memref<2x8x256xf32, #tpu.memory_space<vmem>>, vector<1x8x256xf32>,
    %133 = vector.extract_strided_slice %128 {offsets = [0, 258], sizes = [8, 256], strides = [1, 1]} : vector<8x514xf32> to vector<8x256xf32>
    %c1_137 = arith.constant 1 : index
    %c0_138 = arith.constant 0 : index
    %c0_139 = arith.constant 0 : index
    %134 = vector.load %arg17[%c1_137, %c0_138, %c0_139] : memref<2x8x256xf32, #tpu.memory_space<vmem>>, vector<1x8x256xf32>
    %135 = vector.shape_cast %134 : vector<1x8x256xf32> to vector<8x256xf32>
    %136 = vector.shape_cast %133 : vector<8x256xf32> to vector<1x8x256xf32>
    tpu.vector_store %arg17[%c1_137, %c0_138, %c0_139], %136 {strides = array<i32>} : memref<2x8x256xf32, #tpu.memory_space<vmem>>, vector<1x8x256xf32>,
    %cst_140 = arith.constant 0.000000e+00 : f32
    %137 = vector.broadcast %cst_140 : f32 to vector<2x20xf32>
    %c0_141 = arith.constant 0 : index
    %c0_142 = arith.constant 0 : index
    %c0_143 = arith.constant 0 : index
    %138 = vector.load %arg17[%c0_141, %c0_142, %c0_143] : memref<2x8x256xf32, #tpu.memory_space<vmem>>, vector<2x1x256xf32>
    %139 = vector.shape_cast %138 : vector<2x1x256xf32> to vector<2x256xf32>
    %c0_144 = arith.constant 0 : index
    %c0_145 = arith.constant 0 : index
    %c0_146 = arith.constant 0 : index
    %140 = vector.load %arg11[%c0_144, %c0_145, %c0_146] : memref<20x8x256xf32, #tpu.memory_space<vmem>>, vector<20x1x256xf32>
    %141 = vector.shape_cast %140 : vector<20x1x256xf32> to vector<20x256xf32>
    %cst_147 = arith.constant dense<0.000000e+00> : vector<2x20xf32>
    %142 = tpu.matmul %139, %141, %cst_147 {dimension_numbers = #tpu.dot_dimension_numbers<[1], [1], [0], [0], [0, 0, 1, 0], [], []>} : vector<2x256xf32>, vector<20x256xf32>, vector<2x20xf32> -> vector<2x20xf32>
    %143 = arith.addf %137, %142 : vector<2x20xf32>
    %c0_148 = arith.constant 0 : index
    %c1_149 = arith.constant 1 : index
    %c0_150 = arith.constant 0 : index
    %144 = vector.load %arg17[%c0_148, %c1_149, %c0_150] : memref<2x8x256xf32, #tpu.memory_space<vmem>>, vector<2x1x256xf32>
    %145 = vector.shape_cast %144 : vector<2x1x256xf32> to vector<2x256xf32>
    %c0_151 = arith.constant 0 : index
    %c1_152 = arith.constant 1 : index
    %c0_153 = arith.constant 0 : index
    %146 = vector.load %arg11[%c0_151, %c1_152, %c0_153] : memref<20x8x256xf32, #tpu.memory_space<vmem>>, vector<20x1x256xf32>
    %147 = vector.shape_cast %146 : vector<20x1x256xf32> to vector<20x256xf32>
    %cst_154 = arith.constant dense<0.000000e+00> : vector<2x20xf32>
    %148 = tpu.matmul %145, %147, %cst_154 {dimension_numbers = #tpu.dot_dimension_numbers<[1], [1], [0], [0], [0, 0, 1, 0], [], []>} : vector<2x256xf32>, vector<20x256xf32>, vector<2x20xf32> -> vector<2x20xf32>
    %149 = arith.addf %143, %148 : vector<2x20xf32>
    %c0_155 = arith.constant 0 : index
    %c2_156 = arith.constant 2 : index
    %c0_157 = arith.constant 0 : index
    %150 = vector.load %arg17[%c0_155, %c2_156, %c0_157] : memref<2x8x256xf32, #tpu.memory_space<vmem>>, vector<2x1x256xf32>
    %151 = vector.shape_cast %150 : vector<2x1x256xf32> to vector<2x256xf32>
    %c0_158 = arith.constant 0 : index
    %c2_159 = arith.constant 2 : index
    %c0_160 = arith.constant 0 : index
    %152 = vector.load %arg11[%c0_158, %c2_159, %c0_160] : memref<20x8x256xf32, #tpu.memory_space<vmem>>, vector<20x1x256xf32>
    %153 = vector.shape_cast %152 : vector<20x1x256xf32> to vector<20x256xf32>
    %cst_161 = arith.constant dense<0.000000e+00> : vector<2x20xf32>
    %154 = tpu.matmul %151, %153, %cst_161 {dimension_numbers = #tpu.dot_dimension_numbers<[1], [1], [0], [0], [0, 0, 1, 0], [], []>} : vector<2x256xf32>, vector<20x256xf32>, vector<2x20xf32> -> vector<2x20xf32>
    %155 = arith.addf %149, %154 : vector<2x20xf32>
    %c0_162 = arith.constant 0 : index
    %c3 = arith.constant 3 : index
    %c0_163 = arith.constant 0 : index
    %156 = vector.load %arg17[%c0_162, %c3, %c0_163] : memref<2x8x256xf32, #tpu.memory_space<vmem>>, vector<2x1x256xf32>
    %157 = vector.shape_cast %156 : vector<2x1x256xf32> to vector<2x256xf32>
    %c0_164 = arith.constant 0 : index
    %c3_165 = arith.constant 3 : index
    %c0_166 = arith.constant 0 : index
    %158 = vector.load %arg11[%c0_164, %c3_165, %c0_166] : memref<20x8x256xf32, #tpu.memory_space<vmem>>, vector<20x1x256xf32>
    %159 = vector.shape_cast %158 : vector<20x1x256xf32> to vector<20x256xf32>
    %cst_167 = arith.constant dense<0.000000e+00> : vector<2x20xf32>
    %160 = tpu.matmul %157, %159, %cst_167 {dimension_numbers = #tpu.dot_dimension_numbers<[1], [1], [0], [0], [0, 0, 1, 0], [], []>} : vector<2x256xf32>, vector<20x256xf32>, vector<2x20xf32> -> vector<2x20xf32>
    %161 = arith.addf %155, %160 : vector<2x20xf32>
    %c0_168 = arith.constant 0 : index
    %c4 = arith.constant 4 : index
    %c0_169 = arith.constant 0 : index
    %162 = vector.load %arg17[%c0_168, %c4, %c0_169] : memref<2x8x256xf32, #tpu.memory_space<vmem>>, vector<2x1x256xf32>
    %163 = vector.shape_cast %162 : vector<2x1x256xf32> to vector<2x256xf32>
    %c0_170 = arith.constant 0 : index
    %c4_171 = arith.constant 4 : index
    %c0_172 = arith.constant 0 : index
    %164 = vector.load %arg11[%c0_170, %c4_171, %c0_172] : memref<20x8x256xf32, #tpu.memory_space<vmem>>, vector<20x1x256xf32>
    %165 = vector.shape_cast %164 : vector<20x1x256xf32> to vector<20x256xf32>
    %cst_173 = arith.constant dense<0.000000e+00> : vector<2x20xf32>
    %166 = tpu.matmul %163, %165, %cst_173 {dimension_numbers = #tpu.dot_dimension_numbers<[1], [1], [0], [0], [0, 0, 1, 0], [], []>} : vector<2x256xf32>, vector<20x256xf32>, vector<2x20xf32> -> vector<2x20xf32>
    %167 = arith.addf %161, %166 : vector<2x20xf32>
    %c0_174 = arith.constant 0 : index
    %c5 = arith.constant 5 : index
    %c0_175 = arith.constant 0 : index
    %168 = vector.load %arg17[%c0_174, %c5, %c0_175] : memref<2x8x256xf32, #tpu.memory_space<vmem>>, vector<2x1x256xf32>
    %169 = vector.shape_cast %168 : vector<2x1x256xf32> to vector<2x256xf32>
    %c0_176 = arith.constant 0 : index
    %c5_177 = arith.constant 5 : index
    %c0_178 = arith.constant 0 : index
    %170 = vector.load %arg11[%c0_176, %c5_177, %c0_178] : memref<20x8x256xf32, #tpu.memory_space<vmem>>, vector<20x1x256xf32>
    %171 = vector.shape_cast %170 : vector<20x1x256xf32> to vector<20x256xf32>
    %cst_179 = arith.constant dense<0.000000e+00> : vector<2x20xf32>
    %172 = tpu.matmul %169, %171, %cst_179 {dimension_numbers = #tpu.dot_dimension_numbers<[1], [1], [0], [0], [0, 0, 1, 0], [], []>} : vector<2x256xf32>, vector<20x256xf32>, vector<2x20xf32> -> vector<2x20xf32>
    %173 = arith.addf %167, %172 : vector<2x20xf32>
    %c0_180 = arith.constant 0 : index
    %c6 = arith.constant 6 : index
    %c0_181 = arith.constant 0 : index
    %174 = vector.load %arg17[%c0_180, %c6, %c0_181] : memref<2x8x256xf32, #tpu.memory_space<vmem>>, vector<2x1x256xf32>
    %175 = vector.shape_cast %174 : vector<2x1x256xf32> to vector<2x256xf32>
    %c0_182 = arith.constant 0 : index
    %c6_183 = arith.constant 6 : index
    %c0_184 = arith.constant 0 : index
    %176 = vector.load %arg11[%c0_182, %c6_183, %c0_184] : memref<20x8x256xf32, #tpu.memory_space<vmem>>, vector<20x1x256xf32>
    %177 = vector.shape_cast %176 : vector<20x1x256xf32> to vector<20x256xf32>
    %cst_185 = arith.constant dense<0.000000e+00> : vector<2x20xf32>
    %178 = tpu.matmul %175, %177, %cst_185 {dimension_numbers = #tpu.dot_dimension_numbers<[1], [1], [0], [0], [0, 0, 1, 0], [], []>} : vector<2x256xf32>, vector<20x256xf32>, vector<2x20xf32> -> vector<2x20xf32>
    %179 = arith.addf %173, %178 : vector<2x20xf32>
    %c0_186 = arith.constant 0 : index
    %c7 = arith.constant 7 : index
    %c0_187 = arith.constant 0 : index
    %180 = vector.load %arg17[%c0_186, %c7, %c0_187] : memref<2x8x256xf32, #tpu.memory_space<vmem>>, vector<2x1x256xf32>
    %181 = vector.shape_cast %180 : vector<2x1x256xf32> to vector<2x256xf32>
    %c0_188 = arith.constant 0 : index
    %c7_189 = arith.constant 7 : index
    %c0_190 = arith.constant 0 : index
    %182 = vector.load %arg11[%c0_188, %c7_189, %c0_190] : memref<20x8x256xf32, #tpu.memory_space<vmem>>, vector<20x1x256xf32>
    %183 = vector.shape_cast %182 : vector<20x1x256xf32> to vector<20x256xf32>
    %cst_191 = arith.constant dense<0.000000e+00> : vector<2x20xf32>
    %184 = tpu.matmul %181, %183, %cst_191 {dimension_numbers = #tpu.dot_dimension_numbers<[1], [1], [0], [0], [0, 0, 1, 0], [], []>} : vector<2x256xf32>, vector<20x256xf32>, vector<2x20xf32> -> vector<2x20xf32>
    %185 = arith.addf %179, %184 : vector<2x20xf32>
    %c0_192 = arith.constant 0 : index
    %c0_193 = arith.constant 0 : index
    %186 = vector.load %arg12[%c0_192, %c0_193] : memref<1x20xf32, #tpu.memory_space<vmem>>, vector<1x20xf32>
    %187 = vector.broadcast %186 : vector<1x20xf32> to vector<2x20xf32>
    %188 = arith.addf %185, %187 : vector<2x20xf32>
    %cst_194 = arith.constant 0.000000e+00 : f32
    %189 = vector.broadcast %cst_194 : f32 to vector<2x20xf32>
    %190 = arith.maximumf %188, %189 : vector<2x20xf32>
    %c0_195 = arith.constant 0 : index
    %c0_196 = arith.constant 0 : index
    %191 = vector.load %arg13[%c0_195, %c0_196] : memref<20x1xf32, #tpu.memory_space<vmem>>, vector<20x1xf32>
    %cst_197 = arith.constant dense<0.000000e+00> : vector<2x1xf32>
    %192 = tpu.matmul %190, %191, %cst_197 {dimension_numbers = #tpu.dot_dimension_numbers<[1], [0], [0], [1], [0, 0, 1, 1], [], []>} : vector<2x20xf32>, vector<20x1xf32>, vector<2x1xf32> -> vector<2x1xf32>
    %c0_198 = arith.constant 0 : index
    %c0_199 = arith.constant 0 : index
    %193 = vector.load %arg14[%c0_198, %c0_199] : memref<1x1xf32, #tpu.memory_space<vmem>>, vector<1x1xf32>
    %194 = vector.broadcast %193 : vector<1x1xf32> to vector<2x1xf32>
    %195 = arith.addf %192, %194 : vector<2x1xf32>
    %c0_200 = arith.constant 0 : index
    %c0_201 = arith.constant 0 : index
    %196 = vector.load %arg15[%c0_200, %c0_201] : memref<2x1xf32, #tpu.memory_space<vmem>>, vector<2x1xf32>
    tpu.vector_store %arg15[%c0_200, %c0_201], %195 {strides = array<i32>} : memref<2x1xf32, #tpu.memory_space<vmem>>, vector<2x1xf32>,
    return
  }
}

</mosaic_0001>

<llo_original>
// kernel: dft_forward.1
$region0: #{dft_forward.1}
  #allocation0 [shape = 'u32[]', space=smem, size = 0x4, offset = 0x4, fixed_abs, tag = 'smem constant byte address 0x4 - core index']
  #allocation1 [shape = 'u32[144,128]{1,0:T(1,128)}', space=vmem, size = 0x12000, scoped, tag = 'internal scratch']
  #allocation2 [shape = 'f32[8,516]{1,0:T(8,128)}', space=vmem, size = 0x5000, scoped, tag = 'scratch operand']
  #allocation3 [shape = 'f32[2,8,256]{2,1,0:T(8,128)}', space=vmem, size = 0x4000, scoped, tag = 'scratch operand']
  #allocation4 [shape = 'f32[1,1]{1,0:T(1,128)S(1)}', space=vmem, size = 0x200, scoped, tag = 'scoped memory for dft_forward.1']
  %s0 = inlined_call_operand.vmem [shape: f32[2,4,256], index: 0, kind: input, shape index: {}]
  %s1 = inlined_call_operand.vmem [shape: f32[3,8,4], index: 1, kind: input, shape index: {}]
  %s2 = inlined_call_operand.vmem [shape: f32[3,8,8], index: 2, kind: input, shape index: {}]
  %s3 = inlined_call_operand.vmem [shape: f32[3,8,8], index: 3, kind: input, shape index: {}]
  %s4 = inlined_call_operand.vmem [shape: f32[3,8,8], index: 4, kind: input, shape index: {}]
  %s5 = inlined_call_operand.vmem [shape: f32[3,8,8], index: 5, kind: input, shape index: {}]
  %s6 = inlined_call_operand.vmem [shape: f32[8,1], index: 6, kind: input, shape index: {}]
  %s7 = inlined_call_operand.vmem [shape: f32[8,1], index: 7, kind: input, shape index: {}]
  %s8 = inlined_call_operand.vmem [shape: f32[8,1], index: 8, kind: input, shape index: {}]
  %s9 = inlined_call_operand.vmem [shape: f32[8,1], index: 9, kind: input, shape index: {}]
  %s10 = inlined_call_operand.vmem [shape: f32[8,1], index: 10, kind: input, shape index: {}]
  %s11 = inlined_call_operand.vmem [shape: f32[20,8,256], index: 11, kind: input, shape index: {}]
  %s12 = inlined_call_operand.vmem [shape: f32[1,20], index: 12, kind: input, shape index: {}]
  %s13 = inlined_call_operand.vmem [shape: f32[20,1], index: 13, kind: input, shape index: {}]
  %s14 = inlined_call_operand.<no memory space> [shape: f32[1,1], index: 14, kind: input, shape index: {}]
  %s15 = inlined_call_operand.vmem [shape: f32[2,1], index: 15, kind: output, shape index: {}]
  %s16 = sld [smem:[#allocation0]]
  $region70: #{dft_forward.1} parent=0
    _
  %s18 = ssub.s32 1, %s16
  %s19 = scalar_select 0, %s18, %s16
  %v20 = vstv %s14
  %21 = vst [vmem:[#allocation4] sm:$0x1] %v20
  // Predicated region
  $region2: #{dft_forward.1} parent=0 // pred_check
    _
  $region3: #{dft_forward.1} parent=0 // pred_check_branch
    %23 = sbr.rel (0) target = $region5
  $region4: #{dft_forward.1} parent=0 // pred_region
    _
  $region5: #{dft_forward.1} parent=0 // pred_fallthru
    _
  // Predicated region
  $region6: #{dft_forward.1} parent=0 // pred_check
    _
  $region7: #{dft_forward.1} parent=0 // pred_check_branch
    %25 = sbr.rel (0) target = $region9
  $region8: #{dft_forward.1} parent=0 // pred_region
    _
  $region9: #{dft_forward.1} parent=0 // pred_fallthru
    _
  // Predicated region
  $region10: #{dft_forward.1} parent=0 // pred_check
    _
  $region11: #{dft_forward.1} parent=0 // pred_check_branch
    %27 = sbr.rel (0) target = $region13
  $region12: #{dft_forward.1} parent=0 // pred_region
    _
  $region13: #{dft_forward.1} parent=0 // pred_fallthru
    _
  // Predicated region
  $region14: #{dft_forward.1} parent=0 // pred_check
    _
  $region15: #{dft_forward.1} parent=0 // pred_check_branch
    %29 = sbr.rel (0) target = $region17
  $region16: #{dft_forward.1} parent=0 // pred_region
    _
  $region17: #{dft_forward.1} parent=0 // pred_fallthru
    _
  // Predicated region
  $region18: #{dft_forward.1} parent=0 // pred_check
    _
  $region19: #{dft_forward.1} parent=0 // pred_check_branch
    %31 = sbr.rel (0) target = $region21
  $region20: #{dft_forward.1} parent=0 // pred_region
    _
  $region21: #{dft_forward.1} parent=0 // pred_fallthru
    _
  // Predicated region
  $region22: #{dft_forward.1} parent=0 // pred_check
    _
  $region23: #{dft_forward.1} parent=0 // pred_check_branch
    %33 = sbr.rel (0) target = $region25
  $region24: #{dft_forward.1} parent=0 // pred_region
    _
  $region25: #{dft_forward.1} parent=0 // pred_fallthru
    _
  // Predicated region
  $region26: #{dft_forward.1} parent=0 // pred_check
    _
  $region27: #{dft_forward.1} parent=0 // pred_check_branch
    %35 = sbr.rel (0) target = $region29
  $region28: #{dft_forward.1} parent=0 // pred_region
    _
  $region29: #{dft_forward.1} parent=0 // pred_fallthru
    _
  // Predicated region
  $region30: #{dft_forward.1} parent=0 // pred_check
    _
  $region31: #{dft_forward.1} parent=0 // pred_check_branch
    %37 = sbr.rel (0) target = $region33
  $region32: #{dft_forward.1} parent=0 // pred_region
    _
  $region33: #{dft_forward.1} parent=0 // pred_fallthru
    _
  // Predicated region
  $region34: #{dft_forward.1} parent=0 // pred_check
    _
  $region35: #{dft_forward.1} parent=0 // pred_check_branch
    %39 = sbr.rel (0) target = $region37
  $region36: #{dft_forward.1} parent=0 // pred_region
    _
  $region37: #{dft_forward.1} parent=0 // pred_fallthru
    _
  // Predicated region
  $region38: #{dft_forward.1} parent=0 // pred_check
    _
  $region39: #{dft_forward.1} parent=0 // pred_check_branch
    %41 = sbr.rel (0) target = $region41
  $region40: #{dft_forward.1} parent=0 // pred_region
    _
  $region41: #{dft_forward.1} parent=0 // pred_fallthru
    _
  // Predicated region
  $region42: #{dft_forward.1} parent=0 // pred_check
    _
  $region43: #{dft_forward.1} parent=0 // pred_check_branch
    %43 = sbr.rel (0) target = $region45
  $region44: #{dft_forward.1} parent=0 // pred_region
    _
  $region45: #{dft_forward.1} parent=0 // pred_fallthru
    _
  // Predicated region
  $region46: #{dft_forward.1} parent=0 // pred_check
    _
  $region47: #{dft_forward.1} parent=0 // pred_check_branch
    %45 = sbr.rel (0) target = $region49
  $region48: #{dft_forward.1} parent=0 // pred_region
    _
  $region49: #{dft_forward.1} parent=0 // pred_fallthru
    _
  // Predicated region
  $region50: #{dft_forward.1} parent=0 // pred_check
    _
  $region51: #{dft_forward.1} parent=0 // pred_check_branch
    %47 = sbr.rel (0) target = $region53
  $region52: #{dft_forward.1} parent=0 // pred_region
    _
  $region53: #{dft_forward.1} parent=0 // pred_fallthru
    _
  // Predicated region
  $region54: #{dft_forward.1} parent=0 // pred_check
    _
  $region55: #{dft_forward.1} parent=0 // pred_check_branch
    %49 = sbr.rel (0) target = $region57
  $region56: #{dft_forward.1} parent=0 // pred_region
    _
  $region57: #{dft_forward.1} parent=0 // pred_fallthru
    _
  // Predicated region
  $region58: #{dft_forward.1} parent=0 // pred_check
    _
  $region59: #{dft_forward.1} parent=0 // pred_check_branch
    %51 = sbr.rel (0) target = $region61
  $region60: #{dft_forward.1} parent=0 // pred_region
    _
  $region61: #{dft_forward.1} parent=0 // pred_fallthru
    _
  %52 = vst [vmem:[#allocation2] sm:$0xff] 0.0
  %53 = vst [vmem:[#allocation2 + $0x8] sm:$0xff] 0.0
  %54 = vst [vmem:[#allocation2 + $0x10] sm:$0xff] 0.0
  %55 = vst [vmem:[#allocation2 + $0x18] sm:$0xff] 0.0
  %vm56 = vcmask 31744
  %57 = vst.msk [vmem:[#allocation2 + $0x20] sm:$0xff] %vm56, 0.0
  %v58 = vld [vmem:[%s0] sm:$0xff]
  %v60 = vcombine.high %v58, %v58
  %61 = vrot.lane.b32.xlu0 %v58, 1
  %v62 = vpop.permute.xlu0 %61
  %63 = vrot.lane.b32.xlu0 %v60, 1
  %v64 = vpop.permute.xlu0 %63
  %vm65 = vcmask 7168
  %v66 = vsel %vm65, %v62, %v64
  %vm70 = vcmask 1043464
  %71 = vst.msk [vmem:[#allocation2] sm:$0xf] %vm70, %v62
  %72 = vst [vmem:[#allocation2 + $0x8] sm:$0xf] %v66
  %vm73 = vcmask 3072
  %74 = vst.msk [vmem:[#allocation2 + $0x10] sm:$0xf] %vm73, %v64
  %s75 = scalar_lea.vmem %s0, 8
  %v76 = vld [vmem:[%s75] sm:$0xff]
  %v78 = vcombine.high %v76, %v76
  %79 = vrot.lane.b32.xlu0 %v76, 3
  %v80 = vpop.permute.xlu0 %79
  %81 = vrot.lane.b32.xlu0 %v78, 3
  %v82 = vpop.permute.xlu0 %81
  %vm83 = vcmask 23552
  %v84 = vsel %vm83, %v80, %v82
  %vm88 = vcmask 1043480
  %89 = vst.msk [vmem:[#allocation2 + $0x10] sm:$0xf] %vm88, %v80
  %90 = vst [vmem:[#allocation2 + $0x18] sm:$0xf] %v84
  %vm91 = vcmask 19456
  %92 = vst.msk [vmem:[#allocation2 + $0x20] sm:$0xf] %vm91, %v82
  %v93 = vld [vmem:[%s1] sm:$0xff]
  %v94 = vld [vmem:[#allocation2] sm:$0xf]
  %v95 = vld [vmem:[#allocation2 + $0x8] sm:$0xf]
  %v96 = vld [vmem:[#allocation2 + $0x10] sm:$0xf]
  %v97 = vld [vmem:[#allocation2 + $0x18] sm:$0xf]
  %v98 = vld [vmem:[#allocation2 + $0x20] sm:$0xf]
  %s99 = scalar_lea.vmem %s1, 8
  %v100 = vld [vmem:[%s99] sm:$0xff]
  %106 = vrot.lane.b32.xlu0 %v94, 127
  %v107 = vpop.permute.xlu0 %106
  %108 = vrot.lane.b32.xlu0 %v95, 127
  %v109 = vpop.permute.xlu0 %108
  %110 = vrot.lane.b32.xlu0 %v96, 127
  %v111 = vpop.permute.xlu0 %110
  %112 = vrot.lane.b32.xlu0 %v97, 127
  %v113 = vpop.permute.xlu0 %112
  %114 = vrot.lane.b32.xlu0 %v98, 127
  %v115 = vpop.permute.xlu0 %114
  %vm116 = vcmask 1039360
  %v117 = vsel %vm116, %v107, %v109
  %v118 = vsel %vm116, %v109, %v111
  %v119 = vsel %vm116, %v111, %v113
  %v120 = vsel %vm116, %v113, %v115
  %v122 = vsel %vm56, %v100, 0
  %vm124 = vcmask 1043456
  %v125 = vsel %vm124, %v117, 0
  %v127 = vsel %vm124, %v118, 0
  %v129 = vsel %vm124, %v119, 0
  %v131 = vsel %vm124, %v120, 0
  %v133 = vsel %vm124, %v115, 0
  %135 = vmatprep.subr.mxu0 %v127
  %136 = vmatpush1.msra.mxu0 %v125
  %137 = vmatprep.subr.mxu0 0.0
  %138 = vmatpush1.msra.mxu0 0.0
  %139 = vmatprep.subr.mxu0 0.0
  %140 = vmatpush1.msra.mxu0 0.0
  %141 = vmatprep.subr.mxu0 0.0
  %142 = vmatpush1.msra.mxu0 0.0
  %143 = vmatprep.subr.mxu0 0.0
  %144 = vmatpush1.msra.mxu0 0.0
  %145 = vmatprep.subr.mxu0 0.0
  %146 = vmatpush1.msra.mxu0 0.0
  %147 = vmatprep.subr.mxu0 0.0
  %148 = vmatpush1.msra.mxu0 0.0
  %149 = vmatprep.subr.mxu0 0.0
  %150 = vmatpush1.msra.mxu0 0.0
  %151 = vmatprep.subr.mxu0 0.0
  %152 = vmatpush1.msra.mxu0 0.0
  %153 = vmatprep.subr.mxu0 0.0
  %154 = vmatpush1.msra.mxu0 0.0
  %155 = vmatprep.subr.mxu0 0.0
  %156 = vmatpush1.msra.mxu0 0.0
  %157 = vmatprep.subr.mxu0 0.0
  %158 = vmatpush1.msra.mxu0 0.0
  %159 = vmatprep.subr.mxu0 0.0
  %160 = vmatpush1.msra.mxu0 0.0
  %161 = vmatprep.subr.mxu0 0.0
  %162 = vmatpush1.msra.mxu0 0.0
  %163 = vmatprep.subr.mxu0 0.0
  %164 = vmatpush1.msra.mxu0 0.0
  %165 = vmatprep.subr.mxu0 0.0
  %166 = vmatpush1.msra.mxu0 0.0
  %167 = vmatprep.subr.mxu0 0.0
  %168 = vmatpush1.msra.mxu0 0.0
  %169 = vmatprep.subr.mxu0 0.0
  %170 = vmatpush1.msra.mxu0 0.0
  %171 = vmatprep.subr.mxu0 0.0
  %172 = vmatpush1.msra.mxu0 0.0
  %173 = vmatprep.subr.mxu0 0.0
  %174 = vmatpush1.msra.mxu0 0.0
  %175 = vmatprep.subr.mxu0 0.0
  %176 = vmatpush1.msra.mxu0 0.0
  %177 = vmatprep.subr.mxu0 0.0
  %178 = vmatpush1.msra.mxu0 0.0
  %179 = vmatprep.subr.mxu0 0.0
  %180 = vmatpush1.msra.mxu0 0.0
  %181 = vmatprep.subr.mxu0 0.0
  %182 = vmatpush1.msra.mxu0 0.0
  %183 = vmatprep.subr.mxu0 0.0
  %184 = vmatpush1.msra.mxu0 0.0
  %185 = vmatprep.subr.mxu0 0.0
  %186 = vmatpush1.msra.mxu0 0.0
  %187 = vmatprep.subr.mxu0 0.0
  %188 = vmatpush1.msra.mxu0 0.0
  %189 = vmatprep.subr.mxu0 0.0
  %190 = vmatpush1.msra.mxu0 0.0
  %191 = vmatprep.subr.mxu0 0.0
  %192 = vmatpush1.msra.mxu0 0.0
  %193 = vmatprep.subr.mxu0 0.0
  %194 = vmatpush1.msra.mxu0 0.0
  %195 = vmatprep.subr.mxu0 0.0
  %196 = vmatpush1.msra.mxu0 0.0
  %197 = vmatprep.subr.mxu0 0.0
  %198 = vmatpush1.msra.mxu0 0.0
  %199 = vmatprep.mubr.f32.mxu0 0.0
  %200 = vmatmul.mubr.f32.gmra.mrb[0].mxu0 %v122
  %v201 = vpop.f32.mrb[0].mxu0
  %v202 = vadd.f32 0.0, %v201
  %v203 = vpop.f32.mrb[0].mxu0
  %v204 = vadd.f32 0.0, %v203
  %205 = vdwg.mxu0
  %206 = vmatprep.subr.mxu0 %v131
  %207 = vmatpush1.msra.mxu0 %v129
  %208 = vmatprep.subr.mxu0 0.0
  %209 = vmatpush1.msra.mxu0 0.0
  %210 = vmatprep.subr.mxu0 0.0
  %211 = vmatpush1.msra.mxu0 0.0
  %212 = vmatprep.subr.mxu0 0.0
  %213 = vmatpush1.msra.mxu0 0.0
  %214 = vmatprep.subr.mxu0 0.0
  %215 = vmatpush1.msra.mxu0 0.0
  %216 = vmatprep.subr.mxu0 0.0
  %217 = vmatpush1.msra.mxu0 0.0
  %218 = vmatprep.subr.mxu0 0.0
  %219 = vmatpush1.msra.mxu0 0.0
  %220 = vmatprep.subr.mxu0 0.0
  %221 = vmatpush1.msra.mxu0 0.0
  %222 = vmatprep.subr.mxu0 0.0
  %223 = vmatpush1.msra.mxu0 0.0
  %224 = vmatprep.subr.mxu0 0.0
  %225 = vmatpush1.msra.mxu0 0.0
  %226 = vmatprep.subr.mxu0 0.0
  %227 = vmatpush1.msra.mxu0 0.0
  %228 = vmatprep.subr.mxu0 0.0
  %229 = vmatpush1.msra.mxu0 0.0
  %230 = vmatprep.subr.mxu0 0.0
  %231 = vmatpush1.msra.mxu0 0.0
  %232 = vmatprep.subr.mxu0 0.0
  %233 = vmatpush1.msra.mxu0 0.0
  %234 = vmatprep.subr.mxu0 0.0
  %235 = vmatpush1.msra.mxu0 0.0
  %236 = vmatprep.subr.mxu0 0.0
  %237 = vmatpush1.msra.mxu0 0.0
  %238 = vmatprep.subr.mxu0 0.0
  %239 = vmatpush1.msra.mxu0 0.0
  %240 = vmatprep.subr.mxu0 0.0
  %241 = vmatpush1.msra.mxu0 0.0
  %242 = vmatprep.subr.mxu0 0.0
  %243 = vmatpush1.msra.mxu0 0.0
  %244 = vmatprep.subr.mxu0 0.0
  %245 = vmatpush1.msra.mxu0 0.0
  %246 = vmatprep.subr.mxu0 0.0
  %247 = vmatpush1.msra.mxu0 0.0
  %248 = vmatprep.subr.mxu0 0.0
  %249 = vmatpush1.msra.mxu0 0.0
  %250 = vmatprep.subr.mxu0 0.0
  %251 = vmatpush1.msra.mxu0 0.0
  %252 = vmatprep.subr.mxu0 0.0
  %253 = vmatpush1.msra.mxu0 0.0
  %254 = vmatprep.subr.mxu0 0.0
  %255 = vmatpush1.msra.mxu0 0.0
  %256 = vmatprep.subr.mxu0 0.0
  %257 = vmatpush1.msra.mxu0 0.0
  %258 = vmatprep.subr.mxu0 0.0
  %259 = vmatpush1.msra.mxu0 0.0
  %260 = vmatprep.subr.mxu0 0.0
  %261 = vmatpush1.msra.mxu0 0.0
  %262 = vmatprep.subr.mxu0 0.0
  %263 = vmatpush1.msra.mxu0 0.0
  %264 = vmatprep.subr.mxu0 0.0
  %265 = vmatpush1.msra.mxu0 0.0
  %266 = vmatprep.subr.mxu0 0.0
  %267 = vmatpush1.msra.mxu0 0.0
  %268 = vmatprep.subr.mxu0 0.0
  %269 = vmatpush1.msra.mxu0 0.0
  %270 = vmatprep.mubr.f32.mxu0 0.0
  %271 = vmatmul.mubr.f32.gmra.mrb[0].mxu0 %v122
  %v272 = vpop.f32.mrb[0].mxu0
  %v273 = vadd.f32 0.0, %v272
  %v274 = vpop.f32.mrb[0].mxu0
  %v275 = vadd.f32 0.0, %v274
  %276 = vdwg.mxu0
  %277 = vmatprep.subr.mxu0 0.0
  %278 = vmatpush1.msra.mxu0 %v133
  %279 = vmatprep.subr.mxu0 0.0
  %280 = vmatpush1.msra.mxu0 0.0
  %281 = vmatprep.subr.mxu0 0.0
  %282 = vmatpush1.msra.mxu0 0.0
  %283 = vmatprep.subr.mxu0 0.0
  %284 = vmatpush1.msra.mxu0 0.0
  %285 = vmatprep.subr.mxu0 0.0
  %286 = vmatpush1.msra.mxu0 0.0
  %287 = vmatprep.subr.mxu0 0.0
  %288 = vmatpush1.msra.mxu0 0.0
  %289 = vmatprep.subr.mxu0 0.0
  %290 = vmatpush1.msra.mxu0 0.0
  %291 = vmatprep.subr.mxu0 0.0
  %292 = vmatpush1.msra.mxu0 0.0
  %293 = vmatprep.subr.mxu0 0.0
  %294 = vmatpush1.msra.mxu0 0.0
  %295 = vmatprep.subr.mxu0 0.0
  %296 = vmatpush1.msra.mxu0 0.0
  %297 = vmatprep.subr.mxu0 0.0
  %298 = vmatpush1.msra.mxu0 0.0
  %299 = vmatprep.subr.mxu0 0.0
  %300 = vmatpush1.msra.mxu0 0.0
  %301 = vmatprep.subr.mxu0 0.0
  %302 = vmatpush1.msra.mxu0 0.0
  %303 = vmatprep.subr.mxu0 0.0
  %304 = vmatpush1.msra.mxu0 0.0
  %305 = vmatprep.subr.mxu0 0.0
  %306 = vmatpush1.msra.mxu0 0.0
  %307 = vmatprep.subr.mxu0 0.0
  %308 = vmatpush1.msra.mxu0 0.0
  %309 = vmatprep.subr.mxu0 0.0
  %310 = vmatpush1.msra.mxu0 0.0
  %311 = vmatprep.subr.mxu0 0.0
  %312 = vmatpush1.msra.mxu0 0.0
  %313 = vmatprep.subr.mxu0 0.0
  %314 = vmatpush1.msra.mxu0 0.0
  %315 = vmatprep.subr.mxu0 0.0
  %316 = vmatpush1.msra.mxu0 0.0
  %317 = vmatprep.subr.mxu0 0.0
  %318 = vmatpush1.msra.mxu0 0.0
  %319 = vmatprep.subr.mxu0 0.0
  %320 = vmatpush1.msra.mxu0 0.0
  %321 = vmatprep.subr.mxu0 0.0
  %322 = vmatpush1.msra.mxu0 0.0
  %323 = vmatprep.subr.mxu0 0.0
  %324 = vmatpush1.msra.mxu0 0.0
  %325 = vmatprep.subr.mxu0 0.0
  %326 = vmatpush1.msra.mxu0 0.0
  %327 = vmatprep.subr.mxu0 0.0
  %328 = vmatpush1.msra.mxu0 0.0
  %329 = vmatprep.subr.mxu0 0.0
  %330 = vmatpush1.msra.mxu0 0.0
  %331 = vmatprep.subr.mxu0 0.0
  %332 = vmatpush1.msra.mxu0 0.0
  %333 = vmatprep.subr.mxu0 0.0
  %334 = vmatpush1.msra.mxu0 0.0
  %335 = vmatprep.subr.mxu0 0.0
  %336 = vmatpush1.msra.mxu0 0.0
  %337 = vmatprep.subr.mxu0 0.0
  %338 = vmatpush1.msra.mxu0 0.0
  %339 = vmatprep.subr.mxu0 0.0
  %340 = vmatpush1.msra.mxu0 0.0
  %341 = vmatprep.mubr.f32.mxu0 0.0
  %342 = vmatmul.mubr.f32.gmra.mrb[0].mxu0 %v122
  %v343 = vpop.f32.mrb[0].mxu0
  %v344 = vadd.f32 0.0, %v343
  %v345 = vpop.f32.mrb[0].mxu0
  %346 = vdwg.mxu0
  %v348 = vsel %vm56, %v93, 0
  %v350 = vsel %vm124, %v94, 0
  %v352 = vsel %vm124, %v95, 0
  %v354 = vsel %vm124, %v96, 0
  %v356 = vsel %vm124, %v97, 0
  %v358 = vsel %vm124, %v98, 0
  %360 = vmatprep.subr.mxu0 %v352
  %361 = vmatpush1.msra.mxu0 %v350
  %362 = vmatprep.subr.mxu0 0.0
  %363 = vmatpush1.msra.mxu0 0.0
  %364 = vmatprep.subr.mxu0 0.0
  %365 = vmatpush1.msra.mxu0 0.0
  %366 = vmatprep.subr.mxu0 0.0
  %367 = vmatpush1.msra.mxu0 0.0
  %368 = vmatprep.subr.mxu0 0.0
  %369 = vmatpush1.msra.mxu0 0.0
  %370 = vmatprep.subr.mxu0 0.0
  %371 = vmatpush1.msra.mxu0 0.0
  %372 = vmatprep.subr.mxu0 0.0
  %373 = vmatpush1.msra.mxu0 0.0
  %374 = vmatprep.subr.mxu0 0.0
  %375 = vmatpush1.msra.mxu0 0.0
  %376 = vmatprep.subr.mxu0 0.0
  %377 = vmatpush1.msra.mxu0 0.0
  %378 = vmatprep.subr.mxu0 0.0
  %379 = vmatpush1.msra.mxu0 0.0
  %380 = vmatprep.subr.mxu0 0.0
  %381 = vmatpush1.msra.mxu0 0.0
  %382 = vmatprep.subr.mxu0 0.0
  %383 = vmatpush1.msra.mxu0 0.0
  %384 = vmatprep.subr.mxu0 0.0
  %385 = vmatpush1.msra.mxu0 0.0
  %386 = vmatprep.subr.mxu0 0.0
  %387 = vmatpush1.msra.mxu0 0.0
  %388 = vmatprep.subr.mxu0 0.0
  %389 = vmatpush1.msra.mxu0 0.0
  %390 = vmatprep.subr.mxu0 0.0
  %391 = vmatpush1.msra.mxu0 0.0
  %392 = vmatprep.subr.mxu0 0.0
  %393 = vmatpush1.msra.mxu0 0.0
  %394 = vmatprep.subr.mxu0 0.0
  %395 = vmatpush1.msra.mxu0 0.0
  %396 = vmatprep.subr.mxu0 0.0
  %397 = vmatpush1.msra.mxu0 0.0
  %398 = vmatprep.subr.mxu0 0.0
  %399 = vmatpush1.msra.mxu0 0.0
  %400 = vmatprep.subr.mxu0 0.0
  %401 = vmatpush1.msra.mxu0 0.0
  %402 = vmatprep.subr.mxu0 0.0
  %403 = vmatpush1.msra.mxu0 0.0
  %404 = vmatprep.subr.mxu0 0.0
  %405 = vmatpush1.msra.mxu0 0.0
  %406 = vmatprep.subr.mxu0 0.0
  %407 = vmatpush1.msra.mxu0 0.0
  %408 = vmatprep.subr.mxu0 0.0
  %409 = vmatpush1.msra.mxu0 0.0
  %410 = vmatprep.subr.mxu0 0.0
  %411 = vmatpush1.msra.mxu0 0.0
  %412 = vmatprep.subr.mxu0 0.0
  %413 = vmatpush1.msra.mxu0 0.0
  %414 = vmatprep.subr.mxu0 0.0
  %415 = vmatpush1.msra.mxu0 0.0
  %416 = vmatprep.subr.mxu0 0.0
  %417 = vmatpush1.msra.mxu0 0.0
  %418 = vmatprep.subr.mxu0 0.0
  %419 = vmatpush1.msra.mxu0 0.0
  %420 = vmatprep.subr.mxu0 0.0
  %421 = vmatpush1.msra.mxu0 0.0
  %422 = vmatprep.subr.mxu0 0.0
  %423 = vmatpush1.msra.mxu0 0.0
  %424 = vmatprep.mubr.f32.mxu0 0.0
  %425 = vmatmul.mubr.f32.gmra.mrb[0].mxu0 %v348
  %v426 = vpop.f32.mrb[0].mxu0
  %v427 = vadd.f32 %v202, %v426
  %v428 = vpop.f32.mrb[0].mxu0
  %v429 = vadd.f32 %v204, %v428
  %430 = vdwg.mxu0
  %431 = vmatprep.subr.mxu0 %v356
  %432 = vmatpush1.msra.mxu0 %v354
  %433 = vmatprep.subr.mxu0 0.0
  %434 = vmatpush1.msra.mxu0 0.0
  %435 = vmatprep.subr.mxu0 0.0
  %436 = vmatpush1.msra.mxu0 0.0
  %437 = vmatprep.subr.mxu0 0.0
  %438 = vmatpush1.msra.mxu0 0.0
  %439 = vmatprep.subr.mxu0 0.0
  %440 = vmatpush1.msra.mxu0 0.0
  %441 = vmatprep.subr.mxu0 0.0
  %442 = vmatpush1.msra.mxu0 0.0
  %443 = vmatprep.subr.mxu0 0.0
  %444 = vmatpush1.msra.mxu0 0.0
  %445 = vmatprep.subr.mxu0 0.0
  %446 = vmatpush1.msra.mxu0 0.0
  %447 = vmatprep.subr.mxu0 0.0
  %448 = vmatpush1.msra.mxu0 0.0
  %449 = vmatprep.subr.mxu0 0.0
  %450 = vmatpush1.msra.mxu0 0.0
  %451 = vmatprep.subr.mxu0 0.0
  %452 = vmatpush1.msra.mxu0 0.0
  %453 = vmatprep.subr.mxu0 0.0
  %454 = vmatpush1.msra.mxu0 0.0
  %455 = vmatprep.subr.mxu0 0.0
  %456 = vmatpush1.msra.mxu0 0.0
  %457 = vmatprep.subr.mxu0 0.0
  %458 = vmatpush1.msra.mxu0 0.0
  %459 = vmatprep.subr.mxu0 0.0
  %460 = vmatpush1.msra.mxu0 0.0
  %461 = vmatprep.subr.mxu0 0.0
  %462 = vmatpush1.msra.mxu0 0.0
  %463 = vmatprep.subr.mxu0 0.0
  %464 = vmatpush1.msra.mxu0 0.0
  %465 = vmatprep.subr.mxu0 0.0
  %466 = vmatpush1.msra.mxu0 0.0
  %467 = vmatprep.subr.mxu0 0.0
  %468 = vmatpush1.msra.mxu0 0.0
  %469 = vmatprep.subr.mxu0 0.0
  %470 = vmatpush1.msra.mxu0 0.0
  %471 = vmatprep.subr.mxu0 0.0
  %472 = vmatpush1.msra.mxu0 0.0
  %473 = vmatprep.subr.mxu0 0.0
  %474 = vmatpush1.msra.mxu0 0.0
  %475 = vmatprep.subr.mxu0 0.0
  %476 = vmatpush1.msra.mxu0 0.0
  %477 = vmatprep.subr.mxu0 0.0
  %478 = vmatpush1.msra.mxu0 0.0
  %479 = vmatprep.subr.mxu0 0.0
  %480 = vmatpush1.msra.mxu0 0.0
  %481 = vmatprep.subr.mxu0 0.0
  %482 = vmatpush1.msra.mxu0 0.0
  %483 = vmatprep.subr.mxu0 0.0
  %484 = vmatpush1.msra.mxu0 0.0
  %485 = vmatprep.subr.mxu0 0.0
  %486 = vmatpush1.msra.mxu0 0.0
  %487 = vmatprep.subr.mxu0 0.0
  %488 = vmatpush1.msra.mxu0 0.0
  %489 = vmatprep.subr.mxu0 0.0
  %490 = vmatpush1.msra.mxu0 0.0
  %491 = vmatprep.subr.mxu0 0.0
  %492 = vmatpush1.msra.mxu0 0.0
  %493 = vmatprep.subr.mxu0 0.0
  %494 = vmatpush1.msra.mxu0 0.0
  %495 = vmatprep.mubr.f32.mxu0 0.0
  %496 = vmatmul.mubr.f32.gmra.mrb[0].mxu0 %v348
  %v497 = vpop.f32.mrb[0].mxu0
  %v498 = vadd.f32 %v273, %v497
  %v499 = vpop.f32.mrb[0].mxu0
  %v500 = vadd.f32 %v275, %v499
  %501 = vdwg.mxu0
  %502 = vmatprep.subr.mxu0 0.0
  %503 = vmatpush1.msra.mxu0 %v358
  %504 = vmatprep.subr.mxu0 0.0
  %505 = vmatpush1.msra.mxu0 0.0
  %506 = vmatprep.subr.mxu0 0.0
  %507 = vmatpush1.msra.mxu0 0.0
  %508 = vmatprep.subr.mxu0 0.0
  %509 = vmatpush1.msra.mxu0 0.0
  %510 = vmatprep.subr.mxu0 0.0
  %511 = vmatpush1.msra.mxu0 0.0
  %512 = vmatprep.subr.mxu0 0.0
  %513 = vmatpush1.msra.mxu0 0.0
  %514 = vmatprep.subr.mxu0 0.0
  %515 = vmatpush1.msra.mxu0 0.0
  %516 = vmatprep.subr.mxu0 0.0
  %517 = vmatpush1.msra.mxu0 0.0
  %518 = vmatprep.subr.mxu0 0.0
  %519 = vmatpush1.msra.mxu0 0.0
  %520 = vmatprep.subr.mxu0 0.0
  %521 = vmatpush1.msra.mxu0 0.0
  %522 = vmatprep.subr.mxu0 0.0
  %523 = vmatpush1.msra.mxu0 0.0
  %524 = vmatprep.subr.mxu0 0.0
  %525 = vmatpush1.msra.mxu0 0.0
  %526 = vmatprep.subr.mxu0 0.0
  %527 = vmatpush1.msra.mxu0 0.0
  %528 = vmatprep.subr.mxu0 0.0
  %529 = vmatpush1.msra.mxu0 0.0
  %530 = vmatprep.subr.mxu0 0.0
  %531 = vmatpush1.msra.mxu0 0.0
  %532 = vmatprep.subr.mxu0 0.0
  %533 = vmatpush1.msra.mxu0 0.0
  %534 = vmatprep.subr.mxu0 0.0
  %535 = vmatpush1.msra.mxu0 0.0
  %536 = vmatprep.subr.mxu0 0.0
  %537 = vmatpush1.msra.mxu0 0.0
  %538 = vmatprep.subr.mxu0 0.0
  %539 = vmatpush1.msra.mxu0 0.0
  %540 = vmatprep.subr.mxu0 0.0
  %541 = vmatpush1.msra.mxu0 0.0
  %542 = vmatprep.subr.mxu0 0.0
  %543 = vmatpush1.msra.mxu0 0.0
  %544 = vmatprep.subr.mxu0 0.0
  %545 = vmatpush1.msra.mxu0 0.0
  %546 = vmatprep.subr.mxu0 0.0
  %547 = vmatpush1.msra.mxu0 0.0
  %548 = vmatprep.subr.mxu0 0.0
  %549 = vmatpush1.msra.mxu0 0.0
  %550 = vmatprep.subr.mxu0 0.0
  %551 = vmatpush1.msra.mxu0 0.0
  %552 = vmatprep.subr.mxu0 0.0
  %553 = vmatpush1.msra.mxu0 0.0
  %554 = vmatprep.subr.mxu0 0.0
  %555 = vmatpush1.msra.mxu0 0.0
  %556 = vmatprep.subr.mxu0 0.0
  %557 = vmatpush1.msra.mxu0 0.0
  %558 = vmatprep.subr.mxu0 0.0
  %559 = vmatpush1.msra.mxu0 0.0
  %560 = vmatprep.subr.mxu0 0.0
  %561 = vmatpush1.msra.mxu0 0.0
  %562 = vmatprep.subr.mxu0 0.0
  %563 = vmatpush1.msra.mxu0 0.0
  %564 = vmatprep.subr.mxu0 0.0
  %565 = vmatpush1.msra.mxu0 0.0
  %566 = vmatprep.mubr.f32.mxu0 0.0
  %567 = vmatmul.mubr.f32.gmra.mrb[0].mxu0 %v348
  %v568 = vpop.f32.mrb[0].mxu0
  %v569 = vadd.f32 %v344, %v568
  %v570 = vpop.f32.mrb[0].mxu0
  %571 = vdwg.mxu0
  %s572 = scalar_lea.vmem %s1, 16
  %v573 = vld [vmem:[%s572] sm:$0xff]
  %574 = vrot.lane.b32.xlu0 %v94, 126
  %v575 = vpop.permute.xlu0 %574
  %576 = vrot.lane.b32.xlu0 %v95, 126
  %v577 = vpop.permute.xlu0 %576
  %578 = vrot.lane.b32.xlu0 %v96, 126
  %v579 = vpop.permute.xlu0 %578
  %580 = vrot.lane.b32.xlu0 %v97, 126
  %v581 = vpop.permute.xlu0 %580
  %582 = vrot.lane.b32.xlu0 %v98, 126
  %v583 = vpop.permute.xlu0 %582
  %vm584 = vcmask 1031168
  %v585 = vsel %vm584, %v575, %v577
  %v586 = vsel %vm584, %v577, %v579
  %v587 = vsel %vm584, %v579, %v581
  %v588 = vsel %vm584, %v581, %v583
  %v590 = vsel %vm56, %v573, 0
  %v592 = vsel %vm124, %v585, 0
  %v594 = vsel %vm124, %v586, 0
  %v596 = vsel %vm124, %v587, 0
  %v598 = vsel %vm124, %v588, 0
  %v600 = vsel %vm124, %v583, 0
  %602 = vmatprep.subr.mxu0 %v594
  %603 = vmatpush1.msra.mxu0 %v592
  %604 = vmatprep.subr.mxu0 0.0
  %605 = vmatpush1.msra.mxu0 0.0
  %606 = vmatprep.subr.mxu0 0.0
  %607 = vmatpush1.msra.mxu0 0.0
  %608 = vmatprep.subr.mxu0 0.0
  %609 = vmatpush1.msra.mxu0 0.0
  %610 = vmatprep.subr.mxu0 0.0
  %611 = vmatpush1.msra.mxu0 0.0
  %612 = vmatprep.subr.mxu0 0.0
  %613 = vmatpush1.msra.mxu0 0.0
  %614 = vmatprep.subr.mxu0 0.0
  %615 = vmatpush1.msra.mxu0 0.0
  %616 = vmatprep.subr.mxu0 0.0
  %617 = vmatpush1.msra.mxu0 0.0
  %618 = vmatprep.subr.mxu0 0.0
  %619 = vmatpush1.msra.mxu0 0.0
  %620 = vmatprep.subr.mxu0 0.0
  %621 = vmatpush1.msra.mxu0 0.0
  %622 = vmatprep.subr.mxu0 0.0
  %623 = vmatpush1.msra.mxu0 0.0
  %624 = vmatprep.subr.mxu0 0.0
  %625 = vmatpush1.msra.mxu0 0.0
  %626 = vmatprep.subr.mxu0 0.0
  %627 = vmatpush1.msra.mxu0 0.0
  %628 = vmatprep.subr.mxu0 0.0
  %629 = vmatpush1.msra.mxu0 0.0
  %630 = vmatprep.subr.mxu0 0.0
  %631 = vmatpush1.msra.mxu0 0.0
  %632 = vmatprep.subr.mxu0 0.0
  %633 = vmatpush1.msra.mxu0 0.0
  %634 = vmatprep.subr.mxu0 0.0
  %635 = vmatpush1.msra.mxu0 0.0
  %636 = vmatprep.subr.mxu0 0.0
  %637 = vmatpush1.msra.mxu0 0.0
  %638 = vmatprep.subr.mxu0 0.0
  %639 = vmatpush1.msra.mxu0 0.0
  %640 = vmatprep.subr.mxu0 0.0
  %641 = vmatpush1.msra.mxu0 0.0
  %642 = vmatprep.subr.mxu0 0.0
  %643 = vmatpush1.msra.mxu0 0.0
  %644 = vmatprep.subr.mxu0 0.0
  %645 = vmatpush1.msra.mxu0 0.0
  %646 = vmatprep.subr.mxu0 0.0
  %647 = vmatpush1.msra.mxu0 0.0
  %648 = vmatprep.subr.mxu0 0.0
  %649 = vmatpush1.msra.mxu0 0.0
  %650 = vmatprep.subr.mxu0 0.0
  %651 = vmatpush1.msra.mxu0 0.0
  %652 = vmatprep.subr.mxu0 0.0
  %653 = vmatpush1.msra.mxu0 0.0
  %654 = vmatprep.subr.mxu0 0.0
  %655 = vmatpush1.msra.mxu0 0.0
  %656 = vmatprep.subr.mxu0 0.0
  %657 = vmatpush1.msra.mxu0 0.0
  %658 = vmatprep.subr.mxu0 0.0
  %659 = vmatpush1.msra.mxu0 0.0
  %660 = vmatprep.subr.mxu0 0.0
  %661 = vmatpush1.msra.mxu0 0.0
  %662 = vmatprep.subr.mxu0 0.0
  %663 = vmatpush1.msra.mxu0 0.0
  %664 = vmatprep.subr.mxu0 0.0
  %665 = vmatpush1.msra.mxu0 0.0
  %666 = vmatprep.mubr.f32.mxu0 0.0
  %667 = vmatmul.mubr.f32.gmra.mrb[0].mxu0 %v590
  %v668 = vpop.f32.mrb[0].mxu0
  %v669 = vadd.f32 0.0, %v668
  %v670 = vpop.f32.mrb[0].mxu0
  %v671 = vadd.f32 0.0, %v670
  %672 = vdwg.mxu0
  %673 = vmatprep.subr.mxu0 %v598
  %674 = vmatpush1.msra.mxu0 %v596
  %675 = vmatprep.subr.mxu0 0.0
  %676 = vmatpush1.msra.mxu0 0.0
  %677 = vmatprep.subr.mxu0 0.0
  %678 = vmatpush1.msra.mxu0 0.0
  %679 = vmatprep.subr.mxu0 0.0
  %680 = vmatpush1.msra.mxu0 0.0
  %681 = vmatprep.subr.mxu0 0.0
  %682 = vmatpush1.msra.mxu0 0.0
  %683 = vmatprep.subr.mxu0 0.0
  %684 = vmatpush1.msra.mxu0 0.0
  %685 = vmatprep.subr.mxu0 0.0
  %686 = vmatpush1.msra.mxu0 0.0
  %687 = vmatprep.subr.mxu0 0.0
  %688 = vmatpush1.msra.mxu0 0.0
  %689 = vmatprep.subr.mxu0 0.0
  %690 = vmatpush1.msra.mxu0 0.0
  %691 = vmatprep.subr.mxu0 0.0
  %692 = vmatpush1.msra.mxu0 0.0
  %693 = vmatprep.subr.mxu0 0.0
  %694 = vmatpush1.msra.mxu0 0.0
  %695 = vmatprep.subr.mxu0 0.0
  %696 = vmatpush1.msra.mxu0 0.0
  %697 = vmatprep.subr.mxu0 0.0
  %698 = vmatpush1.msra.mxu0 0.0
  %699 = vmatprep.subr.mxu0 0.0
  %700 = vmatpush1.msra.mxu0 0.0
  %701 = vmatprep.subr.mxu0 0.0
  %702 = vmatpush1.msra.mxu0 0.0
  %703 = vmatprep.subr.mxu0 0.0
  %704 = vmatpush1.msra.mxu0 0.0
  %705 = vmatprep.subr.mxu0 0.0
  %706 = vmatpush1.msra.mxu0 0.0
  %707 = vmatprep.subr.mxu0 0.0
  %708 = vmatpush1.msra.mxu0 0.0
  %709 = vmatprep.subr.mxu0 0.0
  %710 = vmatpush1.msra.mxu0 0.0
  %711 = vmatprep.subr.mxu0 0.0
  %712 = vmatpush1.msra.mxu0 0.0
  %713 = vmatprep.subr.mxu0 0.0
  %714 = vmatpush1.msra.mxu0 0.0
  %715 = vmatprep.subr.mxu0 0.0
  %716 = vmatpush1.msra.mxu0 0.0
  %717 = vmatprep.subr.mxu0 0.0
  %718 = vmatpush1.msra.mxu0 0.0
  %719 = vmatprep.subr.mxu0 0.0
  %720 = vmatpush1.msra.mxu0 0.0
  %721 = vmatprep.subr.mxu0 0.0
  %722 = vmatpush1.msra.mxu0 0.0
  %723 = vmatprep.subr.mxu0 0.0
  %724 = vmatpush1.msra.mxu0 0.0
  %725 = vmatprep.subr.mxu0 0.0
  %726 = vmatpush1.msra.mxu0 0.0
  %727 = vmatprep.subr.mxu0 0.0
  %728 = vmatpush1.msra.mxu0 0.0
  %729 = vmatprep.subr.mxu0 0.0
  %730 = vmatpush1.msra.mxu0 0.0
  %731 = vmatprep.subr.mxu0 0.0
  %732 = vmatpush1.msra.mxu0 0.0
  %733 = vmatprep.subr.mxu0 0.0
  %734 = vmatpush1.msra.mxu0 0.0
  %735 = vmatprep.subr.mxu0 0.0
  %736 = vmatpush1.msra.mxu0 0.0
  %737 = vmatprep.mubr.f32.mxu0 0.0
  %738 = vmatmul.mubr.f32.gmra.mrb[0].mxu0 %v590
  %v739 = vpop.f32.mrb[0].mxu0
  %v740 = vadd.f32 0.0, %v739
  %v741 = vpop.f32.mrb[0].mxu0
  %v742 = vadd.f32 0.0, %v741
  %743 = vdwg.mxu0
  %744 = vmatprep.subr.mxu0 0.0
  %745 = vmatpush1.msra.mxu0 %v600
  %746 = vmatprep.subr.mxu0 0.0
  %747 = vmatpush1.msra.mxu0 0.0
  %748 = vmatprep.subr.mxu0 0.0
  %749 = vmatpush1.msra.mxu0 0.0
  %750 = vmatprep.subr.mxu0 0.0
  %751 = vmatpush1.msra.mxu0 0.0
  %752 = vmatprep.subr.mxu0 0.0
  %753 = vmatpush1.msra.mxu0 0.0
  %754 = vmatprep.subr.mxu0 0.0
  %755 = vmatpush1.msra.mxu0 0.0
  %756 = vmatprep.subr.mxu0 0.0
  %757 = vmatpush1.msra.mxu0 0.0
  %758 = vmatprep.subr.mxu0 0.0
  %759 = vmatpush1.msra.mxu0 0.0
  %760 = vmatprep.subr.mxu0 0.0
  %761 = vmatpush1.msra.mxu0 0.0
  %762 = vmatprep.subr.mxu0 0.0
  %763 = vmatpush1.msra.mxu0 0.0
  %764 = vmatprep.subr.mxu0 0.0
  %765 = vmatpush1.msra.mxu0 0.0
  %766 = vmatprep.subr.mxu0 0.0
  %767 = vmatpush1.msra.mxu0 0.0
  %768 = vmatprep.subr.mxu0 0.0
  %769 = vmatpush1.msra.mxu0 0.0
  %770 = vmatprep.subr.mxu0 0.0
  %771 = vmatpush1.msra.mxu0 0.0
  %772 = vmatprep.subr.mxu0 0.0
  %773 = vmatpush1.msra.mxu0 0.0
  %774 = vmatprep.subr.mxu0 0.0
  %775 = vmatpush1.msra.mxu0 0.0
  %776 = vmatprep.subr.mxu0 0.0
  %777 = vmatpush1.msra.mxu0 0.0
  %778 = vmatprep.subr.mxu0 0.0
  %779 = vmatpush1.msra.mxu0 0.0
  %780 = vmatprep.subr.mxu0 0.0
  %781 = vmatpush1.msra.mxu0 0.0
  %782 = vmatprep.subr.mxu0 0.0
  %783 = vmatpush1.msra.mxu0 0.0
  %784 = vmatprep.subr.mxu0 0.0
  %785 = vmatpush1.msra.mxu0 0.0
  %786 = vmatprep.subr.mxu0 0.0
  %787 = vmatpush1.msra.mxu0 0.0
  %788 = vmatprep.subr.mxu0 0.0
  %789 = vmatpush1.msra.mxu0 0.0
  %790 = vmatprep.subr.mxu0 0.0
  %791 = vmatpush1.msra.mxu0 0.0
  %792 = vmatprep.subr.mxu0 0.0
  %793 = vmatpush1.msra.mxu0 0.0
  %794 = vmatprep.subr.mxu0 0.0
  %795 = vmatpush1.msra.mxu0 0.0
  %796 = vmatprep.subr.mxu0 0.0
  %797 = vmatpush1.msra.mxu0 0.0
  %798 = vmatprep.subr.mxu0 0.0
  %799 = vmatpush1.msra.mxu0 0.0
  %800 = vmatprep.subr.mxu0 0.0
  %801 = vmatpush1.msra.mxu0 0.0
  %802 = vmatprep.subr.mxu0 0.0
  %803 = vmatpush1.msra.mxu0 0.0
  %804 = vmatprep.subr.mxu0 0.0
  %805 = vmatpush1.msra.mxu0 0.0
  %806 = vmatprep.subr.mxu0 0.0
  %807 = vmatpush1.msra.mxu0 0.0
  %808 = vmatprep.mubr.f32.mxu0 0.0
  %809 = vmatmul.mubr.f32.gmra.mrb[0].mxu0 %v590
  %v810 = vpop.f32.mrb[0].mxu0
  %v811 = vadd.f32 0.0, %v810
  %v812 = vpop.f32.mrb[0].mxu0
  %813 = vdwg.mxu0
  %v814 = vadd.f32 %v427, %v669
  %v815 = vadd.f32 %v429, %v671
  %v816 = vadd.f32 %v498, %v740
  %v817 = vadd.f32 %v500, %v742
  %v818 = vadd.f32 %v569, %v811
  %v819 = vld [vmem:[%s6] sm:$0xff]
  %821 = vset.pattern.permute.xlu0 0
  %822 = vperm.xlu0 %821, %v819
  %v823 = vpop.permute.xlu0 %822
  %v825 = vadd.f32 %v814, %v823
  %v826 = vadd.f32 %v815, %v823
  %v827 = vadd.f32 %v816, %v823
  %v828 = vadd.f32 %v817, %v823
  %v829 = vadd.f32 %v818, %v823
  %v830 = vmax.f32 %v825, 0.0
  %v831 = vmax.f32 %v826, 0.0
  %v832 = vmax.f32 %v827, 0.0
  %v833 = vmax.f32 %v828, 0.0
  %v834 = vmax.f32 %v829, 0.0
  %837 = vrot.lane.b32.xlu0 %v830, 1
  %v838 = vpop.permute.xlu0 %837
  %839 = vrot.lane.b32.xlu0 %v831, 1
  %v840 = vpop.permute.xlu0 %839
  %v841 = vsel %vm65, %v838, %v840
  %vm845 = vcmask 1047560
  %846 = vst.msk [vmem:[#allocation2] sm:$0xff] %vm845, %v838
  %847 = vst [vmem:[#allocation2 + $0x8] sm:$0xff] %v841
  %848 = vst.msk [vmem:[#allocation2 + $0x10] sm:$0xff] %vm65, %v840
  %852 = vrot.lane.b32.xlu0 %v832, 1
  %v853 = vpop.permute.xlu0 %852
  %854 = vrot.lane.b32.xlu0 %v833, 1
  %v855 = vpop.permute.xlu0 %854
  %856 = vrot.lane.b32.xlu0 %v834, 1
  %v857 = vpop.permute.xlu0 %856
  %v858 = vsel %vm65, %v853, %v855
  %v859 = vsel %vm65, %v855, %v857
  %vm863 = vcmask 1047576
  %864 = vst.msk [vmem:[#allocation2 + $0x10] sm:$0xff] %vm863, %v853
  %865 = vst [vmem:[#allocation2 + $0x18] sm:$0xff] %v858
  %866 = vst.msk [vmem:[#allocation2 + $0x20] sm:$0xff] %vm83, %v859
  %v867 = vld [vmem:[%s2] sm:$0xff]
  %v868 = vld [vmem:[#allocation2] sm:$0xff]
  %v869 = vld [vmem:[#allocation2 + $0x8] sm:$0xff]
  %v870 = vld [vmem:[#allocation2 + $0x10] sm:$0xff]
  %v871 = vld [vmem:[#allocation2 + $0x18] sm:$0xff]
  %v872 = vld [vmem:[#allocation2 + $0x20] sm:$0xff]
  %s873 = scalar_lea.vmem %s2, 8
  %v874 = vld [vmem:[%s873] sm:$0xff]
  %880 = vrot.lane.b32.xlu0 %v868, 127
  %v881 = vpop.permute.xlu0 %880
  %882 = vrot.lane.b32.xlu0 %v869, 127
  %v883 = vpop.permute.xlu0 %882
  %884 = vrot.lane.b32.xlu0 %v870, 127
  %v885 = vpop.permute.xlu0 %884
  %886 = vrot.lane.b32.xlu0 %v871, 127
  %v887 = vpop.permute.xlu0 %886
  %888 = vrot.lane.b32.xlu0 %v872, 127
  %v889 = vpop.permute.xlu0 %888
  %v890 = vsel %vm116, %v881, %v883
  %v891 = vsel %vm116, %v883, %v885
  %v892 = vsel %vm116, %v885, %v887
  %v893 = vsel %vm116, %v887, %v889
  %vm899 = vcmask 64512
  %v901 = vsel %vm899, %v874, 0
  %903 = vmatprep.subr.mxu0 %v891
  %904 = vmatpush1.msra.mxu0 %v890
  %905 = vmatprep.subr.mxu0 0.0
  %906 = vmatpush1.msra.mxu0 0.0
  %907 = vmatprep.subr.mxu0 0.0
  %908 = vmatpush1.msra.mxu0 0.0
  %909 = vmatprep.subr.mxu0 0.0
  %910 = vmatpush1.msra.mxu0 0.0
  %911 = vmatprep.subr.mxu0 0.0
  %912 = vmatpush1.msra.mxu0 0.0
  %913 = vmatprep.subr.mxu0 0.0
  %914 = vmatpush1.msra.mxu0 0.0
  %915 = vmatprep.subr.mxu0 0.0
  %916 = vmatpush1.msra.mxu0 0.0
  %917 = vmatprep.subr.mxu0 0.0
  %918 = vmatpush1.msra.mxu0 0.0
  %919 = vmatprep.subr.mxu0 0.0
  %920 = vmatpush1.msra.mxu0 0.0
  %921 = vmatprep.subr.mxu0 0.0
  %922 = vmatpush1.msra.mxu0 0.0
  %923 = vmatprep.subr.mxu0 0.0
  %924 = vmatpush1.msra.mxu0 0.0
  %925 = vmatprep.subr.mxu0 0.0
  %926 = vmatpush1.msra.mxu0 0.0
  %927 = vmatprep.subr.mxu0 0.0
  %928 = vmatpush1.msra.mxu0 0.0
  %929 = vmatprep.subr.mxu0 0.0
  %930 = vmatpush1.msra.mxu0 0.0
  %931 = vmatprep.subr.mxu0 0.0
  %932 = vmatpush1.msra.mxu0 0.0
  %933 = vmatprep.subr.mxu0 0.0
  %934 = vmatpush1.msra.mxu0 0.0
  %935 = vmatprep.subr.mxu0 0.0
  %936 = vmatpush1.msra.mxu0 0.0
  %937 = vmatprep.subr.mxu0 0.0
  %938 = vmatpush1.msra.mxu0 0.0
  %939 = vmatprep.subr.mxu0 0.0
  %940 = vmatpush1.msra.mxu0 0.0
  %941 = vmatprep.subr.mxu0 0.0
  %942 = vmatpush1.msra.mxu0 0.0
  %943 = vmatprep.subr.mxu0 0.0
  %944 = vmatpush1.msra.mxu0 0.0
  %945 = vmatprep.subr.mxu0 0.0
  %946 = vmatpush1.msra.mxu0 0.0
  %947 = vmatprep.subr.mxu0 0.0
  %948 = vmatpush1.msra.mxu0 0.0
  %949 = vmatprep.subr.mxu0 0.0
  %950 = vmatpush1.msra.mxu0 0.0
  %951 = vmatprep.subr.mxu0 0.0
  %952 = vmatpush1.msra.mxu0 0.0
  %953 = vmatprep.subr.mxu0 0.0
  %954 = vmatpush1.msra.mxu0 0.0
  %955 = vmatprep.subr.mxu0 0.0
  %956 = vmatpush1.msra.mxu0 0.0
  %957 = vmatprep.subr.mxu0 0.0
  %958 = vmatpush1.msra.mxu0 0.0
  %959 = vmatprep.subr.mxu0 0.0
  %960 = vmatpush1.msra.mxu0 0.0
  %961 = vmatprep.subr.mxu0 0.0
  %962 = vmatpush1.msra.mxu0 0.0
  %963 = vmatprep.subr.mxu0 0.0
  %964 = vmatpush1.msra.mxu0 0.0
  %965 = vmatprep.subr.mxu0 0.0
  %966 = vmatpush1.msra.mxu0 0.0
  %967 = vmatprep.mubr.f32.mxu0 0.0
  %968 = vmatmul.mubr.f32.gmra.mrb[0].mxu0 %v901
  %v969 = vpop.f32.mrb[0].mxu0
  %v970 = vadd.f32 0.0, %v969
  %v971 = vpop.f32.mrb[0].mxu0
  %v972 = vadd.f32 0.0, %v971
  %973 = vdwg.mxu0
  %974 = vmatprep.subr.mxu0 %v893
  %975 = vmatpush1.msra.mxu0 %v892
  %976 = vmatprep.subr.mxu0 0.0
  %977 = vmatpush1.msra.mxu0 0.0
  %978 = vmatprep.subr.mxu0 0.0
  %979 = vmatpush1.msra.mxu0 0.0
  %980 = vmatprep.subr.mxu0 0.0
  %981 = vmatpush1.msra.mxu0 0.0
  %982 = vmatprep.subr.mxu0 0.0
  %983 = vmatpush1.msra.mxu0 0.0
  %984 = vmatprep.subr.mxu0 0.0
  %985 = vmatpush1.msra.mxu0 0.0
  %986 = vmatprep.subr.mxu0 0.0
  %987 = vmatpush1.msra.mxu0 0.0
  %988 = vmatprep.subr.mxu0 0.0
  %989 = vmatpush1.msra.mxu0 0.0
  %990 = vmatprep.subr.mxu0 0.0
  %991 = vmatpush1.msra.mxu0 0.0
  %992 = vmatprep.subr.mxu0 0.0
  %993 = vmatpush1.msra.mxu0 0.0
  %994 = vmatprep.subr.mxu0 0.0
  %995 = vmatpush1.msra.mxu0 0.0
  %996 = vmatprep.subr.mxu0 0.0
  %997 = vmatpush1.msra.mxu0 0.0
  %998 = vmatprep.subr.mxu0 0.0
  %999 = vmatpush1.msra.mxu0 0.0
  %1000 = vmatprep.subr.mxu0 0.0
  %1001 = vmatpush1.msra.mxu0 0.0
  %1002 = vmatprep.subr.mxu0 0.0
  %1003 = vmatpush1.msra.mxu0 0.0
  %1004 = vmatprep.subr.mxu0 0.0
  %1005 = vmatpush1.msra.mxu0 0.0
  %1006 = vmatprep.subr.mxu0 0.0
  %1007 = vmatpush1.msra.mxu0 0.0
  %1008 = vmatprep.subr.mxu0 0.0
  %1009 = vmatpush1.msra.mxu0 0.0
  %1010 = vmatprep.subr.mxu0 0.0
  %1011 = vmatpush1.msra.mxu0 0.0
  %1012 = vmatprep.subr.mxu0 0.0
  %1013 = vmatpush1.msra.mxu0 0.0
  %1014 = vmatprep.subr.mxu0 0.0
  %1015 = vmatpush1.msra.mxu0 0.0
  %1016 = vmatprep.subr.mxu0 0.0
  %1017 = vmatpush1.msra.mxu0 0.0
  %1018 = vmatprep.subr.mxu0 0.0
  %1019 = vmatpush1.msra.mxu0 0.0
  %1020 = vmatprep.subr.mxu0 0.0
  %1021 = vmatpush1.msra.mxu0 0.0
  %1022 = vmatprep.subr.mxu0 0.0
  %1023 = vmatpush1.msra.mxu0 0.0
  %1024 = vmatprep.subr.mxu0 0.0
  %1025 = vmatpush1.msra.mxu0 0.0
  %1026 = vmatprep.subr.mxu0 0.0
  %1027 = vmatpush1.msra.mxu0 0.0
  %1028 = vmatprep.subr.mxu0 0.0
  %1029 = vmatpush1.msra.mxu0 0.0
  %1030 = vmatprep.subr.mxu0 0.0
  %1031 = vmatpush1.msra.mxu0 0.0
  %1032 = vmatprep.subr.mxu0 0.0
  %1033 = vmatpush1.msra.mxu0 0.0
  %1034 = vmatprep.subr.mxu0 0.0
  %1035 = vmatpush1.msra.mxu0 0.0
  %1036 = vmatprep.subr.mxu0 0.0
  %1037 = vmatpush1.msra.mxu0 0.0
  %1038 = vmatprep.mubr.f32.mxu0 0.0
  %1039 = vmatmul.mubr.f32.gmra.mrb[0].mxu0 %v901
  %v1040 = vpop.f32.mrb[0].mxu0
  %v1041 = vadd.f32 0.0, %v1040
  %v1042 = vpop.f32.mrb[0].mxu0
  %v1043 = vadd.f32 0.0, %v1042
  %1044 = vdwg.mxu0
  %1045 = vmatprep.subr.mxu0 0.0
  %1046 = vmatpush1.msra.mxu0 %v889
  %1047 = vmatprep.subr.mxu0 0.0
  %1048 = vmatpush1.msra.mxu0 0.0
  %1049 = vmatprep.subr.mxu0 0.0
  %1050 = vmatpush1.msra.mxu0 0.0
  %1051 = vmatprep.subr.mxu0 0.0
  %1052 = vmatpush1.msra.mxu0 0.0
  %1053 = vmatprep.subr.mxu0 0.0
  %1054 = vmatpush1.msra.mxu0 0.0
  %1055 = vmatprep.subr.mxu0 0.0
  %1056 = vmatpush1.msra.mxu0 0.0
  %1057 = vmatprep.subr.mxu0 0.0
  %1058 = vmatpush1.msra.mxu0 0.0
  %1059 = vmatprep.subr.mxu0 0.0
  %1060 = vmatpush1.msra.mxu0 0.0
  %1061 = vmatprep.subr.mxu0 0.0
  %1062 = vmatpush1.msra.mxu0 0.0
  %1063 = vmatprep.subr.mxu0 0.0
  %1064 = vmatpush1.msra.mxu0 0.0
  %1065 = vmatprep.subr.mxu0 0.0
  %1066 = vmatpush1.msra.mxu0 0.0
  %1067 = vmatprep.subr.mxu0 0.0
  %1068 = vmatpush1.msra.mxu0 0.0
  %1069 = vmatprep.subr.mxu0 0.0
  %1070 = vmatpush1.msra.mxu0 0.0
  %1071 = vmatprep.subr.mxu0 0.0
  %1072 = vmatpush1.msra.mxu0 0.0
  %1073 = vmatprep.subr.mxu0 0.0
  %1074 = vmatpush1.msra.mxu0 0.0
  %1075 = vmatprep.subr.mxu0 0.0
  %1076 = vmatpush1.msra.mxu0 0.0
  %1077 = vmatprep.subr.mxu0 0.0
  %1078 = vmatpush1.msra.mxu0 0.0
  %1079 = vmatprep.subr.mxu0 0.0
  %1080 = vmatpush1.msra.mxu0 0.0
  %1081 = vmatprep.subr.mxu0 0.0
  %1082 = vmatpush1.msra.mxu0 0.0
  %1083 = vmatprep.subr.mxu0 0.0
  %1084 = vmatpush1.msra.mxu0 0.0
  %1085 = vmatprep.subr.mxu0 0.0
  %1086 = vmatpush1.msra.mxu0 0.0
  %1087 = vmatprep.subr.mxu0 0.0
  %1088 = vmatpush1.msra.mxu0 0.0
  %1089 = vmatprep.subr.mxu0 0.0
  %1090 = vmatpush1.msra.mxu0 0.0
  %1091 = vmatprep.subr.mxu0 0.0
  %1092 = vmatpush1.msra.mxu0 0.0
  %1093 = vmatprep.subr.mxu0 0.0
  %1094 = vmatpush1.msra.mxu0 0.0
  %1095 = vmatprep.subr.mxu0 0.0
  %1096 = vmatpush1.msra.mxu0 0.0
  %1097 = vmatprep.subr.mxu0 0.0
  %1098 = vmatpush1.msra.mxu0 0.0
  %1099 = vmatprep.subr.mxu0 0.0
  %1100 = vmatpush1.msra.mxu0 0.0
  %1101 = vmatprep.subr.mxu0 0.0
  %1102 = vmatpush1.msra.mxu0 0.0
  %1103 = vmatprep.subr.mxu0 0.0
  %1104 = vmatpush1.msra.mxu0 0.0
  %1105 = vmatprep.subr.mxu0 0.0
  %1106 = vmatpush1.msra.mxu0 0.0
  %1107 = vmatprep.subr.mxu0 0.0
  %1108 = vmatpush1.msra.mxu0 0.0
  %1109 = vmatprep.mubr.f32.mxu0 0.0
  %1110 = vmatmul.mubr.f32.gmra.mrb[0].mxu0 %v901
  %v1111 = vpop.f32.mrb[0].mxu0
  %v1112 = vadd.f32 0.0, %v1111
  %v1113 = vpop.f32.mrb[0].mxu0
  %1114 = vdwg.mxu0
  %v1116 = vsel %vm899, %v867, 0
  %1118 = vmatprep.subr.mxu0 %v869
  %1119 = vmatpush1.msra.mxu0 %v868
  %1120 = vmatprep.subr.mxu0 0.0
  %1121 = vmatpush1.msra.mxu0 0.0
  %1122 = vmatprep.subr.mxu0 0.0
  %1123 = vmatpush1.msra.mxu0 0.0
  %1124 = vmatprep.subr.mxu0 0.0
  %1125 = vmatpush1.msra.mxu0 0.0
  %1126 = vmatprep.subr.mxu0 0.0
  %1127 = vmatpush1.msra.mxu0 0.0
  %1128 = vmatprep.subr.mxu0 0.0
  %1129 = vmatpush1.msra.mxu0 0.0
  %1130 = vmatprep.subr.mxu0 0.0
  %1131 = vmatpush1.msra.mxu0 0.0
  %1132 = vmatprep.subr.mxu0 0.0
  %1133 = vmatpush1.msra.mxu0 0.0
  %1134 = vmatprep.subr.mxu0 0.0
  %1135 = vmatpush1.msra.mxu0 0.0
  %1136 = vmatprep.subr.mxu0 0.0
  %1137 = vmatpush1.msra.mxu0 0.0
  %1138 = vmatprep.subr.mxu0 0.0
  %1139 = vmatpush1.msra.mxu0 0.0
  %1140 = vmatprep.subr.mxu0 0.0
  %1141 = vmatpush1.msra.mxu0 0.0
  %1142 = vmatprep.subr.mxu0 0.0
  %1143 = vmatpush1.msra.mxu0 0.0
  %1144 = vmatprep.subr.mxu0 0.0
  %1145 = vmatpush1.msra.mxu0 0.0
  %1146 = vmatprep.subr.mxu0 0.0
  %1147 = vmatpush1.msra.mxu0 0.0
  %1148 = vmatprep.subr.mxu0 0.0
  %1149 = vmatpush1.msra.mxu0 0.0
  %1150 = vmatprep.subr.mxu0 0.0
  %1151 = vmatpush1.msra.mxu0 0.0
  %1152 = vmatprep.subr.mxu0 0.0
  %1153 = vmatpush1.msra.mxu0 0.0
  %1154 = vmatprep.subr.mxu0 0.0
  %1155 = vmatpush1.msra.mxu0 0.0
  %1156 = vmatprep.subr.mxu0 0.0
  %1157 = vmatpush1.msra.mxu0 0.0
  %1158 = vmatprep.subr.mxu0 0.0
  %1159 = vmatpush1.msra.mxu0 0.0
  %1160 = vmatprep.subr.mxu0 0.0
  %1161 = vmatpush1.msra.mxu0 0.0
  %1162 = vmatprep.subr.mxu0 0.0
  %1163 = vmatpush1.msra.mxu0 0.0
  %1164 = vmatprep.subr.mxu0 0.0
  %1165 = vmatpush1.msra.mxu0 0.0
  %1166 = vmatprep.subr.mxu0 0.0
  %1167 = vmatpush1.msra.mxu0 0.0
  %1168 = vmatprep.subr.mxu0 0.0
  %1169 = vmatpush1.msra.mxu0 0.0
  %1170 = vmatprep.subr.mxu0 0.0
  %1171 = vmatpush1.msra.mxu0 0.0
  %1172 = vmatprep.subr.mxu0 0.0
  %1173 = vmatpush1.msra.mxu0 0.0
  %1174 = vmatprep.subr.mxu0 0.0
  %1175 = vmatpush1.msra.mxu0 0.0
  %1176 = vmatprep.subr.mxu0 0.0
  %1177 = vmatpush1.msra.mxu0 0.0
  %1178 = vmatprep.subr.mxu0 0.0
  %1179 = vmatpush1.msra.mxu0 0.0
  %1180 = vmatprep.subr.mxu0 0.0
  %1181 = vmatpush1.msra.mxu0 0.0
  %1182 = vmatprep.mubr.f32.mxu0 0.0
  %1183 = vmatmul.mubr.f32.gmra.mrb[0].mxu0 %v1116
  %v1184 = vpop.f32.mrb[0].mxu0
  %v1185 = vadd.f32 %v970, %v1184
  %v1186 = vpop.f32.mrb[0].mxu0
  %v1187 = vadd.f32 %v972, %v1186
  %1188 = vdwg.mxu0
  %1189 = vmatprep.subr.mxu0 %v871
  %1190 = vmatpush1.msra.mxu0 %v870
  %1191 = vmatprep.subr.mxu0 0.0
  %1192 = vmatpush1.msra.mxu0 0.0
  %1193 = vmatprep.subr.mxu0 0.0
  %1194 = vmatpush1.msra.mxu0 0.0
  %1195 = vmatprep.subr.mxu0 0.0
  %1196 = vmatpush1.msra.mxu0 0.0
  %1197 = vmatprep.subr.mxu0 0.0
  %1198 = vmatpush1.msra.mxu0 0.0
  %1199 = vmatprep.subr.mxu0 0.0
  %1200 = vmatpush1.msra.mxu0 0.0
  %1201 = vmatprep.subr.mxu0 0.0
  %1202 = vmatpush1.msra.mxu0 0.0
  %1203 = vmatprep.subr.mxu0 0.0
  %1204 = vmatpush1.msra.mxu0 0.0
  %1205 = vmatprep.subr.mxu0 0.0
  %1206 = vmatpush1.msra.mxu0 0.0
  %1207 = vmatprep.subr.mxu0 0.0
  %1208 = vmatpush1.msra.mxu0 0.0
  %1209 = vmatprep.subr.mxu0 0.0
  %1210 = vmatpush1.msra.mxu0 0.0
  %1211 = vmatprep.subr.mxu0 0.0
  %1212 = vmatpush1.msra.mxu0 0.0
  %1213 = vmatprep.subr.mxu0 0.0
  %1214 = vmatpush1.msra.mxu0 0.0
  %1215 = vmatprep.subr.mxu0 0.0
  %1216 = vmatpush1.msra.mxu0 0.0
  %1217 = vmatprep.subr.mxu0 0.0
  %1218 = vmatpush1.msra.mxu0 0.0
  %1219 = vmatprep.subr.mxu0 0.0
  %1220 = vmatpush1.msra.mxu0 0.0
  %1221 = vmatprep.subr.mxu0 0.0
  %1222 = vmatpush1.msra.mxu0 0.0
  %1223 = vmatprep.subr.mxu0 0.0
  %1224 = vmatpush1.msra.mxu0 0.0
  %1225 = vmatprep.subr.mxu0 0.0
  %1226 = vmatpush1.msra.mxu0 0.0
  %1227 = vmatprep.subr.mxu0 0.0
  %1228 = vmatpush1.msra.mxu0 0.0
  %1229 = vmatprep.subr.mxu0 0.0
  %1230 = vmatpush1.msra.mxu0 0.0
  %1231 = vmatprep.subr.mxu0 0.0
  %1232 = vmatpush1.msra.mxu0 0.0
  %1233 = vmatprep.subr.mxu0 0.0
  %1234 = vmatpush1.msra.mxu0 0.0
  %1235 = vmatprep.subr.mxu0 0.0
  %1236 = vmatpush1.msra.mxu0 0.0
  %1237 = vmatprep.subr.mxu0 0.0
  %1238 = vmatpush1.msra.mxu0 0.0
  %1239 = vmatprep.subr.mxu0 0.0
  %1240 = vmatpush1.msra.mxu0 0.0
  %1241 = vmatprep.subr.mxu0 0.0
  %1242 = vmatpush1.msra.mxu0 0.0
  %1243 = vmatprep.subr.mxu0 0.0
  %1244 = vmatpush1.msra.mxu0 0.0
  %1245 = vmatprep.subr.mxu0 0.0
  %1246 = vmatpush1.msra.mxu0 0.0
  %1247 = vmatprep.subr.mxu0 0.0
  %1248 = vmatpush1.msra.mxu0 0.0
  %1249 = vmatprep.subr.mxu0 0.0
  %1250 = vmatpush1.msra.mxu0 0.0
  %1251 = vmatprep.subr.mxu0 0.0
  %1252 = vmatpush1.msra.mxu0 0.0
  %1253 = vmatprep.mubr.f32.mxu0 0.0
  %1254 = vmatmul.mubr.f32.gmra.mrb[0].mxu0 %v1116
  %v1255 = vpop.f32.mrb[0].mxu0
  %v1256 = vadd.f32 %v1041, %v1255
  %v1257 = vpop.f32.mrb[0].mxu0
  %v1258 = vadd.f32 %v1043, %v1257
  %1259 = vdwg.mxu0
  %1260 = vmatprep.subr.mxu0 0.0
  %1261 = vmatpush1.msra.mxu0 %v872
  %1262 = vmatprep.subr.mxu0 0.0
  %1263 = vmatpush1.msra.mxu0 0.0
  %1264 = vmatprep.subr.mxu0 0.0
  %1265 = vmatpush1.msra.mxu0 0.0
  %1266 = vmatprep.subr.mxu0 0.0
  %1267 = vmatpush1.msra.mxu0 0.0
  %1268 = vmatprep.subr.mxu0 0.0
  %1269 = vmatpush1.msra.mxu0 0.0
  %1270 = vmatprep.subr.mxu0 0.0
  %1271 = vmatpush1.msra.mxu0 0.0
  %1272 = vmatprep.subr.mxu0 0.0
  %1273 = vmatpush1.msra.mxu0 0.0
  %1274 = vmatprep.subr.mxu0 0.0
  %1275 = vmatpush1.msra.mxu0 0.0
  %1276 = vmatprep.subr.mxu0 0.0
  %1277 = vmatpush1.msra.mxu0 0.0
  %1278 = vmatprep.subr.mxu0 0.0
  %1279 = vmatpush1.msra.mxu0 0.0
  %1280 = vmatprep.subr.mxu0 0.0
  %1281 = vmatpush1.msra.mxu0 0.0
  %1282 = vmatprep.subr.mxu0 0.0
  %1283 = vmatpush1.msra.mxu0 0.0
  %1284 = vmatprep.subr.mxu0 0.0
  %1285 = vmatpush1.msra.mxu0 0.0
  %1286 = vmatprep.subr.mxu0 0.0
  %1287 = vmatpush1.msra.mxu0 0.0
  %1288 = vmatprep.subr.mxu0 0.0
  %1289 = vmatpush1.msra.mxu0 0.0
  %1290 = vmatprep.subr.mxu0 0.0
  %1291 = vmatpush1.msra.mxu0 0.0
  %1292 = vmatprep.subr.mxu0 0.0
  %1293 = vmatpush1.msra.mxu0 0.0
  %1294 = vmatprep.subr.mxu0 0.0
  %1295 = vmatpush1.msra.mxu0 0.0
  %1296 = vmatprep.subr.mxu0 0.0
  %1297 = vmatpush1.msra.mxu0 0.0
  %1298 = vmatprep.subr.mxu0 0.0
  %1299 = vmatpush1.msra.mxu0 0.0
  %1300 = vmatprep.subr.mxu0 0.0
  %1301 = vmatpush1.msra.mxu0 0.0
  %1302 = vmatprep.subr.mxu0 0.0
  %1303 = vmatpush1.msra.mxu0 0.0
  %1304 = vmatprep.subr.mxu0 0.0
  %1305 = vmatpush1.msra.mxu0 0.0
  %1306 = vmatprep.subr.mxu0 0.0
  %1307 = vmatpush1.msra.mxu0 0.0
  %1308 = vmatprep.subr.mxu0 0.0
  %1309 = vmatpush1.msra.mxu0 0.0
  %1310 = vmatprep.subr.mxu0 0.0
  %1311 = vmatpush1.msra.mxu0 0.0
  %1312 = vmatprep.subr.mxu0 0.0
  %1313 = vmatpush1.msra.mxu0 0.0
  %1314 = vmatprep.subr.mxu0 0.0
  %1315 = vmatpush1.msra.mxu0 0.0
  %1316 = vmatprep.subr.mxu0 0.0
  %1317 = vmatpush1.msra.mxu0 0.0
  %1318 = vmatprep.subr.mxu0 0.0
  %1319 = vmatpush1.msra.mxu0 0.0
  %1320 = vmatprep.subr.mxu0 0.0
  %1321 = vmatpush1.msra.mxu0 0.0
  %1322 = vmatprep.subr.mxu0 0.0
  %1323 = vmatpush1.msra.mxu0 0.0
  %1324 = vmatprep.mubr.f32.mxu0 0.0
  %1325 = vmatmul.mubr.f32.gmra.mrb[0].mxu0 %v1116
  %v1326 = vpop.f32.mrb[0].mxu0
  %v1327 = vadd.f32 %v1112, %v1326
  %v1328 = vpop.f32.mrb[0].mxu0
  %1329 = vdwg.mxu0
  %s1330 = scalar_lea.vmem %s2, 16
  %v1331 = vld [vmem:[%s1330] sm:$0xff]
  %1332 = vrot.lane.b32.xlu0 %v868, 126
  %v1333 = vpop.permute.xlu0 %1332
  %1334 = vrot.lane.b32.xlu0 %v869, 126
  %v1335 = vpop.permute.xlu0 %1334
  %1336 = vrot.lane.b32.xlu0 %v870, 126
  %v1337 = vpop.permute.xlu0 %1336
  %1338 = vrot.lane.b32.xlu0 %v871, 126
  %v1339 = vpop.permute.xlu0 %1338
  %1340 = vrot.lane.b32.xlu0 %v872, 126
  %v1341 = vpop.permute.xlu0 %1340
  %v1342 = vsel %vm584, %v1333, %v1335
  %v1343 = vsel %vm584, %v1335, %v1337
  %v1344 = vsel %vm584, %v1337, %v1339
  %v1345 = vsel %vm584, %v1339, %v1341
  %v1352 = vsel %vm899, %v1331, 0
  %1354 = vmatprep.subr.mxu0 %v1343
  %1355 = vmatpush1.msra.mxu0 %v1342
  %1356 = vmatprep.subr.mxu0 0.0
  %1357 = vmatpush1.msra.mxu0 0.0
  %1358 = vmatprep.subr.mxu0 0.0
  %1359 = vmatpush1.msra.mxu0 0.0
  %1360 = vmatprep.subr.mxu0 0.0
  %1361 = vmatpush1.msra.mxu0 0.0
  %1362 = vmatprep.subr.mxu0 0.0
  %1363 = vmatpush1.msra.mxu0 0.0
  %1364 = vmatprep.subr.mxu0 0.0
  %1365 = vmatpush1.msra.mxu0 0.0
  %1366 = vmatprep.subr.mxu0 0.0
  %1367 = vmatpush1.msra.mxu0 0.0
  %1368 = vmatprep.subr.mxu0 0.0
  %1369 = vmatpush1.msra.mxu0 0.0
  %1370 = vmatprep.subr.mxu0 0.0
  %1371 = vmatpush1.msra.mxu0 0.0
  %1372 = vmatprep.subr.mxu0 0.0
  %1373 = vmatpush1.msra.mxu0 0.0
  %1374 = vmatprep.subr.mxu0 0.0
  %1375 = vmatpush1.msra.mxu0 0.0
  %1376 = vmatprep.subr.mxu0 0.0
  %1377 = vmatpush1.msra.mxu0 0.0
  %1378 = vmatprep.subr.mxu0 0.0
  %1379 = vmatpush1.msra.mxu0 0.0
  %1380 = vmatprep.subr.mxu0 0.0
  %1381 = vmatpush1.msra.mxu0 0.0
  %1382 = vmatprep.subr.mxu0 0.0
  %1383 = vmatpush1.msra.mxu0 0.0
  %1384 = vmatprep.subr.mxu0 0.0
  %1385 = vmatpush1.msra.mxu0 0.0
  %1386 = vmatprep.subr.mxu0 0.0
  %1387 = vmatpush1.msra.mxu0 0.0
  %1388 = vmatprep.subr.mxu0 0.0
  %1389 = vmatpush1.msra.mxu0 0.0
  %1390 = vmatprep.subr.mxu0 0.0
  %1391 = vmatpush1.msra.mxu0 0.0
  %1392 = vmatprep.subr.mxu0 0.0
  %1393 = vmatpush1.msra.mxu0 0.0
  %1394 = vmatprep.subr.mxu0 0.0
  %1395 = vmatpush1.msra.mxu0 0.0
  %1396 = vmatprep.subr.mxu0 0.0
  %1397 = vmatpush1.msra.mxu0 0.0
  %1398 = vmatprep.subr.mxu0 0.0
  %1399 = vmatpush1.msra.mxu0 0.0
  %1400 = vmatprep.subr.mxu0 0.0
  %1401 = vmatpush1.msra.mxu0 0.0
  %1402 = vmatprep.subr.mxu0 0.0
  %1403 = vmatpush1.msra.mxu0 0.0
  %1404 = vmatprep.subr.mxu0 0.0
  %1405 = vmatpush1.msra.mxu0 0.0
  %1406 = vmatprep.subr.mxu0 0.0
  %1407 = vmatpush1.msra.mxu0 0.0
  %1408 = vmatprep.subr.mxu0 0.0
  %1409 = vmatpush1.msra.mxu0 0.0
  %1410 = vmatprep.subr.mxu0 0.0
  %1411 = vmatpush1.msra.mxu0 0.0
  %1412 = vmatprep.subr.mxu0 0.0
  %1413 = vmatpush1.msra.mxu0 0.0
  %1414 = vmatprep.subr.mxu0 0.0
  %1415 = vmatpush1.msra.mxu0 0.0
  %1416 = vmatprep.subr.mxu0 0.0
  %1417 = vmatpush1.msra.mxu0 0.0
  %1418 = vmatprep.mubr.f32.mxu0 0.0
  %1419 = vmatmul.mubr.f32.gmra.mrb[0].mxu0 %v1352
  %v1420 = vpop.f32.mrb[0].mxu0
  %v1421 = vadd.f32 0.0, %v1420
  %v1422 = vpop.f32.mrb[0].mxu0
  %v1423 = vadd.f32 0.0, %v1422
  %1424 = vdwg.mxu0
  %1425 = vmatprep.subr.mxu0 %v1345
  %1426 = vmatpush1.msra.mxu0 %v1344
  %1427 = vmatprep.subr.mxu0 0.0
  %1428 = vmatpush1.msra.mxu0 0.0
  %1429 = vmatprep.subr.mxu0 0.0
  %1430 = vmatpush1.msra.mxu0 0.0
  %1431 = vmatprep.subr.mxu0 0.0
  %1432 = vmatpush1.msra.mxu0 0.0
  %1433 = vmatprep.subr.mxu0 0.0
  %1434 = vmatpush1.msra.mxu0 0.0
  %1435 = vmatprep.subr.mxu0 0.0
  %1436 = vmatpush1.msra.mxu0 0.0
  %1437 = vmatprep.subr.mxu0 0.0
  %1438 = vmatpush1.msra.mxu0 0.0
  %1439 = vmatprep.subr.mxu0 0.0
  %1440 = vmatpush1.msra.mxu0 0.0
  %1441 = vmatprep.subr.mxu0 0.0
  %1442 = vmatpush1.msra.mxu0 0.0
  %1443 = vmatprep.subr.mxu0 0.0
  %1444 = vmatpush1.msra.mxu0 0.0
  %1445 = vmatprep.subr.mxu0 0.0
  %1446 = vmatpush1.msra.mxu0 0.0
  %1447 = vmatprep.subr.mxu0 0.0
  %1448 = vmatpush1.msra.mxu0 0.0
  %1449 = vmatprep.subr.mxu0 0.0
  %1450 = vmatpush1.msra.mxu0 0.0
  %1451 = vmatprep.subr.mxu0 0.0
  %1452 = vmatpush1.msra.mxu0 0.0
  %1453 = vmatprep.subr.mxu0 0.0
  %1454 = vmatpush1.msra.mxu0 0.0
  %1455 = vmatprep.subr.mxu0 0.0
  %1456 = vmatpush1.msra.mxu0 0.0
  %1457 = vmatprep.subr.mxu0 0.0
  %1458 = vmatpush1.msra.mxu0 0.0
  %1459 = vmatprep.subr.mxu0 0.0
  %1460 = vmatpush1.msra.mxu0 0.0
  %1461 = vmatprep.subr.mxu0 0.0
  %1462 = vmatpush1.msra.mxu0 0.0
  %1463 = vmatprep.subr.mxu0 0.0
  %1464 = vmatpush1.msra.mxu0 0.0
  %1465 = vmatprep.subr.mxu0 0.0
  %1466 = vmatpush1.msra.mxu0 0.0
  %1467 = vmatprep.subr.mxu0 0.0
  %1468 = vmatpush1.msra.mxu0 0.0
  %1469 = vmatprep.subr.mxu0 0.0
  %1470 = vmatpush1.msra.mxu0 0.0
  %1471 = vmatprep.subr.mxu0 0.0
  %1472 = vmatpush1.msra.mxu0 0.0
  %1473 = vmatprep.subr.mxu0 0.0
  %1474 = vmatpush1.msra.mxu0 0.0
  %1475 = vmatprep.subr.mxu0 0.0
  %1476 = vmatpush1.msra.mxu0 0.0
  %1477 = vmatprep.subr.mxu0 0.0
  %1478 = vmatpush1.msra.mxu0 0.0
  %1479 = vmatprep.subr.mxu0 0.0
  %1480 = vmatpush1.msra.mxu0 0.0
  %1481 = vmatprep.subr.mxu0 0.0
  %1482 = vmatpush1.msra.mxu0 0.0
  %1483 = vmatprep.subr.mxu0 0.0
  %1484 = vmatpush1.msra.mxu0 0.0
  %1485 = vmatprep.subr.mxu0 0.0
  %1486 = vmatpush1.msra.mxu0 0.0
  %1487 = vmatprep.subr.mxu0 0.0
  %1488 = vmatpush1.msra.mxu0 0.0
  %1489 = vmatprep.mubr.f32.mxu0 0.0
  %1490 = vmatmul.mubr.f32.gmra.mrb[0].mxu0 %v1352
  %v1491 = vpop.f32.mrb[0].mxu0
  %v1492 = vadd.f32 0.0, %v1491
  %v1493 = vpop.f32.mrb[0].mxu0
  %v1494 = vadd.f32 0.0, %v1493
  %1495 = vdwg.mxu0
  %1496 = vmatprep.subr.mxu0 0.0
  %1497 = vmatpush1.msra.mxu0 %v1341
  %1498 = vmatprep.subr.mxu0 0.0
  %1499 = vmatpush1.msra.mxu0 0.0
  %1500 = vmatprep.subr.mxu0 0.0
  %1501 = vmatpush1.msra.mxu0 0.0
  %1502 = vmatprep.subr.mxu0 0.0
  %1503 = vmatpush1.msra.mxu0 0.0
  %1504 = vmatprep.subr.mxu0 0.0
  %1505 = vmatpush1.msra.mxu0 0.0
  %1506 = vmatprep.subr.mxu0 0.0
  %1507 = vmatpush1.msra.mxu0 0.0
  %1508 = vmatprep.subr.mxu0 0.0
  %1509 = vmatpush1.msra.mxu0 0.0
  %1510 = vmatprep.subr.mxu0 0.0
  %1511 = vmatpush1.msra.mxu0 0.0
  %1512 = vmatprep.subr.mxu0 0.0
  %1513 = vmatpush1.msra.mxu0 0.0
  %1514 = vmatprep.subr.mxu0 0.0
  %1515 = vmatpush1.msra.mxu0 0.0
  %1516 = vmatprep.subr.mxu0 0.0
  %1517 = vmatpush1.msra.mxu0 0.0
  %1518 = vmatprep.subr.mxu0 0.0
  %1519 = vmatpush1.msra.mxu0 0.0
  %1520 = vmatprep.subr.mxu0 0.0
  %1521 = vmatpush1.msra.mxu0 0.0
  %1522 = vmatprep.subr.mxu0 0.0
  %1523 = vmatpush1.msra.mxu0 0.0
  %1524 = vmatprep.subr.mxu0 0.0
  %1525 = vmatpush1.msra.mxu0 0.0
  %1526 = vmatprep.subr.mxu0 0.0
  %1527 = vmatpush1.msra.mxu0 0.0
  %1528 = vmatprep.subr.mxu0 0.0
  %1529 = vmatpush1.msra.mxu0 0.0
  %1530 = vmatprep.subr.mxu0 0.0
  %1531 = vmatpush1.msra.mxu0 0.0
  %1532 = vmatprep.subr.mxu0 0.0
  %1533 = vmatpush1.msra.mxu0 0.0
  %1534 = vmatprep.subr.mxu0 0.0
  %1535 = vmatpush1.msra.mxu0 0.0
  %1536 = vmatprep.subr.mxu0 0.0
  %1537 = vmatpush1.msra.mxu0 0.0
  %1538 = vmatprep.subr.mxu0 0.0
  %1539 = vmatpush1.msra.mxu0 0.0
  %1540 = vmatprep.subr.mxu0 0.0
  %1541 = vmatpush1.msra.mxu0 0.0
  %1542 = vmatprep.subr.mxu0 0.0
  %1543 = vmatpush1.msra.mxu0 0.0
  %1544 = vmatprep.subr.mxu0 0.0
  %1545 = vmatpush1.msra.mxu0 0.0
  %1546 = vmatprep.subr.mxu0 0.0
  %1547 = vmatpush1.msra.mxu0 0.0
  %1548 = vmatprep.subr.mxu0 0.0
  %1549 = vmatpush1.msra.mxu0 0.0
  %1550 = vmatprep.subr.mxu0 0.0
  %1551 = vmatpush1.msra.mxu0 0.0
  %1552 = vmatprep.subr.mxu0 0.0
  %1553 = vmatpush1.msra.mxu0 0.0
  %1554 = vmatprep.subr.mxu0 0.0
  %1555 = vmatpush1.msra.mxu0 0.0
  %1556 = vmatprep.subr.mxu0 0.0
  %1557 = vmatpush1.msra.mxu0 0.0
  %1558 = vmatprep.subr.mxu0 0.0
  %1559 = vmatpush1.msra.mxu0 0.0
  %1560 = vmatprep.mubr.f32.mxu0 0.0
  %1561 = vmatmul.mubr.f32.gmra.mrb[0].mxu0 %v1352
  %v1562 = vpop.f32.mrb[0].mxu0
  %v1563 = vadd.f32 0.0, %v1562
  %v1564 = vpop.f32.mrb[0].mxu0
  %1565 = vdwg.mxu0
  %v1566 = vadd.f32 %v1185, %v1421
  %v1567 = vadd.f32 %v1187, %v1423
  %v1568 = vadd.f32 %v1256, %v1492
  %v1569 = vadd.f32 %v1258, %v1494
  %v1570 = vadd.f32 %v1327, %v1563
  %v1571 = vld [vmem:[%s7] sm:$0xff]
  %1573 = vset.pattern.permute.xlu0 0
  %1574 = vperm.xlu0 %1573, %v1571
  %v1575 = vpop.permute.xlu0 %1574
  %v1577 = vadd.f32 %v1566, %v1575
  %v1578 = vadd.f32 %v1567, %v1575
  %v1579 = vadd.f32 %v1568, %v1575
  %v1580 = vadd.f32 %v1569, %v1575
  %v1581 = vadd.f32 %v1570, %v1575
  %v1582 = vmax.f32 %v1577, 0.0
  %v1583 = vmax.f32 %v1578, 0.0
  %v1584 = vmax.f32 %v1579, 0.0
  %v1585 = vmax.f32 %v1580, 0.0
  %v1586 = vmax.f32 %v1581, 0.0
  %1589 = vrot.lane.b32.xlu0 %v1582, 1
  %v1590 = vpop.permute.xlu0 %1589
  %1591 = vrot.lane.b32.xlu0 %v1583, 1
  %v1592 = vpop.permute.xlu0 %1591
  %v1593 = vsel %vm65, %v1590, %v1592
  %1597 = vst.msk [vmem:[#allocation2] sm:$0xff] %vm845, %v1590
  %1598 = vst [vmem:[#allocation2 + $0x8] sm:$0xff] %v1593
  %1599 = vst.msk [vmem:[#allocation2 + $0x10] sm:$0xff] %vm65, %v1592
  %1603 = vrot.lane.b32.xlu0 %v1584, 1
  %v1604 = vpop.permute.xlu0 %1603
  %1605 = vrot.lane.b32.xlu0 %v1585, 1
  %v1606 = vpop.permute.xlu0 %1605
  %1607 = vrot.lane.b32.xlu0 %v1586, 1
  %v1608 = vpop.permute.xlu0 %1607
  %v1609 = vsel %vm65, %v1604, %v1606
  %v1610 = vsel %vm65, %v1606, %v1608
  %1614 = vst.msk [vmem:[#allocation2 + $0x10] sm:$0xff] %vm863, %v1604
  %1615 = vst [vmem:[#allocation2 + $0x18] sm:$0xff] %v1609
  %1616 = vst.msk [vmem:[#allocation2 + $0x20] sm:$0xff] %vm83, %v1610
  %v1617 = vld [vmem:[%s3] sm:$0xff]
  %v1618 = vld [vmem:[#allocation2] sm:$0xff]
  %v1619 = vld [vmem:[#allocation2 + $0x8] sm:$0xff]
  %v1620 = vld [vmem:[#allocation2 + $0x10] sm:$0xff]
  %v1621 = vld [vmem:[#allocation2 + $0x18] sm:$0xff]
  %v1622 = vld [vmem:[#allocation2 + $0x20] sm:$0xff]
  %s1623 = scalar_lea.vmem %s3, 8
  %v1624 = vld [vmem:[%s1623] sm:$0xff]
  %1630 = vrot.lane.b32.xlu0 %v1618, 127
  %v1631 = vpop.permute.xlu0 %1630
  %1632 = vrot.lane.b32.xlu0 %v1619, 127
  %v1633 = vpop.permute.xlu0 %1632
  %1634 = vrot.lane.b32.xlu0 %v1620, 127
  %v1635 = vpop.permute.xlu0 %1634
  %1636 = vrot.lane.b32.xlu0 %v1621, 127
  %v1637 = vpop.permute.xlu0 %1636
  %1638 = vrot.lane.b32.xlu0 %v1622, 127
  %v1639 = vpop.permute.xlu0 %1638
  %v1640 = vsel %vm116, %v1631, %v1633
  %v1641 = vsel %vm116, %v1633, %v1635
  %v1642 = vsel %vm116, %v1635, %v1637
  %v1643 = vsel %vm116, %v1637, %v1639
  %v1650 = vsel %vm899, %v1624, 0
  %1652 = vmatprep.subr.mxu0 %v1641
  %1653 = vmatpush1.msra.mxu0 %v1640
  %1654 = vmatprep.subr.mxu0 0.0
  %1655 = vmatpush1.msra.mxu0 0.0
  %1656 = vmatprep.subr.mxu0 0.0
  %1657 = vmatpush1.msra.mxu0 0.0
  %1658 = vmatprep.subr.mxu0 0.0
  %1659 = vmatpush1.msra.mxu0 0.0
  %1660 = vmatprep.subr.mxu0 0.0
  %1661 = vmatpush1.msra.mxu0 0.0
  %1662 = vmatprep.subr.mxu0 0.0
  %1663 = vmatpush1.msra.mxu0 0.0
  %1664 = vmatprep.subr.mxu0 0.0
  %1665 = vmatpush1.msra.mxu0 0.0
  %1666 = vmatprep.subr.mxu0 0.0
  %1667 = vmatpush1.msra.mxu0 0.0
  %1668 = vmatprep.subr.mxu0 0.0
  %1669 = vmatpush1.msra.mxu0 0.0
  %1670 = vmatprep.subr.mxu0 0.0
  %1671 = vmatpush1.msra.mxu0 0.0
  %1672 = vmatprep.subr.mxu0 0.0
  %1673 = vmatpush1.msra.mxu0 0.0
  %1674 = vmatprep.subr.mxu0 0.0
  %1675 = vmatpush1.msra.mxu0 0.0
  %1676 = vmatprep.subr.mxu0 0.0
  %1677 = vmatpush1.msra.mxu0 0.0
  %1678 = vmatprep.subr.mxu0 0.0
  %1679 = vmatpush1.msra.mxu0 0.0
  %1680 = vmatprep.subr.mxu0 0.0
  %1681 = vmatpush1.msra.mxu0 0.0
  %1682 = vmatprep.subr.mxu0 0.0
  %1683 = vmatpush1.msra.mxu0 0.0
  %1684 = vmatprep.subr.mxu0 0.0
  %1685 = vmatpush1.msra.mxu0 0.0
  %1686 = vmatprep.subr.mxu0 0.0
  %1687 = vmatpush1.msra.mxu0 0.0
  %1688 = vmatprep.subr.mxu0 0.0
  %1689 = vmatpush1.msra.mxu0 0.0
  %1690 = vmatprep.subr.mxu0 0.0
  %1691 = vmatpush1.msra.mxu0 0.0
  %1692 = vmatprep.subr.mxu0 0.0
  %1693 = vmatpush1.msra.mxu0 0.0
  %1694 = vmatprep.subr.mxu0 0.0
  %1695 = vmatpush1.msra.mxu0 0.0
  %1696 = vmatprep.subr.mxu0 0.0
  %1697 = vmatpush1.msra.mxu0 0.0
  %1698 = vmatprep.subr.mxu0 0.0
  %1699 = vmatpush1.msra.mxu0 0.0
  %1700 = vmatprep.subr.mxu0 0.0
  %1701 = vmatpush1.msra.mxu0 0.0
  %1702 = vmatprep.subr.mxu0 0.0
  %1703 = vmatpush1.msra.mxu0 0.0
  %1704 = vmatprep.subr.mxu0 0.0
  %1705 = vmatpush1.msra.mxu0 0.0
  %1706 = vmatprep.subr.mxu0 0.0
  %1707 = vmatpush1.msra.mxu0 0.0
  %1708 = vmatprep.subr.mxu0 0.0
  %1709 = vmatpush1.msra.mxu0 0.0
  %1710 = vmatprep.subr.mxu0 0.0
  %1711 = vmatpush1.msra.mxu0 0.0
  %1712 = vmatprep.subr.mxu0 0.0
  %1713 = vmatpush1.msra.mxu0 0.0
  %1714 = vmatprep.subr.mxu0 0.0
  %1715 = vmatpush1.msra.mxu0 0.0
  %1716 = vmatprep.mubr.f32.mxu0 0.0
  %1717 = vmatmul.mubr.f32.gmra.mrb[0].mxu0 %v1650
  %v1718 = vpop.f32.mrb[0].mxu0
  %v1719 = vadd.f32 0.0, %v1718
  %v1720 = vpop.f32.mrb[0].mxu0
  %v1721 = vadd.f32 0.0, %v1720
  %1722 = vdwg.mxu0
  %1723 = vmatprep.subr.mxu0 %v1643
  %1724 = vmatpush1.msra.mxu0 %v1642
  %1725 = vmatprep.subr.mxu0 0.0
  %1726 = vmatpush1.msra.mxu0 0.0
  %1727 = vmatprep.subr.mxu0 0.0
  %1728 = vmatpush1.msra.mxu0 0.0
  %1729 = vmatprep.subr.mxu0 0.0
  %1730 = vmatpush1.msra.mxu0 0.0
  %1731 = vmatprep.subr.mxu0 0.0
  %1732 = vmatpush1.msra.mxu0 0.0
  %1733 = vmatprep.subr.mxu0 0.0
  %1734 = vmatpush1.msra.mxu0 0.0
  %1735 = vmatprep.subr.mxu0 0.0
  %1736 = vmatpush1.msra.mxu0 0.0
  %1737 = vmatprep.subr.mxu0 0.0
  %1738 = vmatpush1.msra.mxu0 0.0
  %1739 = vmatprep.subr.mxu0 0.0
  %1740 = vmatpush1.msra.mxu0 0.0
  %1741 = vmatprep.subr.mxu0 0.0
  %1742 = vmatpush1.msra.mxu0 0.0
  %1743 = vmatprep.subr.mxu0 0.0
  %1744 = vmatpush1.msra.mxu0 0.0
  %1745 = vmatprep.subr.mxu0 0.0
  %1746 = vmatpush1.msra.mxu0 0.0
  %1747 = vmatprep.subr.mxu0 0.0
  %1748 = vmatpush1.msra.mxu0 0.0
  %1749 = vmatprep.subr.mxu0 0.0
  %1750 = vmatpush1.msra.mxu0 0.0
  %1751 = vmatprep.subr.mxu0 0.0
  %1752 = vmatpush1.msra.mxu0 0.0
  %1753 = vmatprep.subr.mxu0 0.0
  %1754 = vmatpush1.msra.mxu0 0.0
  %1755 = vmatprep.subr.mxu0 0.0
  %1756 = vmatpush1.msra.mxu0 0.0
  %1757 = vmatprep.subr.mxu0 0.0
  %1758 = vmatpush1.msra.mxu0 0.0
  %1759 = vmatprep.subr.mxu0 0.0
  %1760 = vmatpush1.msra.mxu0 0.0
  %1761 = vmatprep.subr.mxu0 0.0
  %1762 = vmatpush1.msra.mxu0 0.0
  %1763 = vmatprep.subr.mxu0 0.0
  %1764 = vmatpush1.msra.mxu0 0.0
  %1765 = vmatprep.subr.mxu0 0.0
  %1766 = vmatpush1.msra.mxu0 0.0
  %1767 = vmatprep.subr.mxu0 0.0
  %1768 = vmatpush1.msra.mxu0 0.0
  %1769 = vmatprep.subr.mxu0 0.0
  %1770 = vmatpush1.msra.mxu0 0.0
  %1771 = vmatprep.subr.mxu0 0.0
  %1772 = vmatpush1.msra.mxu0 0.0
  %1773 = vmatprep.subr.mxu0 0.0
  %1774 = vmatpush1.msra.mxu0 0.0
  %1775 = vmatprep.subr.mxu0 0.0
  %1776 = vmatpush1.msra.mxu0 0.0
  %1777 = vmatprep.subr.mxu0 0.0
  %1778 = vmatpush1.msra.mxu0 0.0
  %1779 = vmatprep.subr.mxu0 0.0
  %1780 = vmatpush1.msra.mxu0 0.0
  %1781 = vmatprep.subr.mxu0 0.0
  %1782 = vmatpush1.msra.mxu0 0.0
  %1783 = vmatprep.subr.mxu0 0.0
  %1784 = vmatpush1.msra.mxu0 0.0
  %1785 = vmatprep.subr.mxu0 0.0
  %1786 = vmatpush1.msra.mxu0 0.0
  %1787 = vmatprep.mubr.f32.mxu0 0.0
  %1788 = vmatmul.mubr.f32.gmra.mrb[0].mxu0 %v1650
  %v1789 = vpop.f32.mrb[0].mxu0
  %v1790 = vadd.f32 0.0, %v1789
  %v1791 = vpop.f32.mrb[0].mxu0
  %v1792 = vadd.f32 0.0, %v1791
  %1793 = vdwg.mxu0
  %1794 = vmatprep.subr.mxu0 0.0
  %1795 = vmatpush1.msra.mxu0 %v1639
  %1796 = vmatprep.subr.mxu0 0.0
  %1797 = vmatpush1.msra.mxu0 0.0
  %1798 = vmatprep.subr.mxu0 0.0
  %1799 = vmatpush1.msra.mxu0 0.0
  %1800 = vmatprep.subr.mxu0 0.0
  %1801 = vmatpush1.msra.mxu0 0.0
  %1802 = vmatprep.subr.mxu0 0.0
  %1803 = vmatpush1.msra.mxu0 0.0
  %1804 = vmatprep.subr.mxu0 0.0
  %1805 = vmatpush1.msra.mxu0 0.0
  %1806 = vmatprep.subr.mxu0 0.0
  %1807 = vmatpush1.msra.mxu0 0.0
  %1808 = vmatprep.subr.mxu0 0.0
  %1809 = vmatpush1.msra.mxu0 0.0
  %1810 = vmatprep.subr.mxu0 0.0
  %1811 = vmatpush1.msra.mxu0 0.0
  %1812 = vmatprep.subr.mxu0 0.0
  %1813 = vmatpush1.msra.mxu0 0.0
  %1814 = vmatprep.subr.mxu0 0.0
  %1815 = vmatpush1.msra.mxu0 0.0
  %1816 = vmatprep.subr.mxu0 0.0
  %1817 = vmatpush1.msra.mxu0 0.0
  %1818 = vmatprep.subr.mxu0 0.0
  %1819 = vmatpush1.msra.mxu0 0.0
  %1820 = vmatprep.subr.mxu0 0.0
  %1821 = vmatpush1.msra.mxu0 0.0
  %1822 = vmatprep.subr.mxu0 0.0
  %1823 = vmatpush1.msra.mxu0 0.0
  %1824 = vmatprep.subr.mxu0 0.0
  %1825 = vmatpush1.msra.mxu0 0.0
  %1826 = vmatprep.subr.mxu0 0.0
  %1827 = vmatpush1.msra.mxu0 0.0
  %1828 = vmatprep.subr.mxu0 0.0
  %1829 = vmatpush1.msra.mxu0 0.0
  %1830 = vmatprep.subr.mxu0 0.0
  %1831 = vmatpush1.msra.mxu0 0.0
  %1832 = vmatprep.subr.mxu0 0.0
  %1833 = vmatpush1.msra.mxu0 0.0
  %1834 = vmatprep.subr.mxu0 0.0
  %1835 = vmatpush1.msra.mxu0 0.0
  %1836 = vmatprep.subr.mxu0 0.0
  %1837 = vmatpush1.msra.mxu0 0.0
  %1838 = vmatprep.subr.mxu0 0.0
  %1839 = vmatpush1.msra.mxu0 0.0
  %1840 = vmatprep.subr.mxu0 0.0
  %1841 = vmatpush1.msra.mxu0 0.0
  %1842 = vmatprep.subr.mxu0 0.0
  %1843 = vmatpush1.msra.mxu0 0.0
  %1844 = vmatprep.subr.mxu0 0.0
  %1845 = vmatpush1.msra.mxu0 0.0
  %1846 = vmatprep.subr.mxu0 0.0
  %1847 = vmatpush1.msra.mxu0 0.0
  %1848 = vmatprep.subr.mxu0 0.0
  %1849 = vmatpush1.msra.mxu0 0.0
  %1850 = vmatprep.subr.mxu0 0.0
  %1851 = vmatpush1.msra.mxu0 0.0
  %1852 = vmatprep.subr.mxu0 0.0
  %1853 = vmatpush1.msra.mxu0 0.0
  %1854 = vmatprep.subr.mxu0 0.0
  %1855 = vmatpush1.msra.mxu0 0.0
  %1856 = vmatprep.subr.mxu0 0.0
  %1857 = vmatpush1.msra.mxu0 0.0
  %1858 = vmatprep.mubr.f32.mxu0 0.0
  %1859 = vmatmul.mubr.f32.gmra.mrb[0].mxu0 %v1650
  %v1860 = vpop.f32.mrb[0].mxu0
  %v1861 = vadd.f32 0.0, %v1860
  %v1862 = vpop.f32.mrb[0].mxu0
  %1863 = vdwg.mxu0
  %v1865 = vsel %vm899, %v1617, 0
  %1867 = vmatprep.subr.mxu0 %v1619
  %1868 = vmatpush1.msra.mxu0 %v1618
  %1869 = vmatprep.subr.mxu0 0.0
  %1870 = vmatpush1.msra.mxu0 0.0
  %1871 = vmatprep.subr.mxu0 0.0
  %1872 = vmatpush1.msra.mxu0 0.0
  %1873 = vmatprep.subr.mxu0 0.0
  %1874 = vmatpush1.msra.mxu0 0.0
  %1875 = vmatprep.subr.mxu0 0.0
  %1876 = vmatpush1.msra.mxu0 0.0
  %1877 = vmatprep.subr.mxu0 0.0
  %1878 = vmatpush1.msra.mxu0 0.0
  %1879 = vmatprep.subr.mxu0 0.0
  %1880 = vmatpush1.msra.mxu0 0.0
  %1881 = vmatprep.subr.mxu0 0.0
  %1882 = vmatpush1.msra.mxu0 0.0
  %1883 = vmatprep.subr.mxu0 0.0
  %1884 = vmatpush1.msra.mxu0 0.0
  %1885 = vmatprep.subr.mxu0 0.0
  %1886 = vmatpush1.msra.mxu0 0.0
  %1887 = vmatprep.subr.mxu0 0.0
  %1888 = vmatpush1.msra.mxu0 0.0
  %1889 = vmatprep.subr.mxu0 0.0
  %1890 = vmatpush1.msra.mxu0 0.0
  %1891 = vmatprep.subr.mxu0 0.0
  %1892 = vmatpush1.msra.mxu0 0.0
  %1893 = vmatprep.subr.mxu0 0.0
  %1894 = vmatpush1.msra.mxu0 0.0
  %1895 = vmatprep.subr.mxu0 0.0
  %1896 = vmatpush1.msra.mxu0 0.0
  %1897 = vmatprep.subr.mxu0 0.0
  %1898 = vmatpush1.msra.mxu0 0.0
  %1899 = vmatprep.subr.mxu0 0.0
  %1900 = vmatpush1.msra.mxu0 0.0
  %1901 = vmatprep.subr.mxu0 0.0
  %1902 = vmatpush1.msra.mxu0 0.0
  %1903 = vmatprep.subr.mxu0 0.0
  %1904 = vmatpush1.msra.mxu0 0.0
  %1905 = vmatprep.subr.mxu0 0.0
  %1906 = vmatpush1.msra.mxu0 0.0
  %1907 = vmatprep.subr.mxu0 0.0
  %1908 = vmatpush1.msra.mxu0 0.0
  %1909 = vmatprep.subr.mxu0 0.0
  %1910 = vmatpush1.msra.mxu0 0.0
  %1911 = vmatprep.subr.mxu0 0.0
  %1912 = vmatpush1.msra.mxu0 0.0
  %1913 = vmatprep.subr.mxu0 0.0
  %1914 = vmatpush1.msra.mxu0 0.0
  %1915 = vmatprep.subr.mxu0 0.0
  %1916 = vmatpush1.msra.mxu0 0.0
  %1917 = vmatprep.subr.mxu0 0.0
  %1918 = vmatpush1.msra.mxu0 0.0
  %1919 = vmatprep.subr.mxu0 0.0
  %1920 = vmatpush1.msra.mxu0 0.0
  %1921 = vmatprep.subr.mxu0 0.0
  %1922 = vmatpush1.msra.mxu0 0.0
  %1923 = vmatprep.subr.mxu0 0.0
  %1924 = vmatpush1.msra.mxu0 0.0
  %1925 = vmatprep.subr.mxu0 0.0
  %1926 = vmatpush1.msra.mxu0 0.0
  %1927 = vmatprep.subr.mxu0 0.0
  %1928 = vmatpush1.msra.mxu0 0.0
  %1929 = vmatprep.subr.mxu0 0.0
  %1930 = vmatpush1.msra.mxu0 0.0
  %1931 = vmatprep.mubr.f32.mxu0 0.0
  %1932 = vmatmul.mubr.f32.gmra.mrb[0].mxu0 %v1865
  %v1933 = vpop.f32.mrb[0].mxu0
  %v1934 = vadd.f32 %v1719, %v1933
  %v1935 = vpop.f32.mrb[0].mxu0
  %v1936 = vadd.f32 %v1721, %v1935
  %1937 = vdwg.mxu0
  %1938 = vmatprep.subr.mxu0 %v1621
  %1939 = vmatpush1.msra.mxu0 %v1620
  %1940 = vmatprep.subr.mxu0 0.0
  %1941 = vmatpush1.msra.mxu0 0.0
  %1942 = vmatprep.subr.mxu0 0.0
  %1943 = vmatpush1.msra.mxu0 0.0
  %1944 = vmatprep.subr.mxu0 0.0
  %1945 = vmatpush1.msra.mxu0 0.0
  %1946 = vmatprep.subr.mxu0 0.0
  %1947 = vmatpush1.msra.mxu0 0.0
  %1948 = vmatprep.subr.mxu0 0.0
  %1949 = vmatpush1.msra.mxu0 0.0
  %1950 = vmatprep.subr.mxu0 0.0
  %1951 = vmatpush1.msra.mxu0 0.0
  %1952 = vmatprep.subr.mxu0 0.0
  %1953 = vmatpush1.msra.mxu0 0.0
  %1954 = vmatprep.subr.mxu0 0.0
  %1955 = vmatpush1.msra.mxu0 0.0
  %1956 = vmatprep.subr.mxu0 0.0
  %1957 = vmatpush1.msra.mxu0 0.0
  %1958 = vmatprep.subr.mxu0 0.0
  %1959 = vmatpush1.msra.mxu0 0.0
  %1960 = vmatprep.subr.mxu0 0.0
  %1961 = vmatpush1.msra.mxu0 0.0
  %1962 = vmatprep.subr.mxu0 0.0
  %1963 = vmatpush1.msra.mxu0 0.0
  %1964 = vmatprep.subr.mxu0 0.0
  %1965 = vmatpush1.msra.mxu0 0.0
  %1966 = vmatprep.subr.mxu0 0.0
  %1967 = vmatpush1.msra.mxu0 0.0
  %1968 = vmatprep.subr.mxu0 0.0
  %1969 = vmatpush1.msra.mxu0 0.0
  %1970 = vmatprep.subr.mxu0 0.0
  %1971 = vmatpush1.msra.mxu0 0.0
  %1972 = vmatprep.subr.mxu0 0.0
  %1973 = vmatpush1.msra.mxu0 0.0
  %1974 = vmatprep.subr.mxu0 0.0
  %1975 = vmatpush1.msra.mxu0 0.0
  %1976 = vmatprep.subr.mxu0 0.0
  %1977 = vmatpush1.msra.mxu0 0.0
  %1978 = vmatprep.subr.mxu0 0.0
  %1979 = vmatpush1.msra.mxu0 0.0
  %1980 = vmatprep.subr.mxu0 0.0
  %1981 = vmatpush1.msra.mxu0 0.0
  %1982 = vmatprep.subr.mxu0 0.0
  %1983 = vmatpush1.msra.mxu0 0.0
  %1984 = vmatprep.subr.mxu0 0.0
  %1985 = vmatpush1.msra.mxu0 0.0
  %1986 = vmatprep.subr.mxu0 0.0
  %1987 = vmatpush1.msra.mxu0 0.0
  %1988 = vmatprep.subr.mxu0 0.0
  %1989 = vmatpush1.msra.mxu0 0.0
  %1990 = vmatprep.subr.mxu0 0.0
  %1991 = vmatpush1.msra.mxu0 0.0
  %1992 = vmatprep.subr.mxu0 0.0
  %1993 = vmatpush1.msra.mxu0 0.0
  %1994 = vmatprep.subr.mxu0 0.0
  %1995 = vmatpush1.msra.mxu0 0.0
  %1996 = vmatprep.subr.mxu0 0.0
  %1997 = vmatpush1.msra.mxu0 0.0
  %1998 = vmatprep.subr.mxu0 0.0
  %1999 = vmatpush1.msra.mxu0 0.0
  %2000 = vmatprep.subr.mxu0 0.0
  %2001 = vmatpush1.msra.mxu0 0.0
  %2002 = vmatprep.mubr.f32.mxu0 0.0
  %2003 = vmatmul.mubr.f32.gmra.mrb[0].mxu0 %v1865
  %v2004 = vpop.f32.mrb[0].mxu0
  %v2005 = vadd.f32 %v1790, %v2004
  %v2006 = vpop.f32.mrb[0].mxu0
  %v2007 = vadd.f32 %v1792, %v2006
  %2008 = vdwg.mxu0
  %2009 = vmatprep.subr.mxu0 0.0
  %2010 = vmatpush1.msra.mxu0 %v1622
  %2011 = vmatprep.subr.mxu0 0.0
  %2012 = vmatpush1.msra.mxu0 0.0
  %2013 = vmatprep.subr.mxu0 0.0
  %2014 = vmatpush1.msra.mxu0 0.0
  %2015 = vmatprep.subr.mxu0 0.0
  %2016 = vmatpush1.msra.mxu0 0.0
  %2017 = vmatprep.subr.mxu0 0.0
  %2018 = vmatpush1.msra.mxu0 0.0
  %2019 = vmatprep.subr.mxu0 0.0
  %2020 = vmatpush1.msra.mxu0 0.0
  %2021 = vmatprep.subr.mxu0 0.0
  %2022 = vmatpush1.msra.mxu0 0.0
  %2023 = vmatprep.subr.mxu0 0.0
  %2024 = vmatpush1.msra.mxu0 0.0
  %2025 = vmatprep.subr.mxu0 0.0
  %2026 = vmatpush1.msra.mxu0 0.0
  %2027 = vmatprep.subr.mxu0 0.0
  %2028 = vmatpush1.msra.mxu0 0.0
  %2029 = vmatprep.subr.mxu0 0.0
  %2030 = vmatpush1.msra.mxu0 0.0
  %2031 = vmatprep.subr.mxu0 0.0
  %2032 = vmatpush1.msra.mxu0 0.0
  %2033 = vmatprep.subr.mxu0 0.0
  %2034 = vmatpush1.msra.mxu0 0.0
  %2035 = vmatprep.subr.mxu0 0.0
  %2036 = vmatpush1.msra.mxu0 0.0
  %2037 = vmatprep.subr.mxu0 0.0
  %2038 = vmatpush1.msra.mxu0 0.0
  %2039 = vmatprep.subr.mxu0 0.0
  %2040 = vmatpush1.msra.mxu0 0.0
  %2041 = vmatprep.subr.mxu0 0.0
  %2042 = vmatpush1.msra.mxu0 0.0
  %2043 = vmatprep.subr.mxu0 0.0
  %2044 = vmatpush1.msra.mxu0 0.0
  %2045 = vmatprep.subr.mxu0 0.0
  %2046 = vmatpush1.msra.mxu0 0.0
  %2047 = vmatprep.subr.mxu0 0.0
  %2048 = vmatpush1.msra.mxu0 0.0
  %2049 = vmatprep.subr.mxu0 0.0
  %2050 = vmatpush1.msra.mxu0 0.0
  %2051 = vmatprep.subr.mxu0 0.0
  %2052 = vmatpush1.msra.mxu0 0.0
  %2053 = vmatprep.subr.mxu0 0.0
  %2054 = vmatpush1.msra.mxu0 0.0
  %2055 = vmatprep.subr.mxu0 0.0
  %2056 = vmatpush1.msra.mxu0 0.0
  %2057 = vmatprep.subr.mxu0 0.0
  %2058 = vmatpush1.msra.mxu0 0.0
  %2059 = vmatprep.subr.mxu0 0.0
  %2060 = vmatpush1.msra.mxu0 0.0
  %2061 = vmatprep.subr.mxu0 0.0
  %2062 = vmatpush1.msra.mxu0 0.0
  %2063 = vmatprep.subr.mxu0 0.0
  %2064 = vmatpush1.msra.mxu0 0.0
  %2065 = vmatprep.subr.mxu0 0.0
  %2066 = vmatpush1.msra.mxu0 0.0
  %2067 = vmatprep.subr.mxu0 0.0
  %2068 = vmatpush1.msra.mxu0 0.0
  %2069 = vmatprep.subr.mxu0 0.0
  %2070 = vmatpush1.msra.mxu0 0.0
  %2071 = vmatprep.subr.mxu0 0.0
  %2072 = vmatpush1.msra.mxu0 0.0
  %2073 = vmatprep.mubr.f32.mxu0 0.0
  %2074 = vmatmul.mubr.f32.gmra.mrb[0].mxu0 %v1865
  %v2075 = vpop.f32.mrb[0].mxu0
  %v2076 = vadd.f32 %v1861, %v2075
  %v2077 = vpop.f32.mrb[0].mxu0
  %2078 = vdwg.mxu0
  %s2079 = scalar_lea.vmem %s3, 16
  %v2080 = vld [vmem:[%s2079] sm:$0xff]
  %2081 = vrot.lane.b32.xlu0 %v1618, 126
  %v2082 = vpop.permute.xlu0 %2081
  %2083 = vrot.lane.b32.xlu0 %v1619, 126
  %v2084 = vpop.permute.xlu0 %2083
  %2085 = vrot.lane.b32.xlu0 %v1620, 126
  %v2086 = vpop.permute.xlu0 %2085
  %2087 = vrot.lane.b32.xlu0 %v1621, 126
  %v2088 = vpop.permute.xlu0 %2087
  %2089 = vrot.lane.b32.xlu0 %v1622, 126
  %v2090 = vpop.permute.xlu0 %2089
  %v2091 = vsel %vm584, %v2082, %v2084
  %v2092 = vsel %vm584, %v2084, %v2086
  %v2093 = vsel %vm584, %v2086, %v2088
  %v2094 = vsel %vm584, %v2088, %v2090
  %v2101 = vsel %vm899, %v2080, 0
  %2103 = vmatprep.subr.mxu0 %v2092
  %2104 = vmatpush1.msra.mxu0 %v2091
  %2105 = vmatprep.subr.mxu0 0.0
  %2106 = vmatpush1.msra.mxu0 0.0
  %2107 = vmatprep.subr.mxu0 0.0
  %2108 = vmatpush1.msra.mxu0 0.0
  %2109 = vmatprep.subr.mxu0 0.0
  %2110 = vmatpush1.msra.mxu0 0.0
  %2111 = vmatprep.subr.mxu0 0.0
  %2112 = vmatpush1.msra.mxu0 0.0
  %2113 = vmatprep.subr.mxu0 0.0
  %2114 = vmatpush1.msra.mxu0 0.0
  %2115 = vmatprep.subr.mxu0 0.0
  %2116 = vmatpush1.msra.mxu0 0.0
  %2117 = vmatprep.subr.mxu0 0.0
  %2118 = vmatpush1.msra.mxu0 0.0
  %2119 = vmatprep.subr.mxu0 0.0
  %2120 = vmatpush1.msra.mxu0 0.0
  %2121 = vmatprep.subr.mxu0 0.0
  %2122 = vmatpush1.msra.mxu0 0.0
  %2123 = vmatprep.subr.mxu0 0.0
  %2124 = vmatpush1.msra.mxu0 0.0
  %2125 = vmatprep.subr.mxu0 0.0
  %2126 = vmatpush1.msra.mxu0 0.0
  %2127 = vmatprep.subr.mxu0 0.0
  %2128 = vmatpush1.msra.mxu0 0.0
  %2129 = vmatprep.subr.mxu0 0.0
  %2130 = vmatpush1.msra.mxu0 0.0
  %2131 = vmatprep.subr.mxu0 0.0
  %2132 = vmatpush1.msra.mxu0 0.0
  %2133 = vmatprep.subr.mxu0 0.0
  %2134 = vmatpush1.msra.mxu0 0.0
  %2135 = vmatprep.subr.mxu0 0.0
  %2136 = vmatpush1.msra.mxu0 0.0
  %2137 = vmatprep.subr.mxu0 0.0
  %2138 = vmatpush1.msra.mxu0 0.0
  %2139 = vmatprep.subr.mxu0 0.0
  %2140 = vmatpush1.msra.mxu0 0.0
  %2141 = vmatprep.subr.mxu0 0.0
  %2142 = vmatpush1.msra.mxu0 0.0
  %2143 = vmatprep.subr.mxu0 0.0
  %2144 = vmatpush1.msra.mxu0 0.0
  %2145 = vmatprep.subr.mxu0 0.0
  %2146 = vmatpush1.msra.mxu0 0.0
  %2147 = vmatprep.subr.mxu0 0.0
  %2148 = vmatpush1.msra.mxu0 0.0
  %2149 = vmatprep.subr.mxu0 0.0
  %2150 = vmatpush1.msra.mxu0 0.0
  %2151 = vmatprep.subr.mxu0 0.0
  %2152 = vmatpush1.msra.mxu0 0.0
  %2153 = vmatprep.subr.mxu0 0.0
  %2154 = vmatpush1.msra.mxu0 0.0
  %2155 = vmatprep.subr.mxu0 0.0
  %2156 = vmatpush1.msra.mxu0 0.0
  %2157 = vmatprep.subr.mxu0 0.0
  %2158 = vmatpush1.msra.mxu0 0.0
  %2159 = vmatprep.subr.mxu0 0.0
  %2160 = vmatpush1.msra.mxu0 0.0
  %2161 = vmatprep.subr.mxu0 0.0
  %2162 = vmatpush1.msra.mxu0 0.0
  %2163 = vmatprep.subr.mxu0 0.0
  %2164 = vmatpush1.msra.mxu0 0.0
  %2165 = vmatprep.subr.mxu0 0.0
  %2166 = vmatpush1.msra.mxu0 0.0
  %2167 = vmatprep.mubr.f32.mxu0 0.0
  %2168 = vmatmul.mubr.f32.gmra.mrb[0].mxu0 %v2101
  %v2169 = vpop.f32.mrb[0].mxu0
  %v2170 = vadd.f32 0.0, %v2169
  %v2171 = vpop.f32.mrb[0].mxu0
  %v2172 = vadd.f32 0.0, %v2171
  %2173 = vdwg.mxu0
  %2174 = vmatprep.subr.mxu0 %v2094
  %2175 = vmatpush1.msra.mxu0 %v2093
  %2176 = vmatprep.subr.mxu0 0.0
  %2177 = vmatpush1.msra.mxu0 0.0
  %2178 = vmatprep.subr.mxu0 0.0
  %2179 = vmatpush1.msra.mxu0 0.0
  %2180 = vmatprep.subr.mxu0 0.0
  %2181 = vmatpush1.msra.mxu0 0.0
  %2182 = vmatprep.subr.mxu0 0.0
  %2183 = vmatpush1.msra.mxu0 0.0
  %2184 = vmatprep.subr.mxu0 0.0
  %2185 = vmatpush1.msra.mxu0 0.0
  %2186 = vmatprep.subr.mxu0 0.0
  %2187 = vmatpush1.msra.mxu0 0.0
  %2188 = vmatprep.subr.mxu0 0.0
  %2189 = vmatpush1.msra.mxu0 0.0
  %2190 = vmatprep.subr.mxu0 0.0
  %2191 = vmatpush1.msra.mxu0 0.0
  %2192 = vmatprep.subr.mxu0 0.0
  %2193 = vmatpush1.msra.mxu0 0.0
  %2194 = vmatprep.subr.mxu0 0.0
  %2195 = vmatpush1.msra.mxu0 0.0
  %2196 = vmatprep.subr.mxu0 0.0
  %2197 = vmatpush1.msra.mxu0 0.0
  %2198 = vmatprep.subr.mxu0 0.0
  %2199 = vmatpush1.msra.mxu0 0.0
  %2200 = vmatprep.subr.mxu0 0.0
  %2201 = vmatpush1.msra.mxu0 0.0
  %2202 = vmatprep.subr.mxu0 0.0
  %2203 = vmatpush1.msra.mxu0 0.0
  %2204 = vmatprep.subr.mxu0 0.0
  %2205 = vmatpush1.msra.mxu0 0.0
  %2206 = vmatprep.subr.mxu0 0.0
  %2207 = vmatpush1.msra.mxu0 0.0
  %2208 = vmatprep.subr.mxu0 0.0
  %2209 = vmatpush1.msra.mxu0 0.0
  %2210 = vmatprep.subr.mxu0 0.0
  %2211 = vmatpush1.msra.mxu0 0.0
  %2212 = vmatprep.subr.mxu0 0.0
  %2213 = vmatpush1.msra.mxu0 0.0
  %2214 = vmatprep.subr.mxu0 0.0
  %2215 = vmatpush1.msra.mxu0 0.0
  %2216 = vmatprep.subr.mxu0 0.0
  %2217 = vmatpush1.msra.mxu0 0.0
  %2218 = vmatprep.subr.mxu0 0.0
  %2219 = vmatpush1.msra.mxu0 0.0
  %2220 = vmatprep.subr.mxu0 0.0
  %2221 = vmatpush1.msra.mxu0 0.0
  %2222 = vmatprep.subr.mxu0 0.0
  %2223 = vmatpush1.msra.mxu0 0.0
  %2224 = vmatprep.subr.mxu0 0.0
  %2225 = vmatpush1.msra.mxu0 0.0
  %2226 = vmatprep.subr.mxu0 0.0
  %2227 = vmatpush1.msra.mxu0 0.0
  %2228 = vmatprep.subr.mxu0 0.0
  %2229 = vmatpush1.msra.mxu0 0.0
  %2230 = vmatprep.subr.mxu0 0.0
  %2231 = vmatpush1.msra.mxu0 0.0
  %2232 = vmatprep.subr.mxu0 0.0
  %2233 = vmatpush1.msra.mxu0 0.0
  %2234 = vmatprep.subr.mxu0 0.0
  %2235 = vmatpush1.msra.mxu0 0.0
  %2236 = vmatprep.subr.mxu0 0.0
  %2237 = vmatpush1.msra.mxu0 0.0
  %2238 = vmatprep.mubr.f32.mxu0 0.0
  %2239 = vmatmul.mubr.f32.gmra.mrb[0].mxu0 %v2101
  %v2240 = vpop.f32.mrb[0].mxu0
  %v2241 = vadd.f32 0.0, %v2240
  %v2242 = vpop.f32.mrb[0].mxu0
  %v2243 = vadd.f32 0.0, %v2242
  %2244 = vdwg.mxu0
  %2245 = vmatprep.subr.mxu0 0.0
  %2246 = vmatpush1.msra.mxu0 %v2090
  %2247 = vmatprep.subr.mxu0 0.0
  %2248 = vmatpush1.msra.mxu0 0.0
  %2249 = vmatprep.subr.mxu0 0.0
  %2250 = vmatpush1.msra.mxu0 0.0
  %2251 = vmatprep.subr.mxu0 0.0
  %2252 = vmatpush1.msra.mxu0 0.0
  %2253 = vmatprep.subr.mxu0 0.0
  %2254 = vmatpush1.msra.mxu0 0.0
  %2255 = vmatprep.subr.mxu0 0.0
  %2256 = vmatpush1.msra.mxu0 0.0
  %2257 = vmatprep.subr.mxu0 0.0
  %2258 = vmatpush1.msra.mxu0 0.0
  %2259 = vmatprep.subr.mxu0 0.0
  %2260 = vmatpush1.msra.mxu0 0.0
  %2261 = vmatprep.subr.mxu0 0.0
  %2262 = vmatpush1.msra.mxu0 0.0
  %2263 = vmatprep.subr.mxu0 0.0
  %2264 = vmatpush1.msra.mxu0 0.0
  %2265 = vmatprep.subr.mxu0 0.0
  %2266 = vmatpush1.msra.mxu0 0.0
  %2267 = vmatprep.subr.mxu0 0.0
  %2268 = vmatpush1.msra.mxu0 0.0
  %2269 = vmatprep.subr.mxu0 0.0
  %2270 = vmatpush1.msra.mxu0 0.0
  %2271 = vmatprep.subr.mxu0 0.0
  %2272 = vmatpush1.msra.mxu0 0.0
  %2273 = vmatprep.subr.mxu0 0.0
  %2274 = vmatpush1.msra.mxu0 0.0
  %2275 = vmatprep.subr.mxu0 0.0
  %2276 = vmatpush1.msra.mxu0 0.0
  %2277 = vmatprep.subr.mxu0 0.0
  %2278 = vmatpush1.msra.mxu0 0.0
  %2279 = vmatprep.subr.mxu0 0.0
  %2280 = vmatpush1.msra.mxu0 0.0
  %2281 = vmatprep.subr.mxu0 0.0
  %2282 = vmatpush1.msra.mxu0 0.0
  %2283 = vmatprep.subr.mxu0 0.0
  %2284 = vmatpush1.msra.mxu0 0.0
  %2285 = vmatprep.subr.mxu0 0.0
  %2286 = vmatpush1.msra.mxu0 0.0
  %2287 = vmatprep.subr.mxu0 0.0
  %2288 = vmatpush1.msra.mxu0 0.0
  %2289 = vmatprep.subr.mxu0 0.0
  %2290 = vmatpush1.msra.mxu0 0.0
  %2291 = vmatprep.subr.mxu0 0.0
  %2292 = vmatpush1.msra.mxu0 0.0
  %2293 = vmatprep.subr.mxu0 0.0
  %2294 = vmatpush1.msra.mxu0 0.0
  %2295 = vmatprep.subr.mxu0 0.0
  %2296 = vmatpush1.msra.mxu0 0.0
  %2297 = vmatprep.subr.mxu0 0.0
  %2298 = vmatpush1.msra.mxu0 0.0
  %2299 = vmatprep.subr.mxu0 0.0
  %2300 = vmatpush1.msra.mxu0 0.0
  %2301 = vmatprep.subr.mxu0 0.0
  %2302 = vmatpush1.msra.mxu0 0.0
  %2303 = vmatprep.subr.mxu0 0.0
  %2304 = vmatpush1.msra.mxu0 0.0
  %2305 = vmatprep.subr.mxu0 0.0
  %2306 = vmatpush1.msra.mxu0 0.0
  %2307 = vmatprep.subr.mxu0 0.0
  %2308 = vmatpush1.msra.mxu0 0.0
  %2309 = vmatprep.mubr.f32.mxu0 0.0
  %2310 = vmatmul.mubr.f32.gmra.mrb[0].mxu0 %v2101
  %v2311 = vpop.f32.mrb[0].mxu0
  %v2312 = vadd.f32 0.0, %v2311
  %v2313 = vpop.f32.mrb[0].mxu0
  %2314 = vdwg.mxu0
  %v2315 = vadd.f32 %v1934, %v2170
  %v2316 = vadd.f32 %v1936, %v2172
  %v2317 = vadd.f32 %v2005, %v2241
  %v2318 = vadd.f32 %v2007, %v2243
  %v2319 = vadd.f32 %v2076, %v2312
  %v2320 = vld [vmem:[%s8] sm:$0xff]
  %2322 = vset.pattern.permute.xlu0 0
  %2323 = vperm.xlu0 %2322, %v2320
  %v2324 = vpop.permute.xlu0 %2323
  %v2326 = vadd.f32 %v2315, %v2324
  %v2327 = vadd.f32 %v2316, %v2324
  %v2328 = vadd.f32 %v2317, %v2324
  %v2329 = vadd.f32 %v2318, %v2324
  %v2330 = vadd.f32 %v2319, %v2324
  %v2331 = vmax.f32 %v2326, 0.0
  %v2332 = vmax.f32 %v2327, 0.0
  %v2333 = vmax.f32 %v2328, 0.0
  %v2334 = vmax.f32 %v2329, 0.0
  %v2335 = vmax.f32 %v2330, 0.0
  %2338 = vrot.lane.b32.xlu0 %v2331, 1
  %v2339 = vpop.permute.xlu0 %2338
  %2340 = vrot.lane.b32.xlu0 %v2332, 1
  %v2341 = vpop.permute.xlu0 %2340
  %v2342 = vsel %vm65, %v2339, %v2341
  %2346 = vst.msk [vmem:[#allocation2] sm:$0xff] %vm845, %v2339
  %2347 = vst [vmem:[#allocation2 + $0x8] sm:$0xff] %v2342
  %2348 = vst.msk [vmem:[#allocation2 + $0x10] sm:$0xff] %vm65, %v2341
  %2352 = vrot.lane.b32.xlu0 %v2333, 1
  %v2353 = vpop.permute.xlu0 %2352
  %2354 = vrot.lane.b32.xlu0 %v2334, 1
  %v2355 = vpop.permute.xlu0 %2354
  %2356 = vrot.lane.b32.xlu0 %v2335, 1
  %v2357 = vpop.permute.xlu0 %2356
  %v2358 = vsel %vm65, %v2353, %v2355
  %v2359 = vsel %vm65, %v2355, %v2357
  %2363 = vst.msk [vmem:[#allocation2 + $0x10] sm:$0xff] %vm863, %v2353
  %2364 = vst [vmem:[#allocation2 + $0x18] sm:$0xff] %v2358
  %2365 = vst.msk [vmem:[#allocation2 + $0x20] sm:$0xff] %vm83, %v2359
  %v2366 = vld [vmem:[%s4] sm:$0xff]
  %v2367 = vld [vmem:[#allocation2] sm:$0xff]
  %v2368 = vld [vmem:[#allocation2 + $0x8] sm:$0xff]
  %v2369 = vld [vmem:[#allocation2 + $0x10] sm:$0xff]
  %v2370 = vld [vmem:[#allocation2 + $0x18] sm:$0xff]
  %v2371 = vld [vmem:[#allocation2 + $0x20] sm:$0xff]
  %s2372 = scalar_lea.vmem %s4, 8
  %v2373 = vld [vmem:[%s2372] sm:$0xff]
  %2379 = vrot.lane.b32.xlu0 %v2367, 127
  %v2380 = vpop.permute.xlu0 %2379
  %2381 = vrot.lane.b32.xlu0 %v2368, 127
  %v2382 = vpop.permute.xlu0 %2381
  %2383 = vrot.lane.b32.xlu0 %v2369, 127
  %v2384 = vpop.permute.xlu0 %2383
  %2385 = vrot.lane.b32.xlu0 %v2370, 127
  %v2386 = vpop.permute.xlu0 %2385
  %2387 = vrot.lane.b32.xlu0 %v2371, 127
  %v2388 = vpop.permute.xlu0 %2387
  %v2389 = vsel %vm116, %v2380, %v2382
  %v2390 = vsel %vm116, %v2382, %v2384
  %v2391 = vsel %vm116, %v2384, %v2386
  %v2392 = vsel %vm116, %v2386, %v2388
  %v2399 = vsel %vm899, %v2373, 0
  %2401 = vmatprep.subr.mxu0 %v2390
  %2402 = vmatpush1.msra.mxu0 %v2389
  %2403 = vmatprep.subr.mxu0 0.0
  %2404 = vmatpush1.msra.mxu0 0.0
  %2405 = vmatprep.subr.mxu0 0.0
  %2406 = vmatpush1.msra.mxu0 0.0
  %2407 = vmatprep.subr.mxu0 0.0
  %2408 = vmatpush1.msra.mxu0 0.0
  %2409 = vmatprep.subr.mxu0 0.0
  %2410 = vmatpush1.msra.mxu0 0.0
  %2411 = vmatprep.subr.mxu0 0.0
  %2412 = vmatpush1.msra.mxu0 0.0
  %2413 = vmatprep.subr.mxu0 0.0
  %2414 = vmatpush1.msra.mxu0 0.0
  %2415 = vmatprep.subr.mxu0 0.0
  %2416 = vmatpush1.msra.mxu0 0.0
  %2417 = vmatprep.subr.mxu0 0.0
  %2418 = vmatpush1.msra.mxu0 0.0
  %2419 = vmatprep.subr.mxu0 0.0
  %2420 = vmatpush1.msra.mxu0 0.0
  %2421 = vmatprep.subr.mxu0 0.0
  %2422 = vmatpush1.msra.mxu0 0.0
  %2423 = vmatprep.subr.mxu0 0.0
  %2424 = vmatpush1.msra.mxu0 0.0
  %2425 = vmatprep.subr.mxu0 0.0
  %2426 = vmatpush1.msra.mxu0 0.0
  %2427 = vmatprep.subr.mxu0 0.0
  %2428 = vmatpush1.msra.mxu0 0.0
  %2429 = vmatprep.subr.mxu0 0.0
  %2430 = vmatpush1.msra.mxu0 0.0
  %2431 = vmatprep.subr.mxu0 0.0
  %2432 = vmatpush1.msra.mxu0 0.0
  %2433 = vmatprep.subr.mxu0 0.0
  %2434 = vmatpush1.msra.mxu0 0.0
  %2435 = vmatprep.subr.mxu0 0.0
  %2436 = vmatpush1.msra.mxu0 0.0
  %2437 = vmatprep.subr.mxu0 0.0
  %2438 = vmatpush1.msra.mxu0 0.0
  %2439 = vmatprep.subr.mxu0 0.0
  %2440 = vmatpush1.msra.mxu0 0.0
  %2441 = vmatprep.subr.mxu0 0.0
  %2442 = vmatpush1.msra.mxu0 0.0
  %2443 = vmatprep.subr.mxu0 0.0
  %2444 = vmatpush1.msra.mxu0 0.0
  %2445 = vmatprep.subr.mxu0 0.0
  %2446 = vmatpush1.msra.mxu0 0.0
  %2447 = vmatprep.subr.mxu0 0.0
  %2448 = vmatpush1.msra.mxu0 0.0
  %2449 = vmatprep.subr.mxu0 0.0
  %2450 = vmatpush1.msra.mxu0 0.0
  %2451 = vmatprep.subr.mxu0 0.0
  %2452 = vmatpush1.msra.mxu0 0.0
  %2453 = vmatprep.subr.mxu0 0.0
  %2454 = vmatpush1.msra.mxu0 0.0
  %2455 = vmatprep.subr.mxu0 0.0
  %2456 = vmatpush1.msra.mxu0 0.0
  %2457 = vmatprep.subr.mxu0 0.0
  %2458 = vmatpush1.msra.mxu0 0.0
  %2459 = vmatprep.subr.mxu0 0.0
  %2460 = vmatpush1.msra.mxu0 0.0
  %2461 = vmatprep.subr.mxu0 0.0
  %2462 = vmatpush1.msra.mxu0 0.0
  %2463 = vmatprep.subr.mxu0 0.0
  %2464 = vmatpush1.msra.mxu0 0.0
  %2465 = vmatprep.mubr.f32.mxu0 0.0
  %2466 = vmatmul.mubr.f32.gmra.mrb[0].mxu0 %v2399
  %v2467 = vpop.f32.mrb[0].mxu0
  %v2468 = vadd.f32 0.0, %v2467
  %v2469 = vpop.f32.mrb[0].mxu0
  %v2470 = vadd.f32 0.0, %v2469
  %2471 = vdwg.mxu0
  %2472 = vmatprep.subr.mxu0 %v2392
  %2473 = vmatpush1.msra.mxu0 %v2391
  %2474 = vmatprep.subr.mxu0 0.0
  %2475 = vmatpush1.msra.mxu0 0.0
  %2476 = vmatprep.subr.mxu0 0.0
  %2477 = vmatpush1.msra.mxu0 0.0
  %2478 = vmatprep.subr.mxu0 0.0
  %2479 = vmatpush1.msra.mxu0 0.0
  %2480 = vmatprep.subr.mxu0 0.0
  %2481 = vmatpush1.msra.mxu0 0.0
  %2482 = vmatprep.subr.mxu0 0.0
  %2483 = vmatpush1.msra.mxu0 0.0
  %2484 = vmatprep.subr.mxu0 0.0
  %2485 = vmatpush1.msra.mxu0 0.0
  %2486 = vmatprep.subr.mxu0 0.0
  %2487 = vmatpush1.msra.mxu0 0.0
  %2488 = vmatprep.subr.mxu0 0.0
  %2489 = vmatpush1.msra.mxu0 0.0
  %2490 = vmatprep.subr.mxu0 0.0
  %2491 = vmatpush1.msra.mxu0 0.0
  %2492 = vmatprep.subr.mxu0 0.0
  %2493 = vmatpush1.msra.mxu0 0.0
  %2494 = vmatprep.subr.mxu0 0.0
  %2495 = vmatpush1.msra.mxu0 0.0
  %2496 = vmatprep.subr.mxu0 0.0
  %2497 = vmatpush1.msra.mxu0 0.0
  %2498 = vmatprep.subr.mxu0 0.0
  %2499 = vmatpush1.msra.mxu0 0.0
  %2500 = vmatprep.subr.mxu0 0.0
  %2501 = vmatpush1.msra.mxu0 0.0
  %2502 = vmatprep.subr.mxu0 0.0
  %2503 = vmatpush1.msra.mxu0 0.0
  %2504 = vmatprep.subr.mxu0 0.0
  %2505 = vmatpush1.msra.mxu0 0.0
  %2506 = vmatprep.subr.mxu0 0.0
  %2507 = vmatpush1.msra.mxu0 0.0
  %2508 = vmatprep.subr.mxu0 0.0
  %2509 = vmatpush1.msra.mxu0 0.0
  %2510 = vmatprep.subr.mxu0 0.0
  %2511 = vmatpush1.msra.mxu0 0.0
  %2512 = vmatprep.subr.mxu0 0.0
  %2513 = vmatpush1.msra.mxu0 0.0
  %2514 = vmatprep.subr.mxu0 0.0
  %2515 = vmatpush1.msra.mxu0 0.0
  %2516 = vmatprep.subr.mxu0 0.0
  %2517 = vmatpush1.msra.mxu0 0.0
  %2518 = vmatprep.subr.mxu0 0.0
  %2519 = vmatpush1.msra.mxu0 0.0
  %2520 = vmatprep.subr.mxu0 0.0
  %2521 = vmatpush1.msra.mxu0 0.0
  %2522 = vmatprep.subr.mxu0 0.0
  %2523 = vmatpush1.msra.mxu0 0.0
  %2524 = vmatprep.subr.mxu0 0.0
  %2525 = vmatpush1.msra.mxu0 0.0
  %2526 = vmatprep.subr.mxu0 0.0
  %2527 = vmatpush1.msra.mxu0 0.0
  %2528 = vmatprep.subr.mxu0 0.0
  %2529 = vmatpush1.msra.mxu0 0.0
  %2530 = vmatprep.subr.mxu0 0.0
  %2531 = vmatpush1.msra.mxu0 0.0
  %2532 = vmatprep.subr.mxu0 0.0
  %2533 = vmatpush1.msra.mxu0 0.0
  %2534 = vmatprep.subr.mxu0 0.0
  %2535 = vmatpush1.msra.mxu0 0.0
  %2536 = vmatprep.mubr.f32.mxu0 0.0
  %2537 = vmatmul.mubr.f32.gmra.mrb[0].mxu0 %v2399
  %v2538 = vpop.f32.mrb[0].mxu0
  %v2539 = vadd.f32 0.0, %v2538
  %v2540 = vpop.f32.mrb[0].mxu0
  %v2541 = vadd.f32 0.0, %v2540
  %2542 = vdwg.mxu0
  %2543 = vmatprep.subr.mxu0 0.0
  %2544 = vmatpush1.msra.mxu0 %v2388
  %2545 = vmatprep.subr.mxu0 0.0
  %2546 = vmatpush1.msra.mxu0 0.0
  %2547 = vmatprep.subr.mxu0 0.0
  %2548 = vmatpush1.msra.mxu0 0.0
  %2549 = vmatprep.subr.mxu0 0.0
  %2550 = vmatpush1.msra.mxu0 0.0
  %2551 = vmatprep.subr.mxu0 0.0
  %2552 = vmatpush1.msra.mxu0 0.0
  %2553 = vmatprep.subr.mxu0 0.0
  %2554 = vmatpush1.msra.mxu0 0.0
  %2555 = vmatprep.subr.mxu0 0.0
  %2556 = vmatpush1.msra.mxu0 0.0
  %2557 = vmatprep.subr.mxu0 0.0
  %2558 = vmatpush1.msra.mxu0 0.0
  %2559 = vmatprep.subr.mxu0 0.0
  %2560 = vmatpush1.msra.mxu0 0.0
  %2561 = vmatprep.subr.mxu0 0.0
  %2562 = vmatpush1.msra.mxu0 0.0
  %2563 = vmatprep.subr.mxu0 0.0
  %2564 = vmatpush1.msra.mxu0 0.0
  %2565 = vmatprep.subr.mxu0 0.0
  %2566 = vmatpush1.msra.mxu0 0.0
  %2567 = vmatprep.subr.mxu0 0.0
  %2568 = vmatpush1.msra.mxu0 0.0
  %2569 = vmatprep.subr.mxu0 0.0
  %2570 = vmatpush1.msra.mxu0 0.0
  %2571 = vmatprep.subr.mxu0 0.0
  %2572 = vmatpush1.msra.mxu0 0.0
  %2573 = vmatprep.subr.mxu0 0.0
  %2574 = vmatpush1.msra.mxu0 0.0
  %2575 = vmatprep.subr.mxu0 0.0
  %2576 = vmatpush1.msra.mxu0 0.0
  %2577 = vmatprep.subr.mxu0 0.0
  %2578 = vmatpush1.msra.mxu0 0.0
  %2579 = vmatprep.subr.mxu0 0.0
  %2580 = vmatpush1.msra.mxu0 0.0
  %2581 = vmatprep.subr.mxu0 0.0
  %2582 = vmatpush1.msra.mxu0 0.0
  %2583 = vmatprep.subr.mxu0 0.0
  %2584 = vmatpush1.msra.mxu0 0.0
  %2585 = vmatprep.subr.mxu0 0.0
  %2586 = vmatpush1.msra.mxu0 0.0
  %2587 = vmatprep.subr.mxu0 0.0
  %2588 = vmatpush1.msra.mxu0 0.0
  %2589 = vmatprep.subr.mxu0 0.0
  %2590 = vmatpush1.msra.mxu0 0.0
  %2591 = vmatprep.subr.mxu0 0.0
  %2592 = vmatpush1.msra.mxu0 0.0
  %2593 = vmatprep.subr.mxu0 0.0
  %2594 = vmatpush1.msra.mxu0 0.0
  %2595 = vmatprep.subr.mxu0 0.0
  %2596 = vmatpush1.msra.mxu0 0.0
  %2597 = vmatprep.subr.mxu0 0.0
  %2598 = vmatpush1.msra.mxu0 0.0
  %2599 = vmatprep.subr.mxu0 0.0
  %2600 = vmatpush1.msra.mxu0 0.0
  %2601 = vmatprep.subr.mxu0 0.0
  %2602 = vmatpush1.msra.mxu0 0.0
  %2603 = vmatprep.subr.mxu0 0.0
  %2604 = vmatpush1.msra.mxu0 0.0
  %2605 = vmatprep.subr.mxu0 0.0
  %2606 = vmatpush1.msra.mxu0 0.0
  %2607 = vmatprep.mubr.f32.mxu0 0.0
  %2608 = vmatmul.mubr.f32.gmra.mrb[0].mxu0 %v2399
  %v2609 = vpop.f32.mrb[0].mxu0
  %v2610 = vadd.f32 0.0, %v2609
  %v2611 = vpop.f32.mrb[0].mxu0
  %2612 = vdwg.mxu0
  %v2614 = vsel %vm899, %v2366, 0
  %2616 = vmatprep.subr.mxu0 %v2368
  %2617 = vmatpush1.msra.mxu0 %v2367
  %2618 = vmatprep.subr.mxu0 0.0
  %2619 = vmatpush1.msra.mxu0 0.0
  %2620 = vmatprep.subr.mxu0 0.0
  %2621 = vmatpush1.msra.mxu0 0.0
  %2622 = vmatprep.subr.mxu0 0.0
  %2623 = vmatpush1.msra.mxu0 0.0
  %2624 = vmatprep.subr.mxu0 0.0
  %2625 = vmatpush1.msra.mxu0 0.0
  %2626 = vmatprep.subr.mxu0 0.0
  %2627 = vmatpush1.msra.mxu0 0.0
  %2628 = vmatprep.subr.mxu0 0.0
  %2629 = vmatpush1.msra.mxu0 0.0
  %2630 = vmatprep.subr.mxu0 0.0
  %2631 = vmatpush1.msra.mxu0 0.0
  %2632 = vmatprep.subr.mxu0 0.0
  %2633 = vmatpush1.msra.mxu0 0.0
  %2634 = vmatprep.subr.mxu0 0.0
  %2635 = vmatpush1.msra.mxu0 0.0
  %2636 = vmatprep.subr.mxu0 0.0
  %2637 = vmatpush1.msra.mxu0 0.0
  %2638 = vmatprep.subr.mxu0 0.0
  %2639 = vmatpush1.msra.mxu0 0.0
  %2640 = vmatprep.subr.mxu0 0.0
  %2641 = vmatpush1.msra.mxu0 0.0
  %2642 = vmatprep.subr.mxu0 0.0
  %2643 = vmatpush1.msra.mxu0 0.0
  %2644 = vmatprep.subr.mxu0 0.0
  %2645 = vmatpush1.msra.mxu0 0.0
  %2646 = vmatprep.subr.mxu0 0.0
  %2647 = vmatpush1.msra.mxu0 0.0
  %2648 = vmatprep.subr.mxu0 0.0
  %2649 = vmatpush1.msra.mxu0 0.0
  %2650 = vmatprep.subr.mxu0 0.0
  %2651 = vmatpush1.msra.mxu0 0.0
  %2652 = vmatprep.subr.mxu0 0.0
  %2653 = vmatpush1.msra.mxu0 0.0
  %2654 = vmatprep.subr.mxu0 0.0
  %2655 = vmatpush1.msra.mxu0 0.0
  %2656 = vmatprep.subr.mxu0 0.0
  %2657 = vmatpush1.msra.mxu0 0.0
  %2658 = vmatprep.subr.mxu0 0.0
  %2659 = vmatpush1.msra.mxu0 0.0
  %2660 = vmatprep.subr.mxu0 0.0
  %2661 = vmatpush1.msra.mxu0 0.0
  %2662 = vmatprep.subr.mxu0 0.0
  %2663 = vmatpush1.msra.mxu0 0.0
  %2664 = vmatprep.subr.mxu0 0.0
  %2665 = vmatpush1.msra.mxu0 0.0
  %2666 = vmatprep.subr.mxu0 0.0
  %2667 = vmatpush1.msra.mxu0 0.0
  %2668 = vmatprep.subr.mxu0 0.0
  %2669 = vmatpush1.msra.mxu0 0.0
  %2670 = vmatprep.subr.mxu0 0.0
  %2671 = vmatpush1.msra.mxu0 0.0
  %2672 = vmatprep.subr.mxu0 0.0
  %2673 = vmatpush1.msra.mxu0 0.0
  %2674 = vmatprep.subr.mxu0 0.0
  %2675 = vmatpush1.msra.mxu0 0.0
  %2676 = vmatprep.subr.mxu0 0.0
  %2677 = vmatpush1.msra.mxu0 0.0
  %2678 = vmatprep.subr.mxu0 0.0
  %2679 = vmatpush1.msra.mxu0 0.0
  %2680 = vmatprep.mubr.f32.mxu0 0.0
  %2681 = vmatmul.mubr.f32.gmra.mrb[0].mxu0 %v2614
  %v2682 = vpop.f32.mrb[0].mxu0
  %v2683 = vadd.f32 %v2468, %v2682
  %v2684 = vpop.f32.mrb[0].mxu0
  %v2685 = vadd.f32 %v2470, %v2684
  %2686 = vdwg.mxu0
  %2687 = vmatprep.subr.mxu0 %v2370
  %2688 = vmatpush1.msra.mxu0 %v2369
  %2689 = vmatprep.subr.mxu0 0.0
  %2690 = vmatpush1.msra.mxu0 0.0
  %2691 = vmatprep.subr.mxu0 0.0
  %2692 = vmatpush1.msra.mxu0 0.0
  %2693 = vmatprep.subr.mxu0 0.0
  %2694 = vmatpush1.msra.mxu0 0.0
  %2695 = vmatprep.subr.mxu0 0.0
  %2696 = vmatpush1.msra.mxu0 0.0
  %2697 = vmatprep.subr.mxu0 0.0
  %2698 = vmatpush1.msra.mxu0 0.0
  %2699 = vmatprep.subr.mxu0 0.0
  %2700 = vmatpush1.msra.mxu0 0.0
  %2701 = vmatprep.subr.mxu0 0.0
  %2702 = vmatpush1.msra.mxu0 0.0
  %2703 = vmatprep.subr.mxu0 0.0
  %2704 = vmatpush1.msra.mxu0 0.0
  %2705 = vmatprep.subr.mxu0 0.0
  %2706 = vmatpush1.msra.mxu0 0.0
  %2707 = vmatprep.subr.mxu0 0.0
  %2708 = vmatpush1.msra.mxu0 0.0
  %2709 = vmatprep.subr.mxu0 0.0
  %2710 = vmatpush1.msra.mxu0 0.0
  %2711 = vmatprep.subr.mxu0 0.0
  %2712 = vmatpush1.msra.mxu0 0.0
  %2713 = vmatprep.subr.mxu0 0.0
  %2714 = vmatpush1.msra.mxu0 0.0
  %2715 = vmatprep.subr.mxu0 0.0
  %2716 = vmatpush1.msra.mxu0 0.0
  %2717 = vmatprep.subr.mxu0 0.0
  %2718 = vmatpush1.msra.mxu0 0.0
  %2719 = vmatprep.subr.mxu0 0.0
  %2720 = vmatpush1.msra.mxu0 0.0
  %2721 = vmatprep.subr.mxu0 0.0
  %2722 = vmatpush1.msra.mxu0 0.0
  %2723 = vmatprep.subr.mxu0 0.0
  %2724 = vmatpush1.msra.mxu0 0.0
  %2725 = vmatprep.subr.mxu0 0.0
  %2726 = vmatpush1.msra.mxu0 0.0
  %2727 = vmatprep.subr.mxu0 0.0
  %2728 = vmatpush1.msra.mxu0 0.0
  %2729 = vmatprep.subr.mxu0 0.0
  %2730 = vmatpush1.msra.mxu0 0.0
  %2731 = vmatprep.subr.mxu0 0.0
  %2732 = vmatpush1.msra.mxu0 0.0
  %2733 = vmatprep.subr.mxu0 0.0
  %2734 = vmatpush1.msra.mxu0 0.0
  %2735 = vmatprep.subr.mxu0 0.0
  %2736 = vmatpush1.msra.mxu0 0.0
  %2737 = vmatprep.subr.mxu0 0.0
  %2738 = vmatpush1.msra.mxu0 0.0
  %2739 = vmatprep.subr.mxu0 0.0
  %2740 = vmatpush1.msra.mxu0 0.0
  %2741 = vmatprep.subr.mxu0 0.0
  %2742 = vmatpush1.msra.mxu0 0.0
  %2743 = vmatprep.subr.mxu0 0.0
  %2744 = vmatpush1.msra.mxu0 0.0
  %2745 = vmatprep.subr.mxu0 0.0
  %2746 = vmatpush1.msra.mxu0 0.0
  %2747 = vmatprep.subr.mxu0 0.0
  %2748 = vmatpush1.msra.mxu0 0.0
  %2749 = vmatprep.subr.mxu0 0.0
  %2750 = vmatpush1.msra.mxu0 0.0
  %2751 = vmatprep.mubr.f32.mxu0 0.0
  %2752 = vmatmul.mubr.f32.gmra.mrb[0].mxu0 %v2614
  %v2753 = vpop.f32.mrb[0].mxu0
  %v2754 = vadd.f32 %v2539, %v2753
  %v2755 = vpop.f32.mrb[0].mxu0
  %v2756 = vadd.f32 %v2541, %v2755
  %2757 = vdwg.mxu0
  %2758 = vmatprep.subr.mxu0 0.0
  %2759 = vmatpush1.msra.mxu0 %v2371
  %2760 = vmatprep.subr.mxu0 0.0
  %2761 = vmatpush1.msra.mxu0 0.0
  %2762 = vmatprep.subr.mxu0 0.0
  %2763 = vmatpush1.msra.mxu0 0.0
  %2764 = vmatprep.subr.mxu0 0.0
  %2765 = vmatpush1.msra.mxu0 0.0
  %2766 = vmatprep.subr.mxu0 0.0
  %2767 = vmatpush1.msra.mxu0 0.0
  %2768 = vmatprep.subr.mxu0 0.0
  %2769 = vmatpush1.msra.mxu0 0.0
  %2770 = vmatprep.subr.mxu0 0.0
  %2771 = vmatpush1.msra.mxu0 0.0
  %2772 = vmatprep.subr.mxu0 0.0
  %2773 = vmatpush1.msra.mxu0 0.0
  %2774 = vmatprep.subr.mxu0 0.0
  %2775 = vmatpush1.msra.mxu0 0.0
  %2776 = vmatprep.subr.mxu0 0.0
  %2777 = vmatpush1.msra.mxu0 0.0
  %2778 = vmatprep.subr.mxu0 0.0
  %2779 = vmatpush1.msra.mxu0 0.0
  %2780 = vmatprep.subr.mxu0 0.0
  %2781 = vmatpush1.msra.mxu0 0.0
  %2782 = vmatprep.subr.mxu0 0.0
  %2783 = vmatpush1.msra.mxu0 0.0
  %2784 = vmatprep.subr.mxu0 0.0
  %2785 = vmatpush1.msra.mxu0 0.0
  %2786 = vmatprep.subr.mxu0 0.0
  %2787 = vmatpush1.msra.mxu0 0.0
  %2788 = vmatprep.subr.mxu0 0.0
  %2789 = vmatpush1.msra.mxu0 0.0
  %2790 = vmatprep.subr.mxu0 0.0
  %2791 = vmatpush1.msra.mxu0 0.0
  %2792 = vmatprep.subr.mxu0 0.0
  %2793 = vmatpush1.msra.mxu0 0.0
  %2794 = vmatprep.subr.mxu0 0.0
  %2795 = vmatpush1.msra.mxu0 0.0
  %2796 = vmatprep.subr.mxu0 0.0
  %2797 = vmatpush1.msra.mxu0 0.0
  %2798 = vmatprep.subr.mxu0 0.0
  %2799 = vmatpush1.msra.mxu0 0.0
  %2800 = vmatprep.subr.mxu0 0.0
  %2801 = vmatpush1.msra.mxu0 0.0
  %2802 = vmatprep.subr.mxu0 0.0
  %2803 = vmatpush1.msra.mxu0 0.0
  %2804 = vmatprep.subr.mxu0 0.0
  %2805 = vmatpush1.msra.mxu0 0.0
  %2806 = vmatprep.subr.mxu0 0.0
  %2807 = vmatpush1.msra.mxu0 0.0
  %2808 = vmatprep.subr.mxu0 0.0
  %2809 = vmatpush1.msra.mxu0 0.0
  %2810 = vmatprep.subr.mxu0 0.0
  %2811 = vmatpush1.msra.mxu0 0.0
  %2812 = vmatprep.subr.mxu0 0.0
  %2813 = vmatpush1.msra.mxu0 0.0
  %2814 = vmatprep.subr.mxu0 0.0
  %2815 = vmatpush1.msra.mxu0 0.0
  %2816 = vmatprep.subr.mxu0 0.0
  %2817 = vmatpush1.msra.mxu0 0.0
  %2818 = vmatprep.subr.mxu0 0.0
  %2819 = vmatpush1.msra.mxu0 0.0
  %2820 = vmatprep.subr.mxu0 0.0
  %2821 = vmatpush1.msra.mxu0 0.0
  %2822 = vmatprep.mubr.f32.mxu0 0.0
  %2823 = vmatmul.mubr.f32.gmra.mrb[0].mxu0 %v2614
  %v2824 = vpop.f32.mrb[0].mxu0
  %v2825 = vadd.f32 %v2610, %v2824
  %v2826 = vpop.f32.mrb[0].mxu0
  %2827 = vdwg.mxu0
  %s2828 = scalar_lea.vmem %s4, 16
  %v2829 = vld [vmem:[%s2828] sm:$0xff]
  %2830 = vrot.lane.b32.xlu0 %v2367, 126
  %v2831 = vpop.permute.xlu0 %2830
  %2832 = vrot.lane.b32.xlu0 %v2368, 126
  %v2833 = vpop.permute.xlu0 %2832
  %2834 = vrot.lane.b32.xlu0 %v2369, 126
  %v2835 = vpop.permute.xlu0 %2834
  %2836 = vrot.lane.b32.xlu0 %v2370, 126
  %v2837 = vpop.permute.xlu0 %2836
  %2838 = vrot.lane.b32.xlu0 %v2371, 126
  %v2839 = vpop.permute.xlu0 %2838
  %v2840 = vsel %vm584, %v2831, %v2833
  %v2841 = vsel %vm584, %v2833, %v2835
  %v2842 = vsel %vm584, %v2835, %v2837
  %v2843 = vsel %vm584, %v2837, %v2839
  %v2850 = vsel %vm899, %v2829, 0
  %2852 = vmatprep.subr.mxu0 %v2841
  %2853 = vmatpush1.msra.mxu0 %v2840
  %2854 = vmatprep.subr.mxu0 0.0
  %2855 = vmatpush1.msra.mxu0 0.0
  %2856 = vmatprep.subr.mxu0 0.0
  %2857 = vmatpush1.msra.mxu0 0.0
  %2858 = vmatprep.subr.mxu0 0.0
  %2859 = vmatpush1.msra.mxu0 0.0
  %2860 = vmatprep.subr.mxu0 0.0
  %2861 = vmatpush1.msra.mxu0 0.0
  %2862 = vmatprep.subr.mxu0 0.0
  %2863 = vmatpush1.msra.mxu0 0.0
  %2864 = vmatprep.subr.mxu0 0.0
  %2865 = vmatpush1.msra.mxu0 0.0
  %2866 = vmatprep.subr.mxu0 0.0
  %2867 = vmatpush1.msra.mxu0 0.0
  %2868 = vmatprep.subr.mxu0 0.0
  %2869 = vmatpush1.msra.mxu0 0.0
  %2870 = vmatprep.subr.mxu0 0.0
  %2871 = vmatpush1.msra.mxu0 0.0
  %2872 = vmatprep.subr.mxu0 0.0
  %2873 = vmatpush1.msra.mxu0 0.0
  %2874 = vmatprep.subr.mxu0 0.0
  %2875 = vmatpush1.msra.mxu0 0.0
  %2876 = vmatprep.subr.mxu0 0.0
  %2877 = vmatpush1.msra.mxu0 0.0
  %2878 = vmatprep.subr.mxu0 0.0
  %2879 = vmatpush1.msra.mxu0 0.0
  %2880 = vmatprep.subr.mxu0 0.0
  %2881 = vmatpush1.msra.mxu0 0.0
  %2882 = vmatprep.subr.mxu0 0.0
  %2883 = vmatpush1.msra.mxu0 0.0
  %2884 = vmatprep.subr.mxu0 0.0
  %2885 = vmatpush1.msra.mxu0 0.0
  %2886 = vmatprep.subr.mxu0 0.0
  %2887 = vmatpush1.msra.mxu0 0.0
  %2888 = vmatprep.subr.mxu0 0.0
  %2889 = vmatpush1.msra.mxu0 0.0
  %2890 = vmatprep.subr.mxu0 0.0
  %2891 = vmatpush1.msra.mxu0 0.0
  %2892 = vmatprep.subr.mxu0 0.0
  %2893 = vmatpush1.msra.mxu0 0.0
  %2894 = vmatprep.subr.mxu0 0.0
  %2895 = vmatpush1.msra.mxu0 0.0
  %2896 = vmatprep.subr.mxu0 0.0
  %2897 = vmatpush1.msra.mxu0 0.0
  %2898 = vmatprep.subr.mxu0 0.0
  %2899 = vmatpush1.msra.mxu0 0.0
  %2900 = vmatprep.subr.mxu0 0.0
  %2901 = vmatpush1.msra.mxu0 0.0
  %2902 = vmatprep.subr.mxu0 0.0
  %2903 = vmatpush1.msra.mxu0 0.0
  %2904 = vmatprep.subr.mxu0 0.0
  %2905 = vmatpush1.msra.mxu0 0.0
  %2906 = vmatprep.subr.mxu0 0.0
  %2907 = vmatpush1.msra.mxu0 0.0
  %2908 = vmatprep.subr.mxu0 0.0
  %2909 = vmatpush1.msra.mxu0 0.0
  %2910 = vmatprep.subr.mxu0 0.0
  %2911 = vmatpush1.msra.mxu0 0.0
  %2912 = vmatprep.subr.mxu0 0.0
  %2913 = vmatpush1.msra.mxu0 0.0
  %2914 = vmatprep.subr.mxu0 0.0
  %2915 = vmatpush1.msra.mxu0 0.0
  %2916 = vmatprep.mubr.f32.mxu0 0.0
  %2917 = vmatmul.mubr.f32.gmra.mrb[0].mxu0 %v2850
  %v2918 = vpop.f32.mrb[0].mxu0
  %v2919 = vadd.f32 0.0, %v2918
  %v2920 = vpop.f32.mrb[0].mxu0
  %v2921 = vadd.f32 0.0, %v2920
  %2922 = vdwg.mxu0
  %2923 = vmatprep.subr.mxu0 %v2843
  %2924 = vmatpush1.msra.mxu0 %v2842
  %2925 = vmatprep.subr.mxu0 0.0
  %2926 = vmatpush1.msra.mxu0 0.0
  %2927 = vmatprep.subr.mxu0 0.0
  %2928 = vmatpush1.msra.mxu0 0.0
  %2929 = vmatprep.subr.mxu0 0.0
  %2930 = vmatpush1.msra.mxu0 0.0
  %2931 = vmatprep.subr.mxu0 0.0
  %2932 = vmatpush1.msra.mxu0 0.0
  %2933 = vmatprep.subr.mxu0 0.0
  %2934 = vmatpush1.msra.mxu0 0.0
  %2935 = vmatprep.subr.mxu0 0.0
  %2936 = vmatpush1.msra.mxu0 0.0
  %2937 = vmatprep.subr.mxu0 0.0
  %2938 = vmatpush1.msra.mxu0 0.0
  %2939 = vmatprep.subr.mxu0 0.0
  %2940 = vmatpush1.msra.mxu0 0.0
  %2941 = vmatprep.subr.mxu0 0.0
  %2942 = vmatpush1.msra.mxu0 0.0
  %2943 = vmatprep.subr.mxu0 0.0
  %2944 = vmatpush1.msra.mxu0 0.0
  %2945 = vmatprep.subr.mxu0 0.0
  %2946 = vmatpush1.msra.mxu0 0.0
  %2947 = vmatprep.subr.mxu0 0.0
  %2948 = vmatpush1.msra.mxu0 0.0
  %2949 = vmatprep.subr.mxu0 0.0
  %2950 = vmatpush1.msra.mxu0 0.0
  %2951 = vmatprep.subr.mxu0 0.0
  %2952 = vmatpush1.msra.mxu0 0.0
  %2953 = vmatprep.subr.mxu0 0.0
  %2954 = vmatpush1.msra.mxu0 0.0
  %2955 = vmatprep.subr.mxu0 0.0
  %2956 = vmatpush1.msra.mxu0 0.0
  %2957 = vmatprep.subr.mxu0 0.0
  %2958 = vmatpush1.msra.mxu0 0.0
  %2959 = vmatprep.subr.mxu0 0.0
  %2960 = vmatpush1.msra.mxu0 0.0
  %2961 = vmatprep.subr.mxu0 0.0
  %2962 = vmatpush1.msra.mxu0 0.0
  %2963 = vmatprep.subr.mxu0 0.0
  %2964 = vmatpush1.msra.mxu0 0.0
  %2965 = vmatprep.subr.mxu0 0.0
  %2966 = vmatpush1.msra.mxu0 0.0
  %2967 = vmatprep.subr.mxu0 0.0
  %2968 = vmatpush1.msra.mxu0 0.0
  %2969 = vmatprep.subr.mxu0 0.0
  %2970 = vmatpush1.msra.mxu0 0.0
  %2971 = vmatprep.subr.mxu0 0.0
  %2972 = vmatpush1.msra.mxu0 0.0
  %2973 = vmatprep.subr.mxu0 0.0
  %2974 = vmatpush1.msra.mxu0 0.0
  %2975 = vmatprep.subr.mxu0 0.0
  %2976 = vmatpush1.msra.mxu0 0.0
  %2977 = vmatprep.subr.mxu0 0.0
  %2978 = vmatpush1.msra.mxu0 0.0
  %2979 = vmatprep.subr.mxu0 0.0
  %2980 = vmatpush1.msra.mxu0 0.0
  %2981 = vmatprep.subr.mxu0 0.0
  %2982 = vmatpush1.msra.mxu0 0.0
  %2983 = vmatprep.subr.mxu0 0.0
  %2984 = vmatpush1.msra.mxu0 0.0
  %2985 = vmatprep.subr.mxu0 0.0
  %2986 = vmatpush1.msra.mxu0 0.0
  %2987 = vmatprep.mubr.f32.mxu0 0.0
  %2988 = vmatmul.mubr.f32.gmra.mrb[0].mxu0 %v2850
  %v2989 = vpop.f32.mrb[0].mxu0
  %v2990 = vadd.f32 0.0, %v2989
  %v2991 = vpop.f32.mrb[0].mxu0
  %v2992 = vadd.f32 0.0, %v2991
  %2993 = vdwg.mxu0
  %2994 = vmatprep.subr.mxu0 0.0
  %2995 = vmatpush1.msra.mxu0 %v2839
  %2996 = vmatprep.subr.mxu0 0.0
  %2997 = vmatpush1.msra.mxu0 0.0
  %2998 = vmatprep.subr.mxu0 0.0
  %2999 = vmatpush1.msra.mxu0 0.0
  %3000 = vmatprep.subr.mxu0 0.0
  %3001 = vmatpush1.msra.mxu0 0.0
  %3002 = vmatprep.subr.mxu0 0.0
  %3003 = vmatpush1.msra.mxu0 0.0
  %3004 = vmatprep.subr.mxu0 0.0
  %3005 = vmatpush1.msra.mxu0 0.0
  %3006 = vmatprep.subr.mxu0 0.0
  %3007 = vmatpush1.msra.mxu0 0.0
  %3008 = vmatprep.subr.mxu0 0.0
  %3009 = vmatpush1.msra.mxu0 0.0
  %3010 = vmatprep.subr.mxu0 0.0
  %3011 = vmatpush1.msra.mxu0 0.0
  %3012 = vmatprep.subr.mxu0 0.0
  %3013 = vmatpush1.msra.mxu0 0.0
  %3014 = vmatprep.subr.mxu0 0.0
  %3015 = vmatpush1.msra.mxu0 0.0
  %3016 = vmatprep.subr.mxu0 0.0
  %3017 = vmatpush1.msra.mxu0 0.0
  %3018 = vmatprep.subr.mxu0 0.0
  %3019 = vmatpush1.msra.mxu0 0.0
  %3020 = vmatprep.subr.mxu0 0.0
  %3021 = vmatpush1.msra.mxu0 0.0
  %3022 = vmatprep.subr.mxu0 0.0
  %3023 = vmatpush1.msra.mxu0 0.0
  %3024 = vmatprep.subr.mxu0 0.0
  %3025 = vmatpush1.msra.mxu0 0.0
  %3026 = vmatprep.subr.mxu0 0.0
  %3027 = vmatpush1.msra.mxu0 0.0
  %3028 = vmatprep.subr.mxu0 0.0
  %3029 = vmatpush1.msra.mxu0 0.0
  %3030 = vmatprep.subr.mxu0 0.0
  %3031 = vmatpush1.msra.mxu0 0.0
  %3032 = vmatprep.subr.mxu0 0.0
  %3033 = vmatpush1.msra.mxu0 0.0
  %3034 = vmatprep.subr.mxu0 0.0
  %3035 = vmatpush1.msra.mxu0 0.0
  %3036 = vmatprep.subr.mxu0 0.0
  %3037 = vmatpush1.msra.mxu0 0.0
  %3038 = vmatprep.subr.mxu0 0.0
  %3039 = vmatpush1.msra.mxu0 0.0
  %3040 = vmatprep.subr.mxu0 0.0
  %3041 = vmatpush1.msra.mxu0 0.0
  %3042 = vmatprep.subr.mxu0 0.0
  %3043 = vmatpush1.msra.mxu0 0.0
  %3044 = vmatprep.subr.mxu0 0.0
  %3045 = vmatpush1.msra.mxu0 0.0
  %3046 = vmatprep.subr.mxu0 0.0
  %3047 = vmatpush1.msra.mxu0 0.0
  %3048 = vmatprep.subr.mxu0 0.0
  %3049 = vmatpush1.msra.mxu0 0.0
  %3050 = vmatprep.subr.mxu0 0.0
  %3051 = vmatpush1.msra.mxu0 0.0
  %3052 = vmatprep.subr.mxu0 0.0
  %3053 = vmatpush1.msra.mxu0 0.0
  %3054 = vmatprep.subr.mxu0 0.0
  %3055 = vmatpush1.msra.mxu0 0.0
  %3056 = vmatprep.subr.mxu0 0.0
  %3057 = vmatpush1.msra.mxu0 0.0
  %3058 = vmatprep.mubr.f32.mxu0 0.0
  %3059 = vmatmul.mubr.f32.gmra.mrb[0].mxu0 %v2850
  %v3060 = vpop.f32.mrb[0].mxu0
  %v3061 = vadd.f32 0.0, %v3060
  %v3062 = vpop.f32.mrb[0].mxu0
  %3063 = vdwg.mxu0
  %v3064 = vadd.f32 %v2683, %v2919
  %v3065 = vadd.f32 %v2685, %v2921
  %v3066 = vadd.f32 %v2754, %v2990
  %v3067 = vadd.f32 %v2756, %v2992
  %v3068 = vadd.f32 %v2825, %v3061
  %v3069 = vld [vmem:[%s9] sm:$0xff]
  %3071 = vset.pattern.permute.xlu0 0
  %3072 = vperm.xlu0 %3071, %v3069
  %v3073 = vpop.permute.xlu0 %3072
  %v3075 = vadd.f32 %v3064, %v3073
  %v3076 = vadd.f32 %v3065, %v3073
  %v3077 = vadd.f32 %v3066, %v3073
  %v3078 = vadd.f32 %v3067, %v3073
  %v3079 = vadd.f32 %v3068, %v3073
  %v3080 = vmax.f32 %v3075, 0.0
  %v3081 = vmax.f32 %v3076, 0.0
  %v3082 = vmax.f32 %v3077, 0.0
  %v3083 = vmax.f32 %v3078, 0.0
  %v3084 = vmax.f32 %v3079, 0.0
  %3087 = vrot.lane.b32.xlu0 %v3080, 1
  %v3088 = vpop.permute.xlu0 %3087
  %3089 = vrot.lane.b32.xlu0 %v3081, 1
  %v3090 = vpop.permute.xlu0 %3089
  %v3091 = vsel %vm65, %v3088, %v3090
  %3095 = vst.msk [vmem:[#allocation2] sm:$0xff] %vm845, %v3088
  %3096 = vst [vmem:[#allocation2 + $0x8] sm:$0xff] %v3091
  %3097 = vst.msk [vmem:[#allocation2 + $0x10] sm:$0xff] %vm65, %v3090
  %3101 = vrot.lane.b32.xlu0 %v3082, 1
  %v3102 = vpop.permute.xlu0 %3101
  %3103 = vrot.lane.b32.xlu0 %v3083, 1
  %v3104 = vpop.permute.xlu0 %3103
  %3105 = vrot.lane.b32.xlu0 %v3084, 1
  %v3106 = vpop.permute.xlu0 %3105
  %v3107 = vsel %vm65, %v3102, %v3104
  %v3108 = vsel %vm65, %v3104, %v3106
  %3112 = vst.msk [vmem:[#allocation2 + $0x10] sm:$0xff] %vm863, %v3102
  %3113 = vst [vmem:[#allocation2 + $0x18] sm:$0xff] %v3107
  %3114 = vst.msk [vmem:[#allocation2 + $0x20] sm:$0xff] %vm83, %v3108
  %v3115 = vld [vmem:[%s5] sm:$0xff]
  %v3116 = vld [vmem:[#allocation2] sm:$0xff]
  %v3117 = vld [vmem:[#allocation2 + $0x8] sm:$0xff]
  %v3118 = vld [vmem:[#allocation2 + $0x10] sm:$0xff]
  %v3119 = vld [vmem:[#allocation2 + $0x18] sm:$0xff]
  %v3120 = vld [vmem:[#allocation2 + $0x20] sm:$0xff]
  %s3121 = scalar_lea.vmem %s5, 8
  %v3122 = vld [vmem:[%s3121] sm:$0xff]
  %3128 = vrot.lane.b32.xlu0 %v3116, 127
  %v3129 = vpop.permute.xlu0 %3128
  %3130 = vrot.lane.b32.xlu0 %v3117, 127
  %v3131 = vpop.permute.xlu0 %3130
  %3132 = vrot.lane.b32.xlu0 %v3118, 127
  %v3133 = vpop.permute.xlu0 %3132
  %3134 = vrot.lane.b32.xlu0 %v3119, 127
  %v3135 = vpop.permute.xlu0 %3134
  %3136 = vrot.lane.b32.xlu0 %v3120, 127
  %v3137 = vpop.permute.xlu0 %3136
  %v3138 = vsel %vm116, %v3129, %v3131
  %v3139 = vsel %vm116, %v3131, %v3133
  %v3140 = vsel %vm116, %v3133, %v3135
  %v3141 = vsel %vm116, %v3135, %v3137
  %v3148 = vsel %vm899, %v3122, 0
  %3150 = vmatprep.subr.mxu0 %v3139
  %3151 = vmatpush1.msra.mxu0 %v3138
  %3152 = vmatprep.subr.mxu0 0.0
  %3153 = vmatpush1.msra.mxu0 0.0
  %3154 = vmatprep.subr.mxu0 0.0
  %3155 = vmatpush1.msra.mxu0 0.0
  %3156 = vmatprep.subr.mxu0 0.0
  %3157 = vmatpush1.msra.mxu0 0.0
  %3158 = vmatprep.subr.mxu0 0.0
  %3159 = vmatpush1.msra.mxu0 0.0
  %3160 = vmatprep.subr.mxu0 0.0
  %3161 = vmatpush1.msra.mxu0 0.0
  %3162 = vmatprep.subr.mxu0 0.0
  %3163 = vmatpush1.msra.mxu0 0.0
  %3164 = vmatprep.subr.mxu0 0.0
  %3165 = vmatpush1.msra.mxu0 0.0
  %3166 = vmatprep.subr.mxu0 0.0
  %3167 = vmatpush1.msra.mxu0 0.0
  %3168 = vmatprep.subr.mxu0 0.0
  %3169 = vmatpush1.msra.mxu0 0.0
  %3170 = vmatprep.subr.mxu0 0.0
  %3171 = vmatpush1.msra.mxu0 0.0
  %3172 = vmatprep.subr.mxu0 0.0
  %3173 = vmatpush1.msra.mxu0 0.0
  %3174 = vmatprep.subr.mxu0 0.0
  %3175 = vmatpush1.msra.mxu0 0.0
  %3176 = vmatprep.subr.mxu0 0.0
  %3177 = vmatpush1.msra.mxu0 0.0
  %3178 = vmatprep.subr.mxu0 0.0
  %3179 = vmatpush1.msra.mxu0 0.0
  %3180 = vmatprep.subr.mxu0 0.0
  %3181 = vmatpush1.msra.mxu0 0.0
  %3182 = vmatprep.subr.mxu0 0.0
  %3183 = vmatpush1.msra.mxu0 0.0
  %3184 = vmatprep.subr.mxu0 0.0
  %3185 = vmatpush1.msra.mxu0 0.0
  %3186 = vmatprep.subr.mxu0 0.0
  %3187 = vmatpush1.msra.mxu0 0.0
  %3188 = vmatprep.subr.mxu0 0.0
  %3189 = vmatpush1.msra.mxu0 0.0
  %3190 = vmatprep.subr.mxu0 0.0
  %3191 = vmatpush1.msra.mxu0 0.0
  %3192 = vmatprep.subr.mxu0 0.0
  %3193 = vmatpush1.msra.mxu0 0.0
  %3194 = vmatprep.subr.mxu0 0.0
  %3195 = vmatpush1.msra.mxu0 0.0
  %3196 = vmatprep.subr.mxu0 0.0
  %3197 = vmatpush1.msra.mxu0 0.0
  %3198 = vmatprep.subr.mxu0 0.0
  %3199 = vmatpush1.msra.mxu0 0.0
  %3200 = vmatprep.subr.mxu0 0.0
  %3201 = vmatpush1.msra.mxu0 0.0
  %3202 = vmatprep.subr.mxu0 0.0
  %3203 = vmatpush1.msra.mxu0 0.0
  %3204 = vmatprep.subr.mxu0 0.0
  %3205 = vmatpush1.msra.mxu0 0.0
  %3206 = vmatprep.subr.mxu0 0.0
  %3207 = vmatpush1.msra.mxu0 0.0
  %3208 = vmatprep.subr.mxu0 0.0
  %3209 = vmatpush1.msra.mxu0 0.0
  %3210 = vmatprep.subr.mxu0 0.0
  %3211 = vmatpush1.msra.mxu0 0.0
  %3212 = vmatprep.subr.mxu0 0.0
  %3213 = vmatpush1.msra.mxu0 0.0
  %3214 = vmatprep.mubr.f32.mxu0 0.0
  %3215 = vmatmul.mubr.f32.gmra.mrb[0].mxu0 %v3148
  %v3216 = vpop.f32.mrb[0].mxu0
  %v3217 = vadd.f32 0.0, %v3216
  %v3218 = vpop.f32.mrb[0].mxu0
  %v3219 = vadd.f32 0.0, %v3218
  %3220 = vdwg.mxu0
  %3221 = vmatprep.subr.mxu0 %v3141
  %3222 = vmatpush1.msra.mxu0 %v3140
  %3223 = vmatprep.subr.mxu0 0.0
  %3224 = vmatpush1.msra.mxu0 0.0
  %3225 = vmatprep.subr.mxu0 0.0
  %3226 = vmatpush1.msra.mxu0 0.0
  %3227 = vmatprep.subr.mxu0 0.0
  %3228 = vmatpush1.msra.mxu0 0.0
  %3229 = vmatprep.subr.mxu0 0.0
  %3230 = vmatpush1.msra.mxu0 0.0
  %3231 = vmatprep.subr.mxu0 0.0
  %3232 = vmatpush1.msra.mxu0 0.0
  %3233 = vmatprep.subr.mxu0 0.0
  %3234 = vmatpush1.msra.mxu0 0.0
  %3235 = vmatprep.subr.mxu0 0.0
  %3236 = vmatpush1.msra.mxu0 0.0
  %3237 = vmatprep.subr.mxu0 0.0
  %3238 = vmatpush1.msra.mxu0 0.0
  %3239 = vmatprep.subr.mxu0 0.0
  %3240 = vmatpush1.msra.mxu0 0.0
  %3241 = vmatprep.subr.mxu0 0.0
  %3242 = vmatpush1.msra.mxu0 0.0
  %3243 = vmatprep.subr.mxu0 0.0
  %3244 = vmatpush1.msra.mxu0 0.0
  %3245 = vmatprep.subr.mxu0 0.0
  %3246 = vmatpush1.msra.mxu0 0.0
  %3247 = vmatprep.subr.mxu0 0.0
  %3248 = vmatpush1.msra.mxu0 0.0
  %3249 = vmatprep.subr.mxu0 0.0
  %3250 = vmatpush1.msra.mxu0 0.0
  %3251 = vmatprep.subr.mxu0 0.0
  %3252 = vmatpush1.msra.mxu0 0.0
  %3253 = vmatprep.subr.mxu0 0.0
  %3254 = vmatpush1.msra.mxu0 0.0
  %3255 = vmatprep.subr.mxu0 0.0
  %3256 = vmatpush1.msra.mxu0 0.0
  %3257 = vmatprep.subr.mxu0 0.0
  %3258 = vmatpush1.msra.mxu0 0.0
  %3259 = vmatprep.subr.mxu0 0.0
  %3260 = vmatpush1.msra.mxu0 0.0
  %3261 = vmatprep.subr.mxu0 0.0
  %3262 = vmatpush1.msra.mxu0 0.0
  %3263 = vmatprep.subr.mxu0 0.0
  %3264 = vmatpush1.msra.mxu0 0.0
  %3265 = vmatprep.subr.mxu0 0.0
  %3266 = vmatpush1.msra.mxu0 0.0
  %3267 = vmatprep.subr.mxu0 0.0
  %3268 = vmatpush1.msra.mxu0 0.0
  %3269 = vmatprep.subr.mxu0 0.0
  %3270 = vmatpush1.msra.mxu0 0.0
  %3271 = vmatprep.subr.mxu0 0.0
  %3272 = vmatpush1.msra.mxu0 0.0
  %3273 = vmatprep.subr.mxu0 0.0
  %3274 = vmatpush1.msra.mxu0 0.0
  %3275 = vmatprep.subr.mxu0 0.0
  %3276 = vmatpush1.msra.mxu0 0.0
  %3277 = vmatprep.subr.mxu0 0.0
  %3278 = vmatpush1.msra.mxu0 0.0
  %3279 = vmatprep.subr.mxu0 0.0
  %3280 = vmatpush1.msra.mxu0 0.0
  %3281 = vmatprep.subr.mxu0 0.0
  %3282 = vmatpush1.msra.mxu0 0.0
  %3283 = vmatprep.subr.mxu0 0.0
  %3284 = vmatpush1.msra.mxu0 0.0
  %3285 = vmatprep.mubr.f32.mxu0 0.0
  %3286 = vmatmul.mubr.f32.gmra.mrb[0].mxu0 %v3148
  %v3287 = vpop.f32.mrb[0].mxu0
  %v3288 = vadd.f32 0.0, %v3287
  %v3289 = vpop.f32.mrb[0].mxu0
  %v3290 = vadd.f32 0.0, %v3289
  %3291 = vdwg.mxu0
  %3292 = vmatprep.subr.mxu0 0.0
  %3293 = vmatpush1.msra.mxu0 %v3137
  %3294 = vmatprep.subr.mxu0 0.0
  %3295 = vmatpush1.msra.mxu0 0.0
  %3296 = vmatprep.subr.mxu0 0.0
  %3297 = vmatpush1.msra.mxu0 0.0
  %3298 = vmatprep.subr.mxu0 0.0
  %3299 = vmatpush1.msra.mxu0 0.0
  %3300 = vmatprep.subr.mxu0 0.0
  %3301 = vmatpush1.msra.mxu0 0.0
  %3302 = vmatprep.subr.mxu0 0.0
  %3303 = vmatpush1.msra.mxu0 0.0
  %3304 = vmatprep.subr.mxu0 0.0
  %3305 = vmatpush1.msra.mxu0 0.0
  %3306 = vmatprep.subr.mxu0 0.0
  %3307 = vmatpush1.msra.mxu0 0.0
  %3308 = vmatprep.subr.mxu0 0.0
  %3309 = vmatpush1.msra.mxu0 0.0
  %3310 = vmatprep.subr.mxu0 0.0
  %3311 = vmatpush1.msra.mxu0 0.0
  %3312 = vmatprep.subr.mxu0 0.0
  %3313 = vmatpush1.msra.mxu0 0.0
  %3314 = vmatprep.subr.mxu0 0.0
  %3315 = vmatpush1.msra.mxu0 0.0
  %3316 = vmatprep.subr.mxu0 0.0
  %3317 = vmatpush1.msra.mxu0 0.0
  %3318 = vmatprep.subr.mxu0 0.0
  %3319 = vmatpush1.msra.mxu0 0.0
  %3320 = vmatprep.subr.mxu0 0.0
  %3321 = vmatpush1.msra.mxu0 0.0
  %3322 = vmatprep.subr.mxu0 0.0
  %3323 = vmatpush1.msra.mxu0 0.0
  %3324 = vmatprep.subr.mxu0 0.0
  %3325 = vmatpush1.msra.mxu0 0.0
  %3326 = vmatprep.subr.mxu0 0.0
  %3327 = vmatpush1.msra.mxu0 0.0
  %3328 = vmatprep.subr.mxu0 0.0
  %3329 = vmatpush1.msra.mxu0 0.0
  %3330 = vmatprep.subr.mxu0 0.0
  %3331 = vmatpush1.msra.mxu0 0.0
  %3332 = vmatprep.subr.mxu0 0.0
  %3333 = vmatpush1.msra.mxu0 0.0
  %3334 = vmatprep.subr.mxu0 0.0
  %3335 = vmatpush1.msra.mxu0 0.0
  %3336 = vmatprep.subr.mxu0 0.0
  %3337 = vmatpush1.msra.mxu0 0.0
  %3338 = vmatprep.subr.mxu0 0.0
  %3339 = vmatpush1.msra.mxu0 0.0
  %3340 = vmatprep.subr.mxu0 0.0
  %3341 = vmatpush1.msra.mxu0 0.0
  %3342 = vmatprep.subr.mxu0 0.0
  %3343 = vmatpush1.msra.mxu0 0.0
  %3344 = vmatprep.subr.mxu0 0.0
  %3345 = vmatpush1.msra.mxu0 0.0
  %3346 = vmatprep.subr.mxu0 0.0
  %3347 = vmatpush1.msra.mxu0 0.0
  %3348 = vmatprep.subr.mxu0 0.0
  %3349 = vmatpush1.msra.mxu0 0.0
  %3350 = vmatprep.subr.mxu0 0.0
  %3351 = vmatpush1.msra.mxu0 0.0
  %3352 = vmatprep.subr.mxu0 0.0
  %3353 = vmatpush1.msra.mxu0 0.0
  %3354 = vmatprep.subr.mxu0 0.0
  %3355 = vmatpush1.msra.mxu0 0.0
  %3356 = vmatprep.mubr.f32.mxu0 0.0
  %3357 = vmatmul.mubr.f32.gmra.mrb[0].mxu0 %v3148
  %v3358 = vpop.f32.mrb[0].mxu0
  %v3359 = vadd.f32 0.0, %v3358
  %v3360 = vpop.f32.mrb[0].mxu0
  %3361 = vdwg.mxu0
  %v3363 = vsel %vm899, %v3115, 0
  %3365 = vmatprep.subr.mxu0 %v3117
  %3366 = vmatpush1.msra.mxu0 %v3116
  %3367 = vmatprep.subr.mxu0 0.0
  %3368 = vmatpush1.msra.mxu0 0.0
  %3369 = vmatprep.subr.mxu0 0.0
  %3370 = vmatpush1.msra.mxu0 0.0
  %3371 = vmatprep.subr.mxu0 0.0
  %3372 = vmatpush1.msra.mxu0 0.0
  %3373 = vmatprep.subr.mxu0 0.0
  %3374 = vmatpush1.msra.mxu0 0.0
  %3375 = vmatprep.subr.mxu0 0.0
  %3376 = vmatpush1.msra.mxu0 0.0
  %3377 = vmatprep.subr.mxu0 0.0
  %3378 = vmatpush1.msra.mxu0 0.0
  %3379 = vmatprep.subr.mxu0 0.0
  %3380 = vmatpush1.msra.mxu0 0.0
  %3381 = vmatprep.subr.mxu0 0.0
  %3382 = vmatpush1.msra.mxu0 0.0
  %3383 = vmatprep.subr.mxu0 0.0
  %3384 = vmatpush1.msra.mxu0 0.0
  %3385 = vmatprep.subr.mxu0 0.0
  %3386 = vmatpush1.msra.mxu0 0.0
  %3387 = vmatprep.subr.mxu0 0.0
  %3388 = vmatpush1.msra.mxu0 0.0
  %3389 = vmatprep.subr.mxu0 0.0
  %3390 = vmatpush1.msra.mxu0 0.0
  %3391 = vmatprep.subr.mxu0 0.0
  %3392 = vmatpush1.msra.mxu0 0.0
  %3393 = vmatprep.subr.mxu0 0.0
  %3394 = vmatpush1.msra.mxu0 0.0
  %3395 = vmatprep.subr.mxu0 0.0
  %3396 = vmatpush1.msra.mxu0 0.0
  %3397 = vmatprep.subr.mxu0 0.0
  %3398 = vmatpush1.msra.mxu0 0.0
  %3399 = vmatprep.subr.mxu0 0.0
  %3400 = vmatpush1.msra.mxu0 0.0
  %3401 = vmatprep.subr.mxu0 0.0
  %3402 = vmatpush1.msra.mxu0 0.0
  %3403 = vmatprep.subr.mxu0 0.0
  %3404 = vmatpush1.msra.mxu0 0.0
  %3405 = vmatprep.subr.mxu0 0.0
  %3406 = vmatpush1.msra.mxu0 0.0
  %3407 = vmatprep.subr.mxu0 0.0
  %3408 = vmatpush1.msra.mxu0 0.0
  %3409 = vmatprep.subr.mxu0 0.0
  %3410 = vmatpush1.msra.mxu0 0.0
  %3411 = vmatprep.subr.mxu0 0.0
  %3412 = vmatpush1.msra.mxu0 0.0
  %3413 = vmatprep.subr.mxu0 0.0
  %3414 = vmatpush1.msra.mxu0 0.0
  %3415 = vmatprep.subr.mxu0 0.0
  %3416 = vmatpush1.msra.mxu0 0.0
  %3417 = vmatprep.subr.mxu0 0.0
  %3418 = vmatpush1.msra.mxu0 0.0
  %3419 = vmatprep.subr.mxu0 0.0
  %3420 = vmatpush1.msra.mxu0 0.0
  %3421 = vmatprep.subr.mxu0 0.0
  %3422 = vmatpush1.msra.mxu0 0.0
  %3423 = vmatprep.subr.mxu0 0.0
  %3424 = vmatpush1.msra.mxu0 0.0
  %3425 = vmatprep.subr.mxu0 0.0
  %3426 = vmatpush1.msra.mxu0 0.0
  %3427 = vmatprep.subr.mxu0 0.0
  %3428 = vmatpush1.msra.mxu0 0.0
  %3429 = vmatprep.mubr.f32.mxu0 0.0
  %3430 = vmatmul.mubr.f32.gmra.mrb[0].mxu0 %v3363
  %v3431 = vpop.f32.mrb[0].mxu0
  %v3432 = vadd.f32 %v3217, %v3431
  %v3433 = vpop.f32.mrb[0].mxu0
  %v3434 = vadd.f32 %v3219, %v3433
  %3435 = vdwg.mxu0
  %3436 = vmatprep.subr.mxu0 %v3119
  %3437 = vmatpush1.msra.mxu0 %v3118
  %3438 = vmatprep.subr.mxu0 0.0
  %3439 = vmatpush1.msra.mxu0 0.0
  %3440 = vmatprep.subr.mxu0 0.0
  %3441 = vmatpush1.msra.mxu0 0.0
  %3442 = vmatprep.subr.mxu0 0.0
  %3443 = vmatpush1.msra.mxu0 0.0
  %3444 = vmatprep.subr.mxu0 0.0
  %3445 = vmatpush1.msra.mxu0 0.0
  %3446 = vmatprep.subr.mxu0 0.0
  %3447 = vmatpush1.msra.mxu0 0.0
  %3448 = vmatprep.subr.mxu0 0.0
  %3449 = vmatpush1.msra.mxu0 0.0
  %3450 = vmatprep.subr.mxu0 0.0
  %3451 = vmatpush1.msra.mxu0 0.0
  %3452 = vmatprep.subr.mxu0 0.0
  %3453 = vmatpush1.msra.mxu0 0.0
  %3454 = vmatprep.subr.mxu0 0.0
  %3455 = vmatpush1.msra.mxu0 0.0
  %3456 = vmatprep.subr.mxu0 0.0
  %3457 = vmatpush1.msra.mxu0 0.0
  %3458 = vmatprep.subr.mxu0 0.0
  %3459 = vmatpush1.msra.mxu0 0.0
  %3460 = vmatprep.subr.mxu0 0.0
  %3461 = vmatpush1.msra.mxu0 0.0
  %3462 = vmatprep.subr.mxu0 0.0
  %3463 = vmatpush1.msra.mxu0 0.0
  %3464 = vmatprep.subr.mxu0 0.0
  %3465 = vmatpush1.msra.mxu0 0.0
  %3466 = vmatprep.subr.mxu0 0.0
  %3467 = vmatpush1.msra.mxu0 0.0
  %3468 = vmatprep.subr.mxu0 0.0
  %3469 = vmatpush1.msra.mxu0 0.0
  %3470 = vmatprep.subr.mxu0 0.0
  %3471 = vmatpush1.msra.mxu0 0.0
  %3472 = vmatprep.subr.mxu0 0.0
  %3473 = vmatpush1.msra.mxu0 0.0
  %3474 = vmatprep.subr.mxu0 0.0
  %3475 = vmatpush1.msra.mxu0 0.0
  %3476 = vmatprep.subr.mxu0 0.0
  %3477 = vmatpush1.msra.mxu0 0.0
  %3478 = vmatprep.subr.mxu0 0.0
  %3479 = vmatpush1.msra.mxu0 0.0
  %3480 = vmatprep.subr.mxu0 0.0
  %3481 = vmatpush1.msra.mxu0 0.0
  %3482 = vmatprep.subr.mxu0 0.0
  %3483 = vmatpush1.msra.mxu0 0.0
  %3484 = vmatprep.subr.mxu0 0.0
  %3485 = vmatpush1.msra.mxu0 0.0
  %3486 = vmatprep.subr.mxu0 0.0
  %3487 = vmatpush1.msra.mxu0 0.0
  %3488 = vmatprep.subr.mxu0 0.0
  %3489 = vmatpush1.msra.mxu0 0.0
  %3490 = vmatprep.subr.mxu0 0.0
  %3491 = vmatpush1.msra.mxu0 0.0
  %3492 = vmatprep.subr.mxu0 0.0
  %3493 = vmatpush1.msra.mxu0 0.0
  %3494 = vmatprep.subr.mxu0 0.0
  %3495 = vmatpush1.msra.mxu0 0.0
  %3496 = vmatprep.subr.mxu0 0.0
  %3497 = vmatpush1.msra.mxu0 0.0
  %3498 = vmatprep.subr.mxu0 0.0
  %3499 = vmatpush1.msra.mxu0 0.0
  %3500 = vmatprep.mubr.f32.mxu0 0.0
  %3501 = vmatmul.mubr.f32.gmra.mrb[0].mxu0 %v3363
  %v3502 = vpop.f32.mrb[0].mxu0
  %v3503 = vadd.f32 %v3288, %v3502
  %v3504 = vpop.f32.mrb[0].mxu0
  %v3505 = vadd.f32 %v3290, %v3504
  %3506 = vdwg.mxu0
  %3507 = vmatprep.subr.mxu0 0.0
  %3508 = vmatpush1.msra.mxu0 %v3120
  %3509 = vmatprep.subr.mxu0 0.0
  %3510 = vmatpush1.msra.mxu0 0.0
  %3511 = vmatprep.subr.mxu0 0.0
  %3512 = vmatpush1.msra.mxu0 0.0
  %3513 = vmatprep.subr.mxu0 0.0
  %3514 = vmatpush1.msra.mxu0 0.0
  %3515 = vmatprep.subr.mxu0 0.0
  %3516 = vmatpush1.msra.mxu0 0.0
  %3517 = vmatprep.subr.mxu0 0.0
  %3518 = vmatpush1.msra.mxu0 0.0
  %3519 = vmatprep.subr.mxu0 0.0
  %3520 = vmatpush1.msra.mxu0 0.0
  %3521 = vmatprep.subr.mxu0 0.0
  %3522 = vmatpush1.msra.mxu0 0.0
  %3523 = vmatprep.subr.mxu0 0.0
  %3524 = vmatpush1.msra.mxu0 0.0
  %3525 = vmatprep.subr.mxu0 0.0
  %3526 = vmatpush1.msra.mxu0 0.0
  %3527 = vmatprep.subr.mxu0 0.0
  %3528 = vmatpush1.msra.mxu0 0.0
  %3529 = vmatprep.subr.mxu0 0.0
  %3530 = vmatpush1.msra.mxu0 0.0
  %3531 = vmatprep.subr.mxu0 0.0
  %3532 = vmatpush1.msra.mxu0 0.0
  %3533 = vmatprep.subr.mxu0 0.0
  %3534 = vmatpush1.msra.mxu0 0.0
  %3535 = vmatprep.subr.mxu0 0.0
  %3536 = vmatpush1.msra.mxu0 0.0
  %3537 = vmatprep.subr.mxu0 0.0
  %3538 = vmatpush1.msra.mxu0 0.0
  %3539 = vmatprep.subr.mxu0 0.0
  %3540 = vmatpush1.msra.mxu0 0.0
  %3541 = vmatprep.subr.mxu0 0.0
  %3542 = vmatpush1.msra.mxu0 0.0
  %3543 = vmatprep.subr.mxu0 0.0
  %3544 = vmatpush1.msra.mxu0 0.0
  %3545 = vmatprep.subr.mxu0 0.0
  %3546 = vmatpush1.msra.mxu0 0.0
  %3547 = vmatprep.subr.mxu0 0.0
  %3548 = vmatpush1.msra.mxu0 0.0
  %3549 = vmatprep.subr.mxu0 0.0
  %3550 = vmatpush1.msra.mxu0 0.0
  %3551 = vmatprep.subr.mxu0 0.0
  %3552 = vmatpush1.msra.mxu0 0.0
  %3553 = vmatprep.subr.mxu0 0.0
  %3554 = vmatpush1.msra.mxu0 0.0
  %3555 = vmatprep.subr.mxu0 0.0
  %3556 = vmatpush1.msra.mxu0 0.0
  %3557 = vmatprep.subr.mxu0 0.0
  %3558 = vmatpush1.msra.mxu0 0.0
  %3559 = vmatprep.subr.mxu0 0.0
  %3560 = vmatpush1.msra.mxu0 0.0
  %3561 = vmatprep.subr.mxu0 0.0
  %3562 = vmatpush1.msra.mxu0 0.0
  %3563 = vmatprep.subr.mxu0 0.0
  %3564 = vmatpush1.msra.mxu0 0.0
  %3565 = vmatprep.subr.mxu0 0.0
  %3566 = vmatpush1.msra.mxu0 0.0
  %3567 = vmatprep.subr.mxu0 0.0
  %3568 = vmatpush1.msra.mxu0 0.0
  %3569 = vmatprep.subr.mxu0 0.0
  %3570 = vmatpush1.msra.mxu0 0.0
  %3571 = vmatprep.mubr.f32.mxu0 0.0
  %3572 = vmatmul.mubr.f32.gmra.mrb[0].mxu0 %v3363
  %v3573 = vpop.f32.mrb[0].mxu0
  %v3574 = vadd.f32 %v3359, %v3573
  %v3575 = vpop.f32.mrb[0].mxu0
  %3576 = vdwg.mxu0
  %s3577 = scalar_lea.vmem %s5, 16
  %v3578 = vld [vmem:[%s3577] sm:$0xff]
  %3579 = vrot.lane.b32.xlu0 %v3116, 126
  %v3580 = vpop.permute.xlu0 %3579
  %3581 = vrot.lane.b32.xlu0 %v3117, 126
  %v3582 = vpop.permute.xlu0 %3581
  %3583 = vrot.lane.b32.xlu0 %v3118, 126
  %v3584 = vpop.permute.xlu0 %3583
  %3585 = vrot.lane.b32.xlu0 %v3119, 126
  %v3586 = vpop.permute.xlu0 %3585
  %3587 = vrot.lane.b32.xlu0 %v3120, 126
  %v3588 = vpop.permute.xlu0 %3587
  %v3589 = vsel %vm584, %v3580, %v3582
  %v3590 = vsel %vm584, %v3582, %v3584
  %v3591 = vsel %vm584, %v3584, %v3586
  %v3592 = vsel %vm584, %v3586, %v3588
  %v3599 = vsel %vm899, %v3578, 0
  %3601 = vmatprep.subr.mxu0 %v3590
  %3602 = vmatpush1.msra.mxu0 %v3589
  %3603 = vmatprep.subr.mxu0 0.0
  %3604 = vmatpush1.msra.mxu0 0.0
  %3605 = vmatprep.subr.mxu0 0.0
  %3606 = vmatpush1.msra.mxu0 0.0
  %3607 = vmatprep.subr.mxu0 0.0
  %3608 = vmatpush1.msra.mxu0 0.0
  %3609 = vmatprep.subr.mxu0 0.0
  %3610 = vmatpush1.msra.mxu0 0.0
  %3611 = vmatprep.subr.mxu0 0.0
  %3612 = vmatpush1.msra.mxu0 0.0
  %3613 = vmatprep.subr.mxu0 0.0
  %3614 = vmatpush1.msra.mxu0 0.0
  %3615 = vmatprep.subr.mxu0 0.0
  %3616 = vmatpush1.msra.mxu0 0.0
  %3617 = vmatprep.subr.mxu0 0.0
  %3618 = vmatpush1.msra.mxu0 0.0
  %3619 = vmatprep.subr.mxu0 0.0
  %3620 = vmatpush1.msra.mxu0 0.0
  %3621 = vmatprep.subr.mxu0 0.0
  %3622 = vmatpush1.msra.mxu0 0.0
  %3623 = vmatprep.subr.mxu0 0.0
  %3624 = vmatpush1.msra.mxu0 0.0
  %3625 = vmatprep.subr.mxu0 0.0
  %3626 = vmatpush1.msra.mxu0 0.0
  %3627 = vmatprep.subr.mxu0 0.0
  %3628 = vmatpush1.msra.mxu0 0.0
  %3629 = vmatprep.subr.mxu0 0.0
  %3630 = vmatpush1.msra.mxu0 0.0
  %3631 = vmatprep.subr.mxu0 0.0
  %3632 = vmatpush1.msra.mxu0 0.0
  %3633 = vmatprep.subr.mxu0 0.0
  %3634 = vmatpush1.msra.mxu0 0.0
  %3635 = vmatprep.subr.mxu0 0.0
  %3636 = vmatpush1.msra.mxu0 0.0
  %3637 = vmatprep.subr.mxu0 0.0
  %3638 = vmatpush1.msra.mxu0 0.0
  %3639 = vmatprep.subr.mxu0 0.0
  %3640 = vmatpush1.msra.mxu0 0.0
  %3641 = vmatprep.subr.mxu0 0.0
  %3642 = vmatpush1.msra.mxu0 0.0
  %3643 = vmatprep.subr.mxu0 0.0
  %3644 = vmatpush1.msra.mxu0 0.0
  %3645 = vmatprep.subr.mxu0 0.0
  %3646 = vmatpush1.msra.mxu0 0.0
  %3647 = vmatprep.subr.mxu0 0.0
  %3648 = vmatpush1.msra.mxu0 0.0
  %3649 = vmatprep.subr.mxu0 0.0
  %3650 = vmatpush1.msra.mxu0 0.0
  %3651 = vmatprep.subr.mxu0 0.0
  %3652 = vmatpush1.msra.mxu0 0.0
  %3653 = vmatprep.subr.mxu0 0.0
  %3654 = vmatpush1.msra.mxu0 0.0
  %3655 = vmatprep.subr.mxu0 0.0
  %3656 = vmatpush1.msra.mxu0 0.0
  %3657 = vmatprep.subr.mxu0 0.0
  %3658 = vmatpush1.msra.mxu0 0.0
  %3659 = vmatprep.subr.mxu0 0.0
  %3660 = vmatpush1.msra.mxu0 0.0
  %3661 = vmatprep.subr.mxu0 0.0
  %3662 = vmatpush1.msra.mxu0 0.0
  %3663 = vmatprep.subr.mxu0 0.0
  %3664 = vmatpush1.msra.mxu0 0.0
  %3665 = vmatprep.mubr.f32.mxu0 0.0
  %3666 = vmatmul.mubr.f32.gmra.mrb[0].mxu0 %v3599
  %v3667 = vpop.f32.mrb[0].mxu0
  %v3668 = vadd.f32 0.0, %v3667
  %v3669 = vpop.f32.mrb[0].mxu0
  %v3670 = vadd.f32 0.0, %v3669
  %3671 = vdwg.mxu0
  %3672 = vmatprep.subr.mxu0 %v3592
  %3673 = vmatpush1.msra.mxu0 %v3591
  %3674 = vmatprep.subr.mxu0 0.0
  %3675 = vmatpush1.msra.mxu0 0.0
  %3676 = vmatprep.subr.mxu0 0.0
  %3677 = vmatpush1.msra.mxu0 0.0
  %3678 = vmatprep.subr.mxu0 0.0
  %3679 = vmatpush1.msra.mxu0 0.0
  %3680 = vmatprep.subr.mxu0 0.0
  %3681 = vmatpush1.msra.mxu0 0.0
  %3682 = vmatprep.subr.mxu0 0.0
  %3683 = vmatpush1.msra.mxu0 0.0
  %3684 = vmatprep.subr.mxu0 0.0
  %3685 = vmatpush1.msra.mxu0 0.0
  %3686 = vmatprep.subr.mxu0 0.0
  %3687 = vmatpush1.msra.mxu0 0.0
  %3688 = vmatprep.subr.mxu0 0.0
  %3689 = vmatpush1.msra.mxu0 0.0
  %3690 = vmatprep.subr.mxu0 0.0
  %3691 = vmatpush1.msra.mxu0 0.0
  %3692 = vmatprep.subr.mxu0 0.0
  %3693 = vmatpush1.msra.mxu0 0.0
  %3694 = vmatprep.subr.mxu0 0.0
  %3695 = vmatpush1.msra.mxu0 0.0
  %3696 = vmatprep.subr.mxu0 0.0
  %3697 = vmatpush1.msra.mxu0 0.0
  %3698 = vmatprep.subr.mxu0 0.0
  %3699 = vmatpush1.msra.mxu0 0.0
  %3700 = vmatprep.subr.mxu0 0.0
  %3701 = vmatpush1.msra.mxu0 0.0
  %3702 = vmatprep.subr.mxu0 0.0
  %3703 = vmatpush1.msra.mxu0 0.0
  %3704 = vmatprep.subr.mxu0 0.0
  %3705 = vmatpush1.msra.mxu0 0.0
  %3706 = vmatprep.subr.mxu0 0.0
  %3707 = vmatpush1.msra.mxu0 0.0
  %3708 = vmatprep.subr.mxu0 0.0
  %3709 = vmatpush1.msra.mxu0 0.0
  %3710 = vmatprep.subr.mxu0 0.0
  %3711 = vmatpush1.msra.mxu0 0.0
  %3712 = vmatprep.subr.mxu0 0.0
  %3713 = vmatpush1.msra.mxu0 0.0
  %3714 = vmatprep.subr.mxu0 0.0
  %3715 = vmatpush1.msra.mxu0 0.0
  %3716 = vmatprep.subr.mxu0 0.0
  %3717 = vmatpush1.msra.mxu0 0.0
  %3718 = vmatprep.subr.mxu0 0.0
  %3719 = vmatpush1.msra.mxu0 0.0
  %3720 = vmatprep.subr.mxu0 0.0
  %3721 = vmatpush1.msra.mxu0 0.0
  %3722 = vmatprep.subr.mxu0 0.0
  %3723 = vmatpush1.msra.mxu0 0.0
  %3724 = vmatprep.subr.mxu0 0.0
  %3725 = vmatpush1.msra.mxu0 0.0
  %3726 = vmatprep.subr.mxu0 0.0
  %3727 = vmatpush1.msra.mxu0 0.0
  %3728 = vmatprep.subr.mxu0 0.0
  %3729 = vmatpush1.msra.mxu0 0.0
  %3730 = vmatprep.subr.mxu0 0.0
  %3731 = vmatpush1.msra.mxu0 0.0
  %3732 = vmatprep.subr.mxu0 0.0
  %3733 = vmatpush1.msra.mxu0 0.0
  %3734 = vmatprep.subr.mxu0 0.0
  %3735 = vmatpush1.msra.mxu0 0.0
  %3736 = vmatprep.mubr.f32.mxu0 0.0
  %3737 = vmatmul.mubr.f32.gmra.mrb[0].mxu0 %v3599
  %v3738 = vpop.f32.mrb[0].mxu0
  %v3739 = vadd.f32 0.0, %v3738
  %v3740 = vpop.f32.mrb[0].mxu0
  %v3741 = vadd.f32 0.0, %v3740
  %3742 = vdwg.mxu0
  %3743 = vmatprep.subr.mxu0 0.0
  %3744 = vmatpush1.msra.mxu0 %v3588
  %3745 = vmatprep.subr.mxu0 0.0
  %3746 = vmatpush1.msra.mxu0 0.0
  %3747 = vmatprep.subr.mxu0 0.0
  %3748 = vmatpush1.msra.mxu0 0.0
  %3749 = vmatprep.subr.mxu0 0.0
  %3750 = vmatpush1.msra.mxu0 0.0
  %3751 = vmatprep.subr.mxu0 0.0
  %3752 = vmatpush1.msra.mxu0 0.0
  %3753 = vmatprep.subr.mxu0 0.0
  %3754 = vmatpush1.msra.mxu0 0.0
  %3755 = vmatprep.subr.mxu0 0.0
  %3756 = vmatpush1.msra.mxu0 0.0
  %3757 = vmatprep.subr.mxu0 0.0
  %3758 = vmatpush1.msra.mxu0 0.0
  %3759 = vmatprep.subr.mxu0 0.0
  %3760 = vmatpush1.msra.mxu0 0.0
  %3761 = vmatprep.subr.mxu0 0.0
  %3762 = vmatpush1.msra.mxu0 0.0
  %3763 = vmatprep.subr.mxu0 0.0
  %3764 = vmatpush1.msra.mxu0 0.0
  %3765 = vmatprep.subr.mxu0 0.0
  %3766 = vmatpush1.msra.mxu0 0.0
  %3767 = vmatprep.subr.mxu0 0.0
  %3768 = vmatpush1.msra.mxu0 0.0
  %3769 = vmatprep.subr.mxu0 0.0
  %3770 = vmatpush1.msra.mxu0 0.0
  %3771 = vmatprep.subr.mxu0 0.0
  %3772 = vmatpush1.msra.mxu0 0.0
  %3773 = vmatprep.subr.mxu0 0.0
  %3774 = vmatpush1.msra.mxu0 0.0
  %3775 = vmatprep.subr.mxu0 0.0
  %3776 = vmatpush1.msra.mxu0 0.0
  %3777 = vmatprep.subr.mxu0 0.0
  %3778 = vmatpush1.msra.mxu0 0.0
  %3779 = vmatprep.subr.mxu0 0.0
  %3780 = vmatpush1.msra.mxu0 0.0
  %3781 = vmatprep.subr.mxu0 0.0
  %3782 = vmatpush1.msra.mxu0 0.0
  %3783 = vmatprep.subr.mxu0 0.0
  %3784 = vmatpush1.msra.mxu0 0.0
  %3785 = vmatprep.subr.mxu0 0.0
  %3786 = vmatpush1.msra.mxu0 0.0
  %3787 = vmatprep.subr.mxu0 0.0
  %3788 = vmatpush1.msra.mxu0 0.0
  %3789 = vmatprep.subr.mxu0 0.0
  %3790 = vmatpush1.msra.mxu0 0.0
  %3791 = vmatprep.subr.mxu0 0.0
  %3792 = vmatpush1.msra.mxu0 0.0
  %3793 = vmatprep.subr.mxu0 0.0
  %3794 = vmatpush1.msra.mxu0 0.0
  %3795 = vmatprep.subr.mxu0 0.0
  %3796 = vmatpush1.msra.mxu0 0.0
  %3797 = vmatprep.subr.mxu0 0.0
  %3798 = vmatpush1.msra.mxu0 0.0
  %3799 = vmatprep.subr.mxu0 0.0
  %3800 = vmatpush1.msra.mxu0 0.0
  %3801 = vmatprep.subr.mxu0 0.0
  %3802 = vmatpush1.msra.mxu0 0.0
  %3803 = vmatprep.subr.mxu0 0.0
  %3804 = vmatpush1.msra.mxu0 0.0
  %3805 = vmatprep.subr.mxu0 0.0
  %3806 = vmatpush1.msra.mxu0 0.0
  %3807 = vmatprep.mubr.f32.mxu0 0.0
  %3808 = vmatmul.mubr.f32.gmra.mrb[0].mxu0 %v3599
  %v3809 = vpop.f32.mrb[0].mxu0
  %v3810 = vadd.f32 0.0, %v3809
  %v3811 = vpop.f32.mrb[0].mxu0
  %3812 = vdwg.mxu0
  %v3813 = vadd.f32 %v3432, %v3668
  %v3814 = vadd.f32 %v3434, %v3670
  %v3815 = vadd.f32 %v3503, %v3739
  %v3816 = vadd.f32 %v3505, %v3741
  %v3817 = vadd.f32 %v3574, %v3810
  %v3818 = vld [vmem:[%s10] sm:$0xff]
  %3820 = vset.pattern.permute.xlu0 0
  %3821 = vperm.xlu0 %3820, %v3818
  %v3822 = vpop.permute.xlu0 %3821
  %v3824 = vadd.f32 %v3813, %v3822
  %v3825 = vadd.f32 %v3814, %v3822
  %v3826 = vadd.f32 %v3815, %v3822
  %v3827 = vadd.f32 %v3816, %v3822
  %v3828 = vadd.f32 %v3817, %v3822
  %v3829 = vmax.f32 %v3824, 0.0
  %v3830 = vmax.f32 %v3825, 0.0
  %v3831 = vmax.f32 %v3826, 0.0
  %v3832 = vmax.f32 %v3827, 0.0
  %v3833 = vmax.f32 %v3828, 0.0
  %3834 = vst [vmem:[#allocation3] sm:$0xff] %v3829
  %3835 = vst [vmem:[#allocation3 + $0x8] sm:$0xff] %v3830
  %3839 = vrot.lane.b32.xlu0 %v3831, 126
  %v3840 = vpop.permute.xlu0 %3839
  %3841 = vrot.lane.b32.xlu0 %v3832, 126
  %v3842 = vpop.permute.xlu0 %3841
  %3843 = vrot.lane.b32.xlu0 %v3833, 126
  %v3844 = vpop.permute.xlu0 %3843
  %v3845 = vsel %vm584, %v3840, %v3842
  %v3846 = vsel %vm584, %v3842, %v3844
  %s3849 = scalar_lea.vmem [#allocation3], 16
  %3850 = vst [vmem:[%s3849] sm:$0xff] %v3845
  %3851 = vst [vmem:[%s3849 + $0x8] sm:$0xff] %v3846
  %v3852 = vld [vmem:[#allocation3] ss:$8 sm:$0x3]
  %s3853 = scalar_lea.vmem [#allocation3], 16
  %v3854 = vld [vmem:[%s3853] ss:$8 sm:$0x3]
  %v3855 = vld [vmem:[%s11] ss:$8 sm:$0x3]
  %s3856 = scalar_lea.vmem %s11, 16
  %v3857 = vld [vmem:[%s3856] ss:$8 sm:$0x3]
  %s3858 = scalar_lea.vmem %s11, 32
  %v3859 = vld [vmem:[%s3858] ss:$8 sm:$0x3]
  %s3860 = scalar_lea.vmem %s11, 48
  %v3861 = vld [vmem:[%s3860] ss:$8 sm:$0x3]
  %s3862 = scalar_lea.vmem %s11, 64
  %v3863 = vld [vmem:[%s3862] ss:$8 sm:$0x3]
  %s3864 = scalar_lea.vmem %s11, 80
  %v3865 = vld [vmem:[%s3864] ss:$8 sm:$0x3]
  %s3866 = scalar_lea.vmem %s11, 96
  %v3867 = vld [vmem:[%s3866] ss:$8 sm:$0x3]
  %s3868 = scalar_lea.vmem %s11, 112
  %v3869 = vld [vmem:[%s3868] ss:$8 sm:$0x3]
  %s3870 = scalar_lea.vmem %s11, 128
  %v3871 = vld [vmem:[%s3870] ss:$8 sm:$0x3]
  %s3872 = scalar_lea.vmem %s11, 144
  %v3873 = vld [vmem:[%s3872] ss:$8 sm:$0x3]
  %s3874 = scalar_lea.vmem %s11, 160
  %v3875 = vld [vmem:[%s3874] ss:$8 sm:$0x3]
  %s3876 = scalar_lea.vmem %s11, 176
  %v3877 = vld [vmem:[%s3876] ss:$8 sm:$0x3]
  %s3878 = scalar_lea.vmem %s11, 192
  %v3879 = vld [vmem:[%s3878] ss:$8 sm:$0x3]
  %s3880 = scalar_lea.vmem %s11, 208
  %v3881 = vld [vmem:[%s3880] ss:$8 sm:$0x3]
  %s3882 = scalar_lea.vmem %s11, 224
  %v3883 = vld [vmem:[%s3882] ss:$8 sm:$0x3]
  %s3884 = scalar_lea.vmem %s11, 240
  %v3885 = vld [vmem:[%s3884] ss:$8 sm:$0x3]
  %s3886 = scalar_lea.vmem %s11, 256
  %v3887 = vld [vmem:[%s3886] ss:$8 sm:$0x3]
  %s3888 = scalar_lea.vmem %s11, 272
  %v3889 = vld [vmem:[%s3888] ss:$8 sm:$0x3]
  %s3890 = scalar_lea.vmem %s11, 288
  %v3891 = vld [vmem:[%s3890] ss:$8 sm:$0x3]
  %s3892 = scalar_lea.vmem %s11, 304
  %v3893 = vld [vmem:[%s3892] ss:$8 sm:$0x3]
  %s3894 = scalar_lea.vmem [#allocation3], 1
  %v3895 = vld [vmem:[%s3894] ss:$8 sm:$0x3]
  %s3896 = scalar_lea.vmem [#allocation3], 17
  %v3897 = vld [vmem:[%s3896] ss:$8 sm:$0x3]
  %s3898 = scalar_lea.vmem %s11, 1
  %v3899 = vld [vmem:[%s3898] ss:$8 sm:$0x3]
  %s3900 = scalar_lea.vmem %s11, 17
  %v3901 = vld [vmem:[%s3900] ss:$8 sm:$0x3]
  %s3902 = scalar_lea.vmem %s11, 33
  %v3903 = vld [vmem:[%s3902] ss:$8 sm:$0x3]
  %s3904 = scalar_lea.vmem %s11, 49
  %v3905 = vld [vmem:[%s3904] ss:$8 sm:$0x3]
  %s3906 = scalar_lea.vmem %s11, 65
  %v3907 = vld [vmem:[%s3906] ss:$8 sm:$0x3]
  %s3908 = scalar_lea.vmem %s11, 81
  %v3909 = vld [vmem:[%s3908] ss:$8 sm:$0x3]
  %s3910 = scalar_lea.vmem %s11, 97
  %v3911 = vld [vmem:[%s3910] ss:$8 sm:$0x3]
  %s3912 = scalar_lea.vmem %s11, 113
  %v3913 = vld [vmem:[%s3912] ss:$8 sm:$0x3]
  %s3914 = scalar_lea.vmem %s11, 129
  %v3915 = vld [vmem:[%s3914] ss:$8 sm:$0x3]
  %s3916 = scalar_lea.vmem %s11, 145
  %v3917 = vld [vmem:[%s3916] ss:$8 sm:$0x3]
  %s3918 = scalar_lea.vmem %s11, 161
  %v3919 = vld [vmem:[%s3918] ss:$8 sm:$0x3]
  %s3920 = scalar_lea.vmem %s11, 177
  %v3921 = vld [vmem:[%s3920] ss:$8 sm:$0x3]
  %s3922 = scalar_lea.vmem %s11, 193
  %v3923 = vld [vmem:[%s3922] ss:$8 sm:$0x3]
  %s3924 = scalar_lea.vmem %s11, 209
  %v3925 = vld [vmem:[%s3924] ss:$8 sm:$0x3]
  %s3926 = scalar_lea.vmem %s11, 225
  %v3927 = vld [vmem:[%s3926] ss:$8 sm:$0x3]
  %s3928 = scalar_lea.vmem %s11, 241
  %v3929 = vld [vmem:[%s3928] ss:$8 sm:$0x3]
  %s3930 = scalar_lea.vmem %s11, 257
  %v3931 = vld [vmem:[%s3930] ss:$8 sm:$0x3]
  %s3932 = scalar_lea.vmem %s11, 273
  %v3933 = vld [vmem:[%s3932] ss:$8 sm:$0x3]
  %s3934 = scalar_lea.vmem %s11, 289
  %v3935 = vld [vmem:[%s3934] ss:$8 sm:$0x3]
  %s3936 = scalar_lea.vmem %s11, 305
  %v3937 = vld [vmem:[%s3936] ss:$8 sm:$0x3]
  %v3940 = vcombine.low %v3895, %v3897
  %v3942 = vunpack.c.l.s4 1966171168
  %v3943 = vunpack.c.0.s8 %v3942
  %v3944 = vlaneseq
  %v3945 = vshrl.u32 %v3944, 7
  %v3946 = vsub.s32 %v3943, %v3945
  %v3947 = vrot.slane %v3940, %v3946
  %v3948 = vcombine.high %v3947, %v3947
  %v3950 = vunpack.c.l.s4 1966171168
  %v3951 = vunpack.c.0.s8 %v3950
  %v3952 = vlaneseq
  %v3953 = vshrl.u32 %v3952, 7
  %v3954 = vsub.s32 %v3951, %v3953
  %v3955 = vrot.slane %v3947, %v3954
  %v3957 = vunpack.c.l.s4 1966171168
  %v3958 = vunpack.c.0.s8 %v3957
  %v3959 = vlaneseq
  %v3960 = vshrl.u32 %v3959, 7
  %v3961 = vsub.s32 %v3958, %v3960
  %v3962 = vrot.slane %v3948, %v3961
  %v3985 = vcombine.low %v3899, %v3901
  %v3986 = vcombine.low %v3903, %v3905
  %v3987 = vcombine.low %v3907, %v3909
  %v3988 = vcombine.low %v3911, %v3913
  %v3990 = vunpack.c.l.s4 1966171168
  %v3991 = vunpack.c.0.s8 %v3990
  %v3992 = vlaneseq
  %v3993 = vshrl.u32 %v3992, 7
  %v3994 = vsub.s32 %v3991, %v3993
  %v3995 = vrot.slane %v3985, %v3994
  %v3997 = vunpack.c.l.s4 1966171168
  %v3998 = vunpack.c.0.s8 %v3997
  %v3999 = vlaneseq
  %v4000 = vshrl.u32 %v3999, 7
  %v4001 = vsub.s32 %v3998, %v4000
  %v4002 = vrot.slane %v3986, %v4001
  %v4004 = vunpack.c.l.s4 1966171168
  %v4005 = vunpack.c.0.s8 %v4004
  %v4006 = vlaneseq
  %v4007 = vshrl.u32 %v4006, 7
  %v4008 = vsub.s32 %v4005, %v4007
  %v4009 = vrot.slane %v3987, %v4008
  %v4011 = vunpack.c.l.s4 1966171168
  %v4012 = vunpack.c.0.s8 %v4011
  %v4013 = vlaneseq
  %v4014 = vshrl.u32 %v4013, 7
  %v4015 = vsub.s32 %v4012, %v4014
  %v4016 = vrot.slane %v3988, %v4015
  %v4017 = vcombine.low %v3995, %v4002
  %v4018 = vcombine.high %v3995, %v4002
  %v4019 = vcombine.low %v4009, %v4016
  %v4020 = vcombine.high %v4009, %v4016
  %v4022 = vunpack.c.l.s4 1966171168
  %v4023 = vunpack.c.0.s8 %v4022
  %v4024 = vlaneseq
  %v4025 = vshrl.u32 %v4024, 7
  %v4026 = vsub.s32 %v4023, %v4025
  %v4027 = vrot.slane %v4017, %v4026
  %v4029 = vunpack.c.l.s4 1966171168
  %v4030 = vunpack.c.0.s8 %v4029
  %v4031 = vlaneseq
  %v4032 = vshrl.u32 %v4031, 7
  %v4033 = vsub.s32 %v4030, %v4032
  %v4034 = vrot.slane %v4018, %v4033
  %v4036 = vunpack.c.l.s4 1966171168
  %v4037 = vunpack.c.0.s8 %v4036
  %v4038 = vlaneseq
  %v4039 = vshrl.u32 %v4038, 7
  %v4040 = vsub.s32 %v4037, %v4039
  %v4041 = vrot.slane %v4019, %v4040
  %v4043 = vunpack.c.l.s4 1966171168
  %v4044 = vunpack.c.0.s8 %v4043
  %v4045 = vlaneseq
  %v4046 = vshrl.u32 %v4045, 7
  %v4047 = vsub.s32 %v4044, %v4046
  %v4048 = vrot.slane %v4020, %v4047
  %v4049 = vcombine.low %v4027, %v4041
  %v4050 = vcombine.low %v4034, %v4048
  %v4051 = vcombine.low %v3915, %v3917
  %v4052 = vcombine.low %v3919, %v3921
  %v4053 = vcombine.low %v3923, %v3925
  %v4054 = vcombine.low %v3927, %v3929
  %v4056 = vunpack.c.l.s4 1966171168
  %v4057 = vunpack.c.0.s8 %v4056
  %v4058 = vlaneseq
  %v4059 = vshrl.u32 %v4058, 7
  %v4060 = vsub.s32 %v4057, %v4059
  %v4061 = vrot.slane %v4051, %v4060
  %v4063 = vunpack.c.l.s4 1966171168
  %v4064 = vunpack.c.0.s8 %v4063
  %v4065 = vlaneseq
  %v4066 = vshrl.u32 %v4065, 7
  %v4067 = vsub.s32 %v4064, %v4066
  %v4068 = vrot.slane %v4052, %v4067
  %v4070 = vunpack.c.l.s4 1966171168
  %v4071 = vunpack.c.0.s8 %v4070
  %v4072 = vlaneseq
  %v4073 = vshrl.u32 %v4072, 7
  %v4074 = vsub.s32 %v4071, %v4073
  %v4075 = vrot.slane %v4053, %v4074
  %v4077 = vunpack.c.l.s4 1966171168
  %v4078 = vunpack.c.0.s8 %v4077
  %v4079 = vlaneseq
  %v4080 = vshrl.u32 %v4079, 7
  %v4081 = vsub.s32 %v4078, %v4080
  %v4082 = vrot.slane %v4054, %v4081
  %v4083 = vcombine.low %v4061, %v4068
  %v4084 = vcombine.high %v4061, %v4068
  %v4085 = vcombine.low %v4075, %v4082
  %v4086 = vcombine.high %v4075, %v4082
  %v4088 = vunpack.c.l.s4 1966171168
  %v4089 = vunpack.c.0.s8 %v4088
  %v4090 = vlaneseq
  %v4091 = vshrl.u32 %v4090, 7
  %v4092 = vsub.s32 %v4089, %v4091
  %v4093 = vrot.slane %v4083, %v4092
  %v4095 = vunpack.c.l.s4 1966171168
  %v4096 = vunpack.c.0.s8 %v4095
  %v4097 = vlaneseq
  %v4098 = vshrl.u32 %v4097, 7
  %v4099 = vsub.s32 %v4096, %v4098
  %v4100 = vrot.slane %v4084, %v4099
  %v4102 = vunpack.c.l.s4 1966171168
  %v4103 = vunpack.c.0.s8 %v4102
  %v4104 = vlaneseq
  %v4105 = vshrl.u32 %v4104, 7
  %v4106 = vsub.s32 %v4103, %v4105
  %v4107 = vrot.slane %v4085, %v4106
  %v4109 = vunpack.c.l.s4 1966171168
  %v4110 = vunpack.c.0.s8 %v4109
  %v4111 = vlaneseq
  %v4112 = vshrl.u32 %v4111, 7
  %v4113 = vsub.s32 %v4110, %v4112
  %v4114 = vrot.slane %v4086, %v4113
  %v4115 = vcombine.low %v4093, %v4107
  %v4116 = vcombine.low %v4100, %v4114
  %v4117 = vcombine.low %v3931, %v3933
  %v4118 = vcombine.low %v3935, %v3937
  %v4120 = vunpack.c.l.s4 1966171168
  %v4121 = vunpack.c.0.s8 %v4120
  %v4122 = vlaneseq
  %v4123 = vshrl.u32 %v4122, 7
  %v4124 = vsub.s32 %v4121, %v4123
  %v4125 = vrot.slane %v4117, %v4124
  %v4127 = vunpack.c.l.s4 1966171168
  %v4128 = vunpack.c.0.s8 %v4127
  %v4129 = vlaneseq
  %v4130 = vshrl.u32 %v4129, 7
  %v4131 = vsub.s32 %v4128, %v4130
  %v4132 = vrot.slane %v4118, %v4131
  %v4133 = vcombine.low %v4125, %v4132
  %v4134 = vcombine.high %v4125, %v4132
  %v4136 = vunpack.c.l.s4 1966171168
  %v4137 = vunpack.c.0.s8 %v4136
  %v4138 = vlaneseq
  %v4139 = vshrl.u32 %v4138, 7
  %v4140 = vsub.s32 %v4137, %v4139
  %v4141 = vrot.slane %v4133, %v4140
  %v4143 = vunpack.c.l.s4 1966171168
  %v4144 = vunpack.c.0.s8 %v4143
  %v4145 = vlaneseq
  %v4146 = vshrl.u32 %v4145, 7
  %v4147 = vsub.s32 %v4144, %v4146
  %v4148 = vrot.slane %v4134, %v4147
  %4155 = vmatprep.subr.mxu0 %v4050
  %4156 = vmatpush1.xpose.msra.mxu0 %v4049
  %4157 = vmatprep.subr.mxu0 %v4116
  %4158 = vmatpush1.xpose.msra.mxu0 %v4115
  %4159 = vmatprep.subr.mxu0 %v4148
  %4160 = vmatpush1.xpose.msra.mxu0 %v4141
  %4161 = vmatprep.subr.mxu0 0.0
  %4162 = vmatpush1.xpose.msra.mxu0 0.0
  %4163 = vmatprep.subr.mxu0 0.0
  %4164 = vmatpush1.xpose.msra.mxu0 0.0
  %4165 = vmatprep.subr.mxu0 0.0
  %4166 = vmatpush1.xpose.msra.mxu0 0.0
  %4167 = vmatprep.subr.mxu0 0.0
  %4168 = vmatpush1.xpose.msra.mxu0 0.0
  %4169 = vmatprep.subr.mxu0 0.0
  %4170 = vmatpush1.xpose.msra.mxu0 0.0
  %4171 = vmatprep.subr.mxu0 0.0
  %4172 = vmatpush1.xpose.msra.mxu0 0.0
  %4173 = vmatprep.subr.mxu0 0.0
  %4174 = vmatpush1.xpose.msra.mxu0 0.0
  %4175 = vmatprep.subr.mxu0 0.0
  %4176 = vmatpush1.xpose.msra.mxu0 0.0
  %4177 = vmatprep.subr.mxu0 0.0
  %4178 = vmatpush1.xpose.msra.mxu0 0.0
  %4179 = vmatprep.subr.mxu0 0.0
  %4180 = vmatpush1.xpose.msra.mxu0 0.0
  %4181 = vmatprep.subr.mxu0 0.0
  %4182 = vmatpush1.xpose.msra.mxu0 0.0
  %4183 = vmatprep.subr.mxu0 0.0
  %4184 = vmatpush1.xpose.msra.mxu0 0.0
  %4185 = vmatprep.subr.mxu0 0.0
  %4186 = vmatpush1.xpose.msra.mxu0 0.0
  %4187 = vmatprep.subr.mxu0 0.0
  %4188 = vmatpush1.xpose.msra.mxu0 0.0
  %4189 = vmatprep.subr.mxu0 0.0
  %4190 = vmatpush1.xpose.msra.mxu0 0.0
  %4191 = vmatprep.subr.mxu0 0.0
  %4192 = vmatpush1.xpose.msra.mxu0 0.0
  %4193 = vmatprep.subr.mxu0 0.0
  %4194 = vmatpush1.xpose.msra.mxu0 0.0
  %4195 = vmatprep.subr.mxu0 0.0
  %4196 = vmatpush1.xpose.msra.mxu0 0.0
  %4197 = vmatprep.subr.mxu0 0.0
  %4198 = vmatpush1.xpose.msra.mxu0 0.0
  %4199 = vmatprep.subr.mxu0 0.0
  %4200 = vmatpush1.xpose.msra.mxu0 0.0
  %4201 = vmatprep.subr.mxu0 0.0
  %4202 = vmatpush1.xpose.msra.mxu0 0.0
  %4203 = vmatprep.subr.mxu0 0.0
  %4204 = vmatpush1.xpose.msra.mxu0 0.0
  %4205 = vmatprep.subr.mxu0 0.0
  %4206 = vmatpush1.xpose.msra.mxu0 0.0
  %4207 = vmatprep.subr.mxu0 0.0
  %4208 = vmatpush1.xpose.msra.mxu0 0.0
  %4209 = vmatprep.subr.mxu0 0.0
  %4210 = vmatpush1.xpose.msra.mxu0 0.0
  %4211 = vmatprep.subr.mxu0 0.0
  %4212 = vmatpush1.xpose.msra.mxu0 0.0
  %4213 = vmatprep.subr.mxu0 0.0
  %4214 = vmatpush1.xpose.msra.mxu0 0.0
  %4215 = vmatprep.subr.mxu0 0.0
  %4216 = vmatpush1.xpose.msra.mxu0 0.0
  %4217 = vmatprep.subr.mxu0 0.0
  %4218 = vmatpush1.xpose.msra.mxu0 0.0
  %4219 = vmatprep.mubr.f32.mxu0 %v3962
  %4220 = vmatmul.mubr.f32.gmra.mrb[0].mxu0 %v3955
  %v4221 = vpop.f32.mrb[0].mxu0
  %v4222 = vadd.f32 0.0, %v4221
  %v4223 = vpop.f32.mrb[0].mxu0
  %4224 = vdwg.mxu0
  %v4227 = vcombine.low %v3852, %v3854
  %v4229 = vunpack.c.l.s4 1966171168
  %v4230 = vunpack.c.0.s8 %v4229
  %v4231 = vlaneseq
  %v4232 = vshrl.u32 %v4231, 7
  %v4233 = vsub.s32 %v4230, %v4232
  %v4234 = vrot.slane %v4227, %v4233
  %v4235 = vcombine.high %v4234, %v4234
  %v4237 = vunpack.c.l.s4 1966171168
  %v4238 = vunpack.c.0.s8 %v4237
  %v4239 = vlaneseq
  %v4240 = vshrl.u32 %v4239, 7
  %v4241 = vsub.s32 %v4238, %v4240
  %v4242 = vrot.slane %v4234, %v4241
  %v4244 = vunpack.c.l.s4 1966171168
  %v4245 = vunpack.c.0.s8 %v4244
  %v4246 = vlaneseq
  %v4247 = vshrl.u32 %v4246, 7
  %v4248 = vsub.s32 %v4245, %v4247
  %v4249 = vrot.slane %v4235, %v4248
  %v4272 = vcombine.low %v3855, %v3857
  %v4273 = vcombine.low %v3859, %v3861
  %v4274 = vcombine.low %v3863, %v3865
  %v4275 = vcombine.low %v3867, %v3869
  %v4277 = vunpack.c.l.s4 1966171168
  %v4278 = vunpack.c.0.s8 %v4277
  %v4279 = vlaneseq
  %v4280 = vshrl.u32 %v4279, 7
  %v4281 = vsub.s32 %v4278, %v4280
  %v4282 = vrot.slane %v4272, %v4281
  %v4284 = vunpack.c.l.s4 1966171168
  %v4285 = vunpack.c.0.s8 %v4284
  %v4286 = vlaneseq
  %v4287 = vshrl.u32 %v4286, 7
  %v4288 = vsub.s32 %v4285, %v4287
  %v4289 = vrot.slane %v4273, %v4288
  %v4291 = vunpack.c.l.s4 1966171168
  %v4292 = vunpack.c.0.s8 %v4291
  %v4293 = vlaneseq
  %v4294 = vshrl.u32 %v4293, 7
  %v4295 = vsub.s32 %v4292, %v4294
  %v4296 = vrot.slane %v4274, %v4295
  %v4298 = vunpack.c.l.s4 1966171168
  %v4299 = vunpack.c.0.s8 %v4298
  %v4300 = vlaneseq
  %v4301 = vshrl.u32 %v4300, 7
  %v4302 = vsub.s32 %v4299, %v4301
  %v4303 = vrot.slane %v4275, %v4302
  %v4304 = vcombine.low %v4282, %v4289
  %v4305 = vcombine.high %v4282, %v4289
  %v4306 = vcombine.low %v4296, %v4303
  %v4307 = vcombine.high %v4296, %v4303
  %v4309 = vunpack.c.l.s4 1966171168
  %v4310 = vunpack.c.0.s8 %v4309
  %v4311 = vlaneseq
  %v4312 = vshrl.u32 %v4311, 7
  %v4313 = vsub.s32 %v4310, %v4312
  %v4314 = vrot.slane %v4304, %v4313
  %v4316 = vunpack.c.l.s4 1966171168
  %v4317 = vunpack.c.0.s8 %v4316
  %v4318 = vlaneseq
  %v4319 = vshrl.u32 %v4318, 7
  %v4320 = vsub.s32 %v4317, %v4319
  %v4321 = vrot.slane %v4305, %v4320
  %v4323 = vunpack.c.l.s4 1966171168
  %v4324 = vunpack.c.0.s8 %v4323
  %v4325 = vlaneseq
  %v4326 = vshrl.u32 %v4325, 7
  %v4327 = vsub.s32 %v4324, %v4326
  %v4328 = vrot.slane %v4306, %v4327
  %v4330 = vunpack.c.l.s4 1966171168
  %v4331 = vunpack.c.0.s8 %v4330
  %v4332 = vlaneseq
  %v4333 = vshrl.u32 %v4332, 7
  %v4334 = vsub.s32 %v4331, %v4333
  %v4335 = vrot.slane %v4307, %v4334
  %v4336 = vcombine.low %v4314, %v4328
  %v4337 = vcombine.low %v4321, %v4335
  %v4338 = vcombine.low %v3871, %v3873
  %v4339 = vcombine.low %v3875, %v3877
  %v4340 = vcombine.low %v3879, %v3881
  %v4341 = vcombine.low %v3883, %v3885
  %v4343 = vunpack.c.l.s4 1966171168
  %v4344 = vunpack.c.0.s8 %v4343
  %v4345 = vlaneseq
  %v4346 = vshrl.u32 %v4345, 7
  %v4347 = vsub.s32 %v4344, %v4346
  %v4348 = vrot.slane %v4338, %v4347
  %v4350 = vunpack.c.l.s4 1966171168
  %v4351 = vunpack.c.0.s8 %v4350
  %v4352 = vlaneseq
  %v4353 = vshrl.u32 %v4352, 7
  %v4354 = vsub.s32 %v4351, %v4353
  %v4355 = vrot.slane %v4339, %v4354
  %v4357 = vunpack.c.l.s4 1966171168
  %v4358 = vunpack.c.0.s8 %v4357
  %v4359 = vlaneseq
  %v4360 = vshrl.u32 %v4359, 7
  %v4361 = vsub.s32 %v4358, %v4360
  %v4362 = vrot.slane %v4340, %v4361
  %v4364 = vunpack.c.l.s4 1966171168
  %v4365 = vunpack.c.0.s8 %v4364
  %v4366 = vlaneseq
  %v4367 = vshrl.u32 %v4366, 7
  %v4368 = vsub.s32 %v4365, %v4367
  %v4369 = vrot.slane %v4341, %v4368
  %v4370 = vcombine.low %v4348, %v4355
  %v4371 = vcombine.high %v4348, %v4355
  %v4372 = vcombine.low %v4362, %v4369
  %v4373 = vcombine.high %v4362, %v4369
  %v4375 = vunpack.c.l.s4 1966171168
  %v4376 = vunpack.c.0.s8 %v4375
  %v4377 = vlaneseq
  %v4378 = vshrl.u32 %v4377, 7
  %v4379 = vsub.s32 %v4376, %v4378
  %v4380 = vrot.slane %v4370, %v4379
  %v4382 = vunpack.c.l.s4 1966171168
  %v4383 = vunpack.c.0.s8 %v4382
  %v4384 = vlaneseq
  %v4385 = vshrl.u32 %v4384, 7
  %v4386 = vsub.s32 %v4383, %v4385
  %v4387 = vrot.slane %v4371, %v4386
  %v4389 = vunpack.c.l.s4 1966171168
  %v4390 = vunpack.c.0.s8 %v4389
  %v4391 = vlaneseq
  %v4392 = vshrl.u32 %v4391, 7
  %v4393 = vsub.s32 %v4390, %v4392
  %v4394 = vrot.slane %v4372, %v4393
  %v4396 = vunpack.c.l.s4 1966171168
  %v4397 = vunpack.c.0.s8 %v4396
  %v4398 = vlaneseq
  %v4399 = vshrl.u32 %v4398, 7
  %v4400 = vsub.s32 %v4397, %v4399
  %v4401 = vrot.slane %v4373, %v4400
  %v4402 = vcombine.low %v4380, %v4394
  %v4403 = vcombine.low %v4387, %v4401
  %v4404 = vcombine.low %v3887, %v3889
  %v4405 = vcombine.low %v3891, %v3893
  %v4407 = vunpack.c.l.s4 1966171168
  %v4408 = vunpack.c.0.s8 %v4407
  %v4409 = vlaneseq
  %v4410 = vshrl.u32 %v4409, 7
  %v4411 = vsub.s32 %v4408, %v4410
  %v4412 = vrot.slane %v4404, %v4411
  %v4414 = vunpack.c.l.s4 1966171168
  %v4415 = vunpack.c.0.s8 %v4414
  %v4416 = vlaneseq
  %v4417 = vshrl.u32 %v4416, 7
  %v4418 = vsub.s32 %v4415, %v4417
  %v4419 = vrot.slane %v4405, %v4418
  %v4420 = vcombine.low %v4412, %v4419
  %v4421 = vcombine.high %v4412, %v4419
  %v4423 = vunpack.c.l.s4 1966171168
  %v4424 = vunpack.c.0.s8 %v4423
  %v4425 = vlaneseq
  %v4426 = vshrl.u32 %v4425, 7
  %v4427 = vsub.s32 %v4424, %v4426
  %v4428 = vrot.slane %v4420, %v4427
  %v4430 = vunpack.c.l.s4 1966171168
  %v4431 = vunpack.c.0.s8 %v4430
  %v4432 = vlaneseq
  %v4433 = vshrl.u32 %v4432, 7
  %v4434 = vsub.s32 %v4431, %v4433
  %v4435 = vrot.slane %v4421, %v4434
  %4442 = vmatprep.subr.mxu0 %v4337
  %4443 = vmatpush1.xpose.msra.mxu0 %v4336
  %4444 = vmatprep.subr.mxu0 %v4403
  %4445 = vmatpush1.xpose.msra.mxu0 %v4402
  %4446 = vmatprep.subr.mxu0 %v4435
  %4447 = vmatpush1.xpose.msra.mxu0 %v4428
  %4448 = vmatprep.subr.mxu0 0.0
  %4449 = vmatpush1.xpose.msra.mxu0 0.0
  %4450 = vmatprep.subr.mxu0 0.0
  %4451 = vmatpush1.xpose.msra.mxu0 0.0
  %4452 = vmatprep.subr.mxu0 0.0
  %4453 = vmatpush1.xpose.msra.mxu0 0.0
  %4454 = vmatprep.subr.mxu0 0.0
  %4455 = vmatpush1.xpose.msra.mxu0 0.0
  %4456 = vmatprep.subr.mxu0 0.0
  %4457 = vmatpush1.xpose.msra.mxu0 0.0
  %4458 = vmatprep.subr.mxu0 0.0
  %4459 = vmatpush1.xpose.msra.mxu0 0.0
  %4460 = vmatprep.subr.mxu0 0.0
  %4461 = vmatpush1.xpose.msra.mxu0 0.0
  %4462 = vmatprep.subr.mxu0 0.0
  %4463 = vmatpush1.xpose.msra.mxu0 0.0
  %4464 = vmatprep.subr.mxu0 0.0
  %4465 = vmatpush1.xpose.msra.mxu0 0.0
  %4466 = vmatprep.subr.mxu0 0.0
  %4467 = vmatpush1.xpose.msra.mxu0 0.0
  %4468 = vmatprep.subr.mxu0 0.0
  %4469 = vmatpush1.xpose.msra.mxu0 0.0
  %4470 = vmatprep.subr.mxu0 0.0
  %4471 = vmatpush1.xpose.msra.mxu0 0.0
  %4472 = vmatprep.subr.mxu0 0.0
  %4473 = vmatpush1.xpose.msra.mxu0 0.0
  %4474 = vmatprep.subr.mxu0 0.0
  %4475 = vmatpush1.xpose.msra.mxu0 0.0
  %4476 = vmatprep.subr.mxu0 0.0
  %4477 = vmatpush1.xpose.msra.mxu0 0.0
  %4478 = vmatprep.subr.mxu0 0.0
  %4479 = vmatpush1.xpose.msra.mxu0 0.0
  %4480 = vmatprep.subr.mxu0 0.0
  %4481 = vmatpush1.xpose.msra.mxu0 0.0
  %4482 = vmatprep.subr.mxu0 0.0
  %4483 = vmatpush1.xpose.msra.mxu0 0.0
  %4484 = vmatprep.subr.mxu0 0.0
  %4485 = vmatpush1.xpose.msra.mxu0 0.0
  %4486 = vmatprep.subr.mxu0 0.0
  %4487 = vmatpush1.xpose.msra.mxu0 0.0
  %4488 = vmatprep.subr.mxu0 0.0
  %4489 = vmatpush1.xpose.msra.mxu0 0.0
  %4490 = vmatprep.subr.mxu0 0.0
  %4491 = vmatpush1.xpose.msra.mxu0 0.0
  %4492 = vmatprep.subr.mxu0 0.0
  %4493 = vmatpush1.xpose.msra.mxu0 0.0
  %4494 = vmatprep.subr.mxu0 0.0
  %4495 = vmatpush1.xpose.msra.mxu0 0.0
  %4496 = vmatprep.subr.mxu0 0.0
  %4497 = vmatpush1.xpose.msra.mxu0 0.0
  %4498 = vmatprep.subr.mxu0 0.0
  %4499 = vmatpush1.xpose.msra.mxu0 0.0
  %4500 = vmatprep.subr.mxu0 0.0
  %4501 = vmatpush1.xpose.msra.mxu0 0.0
  %4502 = vmatprep.subr.mxu0 0.0
  %4503 = vmatpush1.xpose.msra.mxu0 0.0
  %4504 = vmatprep.subr.mxu0 0.0
  %4505 = vmatpush1.xpose.msra.mxu0 0.0
  %4506 = vmatprep.mubr.f32.mxu0 %v4249
  %4507 = vmatmul.mubr.f32.gmra.mrb[0].mxu0 %v4242
  %v4508 = vpop.f32.mrb[0].mxu0
  %v4509 = vadd.f32 %v4222, %v4508
  %v4510 = vpop.f32.mrb[0].mxu0
  %4511 = vdwg.mxu0
  %s4512 = scalar_lea.vmem [#allocation3], 2
  %v4513 = vld [vmem:[%s4512] ss:$8 sm:$0x3]
  %s4514 = scalar_lea.vmem [#allocation3], 18
  %v4515 = vld [vmem:[%s4514] ss:$8 sm:$0x3]
  %s4516 = scalar_lea.vmem %s11, 2
  %v4517 = vld [vmem:[%s4516] ss:$8 sm:$0x3]
  %s4518 = scalar_lea.vmem %s11, 18
  %v4519 = vld [vmem:[%s4518] ss:$8 sm:$0x3]
  %s4520 = scalar_lea.vmem %s11, 34
  %v4521 = vld [vmem:[%s4520] ss:$8 sm:$0x3]
  %s4522 = scalar_lea.vmem %s11, 50
  %v4523 = vld [vmem:[%s4522] ss:$8 sm:$0x3]
  %s4524 = scalar_lea.vmem %s11, 66
  %v4525 = vld [vmem:[%s4524] ss:$8 sm:$0x3]
  %s4526 = scalar_lea.vmem %s11, 82
  %v4527 = vld [vmem:[%s4526] ss:$8 sm:$0x3]
  %s4528 = scalar_lea.vmem %s11, 98
  %v4529 = vld [vmem:[%s4528] ss:$8 sm:$0x3]
  %s4530 = scalar_lea.vmem %s11, 114
  %v4531 = vld [vmem:[%s4530] ss:$8 sm:$0x3]
  %s4532 = scalar_lea.vmem %s11, 130
  %v4533 = vld [vmem:[%s4532] ss:$8 sm:$0x3]
  %s4534 = scalar_lea.vmem %s11, 146
  %v4535 = vld [vmem:[%s4534] ss:$8 sm:$0x3]
  %s4536 = scalar_lea.vmem %s11, 162
  %v4537 = vld [vmem:[%s4536] ss:$8 sm:$0x3]
  %s4538 = scalar_lea.vmem %s11, 178
  %v4539 = vld [vmem:[%s4538] ss:$8 sm:$0x3]
  %s4540 = scalar_lea.vmem %s11, 194
  %v4541 = vld [vmem:[%s4540] ss:$8 sm:$0x3]
  %s4542 = scalar_lea.vmem %s11, 210
  %v4543 = vld [vmem:[%s4542] ss:$8 sm:$0x3]
  %s4544 = scalar_lea.vmem %s11, 226
  %v4545 = vld [vmem:[%s4544] ss:$8 sm:$0x3]
  %s4546 = scalar_lea.vmem %s11, 242
  %v4547 = vld [vmem:[%s4546] ss:$8 sm:$0x3]
  %s4548 = scalar_lea.vmem %s11, 258
  %v4549 = vld [vmem:[%s4548] ss:$8 sm:$0x3]
  %s4550 = scalar_lea.vmem %s11, 274
  %v4551 = vld [vmem:[%s4550] ss:$8 sm:$0x3]
  %s4552 = scalar_lea.vmem %s11, 290
  %v4553 = vld [vmem:[%s4552] ss:$8 sm:$0x3]
  %s4554 = scalar_lea.vmem %s11, 306
  %v4555 = vld [vmem:[%s4554] ss:$8 sm:$0x3]
  %v4558 = vcombine.low %v4513, %v4515
  %v4560 = vunpack.c.l.s4 1966171168
  %v4561 = vunpack.c.0.s8 %v4560
  %v4562 = vlaneseq
  %v4563 = vshrl.u32 %v4562, 7
  %v4564 = vsub.s32 %v4561, %v4563
  %v4565 = vrot.slane %v4558, %v4564
  %v4566 = vcombine.high %v4565, %v4565
  %v4568 = vunpack.c.l.s4 1966171168
  %v4569 = vunpack.c.0.s8 %v4568
  %v4570 = vlaneseq
  %v4571 = vshrl.u32 %v4570, 7
  %v4572 = vsub.s32 %v4569, %v4571
  %v4573 = vrot.slane %v4565, %v4572
  %v4575 = vunpack.c.l.s4 1966171168
  %v4576 = vunpack.c.0.s8 %v4575
  %v4577 = vlaneseq
  %v4578 = vshrl.u32 %v4577, 7
  %v4579 = vsub.s32 %v4576, %v4578
  %v4580 = vrot.slane %v4566, %v4579
  %v4603 = vcombine.low %v4517, %v4519
  %v4604 = vcombine.low %v4521, %v4523
  %v4605 = vcombine.low %v4525, %v4527
  %v4606 = vcombine.low %v4529, %v4531
  %v4608 = vunpack.c.l.s4 1966171168
  %v4609 = vunpack.c.0.s8 %v4608
  %v4610 = vlaneseq
  %v4611 = vshrl.u32 %v4610, 7
  %v4612 = vsub.s32 %v4609, %v4611
  %v4613 = vrot.slane %v4603, %v4612
  %v4615 = vunpack.c.l.s4 1966171168
  %v4616 = vunpack.c.0.s8 %v4615
  %v4617 = vlaneseq
  %v4618 = vshrl.u32 %v4617, 7
  %v4619 = vsub.s32 %v4616, %v4618
  %v4620 = vrot.slane %v4604, %v4619
  %v4622 = vunpack.c.l.s4 1966171168
  %v4623 = vunpack.c.0.s8 %v4622
  %v4624 = vlaneseq
  %v4625 = vshrl.u32 %v4624, 7
  %v4626 = vsub.s32 %v4623, %v4625
  %v4627 = vrot.slane %v4605, %v4626
  %v4629 = vunpack.c.l.s4 1966171168
  %v4630 = vunpack.c.0.s8 %v4629
  %v4631 = vlaneseq
  %v4632 = vshrl.u32 %v4631, 7
  %v4633 = vsub.s32 %v4630, %v4632
  %v4634 = vrot.slane %v4606, %v4633
  %v4635 = vcombine.low %v4613, %v4620
  %v4636 = vcombine.high %v4613, %v4620
  %v4637 = vcombine.low %v4627, %v4634
  %v4638 = vcombine.high %v4627, %v4634
  %v4640 = vunpack.c.l.s4 1966171168
  %v4641 = vunpack.c.0.s8 %v4640
  %v4642 = vlaneseq
  %v4643 = vshrl.u32 %v4642, 7
  %v4644 = vsub.s32 %v4641, %v4643
  %v4645 = vrot.slane %v4635, %v4644
  %v4647 = vunpack.c.l.s4 1966171168
  %v4648 = vunpack.c.0.s8 %v4647
  %v4649 = vlaneseq
  %v4650 = vshrl.u32 %v4649, 7
  %v4651 = vsub.s32 %v4648, %v4650
  %v4652 = vrot.slane %v4636, %v4651
  %v4654 = vunpack.c.l.s4 1966171168
  %v4655 = vunpack.c.0.s8 %v4654
  %v4656 = vlaneseq
  %v4657 = vshrl.u32 %v4656, 7
  %v4658 = vsub.s32 %v4655, %v4657
  %v4659 = vrot.slane %v4637, %v4658
  %v4661 = vunpack.c.l.s4 1966171168
  %v4662 = vunpack.c.0.s8 %v4661
  %v4663 = vlaneseq
  %v4664 = vshrl.u32 %v4663, 7
  %v4665 = vsub.s32 %v4662, %v4664
  %v4666 = vrot.slane %v4638, %v4665
  %v4667 = vcombine.low %v4645, %v4659
  %v4668 = vcombine.low %v4652, %v4666
  %v4669 = vcombine.low %v4533, %v4535
  %v4670 = vcombine.low %v4537, %v4539
  %v4671 = vcombine.low %v4541, %v4543
  %v4672 = vcombine.low %v4545, %v4547
  %v4674 = vunpack.c.l.s4 1966171168
  %v4675 = vunpack.c.0.s8 %v4674
  %v4676 = vlaneseq
  %v4677 = vshrl.u32 %v4676, 7
  %v4678 = vsub.s32 %v4675, %v4677
  %v4679 = vrot.slane %v4669, %v4678
  %v4681 = vunpack.c.l.s4 1966171168
  %v4682 = vunpack.c.0.s8 %v4681
  %v4683 = vlaneseq
  %v4684 = vshrl.u32 %v4683, 7
  %v4685 = vsub.s32 %v4682, %v4684
  %v4686 = vrot.slane %v4670, %v4685
  %v4688 = vunpack.c.l.s4 1966171168
  %v4689 = vunpack.c.0.s8 %v4688
  %v4690 = vlaneseq
  %v4691 = vshrl.u32 %v4690, 7
  %v4692 = vsub.s32 %v4689, %v4691
  %v4693 = vrot.slane %v4671, %v4692
  %v4695 = vunpack.c.l.s4 1966171168
  %v4696 = vunpack.c.0.s8 %v4695
  %v4697 = vlaneseq
  %v4698 = vshrl.u32 %v4697, 7
  %v4699 = vsub.s32 %v4696, %v4698
  %v4700 = vrot.slane %v4672, %v4699
  %v4701 = vcombine.low %v4679, %v4686
  %v4702 = vcombine.high %v4679, %v4686
  %v4703 = vcombine.low %v4693, %v4700
  %v4704 = vcombine.high %v4693, %v4700
  %v4706 = vunpack.c.l.s4 1966171168
  %v4707 = vunpack.c.0.s8 %v4706
  %v4708 = vlaneseq
  %v4709 = vshrl.u32 %v4708, 7
  %v4710 = vsub.s32 %v4707, %v4709
  %v4711 = vrot.slane %v4701, %v4710
  %v4713 = vunpack.c.l.s4 1966171168
  %v4714 = vunpack.c.0.s8 %v4713
  %v4715 = vlaneseq
  %v4716 = vshrl.u32 %v4715, 7
  %v4717 = vsub.s32 %v4714, %v4716
  %v4718 = vrot.slane %v4702, %v4717
  %v4720 = vunpack.c.l.s4 1966171168
  %v4721 = vunpack.c.0.s8 %v4720
  %v4722 = vlaneseq
  %v4723 = vshrl.u32 %v4722, 7
  %v4724 = vsub.s32 %v4721, %v4723
  %v4725 = vrot.slane %v4703, %v4724
  %v4727 = vunpack.c.l.s4 1966171168
  %v4728 = vunpack.c.0.s8 %v4727
  %v4729 = vlaneseq
  %v4730 = vshrl.u32 %v4729, 7
  %v4731 = vsub.s32 %v4728, %v4730
  %v4732 = vrot.slane %v4704, %v4731
  %v4733 = vcombine.low %v4711, %v4725
  %v4734 = vcombine.low %v4718, %v4732
  %v4735 = vcombine.low %v4549, %v4551
  %v4736 = vcombine.low %v4553, %v4555
  %v4738 = vunpack.c.l.s4 1966171168
  %v4739 = vunpack.c.0.s8 %v4738
  %v4740 = vlaneseq
  %v4741 = vshrl.u32 %v4740, 7
  %v4742 = vsub.s32 %v4739, %v4741
  %v4743 = vrot.slane %v4735, %v4742
  %v4745 = vunpack.c.l.s4 1966171168
  %v4746 = vunpack.c.0.s8 %v4745
  %v4747 = vlaneseq
  %v4748 = vshrl.u32 %v4747, 7
  %v4749 = vsub.s32 %v4746, %v4748
  %v4750 = vrot.slane %v4736, %v4749
  %v4751 = vcombine.low %v4743, %v4750
  %v4752 = vcombine.high %v4743, %v4750
  %v4754 = vunpack.c.l.s4 1966171168
  %v4755 = vunpack.c.0.s8 %v4754
  %v4756 = vlaneseq
  %v4757 = vshrl.u32 %v4756, 7
  %v4758 = vsub.s32 %v4755, %v4757
  %v4759 = vrot.slane %v4751, %v4758
  %v4761 = vunpack.c.l.s4 1966171168
  %v4762 = vunpack.c.0.s8 %v4761
  %v4763 = vlaneseq
  %v4764 = vshrl.u32 %v4763, 7
  %v4765 = vsub.s32 %v4762, %v4764
  %v4766 = vrot.slane %v4752, %v4765
  %4773 = vmatprep.subr.mxu0 %v4668
  %4774 = vmatpush1.xpose.msra.mxu0 %v4667
  %4775 = vmatprep.subr.mxu0 %v4734
  %4776 = vmatpush1.xpose.msra.mxu0 %v4733
  %4777 = vmatprep.subr.mxu0 %v4766
  %4778 = vmatpush1.xpose.msra.mxu0 %v4759
  %4779 = vmatprep.subr.mxu0 0.0
  %4780 = vmatpush1.xpose.msra.mxu0 0.0
  %4781 = vmatprep.subr.mxu0 0.0
  %4782 = vmatpush1.xpose.msra.mxu0 0.0
  %4783 = vmatprep.subr.mxu0 0.0
  %4784 = vmatpush1.xpose.msra.mxu0 0.0
  %4785 = vmatprep.subr.mxu0 0.0
  %4786 = vmatpush1.xpose.msra.mxu0 0.0
  %4787 = vmatprep.subr.mxu0 0.0
  %4788 = vmatpush1.xpose.msra.mxu0 0.0
  %4789 = vmatprep.subr.mxu0 0.0
  %4790 = vmatpush1.xpose.msra.mxu0 0.0
  %4791 = vmatprep.subr.mxu0 0.0
  %4792 = vmatpush1.xpose.msra.mxu0 0.0
  %4793 = vmatprep.subr.mxu0 0.0
  %4794 = vmatpush1.xpose.msra.mxu0 0.0
  %4795 = vmatprep.subr.mxu0 0.0
  %4796 = vmatpush1.xpose.msra.mxu0 0.0
  %4797 = vmatprep.subr.mxu0 0.0
  %4798 = vmatpush1.xpose.msra.mxu0 0.0
  %4799 = vmatprep.subr.mxu0 0.0
  %4800 = vmatpush1.xpose.msra.mxu0 0.0
  %4801 = vmatprep.subr.mxu0 0.0
  %4802 = vmatpush1.xpose.msra.mxu0 0.0
  %4803 = vmatprep.subr.mxu0 0.0
  %4804 = vmatpush1.xpose.msra.mxu0 0.0
  %4805 = vmatprep.subr.mxu0 0.0
  %4806 = vmatpush1.xpose.msra.mxu0 0.0
  %4807 = vmatprep.subr.mxu0 0.0
  %4808 = vmatpush1.xpose.msra.mxu0 0.0
  %4809 = vmatprep.subr.mxu0 0.0
  %4810 = vmatpush1.xpose.msra.mxu0 0.0
  %4811 = vmatprep.subr.mxu0 0.0
  %4812 = vmatpush1.xpose.msra.mxu0 0.0
  %4813 = vmatprep.subr.mxu0 0.0
  %4814 = vmatpush1.xpose.msra.mxu0 0.0
  %4815 = vmatprep.subr.mxu0 0.0
  %4816 = vmatpush1.xpose.msra.mxu0 0.0
  %4817 = vmatprep.subr.mxu0 0.0
  %4818 = vmatpush1.xpose.msra.mxu0 0.0
  %4819 = vmatprep.subr.mxu0 0.0
  %4820 = vmatpush1.xpose.msra.mxu0 0.0
  %4821 = vmatprep.subr.mxu0 0.0
  %4822 = vmatpush1.xpose.msra.mxu0 0.0
  %4823 = vmatprep.subr.mxu0 0.0
  %4824 = vmatpush1.xpose.msra.mxu0 0.0
  %4825 = vmatprep.subr.mxu0 0.0
  %4826 = vmatpush1.xpose.msra.mxu0 0.0
  %4827 = vmatprep.subr.mxu0 0.0
  %4828 = vmatpush1.xpose.msra.mxu0 0.0
  %4829 = vmatprep.subr.mxu0 0.0
  %4830 = vmatpush1.xpose.msra.mxu0 0.0
  %4831 = vmatprep.subr.mxu0 0.0
  %4832 = vmatpush1.xpose.msra.mxu0 0.0
  %4833 = vmatprep.subr.mxu0 0.0
  %4834 = vmatpush1.xpose.msra.mxu0 0.0
  %4835 = vmatprep.subr.mxu0 0.0
  %4836 = vmatpush1.xpose.msra.mxu0 0.0
  %4837 = vmatprep.mubr.f32.mxu0 %v4580
  %4838 = vmatmul.mubr.f32.gmra.mrb[0].mxu0 %v4573
  %v4839 = vpop.f32.mrb[0].mxu0
  %v4840 = vadd.f32 0.0, %v4839
  %v4841 = vpop.f32.mrb[0].mxu0
  %4842 = vdwg.mxu0
  %v4843 = vadd.f32 %v4509, %v4840
  %s4844 = scalar_lea.vmem [#allocation3], 3
  %v4845 = vld [vmem:[%s4844] ss:$8 sm:$0x3]
  %s4846 = scalar_lea.vmem [#allocation3], 19
  %v4847 = vld [vmem:[%s4846] ss:$8 sm:$0x3]
  %s4848 = scalar_lea.vmem %s11, 3
  %v4849 = vld [vmem:[%s4848] ss:$8 sm:$0x3]
  %s4850 = scalar_lea.vmem %s11, 19
  %v4851 = vld [vmem:[%s4850] ss:$8 sm:$0x3]
  %s4852 = scalar_lea.vmem %s11, 35
  %v4853 = vld [vmem:[%s4852] ss:$8 sm:$0x3]
  %s4854 = scalar_lea.vmem %s11, 51
  %v4855 = vld [vmem:[%s4854] ss:$8 sm:$0x3]
  %s4856 = scalar_lea.vmem %s11, 67
  %v4857 = vld [vmem:[%s4856] ss:$8 sm:$0x3]
  %s4858 = scalar_lea.vmem %s11, 83
  %v4859 = vld [vmem:[%s4858] ss:$8 sm:$0x3]
  %s4860 = scalar_lea.vmem %s11, 99
  %v4861 = vld [vmem:[%s4860] ss:$8 sm:$0x3]
  %s4862 = scalar_lea.vmem %s11, 115
  %v4863 = vld [vmem:[%s4862] ss:$8 sm:$0x3]
  %s4864 = scalar_lea.vmem %s11, 131
  %v4865 = vld [vmem:[%s4864] ss:$8 sm:$0x3]
  %s4866 = scalar_lea.vmem %s11, 147
  %v4867 = vld [vmem:[%s4866] ss:$8 sm:$0x3]
  %s4868 = scalar_lea.vmem %s11, 163
  %v4869 = vld [vmem:[%s4868] ss:$8 sm:$0x3]
  %s4870 = scalar_lea.vmem %s11, 179
  %v4871 = vld [vmem:[%s4870] ss:$8 sm:$0x3]
  %s4872 = scalar_lea.vmem %s11, 195
  %v4873 = vld [vmem:[%s4872] ss:$8 sm:$0x3]
  %s4874 = scalar_lea.vmem %s11, 211
  %v4875 = vld [vmem:[%s4874] ss:$8 sm:$0x3]
  %s4876 = scalar_lea.vmem %s11, 227
  %v4877 = vld [vmem:[%s4876] ss:$8 sm:$0x3]
  %s4878 = scalar_lea.vmem %s11, 243
  %v4879 = vld [vmem:[%s4878] ss:$8 sm:$0x3]
  %s4880 = scalar_lea.vmem %s11, 259
  %v4881 = vld [vmem:[%s4880] ss:$8 sm:$0x3]
  %s4882 = scalar_lea.vmem %s11, 275
  %v4883 = vld [vmem:[%s4882] ss:$8 sm:$0x3]
  %s4884 = scalar_lea.vmem %s11, 291
  %v4885 = vld [vmem:[%s4884] ss:$8 sm:$0x3]
  %s4886 = scalar_lea.vmem %s11, 307
  %v4887 = vld [vmem:[%s4886] ss:$8 sm:$0x3]
  %v4890 = vcombine.low %v4845, %v4847
  %v4892 = vunpack.c.l.s4 1966171168
  %v4893 = vunpack.c.0.s8 %v4892
  %v4894 = vlaneseq
  %v4895 = vshrl.u32 %v4894, 7
  %v4896 = vsub.s32 %v4893, %v4895
  %v4897 = vrot.slane %v4890, %v4896
  %v4898 = vcombine.high %v4897, %v4897
  %v4900 = vunpack.c.l.s4 1966171168
  %v4901 = vunpack.c.0.s8 %v4900
  %v4902 = vlaneseq
  %v4903 = vshrl.u32 %v4902, 7
  %v4904 = vsub.s32 %v4901, %v4903
  %v4905 = vrot.slane %v4897, %v4904
  %v4907 = vunpack.c.l.s4 1966171168
  %v4908 = vunpack.c.0.s8 %v4907
  %v4909 = vlaneseq
  %v4910 = vshrl.u32 %v4909, 7
  %v4911 = vsub.s32 %v4908, %v4910
  %v4912 = vrot.slane %v4898, %v4911
  %v4935 = vcombine.low %v4849, %v4851
  %v4936 = vcombine.low %v4853, %v4855
  %v4937 = vcombine.low %v4857, %v4859
  %v4938 = vcombine.low %v4861, %v4863
  %v4940 = vunpack.c.l.s4 1966171168
  %v4941 = vunpack.c.0.s8 %v4940
  %v4942 = vlaneseq
  %v4943 = vshrl.u32 %v4942, 7
  %v4944 = vsub.s32 %v4941, %v4943
  %v4945 = vrot.slane %v4935, %v4944
  %v4947 = vunpack.c.l.s4 1966171168
  %v4948 = vunpack.c.0.s8 %v4947
  %v4949 = vlaneseq
  %v4950 = vshrl.u32 %v4949, 7
  %v4951 = vsub.s32 %v4948, %v4950
  %v4952 = vrot.slane %v4936, %v4951
  %v4954 = vunpack.c.l.s4 1966171168
  %v4955 = vunpack.c.0.s8 %v4954
  %v4956 = vlaneseq
  %v4957 = vshrl.u32 %v4956, 7
  %v4958 = vsub.s32 %v4955, %v4957
  %v4959 = vrot.slane %v4937, %v4958
  %v4961 = vunpack.c.l.s4 1966171168
  %v4962 = vunpack.c.0.s8 %v4961
  %v4963 = vlaneseq
  %v4964 = vshrl.u32 %v4963, 7
  %v4965 = vsub.s32 %v4962, %v4964
  %v4966 = vrot.slane %v4938, %v4965
  %v4967 = vcombine.low %v4945, %v4952
  %v4968 = vcombine.high %v4945, %v4952
  %v4969 = vcombine.low %v4959, %v4966
  %v4970 = vcombine.high %v4959, %v4966
  %v4972 = vunpack.c.l.s4 1966171168
  %v4973 = vunpack.c.0.s8 %v4972
  %v4974 = vlaneseq
  %v4975 = vshrl.u32 %v4974, 7
  %v4976 = vsub.s32 %v4973, %v4975
  %v4977 = vrot.slane %v4967, %v4976
  %v4979 = vunpack.c.l.s4 1966171168
  %v4980 = vunpack.c.0.s8 %v4979
  %v4981 = vlaneseq
  %v4982 = vshrl.u32 %v4981, 7
  %v4983 = vsub.s32 %v4980, %v4982
  %v4984 = vrot.slane %v4968, %v4983
  %v4986 = vunpack.c.l.s4 1966171168
  %v4987 = vunpack.c.0.s8 %v4986
  %v4988 = vlaneseq
  %v4989 = vshrl.u32 %v4988, 7
  %v4990 = vsub.s32 %v4987, %v4989
  %v4991 = vrot.slane %v4969, %v4990
  %v4993 = vunpack.c.l.s4 1966171168
  %v4994 = vunpack.c.0.s8 %v4993
  %v4995 = vlaneseq
  %v4996 = vshrl.u32 %v4995, 7
  %v4997 = vsub.s32 %v4994, %v4996
  %v4998 = vrot.slane %v4970, %v4997
  %v4999 = vcombine.low %v4977, %v4991
  %v5000 = vcombine.low %v4984, %v4998
  %v5001 = vcombine.low %v4865, %v4867
  %v5002 = vcombine.low %v4869, %v4871
  %v5003 = vcombine.low %v4873, %v4875
  %v5004 = vcombine.low %v4877, %v4879
  %v5006 = vunpack.c.l.s4 1966171168
  %v5007 = vunpack.c.0.s8 %v5006
  %v5008 = vlaneseq
  %v5009 = vshrl.u32 %v5008, 7
  %v5010 = vsub.s32 %v5007, %v5009
  %v5011 = vrot.slane %v5001, %v5010
  %v5013 = vunpack.c.l.s4 1966171168
  %v5014 = vunpack.c.0.s8 %v5013
  %v5015 = vlaneseq
  %v5016 = vshrl.u32 %v5015, 7
  %v5017 = vsub.s32 %v5014, %v5016
  %v5018 = vrot.slane %v5002, %v5017
  %v5020 = vunpack.c.l.s4 1966171168
  %v5021 = vunpack.c.0.s8 %v5020
  %v5022 = vlaneseq
  %v5023 = vshrl.u32 %v5022, 7
  %v5024 = vsub.s32 %v5021, %v5023
  %v5025 = vrot.slane %v5003, %v5024
  %v5027 = vunpack.c.l.s4 1966171168
  %v5028 = vunpack.c.0.s8 %v5027
  %v5029 = vlaneseq
  %v5030 = vshrl.u32 %v5029, 7
  %v5031 = vsub.s32 %v5028, %v5030
  %v5032 = vrot.slane %v5004, %v5031
  %v5033 = vcombine.low %v5011, %v5018
  %v5034 = vcombine.high %v5011, %v5018
  %v5035 = vcombine.low %v5025, %v5032
  %v5036 = vcombine.high %v5025, %v5032
  %v5038 = vunpack.c.l.s4 1966171168
  %v5039 = vunpack.c.0.s8 %v5038
  %v5040 = vlaneseq
  %v5041 = vshrl.u32 %v5040, 7
  %v5042 = vsub.s32 %v5039, %v5041
  %v5043 = vrot.slane %v5033, %v5042
  %v5045 = vunpack.c.l.s4 1966171168
  %v5046 = vunpack.c.0.s8 %v5045
  %v5047 = vlaneseq
  %v5048 = vshrl.u32 %v5047, 7
  %v5049 = vsub.s32 %v5046, %v5048
  %v5050 = vrot.slane %v5034, %v5049
  %v5052 = vunpack.c.l.s4 1966171168
  %v5053 = vunpack.c.0.s8 %v5052
  %v5054 = vlaneseq
  %v5055 = vshrl.u32 %v5054, 7
  %v5056 = vsub.s32 %v5053, %v5055
  %v5057 = vrot.slane %v5035, %v5056
  %v5059 = vunpack.c.l.s4 1966171168
  %v5060 = vunpack.c.0.s8 %v5059
  %v5061 = vlaneseq
  %v5062 = vshrl.u32 %v5061, 7
  %v5063 = vsub.s32 %v5060, %v5062
  %v5064 = vrot.slane %v5036, %v5063
  %v5065 = vcombine.low %v5043, %v5057
  %v5066 = vcombine.low %v5050, %v5064
  %v5067 = vcombine.low %v4881, %v4883
  %v5068 = vcombine.low %v4885, %v4887
  %v5070 = vunpack.c.l.s4 1966171168
  %v5071 = vunpack.c.0.s8 %v5070
  %v5072 = vlaneseq
  %v5073 = vshrl.u32 %v5072, 7
  %v5074 = vsub.s32 %v5071, %v5073
  %v5075 = vrot.slane %v5067, %v5074
  %v5077 = vunpack.c.l.s4 1966171168
  %v5078 = vunpack.c.0.s8 %v5077
  %v5079 = vlaneseq
  %v5080 = vshrl.u32 %v5079, 7
  %v5081 = vsub.s32 %v5078, %v5080
  %v5082 = vrot.slane %v5068, %v5081
  %v5083 = vcombine.low %v5075, %v5082
  %v5084 = vcombine.high %v5075, %v5082
  %v5086 = vunpack.c.l.s4 1966171168
  %v5087 = vunpack.c.0.s8 %v5086
  %v5088 = vlaneseq
  %v5089 = vshrl.u32 %v5088, 7
  %v5090 = vsub.s32 %v5087, %v5089
  %v5091 = vrot.slane %v5083, %v5090
  %v5093 = vunpack.c.l.s4 1966171168
  %v5094 = vunpack.c.0.s8 %v5093
  %v5095 = vlaneseq
  %v5096 = vshrl.u32 %v5095, 7
  %v5097 = vsub.s32 %v5094, %v5096
  %v5098 = vrot.slane %v5084, %v5097
  %5105 = vmatprep.subr.mxu0 %v5000
  %5106 = vmatpush1.xpose.msra.mxu0 %v4999
  %5107 = vmatprep.subr.mxu0 %v5066
  %5108 = vmatpush1.xpose.msra.mxu0 %v5065
  %5109 = vmatprep.subr.mxu0 %v5098
  %5110 = vmatpush1.xpose.msra.mxu0 %v5091
  %5111 = vmatprep.subr.mxu0 0.0
  %5112 = vmatpush1.xpose.msra.mxu0 0.0
  %5113 = vmatprep.subr.mxu0 0.0
  %5114 = vmatpush1.xpose.msra.mxu0 0.0
  %5115 = vmatprep.subr.mxu0 0.0
  %5116 = vmatpush1.xpose.msra.mxu0 0.0
  %5117 = vmatprep.subr.mxu0 0.0
  %5118 = vmatpush1.xpose.msra.mxu0 0.0
  %5119 = vmatprep.subr.mxu0 0.0
  %5120 = vmatpush1.xpose.msra.mxu0 0.0
  %5121 = vmatprep.subr.mxu0 0.0
  %5122 = vmatpush1.xpose.msra.mxu0 0.0
  %5123 = vmatprep.subr.mxu0 0.0
  %5124 = vmatpush1.xpose.msra.mxu0 0.0
  %5125 = vmatprep.subr.mxu0 0.0
  %5126 = vmatpush1.xpose.msra.mxu0 0.0
  %5127 = vmatprep.subr.mxu0 0.0
  %5128 = vmatpush1.xpose.msra.mxu0 0.0
  %5129 = vmatprep.subr.mxu0 0.0
  %5130 = vmatpush1.xpose.msra.mxu0 0.0
  %5131 = vmatprep.subr.mxu0 0.0
  %5132 = vmatpush1.xpose.msra.mxu0 0.0
  %5133 = vmatprep.subr.mxu0 0.0
  %5134 = vmatpush1.xpose.msra.mxu0 0.0
  %5135 = vmatprep.subr.mxu0 0.0
  %5136 = vmatpush1.xpose.msra.mxu0 0.0
  %5137 = vmatprep.subr.mxu0 0.0
  %5138 = vmatpush1.xpose.msra.mxu0 0.0
  %5139 = vmatprep.subr.mxu0 0.0
  %5140 = vmatpush1.xpose.msra.mxu0 0.0
  %5141 = vmatprep.subr.mxu0 0.0
  %5142 = vmatpush1.xpose.msra.mxu0 0.0
  %5143 = vmatprep.subr.mxu0 0.0
  %5144 = vmatpush1.xpose.msra.mxu0 0.0
  %5145 = vmatprep.subr.mxu0 0.0
  %5146 = vmatpush1.xpose.msra.mxu0 0.0
  %5147 = vmatprep.subr.mxu0 0.0
  %5148 = vmatpush1.xpose.msra.mxu0 0.0
  %5149 = vmatprep.subr.mxu0 0.0
  %5150 = vmatpush1.xpose.msra.mxu0 0.0
  %5151 = vmatprep.subr.mxu0 0.0
  %5152 = vmatpush1.xpose.msra.mxu0 0.0
  %5153 = vmatprep.subr.mxu0 0.0
  %5154 = vmatpush1.xpose.msra.mxu0 0.0
  %5155 = vmatprep.subr.mxu0 0.0
  %5156 = vmatpush1.xpose.msra.mxu0 0.0
  %5157 = vmatprep.subr.mxu0 0.0
  %5158 = vmatpush1.xpose.msra.mxu0 0.0
  %5159 = vmatprep.subr.mxu0 0.0
  %5160 = vmatpush1.xpose.msra.mxu0 0.0
  %5161 = vmatprep.subr.mxu0 0.0
  %5162 = vmatpush1.xpose.msra.mxu0 0.0
  %5163 = vmatprep.subr.mxu0 0.0
  %5164 = vmatpush1.xpose.msra.mxu0 0.0
  %5165 = vmatprep.subr.mxu0 0.0
  %5166 = vmatpush1.xpose.msra.mxu0 0.0
  %5167 = vmatprep.subr.mxu0 0.0
  %5168 = vmatpush1.xpose.msra.mxu0 0.0
  %5169 = vmatprep.mubr.f32.mxu0 %v4912
  %5170 = vmatmul.mubr.f32.gmra.mrb[0].mxu0 %v4905
  %v5171 = vpop.f32.mrb[0].mxu0
  %v5172 = vadd.f32 0.0, %v5171
  %v5173 = vpop.f32.mrb[0].mxu0
  %5174 = vdwg.mxu0
  %v5175 = vadd.f32 %v4843, %v5172
  %s5176 = scalar_lea.vmem [#allocation3], 4
  %v5177 = vld [vmem:[%s5176] ss:$8 sm:$0x3]
  %s5178 = scalar_lea.vmem [#allocation3], 20
  %v5179 = vld [vmem:[%s5178] ss:$8 sm:$0x3]
  %s5180 = scalar_lea.vmem %s11, 4
  %v5181 = vld [vmem:[%s5180] ss:$8 sm:$0x3]
  %s5182 = scalar_lea.vmem %s11, 20
  %v5183 = vld [vmem:[%s5182] ss:$8 sm:$0x3]
  %s5184 = scalar_lea.vmem %s11, 36
  %v5185 = vld [vmem:[%s5184] ss:$8 sm:$0x3]
  %s5186 = scalar_lea.vmem %s11, 52
  %v5187 = vld [vmem:[%s5186] ss:$8 sm:$0x3]
  %s5188 = scalar_lea.vmem %s11, 68
  %v5189 = vld [vmem:[%s5188] ss:$8 sm:$0x3]
  %s5190 = scalar_lea.vmem %s11, 84
  %v5191 = vld [vmem:[%s5190] ss:$8 sm:$0x3]
  %s5192 = scalar_lea.vmem %s11, 100
  %v5193 = vld [vmem:[%s5192] ss:$8 sm:$0x3]
  %s5194 = scalar_lea.vmem %s11, 116
  %v5195 = vld [vmem:[%s5194] ss:$8 sm:$0x3]
  %s5196 = scalar_lea.vmem %s11, 132
  %v5197 = vld [vmem:[%s5196] ss:$8 sm:$0x3]
  %s5198 = scalar_lea.vmem %s11, 148
  %v5199 = vld [vmem:[%s5198] ss:$8 sm:$0x3]
  %s5200 = scalar_lea.vmem %s11, 164
  %v5201 = vld [vmem:[%s5200] ss:$8 sm:$0x3]
  %s5202 = scalar_lea.vmem %s11, 180
  %v5203 = vld [vmem:[%s5202] ss:$8 sm:$0x3]
  %s5204 = scalar_lea.vmem %s11, 196
  %v5205 = vld [vmem:[%s5204] ss:$8 sm:$0x3]
  %s5206 = scalar_lea.vmem %s11, 212
  %v5207 = vld [vmem:[%s5206] ss:$8 sm:$0x3]
  %s5208 = scalar_lea.vmem %s11, 228
  %v5209 = vld [vmem:[%s5208] ss:$8 sm:$0x3]
  %s5210 = scalar_lea.vmem %s11, 244
  %v5211 = vld [vmem:[%s5210] ss:$8 sm:$0x3]
  %s5212 = scalar_lea.vmem %s11, 260
  %v5213 = vld [vmem:[%s5212] ss:$8 sm:$0x3]
  %s5214 = scalar_lea.vmem %s11, 276
  %v5215 = vld [vmem:[%s5214] ss:$8 sm:$0x3]
  %s5216 = scalar_lea.vmem %s11, 292
  %v5217 = vld [vmem:[%s5216] ss:$8 sm:$0x3]
  %s5218 = scalar_lea.vmem %s11, 308
  %v5219 = vld [vmem:[%s5218] ss:$8 sm:$0x3]
  %v5222 = vcombine.low %v5177, %v5179
  %v5224 = vunpack.c.l.s4 1966171168
  %v5225 = vunpack.c.0.s8 %v5224
  %v5226 = vlaneseq
  %v5227 = vshrl.u32 %v5226, 7
  %v5228 = vsub.s32 %v5225, %v5227
  %v5229 = vrot.slane %v5222, %v5228
  %v5230 = vcombine.high %v5229, %v5229
  %v5232 = vunpack.c.l.s4 1966171168
  %v5233 = vunpack.c.0.s8 %v5232
  %v5234 = vlaneseq
  %v5235 = vshrl.u32 %v5234, 7
  %v5236 = vsub.s32 %v5233, %v5235
  %v5237 = vrot.slane %v5229, %v5236
  %v5239 = vunpack.c.l.s4 1966171168
  %v5240 = vunpack.c.0.s8 %v5239
  %v5241 = vlaneseq
  %v5242 = vshrl.u32 %v5241, 7
  %v5243 = vsub.s32 %v5240, %v5242
  %v5244 = vrot.slane %v5230, %v5243
  %v5267 = vcombine.low %v5181, %v5183
  %v5268 = vcombine.low %v5185, %v5187
  %v5269 = vcombine.low %v5189, %v5191
  %v5270 = vcombine.low %v5193, %v5195
  %v5272 = vunpack.c.l.s4 1966171168
  %v5273 = vunpack.c.0.s8 %v5272
  %v5274 = vlaneseq
  %v5275 = vshrl.u32 %v5274, 7
  %v5276 = vsub.s32 %v5273, %v5275
  %v5277 = vrot.slane %v5267, %v5276
  %v5279 = vunpack.c.l.s4 1966171168
  %v5280 = vunpack.c.0.s8 %v5279
  %v5281 = vlaneseq
  %v5282 = vshrl.u32 %v5281, 7
  %v5283 = vsub.s32 %v5280, %v5282
  %v5284 = vrot.slane %v5268, %v5283
  %v5286 = vunpack.c.l.s4 1966171168
  %v5287 = vunpack.c.0.s8 %v5286
  %v5288 = vlaneseq
  %v5289 = vshrl.u32 %v5288, 7
  %v5290 = vsub.s32 %v5287, %v5289
  %v5291 = vrot.slane %v5269, %v5290
  %v5293 = vunpack.c.l.s4 1966171168
  %v5294 = vunpack.c.0.s8 %v5293
  %v5295 = vlaneseq
  %v5296 = vshrl.u32 %v5295, 7
  %v5297 = vsub.s32 %v5294, %v5296
  %v5298 = vrot.slane %v5270, %v5297
  %v5299 = vcombine.low %v5277, %v5284
  %v5300 = vcombine.high %v5277, %v5284
  %v5301 = vcombine.low %v5291, %v5298
  %v5302 = vcombine.high %v5291, %v5298
  %v5304 = vunpack.c.l.s4 1966171168
  %v5305 = vunpack.c.0.s8 %v5304
  %v5306 = vlaneseq
  %v5307 = vshrl.u32 %v5306, 7
  %v5308 = vsub.s32 %v5305, %v5307
  %v5309 = vrot.slane %v5299, %v5308
  %v5311 = vunpack.c.l.s4 1966171168
  %v5312 = vunpack.c.0.s8 %v5311
  %v5313 = vlaneseq
  %v5314 = vshrl.u32 %v5313, 7
  %v5315 = vsub.s32 %v5312, %v5314
  %v5316 = vrot.slane %v5300, %v5315
  %v5318 = vunpack.c.l.s4 1966171168
  %v5319 = vunpack.c.0.s8 %v5318
  %v5320 = vlaneseq
  %v5321 = vshrl.u32 %v5320, 7
  %v5322 = vsub.s32 %v5319, %v5321
  %v5323 = vrot.slane %v5301, %v5322
  %v5325 = vunpack.c.l.s4 1966171168
  %v5326 = vunpack.c.0.s8 %v5325
  %v5327 = vlaneseq
  %v5328 = vshrl.u32 %v5327, 7
  %v5329 = vsub.s32 %v5326, %v5328
  %v5330 = vrot.slane %v5302, %v5329
  %v5331 = vcombine.low %v5309, %v5323
  %v5332 = vcombine.low %v5316, %v5330
  %v5333 = vcombine.low %v5197, %v5199
  %v5334 = vcombine.low %v5201, %v5203
  %v5335 = vcombine.low %v5205, %v5207
  %v5336 = vcombine.low %v5209, %v5211
  %v5338 = vunpack.c.l.s4 1966171168
  %v5339 = vunpack.c.0.s8 %v5338
  %v5340 = vlaneseq
  %v5341 = vshrl.u32 %v5340, 7
  %v5342 = vsub.s32 %v5339, %v5341
  %v5343 = vrot.slane %v5333, %v5342
  %v5345 = vunpack.c.l.s4 1966171168
  %v5346 = vunpack.c.0.s8 %v5345
  %v5347 = vlaneseq
  %v5348 = vshrl.u32 %v5347, 7
  %v5349 = vsub.s32 %v5346, %v5348
  %v5350 = vrot.slane %v5334, %v5349
  %v5352 = vunpack.c.l.s4 1966171168
  %v5353 = vunpack.c.0.s8 %v5352
  %v5354 = vlaneseq
  %v5355 = vshrl.u32 %v5354, 7
  %v5356 = vsub.s32 %v5353, %v5355
  %v5357 = vrot.slane %v5335, %v5356
  %v5359 = vunpack.c.l.s4 1966171168
  %v5360 = vunpack.c.0.s8 %v5359
  %v5361 = vlaneseq
  %v5362 = vshrl.u32 %v5361, 7
  %v5363 = vsub.s32 %v5360, %v5362
  %v5364 = vrot.slane %v5336, %v5363
  %v5365 = vcombine.low %v5343, %v5350
  %v5366 = vcombine.high %v5343, %v5350
  %v5367 = vcombine.low %v5357, %v5364
  %v5368 = vcombine.high %v5357, %v5364
  %v5370 = vunpack.c.l.s4 1966171168
  %v5371 = vunpack.c.0.s8 %v5370
  %v5372 = vlaneseq
  %v5373 = vshrl.u32 %v5372, 7
  %v5374 = vsub.s32 %v5371, %v5373
  %v5375 = vrot.slane %v5365, %v5374
  %v5377 = vunpack.c.l.s4 1966171168
  %v5378 = vunpack.c.0.s8 %v5377
  %v5379 = vlaneseq
  %v5380 = vshrl.u32 %v5379, 7
  %v5381 = vsub.s32 %v5378, %v5380
  %v5382 = vrot.slane %v5366, %v5381
  %v5384 = vunpack.c.l.s4 1966171168
  %v5385 = vunpack.c.0.s8 %v5384
  %v5386 = vlaneseq
  %v5387 = vshrl.u32 %v5386, 7
  %v5388 = vsub.s32 %v5385, %v5387
  %v5389 = vrot.slane %v5367, %v5388
  %v5391 = vunpack.c.l.s4 1966171168
  %v5392 = vunpack.c.0.s8 %v5391
  %v5393 = vlaneseq
  %v5394 = vshrl.u32 %v5393, 7
  %v5395 = vsub.s32 %v5392, %v5394
  %v5396 = vrot.slane %v5368, %v5395
  %v5397 = vcombine.low %v5375, %v5389
  %v5398 = vcombine.low %v5382, %v5396
  %v5399 = vcombine.low %v5213, %v5215
  %v5400 = vcombine.low %v5217, %v5219
  %v5402 = vunpack.c.l.s4 1966171168
  %v5403 = vunpack.c.0.s8 %v5402
  %v5404 = vlaneseq
  %v5405 = vshrl.u32 %v5404, 7
  %v5406 = vsub.s32 %v5403, %v5405
  %v5407 = vrot.slane %v5399, %v5406
  %v5409 = vunpack.c.l.s4 1966171168
  %v5410 = vunpack.c.0.s8 %v5409
  %v5411 = vlaneseq
  %v5412 = vshrl.u32 %v5411, 7
  %v5413 = vsub.s32 %v5410, %v5412
  %v5414 = vrot.slane %v5400, %v5413
  %v5415 = vcombine.low %v5407, %v5414
  %v5416 = vcombine.high %v5407, %v5414
  %v5418 = vunpack.c.l.s4 1966171168
  %v5419 = vunpack.c.0.s8 %v5418
  %v5420 = vlaneseq
  %v5421 = vshrl.u32 %v5420, 7
  %v5422 = vsub.s32 %v5419, %v5421
  %v5423 = vrot.slane %v5415, %v5422
  %v5425 = vunpack.c.l.s4 1966171168
  %v5426 = vunpack.c.0.s8 %v5425
  %v5427 = vlaneseq
  %v5428 = vshrl.u32 %v5427, 7
  %v5429 = vsub.s32 %v5426, %v5428
  %v5430 = vrot.slane %v5416, %v5429
  %5437 = vmatprep.subr.mxu0 %v5332
  %5438 = vmatpush1.xpose.msra.mxu0 %v5331
  %5439 = vmatprep.subr.mxu0 %v5398
  %5440 = vmatpush1.xpose.msra.mxu0 %v5397
  %5441 = vmatprep.subr.mxu0 %v5430
  %5442 = vmatpush1.xpose.msra.mxu0 %v5423
  %5443 = vmatprep.subr.mxu0 0.0
  %5444 = vmatpush1.xpose.msra.mxu0 0.0
  %5445 = vmatprep.subr.mxu0 0.0
  %5446 = vmatpush1.xpose.msra.mxu0 0.0
  %5447 = vmatprep.subr.mxu0 0.0
  %5448 = vmatpush1.xpose.msra.mxu0 0.0
  %5449 = vmatprep.subr.mxu0 0.0
  %5450 = vmatpush1.xpose.msra.mxu0 0.0
  %5451 = vmatprep.subr.mxu0 0.0
  %5452 = vmatpush1.xpose.msra.mxu0 0.0
  %5453 = vmatprep.subr.mxu0 0.0
  %5454 = vmatpush1.xpose.msra.mxu0 0.0
  %5455 = vmatprep.subr.mxu0 0.0
  %5456 = vmatpush1.xpose.msra.mxu0 0.0
  %5457 = vmatprep.subr.mxu0 0.0
  %5458 = vmatpush1.xpose.msra.mxu0 0.0
  %5459 = vmatprep.subr.mxu0 0.0
  %5460 = vmatpush1.xpose.msra.mxu0 0.0
  %5461 = vmatprep.subr.mxu0 0.0
  %5462 = vmatpush1.xpose.msra.mxu0 0.0
  %5463 = vmatprep.subr.mxu0 0.0
  %5464 = vmatpush1.xpose.msra.mxu0 0.0
  %5465 = vmatprep.subr.mxu0 0.0
  %5466 = vmatpush1.xpose.msra.mxu0 0.0
  %5467 = vmatprep.subr.mxu0 0.0
  %5468 = vmatpush1.xpose.msra.mxu0 0.0
  %5469 = vmatprep.subr.mxu0 0.0
  %5470 = vmatpush1.xpose.msra.mxu0 0.0
  %5471 = vmatprep.subr.mxu0 0.0
  %5472 = vmatpush1.xpose.msra.mxu0 0.0
  %5473 = vmatprep.subr.mxu0 0.0
  %5474 = vmatpush1.xpose.msra.mxu0 0.0
  %5475 = vmatprep.subr.mxu0 0.0
  %5476 = vmatpush1.xpose.msra.mxu0 0.0
  %5477 = vmatprep.subr.mxu0 0.0
  %5478 = vmatpush1.xpose.msra.mxu0 0.0
  %5479 = vmatprep.subr.mxu0 0.0
  %5480 = vmatpush1.xpose.msra.mxu0 0.0
  %5481 = vmatprep.subr.mxu0 0.0
  %5482 = vmatpush1.xpose.msra.mxu0 0.0
  %5483 = vmatprep.subr.mxu0 0.0
  %5484 = vmatpush1.xpose.msra.mxu0 0.0
  %5485 = vmatprep.subr.mxu0 0.0
  %5486 = vmatpush1.xpose.msra.mxu0 0.0
  %5487 = vmatprep.subr.mxu0 0.0
  %5488 = vmatpush1.xpose.msra.mxu0 0.0
  %5489 = vmatprep.subr.mxu0 0.0
  %5490 = vmatpush1.xpose.msra.mxu0 0.0
  %5491 = vmatprep.subr.mxu0 0.0
  %5492 = vmatpush1.xpose.msra.mxu0 0.0
  %5493 = vmatprep.subr.mxu0 0.0
  %5494 = vmatpush1.xpose.msra.mxu0 0.0
  %5495 = vmatprep.subr.mxu0 0.0
  %5496 = vmatpush1.xpose.msra.mxu0 0.0
  %5497 = vmatprep.subr.mxu0 0.0
  %5498 = vmatpush1.xpose.msra.mxu0 0.0
  %5499 = vmatprep.subr.mxu0 0.0
  %5500 = vmatpush1.xpose.msra.mxu0 0.0
  %5501 = vmatprep.mubr.f32.mxu0 %v5244
  %5502 = vmatmul.mubr.f32.gmra.mrb[0].mxu0 %v5237
  %v5503 = vpop.f32.mrb[0].mxu0
  %v5504 = vadd.f32 0.0, %v5503
  %v5505 = vpop.f32.mrb[0].mxu0
  %5506 = vdwg.mxu0
  %v5507 = vadd.f32 %v5175, %v5504
  %s5508 = scalar_lea.vmem [#allocation3], 5
  %v5509 = vld [vmem:[%s5508] ss:$8 sm:$0x3]
  %s5510 = scalar_lea.vmem [#allocation3], 21
  %v5511 = vld [vmem:[%s5510] ss:$8 sm:$0x3]
  %s5512 = scalar_lea.vmem %s11, 5
  %v5513 = vld [vmem:[%s5512] ss:$8 sm:$0x3]
  %s5514 = scalar_lea.vmem %s11, 21
  %v5515 = vld [vmem:[%s5514] ss:$8 sm:$0x3]
  %s5516 = scalar_lea.vmem %s11, 37
  %v5517 = vld [vmem:[%s5516] ss:$8 sm:$0x3]
  %s5518 = scalar_lea.vmem %s11, 53
  %v5519 = vld [vmem:[%s5518] ss:$8 sm:$0x3]
  %s5520 = scalar_lea.vmem %s11, 69
  %v5521 = vld [vmem:[%s5520] ss:$8 sm:$0x3]
  %s5522 = scalar_lea.vmem %s11, 85
  %v5523 = vld [vmem:[%s5522] ss:$8 sm:$0x3]
  %s5524 = scalar_lea.vmem %s11, 101
  %v5525 = vld [vmem:[%s5524] ss:$8 sm:$0x3]
  %s5526 = scalar_lea.vmem %s11, 117
  %v5527 = vld [vmem:[%s5526] ss:$8 sm:$0x3]
  %s5528 = scalar_lea.vmem %s11, 133
  %v5529 = vld [vmem:[%s5528] ss:$8 sm:$0x3]
  %s5530 = scalar_lea.vmem %s11, 149
  %v5531 = vld [vmem:[%s5530] ss:$8 sm:$0x3]
  %s5532 = scalar_lea.vmem %s11, 165
  %v5533 = vld [vmem:[%s5532] ss:$8 sm:$0x3]
  %s5534 = scalar_lea.vmem %s11, 181
  %v5535 = vld [vmem:[%s5534] ss:$8 sm:$0x3]
  %s5536 = scalar_lea.vmem %s11, 197
  %v5537 = vld [vmem:[%s5536] ss:$8 sm:$0x3]
  %s5538 = scalar_lea.vmem %s11, 213
  %v5539 = vld [vmem:[%s5538] ss:$8 sm:$0x3]
  %s5540 = scalar_lea.vmem %s11, 229
  %v5541 = vld [vmem:[%s5540] ss:$8 sm:$0x3]
  %s5542 = scalar_lea.vmem %s11, 245
  %v5543 = vld [vmem:[%s5542] ss:$8 sm:$0x3]
  %s5544 = scalar_lea.vmem %s11, 261
  %v5545 = vld [vmem:[%s5544] ss:$8 sm:$0x3]
  %s5546 = scalar_lea.vmem %s11, 277
  %v5547 = vld [vmem:[%s5546] ss:$8 sm:$0x3]
  %s5548 = scalar_lea.vmem %s11, 293
  %v5549 = vld [vmem:[%s5548] ss:$8 sm:$0x3]
  %s5550 = scalar_lea.vmem %s11, 309
  %v5551 = vld [vmem:[%s5550] ss:$8 sm:$0x3]
  %v5554 = vcombine.low %v5509, %v5511
  %v5556 = vunpack.c.l.s4 1966171168
  %v5557 = vunpack.c.0.s8 %v5556
  %v5558 = vlaneseq
  %v5559 = vshrl.u32 %v5558, 7
  %v5560 = vsub.s32 %v5557, %v5559
  %v5561 = vrot.slane %v5554, %v5560
  %v5562 = vcombine.high %v5561, %v5561
  %v5564 = vunpack.c.l.s4 1966171168
  %v5565 = vunpack.c.0.s8 %v5564
  %v5566 = vlaneseq
  %v5567 = vshrl.u32 %v5566, 7
  %v5568 = vsub.s32 %v5565, %v5567
  %v5569 = vrot.slane %v5561, %v5568
  %v5571 = vunpack.c.l.s4 1966171168
  %v5572 = vunpack.c.0.s8 %v5571
  %v5573 = vlaneseq
  %v5574 = vshrl.u32 %v5573, 7
  %v5575 = vsub.s32 %v5572, %v5574
  %v5576 = vrot.slane %v5562, %v5575
  %v5599 = vcombine.low %v5513, %v5515
  %v5600 = vcombine.low %v5517, %v5519
  %v5601 = vcombine.low %v5521, %v5523
  %v5602 = vcombine.low %v5525, %v5527
  %v5604 = vunpack.c.l.s4 1966171168
  %v5605 = vunpack.c.0.s8 %v5604
  %v5606 = vlaneseq
  %v5607 = vshrl.u32 %v5606, 7
  %v5608 = vsub.s32 %v5605, %v5607
  %v5609 = vrot.slane %v5599, %v5608
  %v5611 = vunpack.c.l.s4 1966171168
  %v5612 = vunpack.c.0.s8 %v5611
  %v5613 = vlaneseq
  %v5614 = vshrl.u32 %v5613, 7
  %v5615 = vsub.s32 %v5612, %v5614
  %v5616 = vrot.slane %v5600, %v5615
  %v5618 = vunpack.c.l.s4 1966171168
  %v5619 = vunpack.c.0.s8 %v5618
  %v5620 = vlaneseq
  %v5621 = vshrl.u32 %v5620, 7
  %v5622 = vsub.s32 %v5619, %v5621
  %v5623 = vrot.slane %v5601, %v5622
  %v5625 = vunpack.c.l.s4 1966171168
  %v5626 = vunpack.c.0.s8 %v5625
  %v5627 = vlaneseq
  %v5628 = vshrl.u32 %v5627, 7
  %v5629 = vsub.s32 %v5626, %v5628
  %v5630 = vrot.slane %v5602, %v5629
  %v5631 = vcombine.low %v5609, %v5616
  %v5632 = vcombine.high %v5609, %v5616
  %v5633 = vcombine.low %v5623, %v5630
  %v5634 = vcombine.high %v5623, %v5630
  %v5636 = vunpack.c.l.s4 1966171168
  %v5637 = vunpack.c.0.s8 %v5636
  %v5638 = vlaneseq
  %v5639 = vshrl.u32 %v5638, 7
  %v5640 = vsub.s32 %v5637, %v5639
  %v5641 = vrot.slane %v5631, %v5640
  %v5643 = vunpack.c.l.s4 1966171168
  %v5644 = vunpack.c.0.s8 %v5643
  %v5645 = vlaneseq
  %v5646 = vshrl.u32 %v5645, 7
  %v5647 = vsub.s32 %v5644, %v5646
  %v5648 = vrot.slane %v5632, %v5647
  %v5650 = vunpack.c.l.s4 1966171168
  %v5651 = vunpack.c.0.s8 %v5650
  %v5652 = vlaneseq
  %v5653 = vshrl.u32 %v5652, 7
  %v5654 = vsub.s32 %v5651, %v5653
  %v5655 = vrot.slane %v5633, %v5654
  %v5657 = vunpack.c.l.s4 1966171168
  %v5658 = vunpack.c.0.s8 %v5657
  %v5659 = vlaneseq
  %v5660 = vshrl.u32 %v5659, 7
  %v5661 = vsub.s32 %v5658, %v5660
  %v5662 = vrot.slane %v5634, %v5661
  %v5663 = vcombine.low %v5641, %v5655
  %v5664 = vcombine.low %v5648, %v5662
  %v5665 = vcombine.low %v5529, %v5531
  %v5666 = vcombine.low %v5533, %v5535
  %v5667 = vcombine.low %v5537, %v5539
  %v5668 = vcombine.low %v5541, %v5543
  %v5670 = vunpack.c.l.s4 1966171168
  %v5671 = vunpack.c.0.s8 %v5670
  %v5672 = vlaneseq
  %v5673 = vshrl.u32 %v5672, 7
  %v5674 = vsub.s32 %v5671, %v5673
  %v5675 = vrot.slane %v5665, %v5674
  %v5677 = vunpack.c.l.s4 1966171168
  %v5678 = vunpack.c.0.s8 %v5677
  %v5679 = vlaneseq
  %v5680 = vshrl.u32 %v5679, 7
  %v5681 = vsub.s32 %v5678, %v5680
  %v5682 = vrot.slane %v5666, %v5681
  %v5684 = vunpack.c.l.s4 1966171168
  %v5685 = vunpack.c.0.s8 %v5684
  %v5686 = vlaneseq
  %v5687 = vshrl.u32 %v5686, 7
  %v5688 = vsub.s32 %v5685, %v5687
  %v5689 = vrot.slane %v5667, %v5688
  %v5691 = vunpack.c.l.s4 1966171168
  %v5692 = vunpack.c.0.s8 %v5691
  %v5693 = vlaneseq
  %v5694 = vshrl.u32 %v5693, 7
  %v5695 = vsub.s32 %v5692, %v5694
  %v5696 = vrot.slane %v5668, %v5695
  %v5697 = vcombine.low %v5675, %v5682
  %v5698 = vcombine.high %v5675, %v5682
  %v5699 = vcombine.low %v5689, %v5696
  %v5700 = vcombine.high %v5689, %v5696
  %v5702 = vunpack.c.l.s4 1966171168
  %v5703 = vunpack.c.0.s8 %v5702
  %v5704 = vlaneseq
  %v5705 = vshrl.u32 %v5704, 7
  %v5706 = vsub.s32 %v5703, %v5705
  %v5707 = vrot.slane %v5697, %v5706
  %v5709 = vunpack.c.l.s4 1966171168
  %v5710 = vunpack.c.0.s8 %v5709
  %v5711 = vlaneseq
  %v5712 = vshrl.u32 %v5711, 7
  %v5713 = vsub.s32 %v5710, %v5712
  %v5714 = vrot.slane %v5698, %v5713
  %v5716 = vunpack.c.l.s4 1966171168
  %v5717 = vunpack.c.0.s8 %v5716
  %v5718 = vlaneseq
  %v5719 = vshrl.u32 %v5718, 7
  %v5720 = vsub.s32 %v5717, %v5719
  %v5721 = vrot.slane %v5699, %v5720
  %v5723 = vunpack.c.l.s4 1966171168
  %v5724 = vunpack.c.0.s8 %v5723
  %v5725 = vlaneseq
  %v5726 = vshrl.u32 %v5725, 7
  %v5727 = vsub.s32 %v5724, %v5726
  %v5728 = vrot.slane %v5700, %v5727
  %v5729 = vcombine.low %v5707, %v5721
  %v5730 = vcombine.low %v5714, %v5728
  %v5731 = vcombine.low %v5545, %v5547
  %v5732 = vcombine.low %v5549, %v5551
  %v5734 = vunpack.c.l.s4 1966171168
  %v5735 = vunpack.c.0.s8 %v5734
  %v5736 = vlaneseq
  %v5737 = vshrl.u32 %v5736, 7
  %v5738 = vsub.s32 %v5735, %v5737
  %v5739 = vrot.slane %v5731, %v5738
  %v5741 = vunpack.c.l.s4 1966171168
  %v5742 = vunpack.c.0.s8 %v5741
  %v5743 = vlaneseq
  %v5744 = vshrl.u32 %v5743, 7
  %v5745 = vsub.s32 %v5742, %v5744
  %v5746 = vrot.slane %v5732, %v5745
  %v5747 = vcombine.low %v5739, %v5746
  %v5748 = vcombine.high %v5739, %v5746
  %v5750 = vunpack.c.l.s4 1966171168
  %v5751 = vunpack.c.0.s8 %v5750
  %v5752 = vlaneseq
  %v5753 = vshrl.u32 %v5752, 7
  %v5754 = vsub.s32 %v5751, %v5753
  %v5755 = vrot.slane %v5747, %v5754
  %v5757 = vunpack.c.l.s4 1966171168
  %v5758 = vunpack.c.0.s8 %v5757
  %v5759 = vlaneseq
  %v5760 = vshrl.u32 %v5759, 7
  %v5761 = vsub.s32 %v5758, %v5760
  %v5762 = vrot.slane %v5748, %v5761
  %5769 = vmatprep.subr.mxu0 %v5664
  %5770 = vmatpush1.xpose.msra.mxu0 %v5663
  %5771 = vmatprep.subr.mxu0 %v5730
  %5772 = vmatpush1.xpose.msra.mxu0 %v5729
  %5773 = vmatprep.subr.mxu0 %v5762
  %5774 = vmatpush1.xpose.msra.mxu0 %v5755
  %5775 = vmatprep.subr.mxu0 0.0
  %5776 = vmatpush1.xpose.msra.mxu0 0.0
  %5777 = vmatprep.subr.mxu0 0.0
  %5778 = vmatpush1.xpose.msra.mxu0 0.0
  %5779 = vmatprep.subr.mxu0 0.0
  %5780 = vmatpush1.xpose.msra.mxu0 0.0
  %5781 = vmatprep.subr.mxu0 0.0
  %5782 = vmatpush1.xpose.msra.mxu0 0.0
  %5783 = vmatprep.subr.mxu0 0.0
  %5784 = vmatpush1.xpose.msra.mxu0 0.0
  %5785 = vmatprep.subr.mxu0 0.0
  %5786 = vmatpush1.xpose.msra.mxu0 0.0
  %5787 = vmatprep.subr.mxu0 0.0
  %5788 = vmatpush1.xpose.msra.mxu0 0.0
  %5789 = vmatprep.subr.mxu0 0.0
  %5790 = vmatpush1.xpose.msra.mxu0 0.0
  %5791 = vmatprep.subr.mxu0 0.0
  %5792 = vmatpush1.xpose.msra.mxu0 0.0
  %5793 = vmatprep.subr.mxu0 0.0
  %5794 = vmatpush1.xpose.msra.mxu0 0.0
  %5795 = vmatprep.subr.mxu0 0.0
  %5796 = vmatpush1.xpose.msra.mxu0 0.0
  %5797 = vmatprep.subr.mxu0 0.0
  %5798 = vmatpush1.xpose.msra.mxu0 0.0
  %5799 = vmatprep.subr.mxu0 0.0
  %5800 = vmatpush1.xpose.msra.mxu0 0.0
  %5801 = vmatprep.subr.mxu0 0.0
  %5802 = vmatpush1.xpose.msra.mxu0 0.0
  %5803 = vmatprep.subr.mxu0 0.0
  %5804 = vmatpush1.xpose.msra.mxu0 0.0
  %5805 = vmatprep.subr.mxu0 0.0
  %5806 = vmatpush1.xpose.msra.mxu0 0.0
  %5807 = vmatprep.subr.mxu0 0.0
  %5808 = vmatpush1.xpose.msra.mxu0 0.0
  %5809 = vmatprep.subr.mxu0 0.0
  %5810 = vmatpush1.xpose.msra.mxu0 0.0
  %5811 = vmatprep.subr.mxu0 0.0
  %5812 = vmatpush1.xpose.msra.mxu0 0.0
  %5813 = vmatprep.subr.mxu0 0.0
  %5814 = vmatpush1.xpose.msra.mxu0 0.0
  %5815 = vmatprep.subr.mxu0 0.0
  %5816 = vmatpush1.xpose.msra.mxu0 0.0
  %5817 = vmatprep.subr.mxu0 0.0
  %5818 = vmatpush1.xpose.msra.mxu0 0.0
  %5819 = vmatprep.subr.mxu0 0.0
  %5820 = vmatpush1.xpose.msra.mxu0 0.0
  %5821 = vmatprep.subr.mxu0 0.0
  %5822 = vmatpush1.xpose.msra.mxu0 0.0
  %5823 = vmatprep.subr.mxu0 0.0
  %5824 = vmatpush1.xpose.msra.mxu0 0.0
  %5825 = vmatprep.subr.mxu0 0.0
  %5826 = vmatpush1.xpose.msra.mxu0 0.0
  %5827 = vmatprep.subr.mxu0 0.0
  %5828 = vmatpush1.xpose.msra.mxu0 0.0
  %5829 = vmatprep.subr.mxu0 0.0
  %5830 = vmatpush1.xpose.msra.mxu0 0.0
  %5831 = vmatprep.subr.mxu0 0.0
  %5832 = vmatpush1.xpose.msra.mxu0 0.0
  %5833 = vmatprep.mubr.f32.mxu0 %v5576
  %5834 = vmatmul.mubr.f32.gmra.mrb[0].mxu0 %v5569
  %v5835 = vpop.f32.mrb[0].mxu0
  %v5836 = vadd.f32 0.0, %v5835
  %v5837 = vpop.f32.mrb[0].mxu0
  %5838 = vdwg.mxu0
  %v5839 = vadd.f32 %v5507, %v5836
  %s5840 = scalar_lea.vmem [#allocation3], 6
  %v5841 = vld [vmem:[%s5840] ss:$8 sm:$0x3]
  %s5842 = scalar_lea.vmem [#allocation3], 22
  %v5843 = vld [vmem:[%s5842] ss:$8 sm:$0x3]
  %s5844 = scalar_lea.vmem %s11, 6
  %v5845 = vld [vmem:[%s5844] ss:$8 sm:$0x3]
  %s5846 = scalar_lea.vmem %s11, 22
  %v5847 = vld [vmem:[%s5846] ss:$8 sm:$0x3]
  %s5848 = scalar_lea.vmem %s11, 38
  %v5849 = vld [vmem:[%s5848] ss:$8 sm:$0x3]
  %s5850 = scalar_lea.vmem %s11, 54
  %v5851 = vld [vmem:[%s5850] ss:$8 sm:$0x3]
  %s5852 = scalar_lea.vmem %s11, 70
  %v5853 = vld [vmem:[%s5852] ss:$8 sm:$0x3]
  %s5854 = scalar_lea.vmem %s11, 86
  %v5855 = vld [vmem:[%s5854] ss:$8 sm:$0x3]
  %s5856 = scalar_lea.vmem %s11, 102
  %v5857 = vld [vmem:[%s5856] ss:$8 sm:$0x3]
  %s5858 = scalar_lea.vmem %s11, 118
  %v5859 = vld [vmem:[%s5858] ss:$8 sm:$0x3]
  %s5860 = scalar_lea.vmem %s11, 134
  %v5861 = vld [vmem:[%s5860] ss:$8 sm:$0x3]
  %s5862 = scalar_lea.vmem %s11, 150
  %v5863 = vld [vmem:[%s5862] ss:$8 sm:$0x3]
  %s5864 = scalar_lea.vmem %s11, 166
  %v5865 = vld [vmem:[%s5864] ss:$8 sm:$0x3]
  %s5866 = scalar_lea.vmem %s11, 182
  %v5867 = vld [vmem:[%s5866] ss:$8 sm:$0x3]
  %s5868 = scalar_lea.vmem %s11, 198
  %v5869 = vld [vmem:[%s5868] ss:$8 sm:$0x3]
  %s5870 = scalar_lea.vmem %s11, 214
  %v5871 = vld [vmem:[%s5870] ss:$8 sm:$0x3]
  %s5872 = scalar_lea.vmem %s11, 230
  %v5873 = vld [vmem:[%s5872] ss:$8 sm:$0x3]
  %s5874 = scalar_lea.vmem %s11, 246
  %v5875 = vld [vmem:[%s5874] ss:$8 sm:$0x3]
  %s5876 = scalar_lea.vmem %s11, 262
  %v5877 = vld [vmem:[%s5876] ss:$8 sm:$0x3]
  %s5878 = scalar_lea.vmem %s11, 278
  %v5879 = vld [vmem:[%s5878] ss:$8 sm:$0x3]
  %s5880 = scalar_lea.vmem %s11, 294
  %v5881 = vld [vmem:[%s5880] ss:$8 sm:$0x3]
  %s5882 = scalar_lea.vmem %s11, 310
  %v5883 = vld [vmem:[%s5882] ss:$8 sm:$0x3]
  %v5886 = vcombine.low %v5841, %v5843
  %v5888 = vunpack.c.l.s4 1966171168
  %v5889 = vunpack.c.0.s8 %v5888
  %v5890 = vlaneseq
  %v5891 = vshrl.u32 %v5890, 7
  %v5892 = vsub.s32 %v5889, %v5891
  %v5893 = vrot.slane %v5886, %v5892
  %v5894 = vcombine.high %v5893, %v5893
  %v5896 = vunpack.c.l.s4 1966171168
  %v5897 = vunpack.c.0.s8 %v5896
  %v5898 = vlaneseq
  %v5899 = vshrl.u32 %v5898, 7
  %v5900 = vsub.s32 %v5897, %v5899
  %v5901 = vrot.slane %v5893, %v5900
  %v5903 = vunpack.c.l.s4 1966171168
  %v5904 = vunpack.c.0.s8 %v5903
  %v5905 = vlaneseq
  %v5906 = vshrl.u32 %v5905, 7
  %v5907 = vsub.s32 %v5904, %v5906
  %v5908 = vrot.slane %v5894, %v5907
  %v5931 = vcombine.low %v5845, %v5847
  %v5932 = vcombine.low %v5849, %v5851
  %v5933 = vcombine.low %v5853, %v5855
  %v5934 = vcombine.low %v5857, %v5859
  %v5936 = vunpack.c.l.s4 1966171168
  %v5937 = vunpack.c.0.s8 %v5936
  %v5938 = vlaneseq
  %v5939 = vshrl.u32 %v5938, 7
  %v5940 = vsub.s32 %v5937, %v5939
  %v5941 = vrot.slane %v5931, %v5940
  %v5943 = vunpack.c.l.s4 1966171168
  %v5944 = vunpack.c.0.s8 %v5943
  %v5945 = vlaneseq
  %v5946 = vshrl.u32 %v5945, 7
  %v5947 = vsub.s32 %v5944, %v5946
  %v5948 = vrot.slane %v5932, %v5947
  %v5950 = vunpack.c.l.s4 1966171168
  %v5951 = vunpack.c.0.s8 %v5950
  %v5952 = vlaneseq
  %v5953 = vshrl.u32 %v5952, 7
  %v5954 = vsub.s32 %v5951, %v5953
  %v5955 = vrot.slane %v5933, %v5954
  %v5957 = vunpack.c.l.s4 1966171168
  %v5958 = vunpack.c.0.s8 %v5957
  %v5959 = vlaneseq
  %v5960 = vshrl.u32 %v5959, 7
  %v5961 = vsub.s32 %v5958, %v5960
  %v5962 = vrot.slane %v5934, %v5961
  %v5963 = vcombine.low %v5941, %v5948
  %v5964 = vcombine.high %v5941, %v5948
  %v5965 = vcombine.low %v5955, %v5962
  %v5966 = vcombine.high %v5955, %v5962
  %v5968 = vunpack.c.l.s4 1966171168
  %v5969 = vunpack.c.0.s8 %v5968
  %v5970 = vlaneseq
  %v5971 = vshrl.u32 %v5970, 7
  %v5972 = vsub.s32 %v5969, %v5971
  %v5973 = vrot.slane %v5963, %v5972
  %v5975 = vunpack.c.l.s4 1966171168
  %v5976 = vunpack.c.0.s8 %v5975
  %v5977 = vlaneseq
  %v5978 = vshrl.u32 %v5977, 7
  %v5979 = vsub.s32 %v5976, %v5978
  %v5980 = vrot.slane %v5964, %v5979
  %v5982 = vunpack.c.l.s4 1966171168
  %v5983 = vunpack.c.0.s8 %v5982
  %v5984 = vlaneseq
  %v5985 = vshrl.u32 %v5984, 7
  %v5986 = vsub.s32 %v5983, %v5985
  %v5987 = vrot.slane %v5965, %v5986
  %v5989 = vunpack.c.l.s4 1966171168
  %v5990 = vunpack.c.0.s8 %v5989
  %v5991 = vlaneseq
  %v5992 = vshrl.u32 %v5991, 7
  %v5993 = vsub.s32 %v5990, %v5992
  %v5994 = vrot.slane %v5966, %v5993
  %v5995 = vcombine.low %v5973, %v5987
  %v5996 = vcombine.low %v5980, %v5994
  %v5997 = vcombine.low %v5861, %v5863
  %v5998 = vcombine.low %v5865, %v5867
  %v5999 = vcombine.low %v5869, %v5871
  %v6000 = vcombine.low %v5873, %v5875
  %v6002 = vunpack.c.l.s4 1966171168
  %v6003 = vunpack.c.0.s8 %v6002
  %v6004 = vlaneseq
  %v6005 = vshrl.u32 %v6004, 7
  %v6006 = vsub.s32 %v6003, %v6005
  %v6007 = vrot.slane %v5997, %v6006
  %v6009 = vunpack.c.l.s4 1966171168
  %v6010 = vunpack.c.0.s8 %v6009
  %v6011 = vlaneseq
  %v6012 = vshrl.u32 %v6011, 7
  %v6013 = vsub.s32 %v6010, %v6012
  %v6014 = vrot.slane %v5998, %v6013
  %v6016 = vunpack.c.l.s4 1966171168
  %v6017 = vunpack.c.0.s8 %v6016
  %v6018 = vlaneseq
  %v6019 = vshrl.u32 %v6018, 7
  %v6020 = vsub.s32 %v6017, %v6019
  %v6021 = vrot.slane %v5999, %v6020
  %v6023 = vunpack.c.l.s4 1966171168
  %v6024 = vunpack.c.0.s8 %v6023
  %v6025 = vlaneseq
  %v6026 = vshrl.u32 %v6025, 7
  %v6027 = vsub.s32 %v6024, %v6026
  %v6028 = vrot.slane %v6000, %v6027
  %v6029 = vcombine.low %v6007, %v6014
  %v6030 = vcombine.high %v6007, %v6014
  %v6031 = vcombine.low %v6021, %v6028
  %v6032 = vcombine.high %v6021, %v6028
  %v6034 = vunpack.c.l.s4 1966171168
  %v6035 = vunpack.c.0.s8 %v6034
  %v6036 = vlaneseq
  %v6037 = vshrl.u32 %v6036, 7
  %v6038 = vsub.s32 %v6035, %v6037
  %v6039 = vrot.slane %v6029, %v6038
  %v6041 = vunpack.c.l.s4 1966171168
  %v6042 = vunpack.c.0.s8 %v6041
  %v6043 = vlaneseq
  %v6044 = vshrl.u32 %v6043, 7
  %v6045 = vsub.s32 %v6042, %v6044
  %v6046 = vrot.slane %v6030, %v6045
  %v6048 = vunpack.c.l.s4 1966171168
  %v6049 = vunpack.c.0.s8 %v6048
  %v6050 = vlaneseq
  %v6051 = vshrl.u32 %v6050, 7
  %v6052 = vsub.s32 %v6049, %v6051
  %v6053 = vrot.slane %v6031, %v6052
  %v6055 = vunpack.c.l.s4 1966171168
  %v6056 = vunpack.c.0.s8 %v6055
  %v6057 = vlaneseq
  %v6058 = vshrl.u32 %v6057, 7
  %v6059 = vsub.s32 %v6056, %v6058
  %v6060 = vrot.slane %v6032, %v6059
  %v6061 = vcombine.low %v6039, %v6053
  %v6062 = vcombine.low %v6046, %v6060
  %v6063 = vcombine.low %v5877, %v5879
  %v6064 = vcombine.low %v5881, %v5883
  %v6066 = vunpack.c.l.s4 1966171168
  %v6067 = vunpack.c.0.s8 %v6066
  %v6068 = vlaneseq
  %v6069 = vshrl.u32 %v6068, 7
  %v6070 = vsub.s32 %v6067, %v6069
  %v6071 = vrot.slane %v6063, %v6070
  %v6073 = vunpack.c.l.s4 1966171168
  %v6074 = vunpack.c.0.s8 %v6073
  %v6075 = vlaneseq
  %v6076 = vshrl.u32 %v6075, 7
  %v6077 = vsub.s32 %v6074, %v6076
  %v6078 = vrot.slane %v6064, %v6077
  %v6079 = vcombine.low %v6071, %v6078
  %v6080 = vcombine.high %v6071, %v6078
  %v6082 = vunpack.c.l.s4 1966171168
  %v6083 = vunpack.c.0.s8 %v6082
  %v6084 = vlaneseq
  %v6085 = vshrl.u32 %v6084, 7
  %v6086 = vsub.s32 %v6083, %v6085
  %v6087 = vrot.slane %v6079, %v6086
  %v6089 = vunpack.c.l.s4 1966171168
  %v6090 = vunpack.c.0.s8 %v6089
  %v6091 = vlaneseq
  %v6092 = vshrl.u32 %v6091, 7
  %v6093 = vsub.s32 %v6090, %v6092
  %v6094 = vrot.slane %v6080, %v6093
  %6101 = vmatprep.subr.mxu0 %v5996
  %6102 = vmatpush1.xpose.msra.mxu0 %v5995
  %6103 = vmatprep.subr.mxu0 %v6062
  %6104 = vmatpush1.xpose.msra.mxu0 %v6061
  %6105 = vmatprep.subr.mxu0 %v6094
  %6106 = vmatpush1.xpose.msra.mxu0 %v6087
  %6107 = vmatprep.subr.mxu0 0.0
  %6108 = vmatpush1.xpose.msra.mxu0 0.0
  %6109 = vmatprep.subr.mxu0 0.0
  %6110 = vmatpush1.xpose.msra.mxu0 0.0
  %6111 = vmatprep.subr.mxu0 0.0
  %6112 = vmatpush1.xpose.msra.mxu0 0.0
  %6113 = vmatprep.subr.mxu0 0.0
  %6114 = vmatpush1.xpose.msra.mxu0 0.0
  %6115 = vmatprep.subr.mxu0 0.0
  %6116 = vmatpush1.xpose.msra.mxu0 0.0
  %6117 = vmatprep.subr.mxu0 0.0
  %6118 = vmatpush1.xpose.msra.mxu0 0.0
  %6119 = vmatprep.subr.mxu0 0.0
  %6120 = vmatpush1.xpose.msra.mxu0 0.0
  %6121 = vmatprep.subr.mxu0 0.0
  %6122 = vmatpush1.xpose.msra.mxu0 0.0
  %6123 = vmatprep.subr.mxu0 0.0
  %6124 = vmatpush1.xpose.msra.mxu0 0.0
  %6125 = vmatprep.subr.mxu0 0.0
  %6126 = vmatpush1.xpose.msra.mxu0 0.0
  %6127 = vmatprep.subr.mxu0 0.0
  %6128 = vmatpush1.xpose.msra.mxu0 0.0
  %6129 = vmatprep.subr.mxu0 0.0
  %6130 = vmatpush1.xpose.msra.mxu0 0.0
  %6131 = vmatprep.subr.mxu0 0.0
  %6132 = vmatpush1.xpose.msra.mxu0 0.0
  %6133 = vmatprep.subr.mxu0 0.0
  %6134 = vmatpush1.xpose.msra.mxu0 0.0
  %6135 = vmatprep.subr.mxu0 0.0
  %6136 = vmatpush1.xpose.msra.mxu0 0.0
  %6137 = vmatprep.subr.mxu0 0.0
  %6138 = vmatpush1.xpose.msra.mxu0 0.0
  %6139 = vmatprep.subr.mxu0 0.0
  %6140 = vmatpush1.xpose.msra.mxu0 0.0
  %6141 = vmatprep.subr.mxu0 0.0
  %6142 = vmatpush1.xpose.msra.mxu0 0.0
  %6143 = vmatprep.subr.mxu0 0.0
  %6144 = vmatpush1.xpose.msra.mxu0 0.0
  %6145 = vmatprep.subr.mxu0 0.0
  %6146 = vmatpush1.xpose.msra.mxu0 0.0
  %6147 = vmatprep.subr.mxu0 0.0
  %6148 = vmatpush1.xpose.msra.mxu0 0.0
  %6149 = vmatprep.subr.mxu0 0.0
  %6150 = vmatpush1.xpose.msra.mxu0 0.0
  %6151 = vmatprep.subr.mxu0 0.0
  %6152 = vmatpush1.xpose.msra.mxu0 0.0
  %6153 = vmatprep.subr.mxu0 0.0
  %6154 = vmatpush1.xpose.msra.mxu0 0.0
  %6155 = vmatprep.subr.mxu0 0.0
  %6156 = vmatpush1.xpose.msra.mxu0 0.0
  %6157 = vmatprep.subr.mxu0 0.0
  %6158 = vmatpush1.xpose.msra.mxu0 0.0
  %6159 = vmatprep.subr.mxu0 0.0
  %6160 = vmatpush1.xpose.msra.mxu0 0.0
  %6161 = vmatprep.subr.mxu0 0.0
  %6162 = vmatpush1.xpose.msra.mxu0 0.0
  %6163 = vmatprep.subr.mxu0 0.0
  %6164 = vmatpush1.xpose.msra.mxu0 0.0
  %6165 = vmatprep.mubr.f32.mxu0 %v5908
  %6166 = vmatmul.mubr.f32.gmra.mrb[0].mxu0 %v5901
  %v6167 = vpop.f32.mrb[0].mxu0
  %v6168 = vadd.f32 0.0, %v6167
  %v6169 = vpop.f32.mrb[0].mxu0
  %6170 = vdwg.mxu0
  %v6171 = vadd.f32 %v5839, %v6168
  %s6172 = scalar_lea.vmem [#allocation3], 7
  %v6173 = vld [vmem:[%s6172] ss:$8 sm:$0x3]
  %s6174 = scalar_lea.vmem [#allocation3], 23
  %v6175 = vld [vmem:[%s6174] ss:$8 sm:$0x3]
  %s6176 = scalar_lea.vmem %s11, 7
  %v6177 = vld [vmem:[%s6176] ss:$8 sm:$0x3]
  %s6178 = scalar_lea.vmem %s11, 23
  %v6179 = vld [vmem:[%s6178] ss:$8 sm:$0x3]
  %s6180 = scalar_lea.vmem %s11, 39
  %v6181 = vld [vmem:[%s6180] ss:$8 sm:$0x3]
  %s6182 = scalar_lea.vmem %s11, 55
  %v6183 = vld [vmem:[%s6182] ss:$8 sm:$0x3]
  %s6184 = scalar_lea.vmem %s11, 71
  %v6185 = vld [vmem:[%s6184] ss:$8 sm:$0x3]
  %s6186 = scalar_lea.vmem %s11, 87
  %v6187 = vld [vmem:[%s6186] ss:$8 sm:$0x3]
  %s6188 = scalar_lea.vmem %s11, 103
  %v6189 = vld [vmem:[%s6188] ss:$8 sm:$0x3]
  %s6190 = scalar_lea.vmem %s11, 119
  %v6191 = vld [vmem:[%s6190] ss:$8 sm:$0x3]
  %s6192 = scalar_lea.vmem %s11, 135
  %v6193 = vld [vmem:[%s6192] ss:$8 sm:$0x3]
  %s6194 = scalar_lea.vmem %s11, 151
  %v6195 = vld [vmem:[%s6194] ss:$8 sm:$0x3]
  %s6196 = scalar_lea.vmem %s11, 167
  %v6197 = vld [vmem:[%s6196] ss:$8 sm:$0x3]
  %s6198 = scalar_lea.vmem %s11, 183
  %v6199 = vld [vmem:[%s6198] ss:$8 sm:$0x3]
  %s6200 = scalar_lea.vmem %s11, 199
  %v6201 = vld [vmem:[%s6200] ss:$8 sm:$0x3]
  %s6202 = scalar_lea.vmem %s11, 215
  %v6203 = vld [vmem:[%s6202] ss:$8 sm:$0x3]
  %s6204 = scalar_lea.vmem %s11, 231
  %v6205 = vld [vmem:[%s6204] ss:$8 sm:$0x3]
  %s6206 = scalar_lea.vmem %s11, 247
  %v6207 = vld [vmem:[%s6206] ss:$8 sm:$0x3]
  %s6208 = scalar_lea.vmem %s11, 263
  %v6209 = vld [vmem:[%s6208] ss:$8 sm:$0x3]
  %s6210 = scalar_lea.vmem %s11, 279
  %v6211 = vld [vmem:[%s6210] ss:$8 sm:$0x3]
  %s6212 = scalar_lea.vmem %s11, 295
  %v6213 = vld [vmem:[%s6212] ss:$8 sm:$0x3]
  %s6214 = scalar_lea.vmem %s11, 311
  %v6215 = vld [vmem:[%s6214] ss:$8 sm:$0x3]
  %v6218 = vcombine.low %v6173, %v6175
  %v6220 = vunpack.c.l.s4 1966171168
  %v6221 = vunpack.c.0.s8 %v6220
  %v6222 = vlaneseq
  %v6223 = vshrl.u32 %v6222, 7
  %v6224 = vsub.s32 %v6221, %v6223
  %v6225 = vrot.slane %v6218, %v6224
  %v6226 = vcombine.high %v6225, %v6225
  %v6228 = vunpack.c.l.s4 1966171168
  %v6229 = vunpack.c.0.s8 %v6228
  %v6230 = vlaneseq
  %v6231 = vshrl.u32 %v6230, 7
  %v6232 = vsub.s32 %v6229, %v6231
  %v6233 = vrot.slane %v6225, %v6232
  %v6235 = vunpack.c.l.s4 1966171168
  %v6236 = vunpack.c.0.s8 %v6235
  %v6237 = vlaneseq
  %v6238 = vshrl.u32 %v6237, 7
  %v6239 = vsub.s32 %v6236, %v6238
  %v6240 = vrot.slane %v6226, %v6239
  %v6263 = vcombine.low %v6177, %v6179
  %v6264 = vcombine.low %v6181, %v6183
  %v6265 = vcombine.low %v6185, %v6187
  %v6266 = vcombine.low %v6189, %v6191
  %v6268 = vunpack.c.l.s4 1966171168
  %v6269 = vunpack.c.0.s8 %v6268
  %v6270 = vlaneseq
  %v6271 = vshrl.u32 %v6270, 7
  %v6272 = vsub.s32 %v6269, %v6271
  %v6273 = vrot.slane %v6263, %v6272
  %v6275 = vunpack.c.l.s4 1966171168
  %v6276 = vunpack.c.0.s8 %v6275
  %v6277 = vlaneseq
  %v6278 = vshrl.u32 %v6277, 7
  %v6279 = vsub.s32 %v6276, %v6278
  %v6280 = vrot.slane %v6264, %v6279
  %v6282 = vunpack.c.l.s4 1966171168
  %v6283 = vunpack.c.0.s8 %v6282
  %v6284 = vlaneseq
  %v6285 = vshrl.u32 %v6284, 7
  %v6286 = vsub.s32 %v6283, %v6285
  %v6287 = vrot.slane %v6265, %v6286
  %v6289 = vunpack.c.l.s4 1966171168
  %v6290 = vunpack.c.0.s8 %v6289
  %v6291 = vlaneseq
  %v6292 = vshrl.u32 %v6291, 7
  %v6293 = vsub.s32 %v6290, %v6292
  %v6294 = vrot.slane %v6266, %v6293
  %v6295 = vcombine.low %v6273, %v6280
  %v6296 = vcombine.high %v6273, %v6280
  %v6297 = vcombine.low %v6287, %v6294
  %v6298 = vcombine.high %v6287, %v6294
  %v6300 = vunpack.c.l.s4 1966171168
  %v6301 = vunpack.c.0.s8 %v6300
  %v6302 = vlaneseq
  %v6303 = vshrl.u32 %v6302, 7
  %v6304 = vsub.s32 %v6301, %v6303
  %v6305 = vrot.slane %v6295, %v6304
  %v6307 = vunpack.c.l.s4 1966171168
  %v6308 = vunpack.c.0.s8 %v6307
  %v6309 = vlaneseq
  %v6310 = vshrl.u32 %v6309, 7
  %v6311 = vsub.s32 %v6308, %v6310
  %v6312 = vrot.slane %v6296, %v6311
  %v6314 = vunpack.c.l.s4 1966171168
  %v6315 = vunpack.c.0.s8 %v6314
  %v6316 = vlaneseq
  %v6317 = vshrl.u32 %v6316, 7
  %v6318 = vsub.s32 %v6315, %v6317
  %v6319 = vrot.slane %v6297, %v6318
  %v6321 = vunpack.c.l.s4 1966171168
  %v6322 = vunpack.c.0.s8 %v6321
  %v6323 = vlaneseq
  %v6324 = vshrl.u32 %v6323, 7
  %v6325 = vsub.s32 %v6322, %v6324
  %v6326 = vrot.slane %v6298, %v6325
  %v6327 = vcombine.low %v6305, %v6319
  %v6328 = vcombine.low %v6312, %v6326
  %v6329 = vcombine.low %v6193, %v6195
  %v6330 = vcombine.low %v6197, %v6199
  %v6331 = vcombine.low %v6201, %v6203
  %v6332 = vcombine.low %v6205, %v6207
  %v6334 = vunpack.c.l.s4 1966171168
  %v6335 = vunpack.c.0.s8 %v6334
  %v6336 = vlaneseq
  %v6337 = vshrl.u32 %v6336, 7
  %v6338 = vsub.s32 %v6335, %v6337
  %v6339 = vrot.slane %v6329, %v6338
  %v6341 = vunpack.c.l.s4 1966171168
  %v6342 = vunpack.c.0.s8 %v6341
  %v6343 = vlaneseq
  %v6344 = vshrl.u32 %v6343, 7
  %v6345 = vsub.s32 %v6342, %v6344
  %v6346 = vrot.slane %v6330, %v6345
  %v6348 = vunpack.c.l.s4 1966171168
  %v6349 = vunpack.c.0.s8 %v6348
  %v6350 = vlaneseq
  %v6351 = vshrl.u32 %v6350, 7
  %v6352 = vsub.s32 %v6349, %v6351
  %v6353 = vrot.slane %v6331, %v6352
  %v6355 = vunpack.c.l.s4 1966171168
  %v6356 = vunpack.c.0.s8 %v6355
  %v6357 = vlaneseq
  %v6358 = vshrl.u32 %v6357, 7
  %v6359 = vsub.s32 %v6356, %v6358
  %v6360 = vrot.slane %v6332, %v6359
  %v6361 = vcombine.low %v6339, %v6346
  %v6362 = vcombine.high %v6339, %v6346
  %v6363 = vcombine.low %v6353, %v6360
  %v6364 = vcombine.high %v6353, %v6360
  %v6366 = vunpack.c.l.s4 1966171168
  %v6367 = vunpack.c.0.s8 %v6366
  %v6368 = vlaneseq
  %v6369 = vshrl.u32 %v6368, 7
  %v6370 = vsub.s32 %v6367, %v6369
  %v6371 = vrot.slane %v6361, %v6370
  %v6373 = vunpack.c.l.s4 1966171168
  %v6374 = vunpack.c.0.s8 %v6373
  %v6375 = vlaneseq
  %v6376 = vshrl.u32 %v6375, 7
  %v6377 = vsub.s32 %v6374, %v6376
  %v6378 = vrot.slane %v6362, %v6377
  %v6380 = vunpack.c.l.s4 1966171168
  %v6381 = vunpack.c.0.s8 %v6380
  %v6382 = vlaneseq
  %v6383 = vshrl.u32 %v6382, 7
  %v6384 = vsub.s32 %v6381, %v6383
  %v6385 = vrot.slane %v6363, %v6384
  %v6387 = vunpack.c.l.s4 1966171168
  %v6388 = vunpack.c.0.s8 %v6387
  %v6389 = vlaneseq
  %v6390 = vshrl.u32 %v6389, 7
  %v6391 = vsub.s32 %v6388, %v6390
  %v6392 = vrot.slane %v6364, %v6391
  %v6393 = vcombine.low %v6371, %v6385
  %v6394 = vcombine.low %v6378, %v6392
  %v6395 = vcombine.low %v6209, %v6211
  %v6396 = vcombine.low %v6213, %v6215
  %v6398 = vunpack.c.l.s4 1966171168
  %v6399 = vunpack.c.0.s8 %v6398
  %v6400 = vlaneseq
  %v6401 = vshrl.u32 %v6400, 7
  %v6402 = vsub.s32 %v6399, %v6401
  %v6403 = vrot.slane %v6395, %v6402
  %v6405 = vunpack.c.l.s4 1966171168
  %v6406 = vunpack.c.0.s8 %v6405
  %v6407 = vlaneseq
  %v6408 = vshrl.u32 %v6407, 7
  %v6409 = vsub.s32 %v6406, %v6408
  %v6410 = vrot.slane %v6396, %v6409
  %v6411 = vcombine.low %v6403, %v6410
  %v6412 = vcombine.high %v6403, %v6410
  %v6414 = vunpack.c.l.s4 1966171168
  %v6415 = vunpack.c.0.s8 %v6414
  %v6416 = vlaneseq
  %v6417 = vshrl.u32 %v6416, 7
  %v6418 = vsub.s32 %v6415, %v6417
  %v6419 = vrot.slane %v6411, %v6418
  %v6421 = vunpack.c.l.s4 1966171168
  %v6422 = vunpack.c.0.s8 %v6421
  %v6423 = vlaneseq
  %v6424 = vshrl.u32 %v6423, 7
  %v6425 = vsub.s32 %v6422, %v6424
  %v6426 = vrot.slane %v6412, %v6425
  %6433 = vmatprep.subr.mxu0 %v6328
  %6434 = vmatpush1.xpose.msra.mxu0 %v6327
  %6435 = vmatprep.subr.mxu0 %v6394
  %6436 = vmatpush1.xpose.msra.mxu0 %v6393
  %6437 = vmatprep.subr.mxu0 %v6426
  %6438 = vmatpush1.xpose.msra.mxu0 %v6419
  %6439 = vmatprep.subr.mxu0 0.0
  %6440 = vmatpush1.xpose.msra.mxu0 0.0
  %6441 = vmatprep.subr.mxu0 0.0
  %6442 = vmatpush1.xpose.msra.mxu0 0.0
  %6443 = vmatprep.subr.mxu0 0.0
  %6444 = vmatpush1.xpose.msra.mxu0 0.0
  %6445 = vmatprep.subr.mxu0 0.0
  %6446 = vmatpush1.xpose.msra.mxu0 0.0
  %6447 = vmatprep.subr.mxu0 0.0
  %6448 = vmatpush1.xpose.msra.mxu0 0.0
  %6449 = vmatprep.subr.mxu0 0.0
  %6450 = vmatpush1.xpose.msra.mxu0 0.0
  %6451 = vmatprep.subr.mxu0 0.0
  %6452 = vmatpush1.xpose.msra.mxu0 0.0
  %6453 = vmatprep.subr.mxu0 0.0
  %6454 = vmatpush1.xpose.msra.mxu0 0.0
  %6455 = vmatprep.subr.mxu0 0.0
  %6456 = vmatpush1.xpose.msra.mxu0 0.0
  %6457 = vmatprep.subr.mxu0 0.0
  %6458 = vmatpush1.xpose.msra.mxu0 0.0
  %6459 = vmatprep.subr.mxu0 0.0
  %6460 = vmatpush1.xpose.msra.mxu0 0.0
  %6461 = vmatprep.subr.mxu0 0.0
  %6462 = vmatpush1.xpose.msra.mxu0 0.0
  %6463 = vmatprep.subr.mxu0 0.0
  %6464 = vmatpush1.xpose.msra.mxu0 0.0
  %6465 = vmatprep.subr.mxu0 0.0
  %6466 = vmatpush1.xpose.msra.mxu0 0.0
  %6467 = vmatprep.subr.mxu0 0.0
  %6468 = vmatpush1.xpose.msra.mxu0 0.0
  %6469 = vmatprep.subr.mxu0 0.0
  %6470 = vmatpush1.xpose.msra.mxu0 0.0
  %6471 = vmatprep.subr.mxu0 0.0
  %6472 = vmatpush1.xpose.msra.mxu0 0.0
  %6473 = vmatprep.subr.mxu0 0.0
  %6474 = vmatpush1.xpose.msra.mxu0 0.0
  %6475 = vmatprep.subr.mxu0 0.0
  %6476 = vmatpush1.xpose.msra.mxu0 0.0
  %6477 = vmatprep.subr.mxu0 0.0
  %6478 = vmatpush1.xpose.msra.mxu0 0.0
  %6479 = vmatprep.subr.mxu0 0.0
  %6480 = vmatpush1.xpose.msra.mxu0 0.0
  %6481 = vmatprep.subr.mxu0 0.0
  %6482 = vmatpush1.xpose.msra.mxu0 0.0
  %6483 = vmatprep.subr.mxu0 0.0
  %6484 = vmatpush1.xpose.msra.mxu0 0.0
  %6485 = vmatprep.subr.mxu0 0.0
  %6486 = vmatpush1.xpose.msra.mxu0 0.0
  %6487 = vmatprep.subr.mxu0 0.0
  %6488 = vmatpush1.xpose.msra.mxu0 0.0
  %6489 = vmatprep.subr.mxu0 0.0
  %6490 = vmatpush1.xpose.msra.mxu0 0.0
  %6491 = vmatprep.subr.mxu0 0.0
  %6492 = vmatpush1.xpose.msra.mxu0 0.0
  %6493 = vmatprep.subr.mxu0 0.0
  %6494 = vmatpush1.xpose.msra.mxu0 0.0
  %6495 = vmatprep.subr.mxu0 0.0
  %6496 = vmatpush1.xpose.msra.mxu0 0.0
  %6497 = vmatprep.mubr.f32.mxu0 %v6240
  %6498 = vmatmul.mubr.f32.gmra.mrb[0].mxu0 %v6233
  %v6499 = vpop.f32.mrb[0].mxu0
  %v6500 = vadd.f32 0.0, %v6499
  %v6501 = vpop.f32.mrb[0].mxu0
  %6502 = vdwg.mxu0
  %v6503 = vadd.f32 %v6171, %v6500
  %v6504 = vld [vmem:[%s12] sm:$0x1]
  %v6506 = vlaneseq
  %v6507 = vshrl.u32 %v6506, 7
  %v6508 = vsub.s32 0, %v6507
  %v6509 = vrot.slane %v6504, %v6508
  %v6511 = vadd.f32 %v6503, %v6509
  %v6512 = vmax.f32 %v6511, 0.0
  %v6513 = vld [vmem:[%s13] sm:$0xff]
  %v6514 = vld [vmem:[%s13 + $0x8] sm:$0xff]
  %v6515 = vld [vmem:[%s13 + $0x10] sm:$0xf]
  %v6516 = vld [vmem:[#allocation4] sm:$0x1]
  %v6518 = vlaneseq
  %v6519 = vshrl.u32 %v6518, 7
  %v6520 = vsub.s32 0, %v6519
  %v6521 = vrot.slane %v6516, %v6520
  %vm6523 = vcmask 162816
  %v6525 = vsel %vm6523, %v6512, 0
  %v6528 = vsel %vm124, %v6515, 0
  %6530 = vmatprep.subr.mxu0 0.0
  %6531 = vmatpush1.msra.mxu0 %v6513
  %6532 = vmatprep.subr.mxu0 0.0
  %6533 = vmatpush1.msra.mxu0 %v6514
  %6534 = vmatprep.subr.mxu0 0.0
  %6535 = vmatpush1.msra.mxu0 %v6528
  %6536 = vmatprep.subr.mxu0 0.0
  %6537 = vmatpush1.msra.mxu0 0.0
  %6538 = vmatprep.subr.mxu0 0.0
  %6539 = vmatpush1.msra.mxu0 0.0
  %6540 = vmatprep.subr.mxu0 0.0
  %6541 = vmatpush1.msra.mxu0 0.0
  %6542 = vmatprep.subr.mxu0 0.0
  %6543 = vmatpush1.msra.mxu0 0.0
  %6544 = vmatprep.subr.mxu0 0.0
  %6545 = vmatpush1.msra.mxu0 0.0
  %6546 = vmatprep.subr.mxu0 0.0
  %6547 = vmatpush1.msra.mxu0 0.0
  %6548 = vmatprep.subr.mxu0 0.0
  %6549 = vmatpush1.msra.mxu0 0.0
  %6550 = vmatprep.subr.mxu0 0.0
  %6551 = vmatpush1.msra.mxu0 0.0
  %6552 = vmatprep.subr.mxu0 0.0
  %6553 = vmatpush1.msra.mxu0 0.0
  %6554 = vmatprep.subr.mxu0 0.0
  %6555 = vmatpush1.msra.mxu0 0.0
  %6556 = vmatprep.subr.mxu0 0.0
  %6557 = vmatpush1.msra.mxu0 0.0
  %6558 = vmatprep.subr.mxu0 0.0
  %6559 = vmatpush1.msra.mxu0 0.0
  %6560 = vmatprep.subr.mxu0 0.0
  %6561 = vmatpush1.msra.mxu0 0.0
  %6562 = vmatprep.subr.mxu0 0.0
  %6563 = vmatpush1.msra.mxu0 0.0
  %6564 = vmatprep.subr.mxu0 0.0
  %6565 = vmatpush1.msra.mxu0 0.0
  %6566 = vmatprep.subr.mxu0 0.0
  %6567 = vmatpush1.msra.mxu0 0.0
  %6568 = vmatprep.subr.mxu0 0.0
  %6569 = vmatpush1.msra.mxu0 0.0
  %6570 = vmatprep.subr.mxu0 0.0
  %6571 = vmatpush1.msra.mxu0 0.0
  %6572 = vmatprep.subr.mxu0 0.0
  %6573 = vmatpush1.msra.mxu0 0.0
  %6574 = vmatprep.subr.mxu0 0.0
  %6575 = vmatpush1.msra.mxu0 0.0
  %6576 = vmatprep.subr.mxu0 0.0
  %6577 = vmatpush1.msra.mxu0 0.0
  %6578 = vmatprep.subr.mxu0 0.0
  %6579 = vmatpush1.msra.mxu0 0.0
  %6580 = vmatprep.subr.mxu0 0.0
  %6581 = vmatpush1.msra.mxu0 0.0
  %6582 = vmatprep.subr.mxu0 0.0
  %6583 = vmatpush1.msra.mxu0 0.0
  %6584 = vmatprep.subr.mxu0 0.0
  %6585 = vmatpush1.msra.mxu0 0.0
  %6586 = vmatprep.subr.mxu0 0.0
  %6587 = vmatpush1.msra.mxu0 0.0
  %6588 = vmatprep.subr.mxu0 0.0
  %6589 = vmatpush1.msra.mxu0 0.0
  %6590 = vmatprep.subr.mxu0 0.0
  %6591 = vmatpush1.msra.mxu0 0.0
  %6592 = vmatprep.subr.mxu0 0.0
  %6593 = vmatpush1.msra.mxu0 0.0
  %6594 = vmatprep.mubr.f32.mxu0 0.0
  %6595 = vmatmul.mubr.f32.gmra.mrb[0].mxu0 %v6525
  %v6596 = vpop.f32.mrb[0].mxu0
  %v6597 = vadd.f32 %v6521, %v6596
  %v6598 = vpop.f32.mrb[0].mxu0
  %6599 = vdwg.mxu0
  %vm6600 = vcmask 1024
  %6601 = vst.msk [vmem:[%s15] sm:$0x3] %vm6600, %v6597
  // Predicated region
  $region62: #{dft_forward.1} parent=0 // pred_check
    _
  $region63: #{dft_forward.1} parent=0 // pred_check_branch
    %6603 = sbr.rel (0) target = $region65
  $region64: #{dft_forward.1} parent=0 // pred_region
    _
  $region65: #{dft_forward.1} parent=0 // pred_fallthru
    _
  // Predicated region
  $region66: #{dft_forward.1} parent=0 // pred_check
    _
  $region67: #{dft_forward.1} parent=0 // pred_check_branch
    %6605 = sbr.rel (0) target = $region69
  $region68: #{dft_forward.1} parent=0 // pred_region
    _
  $region69: #{dft_forward.1} parent=0 // pred_fallthru
    _

</llo_original>
